<compile_context>
chip_gen: v6e
topology: v6e:2x2x1
jax: 0.10.0
libtpu: 0.0.40
codegen_flags: <defaults>
</compile_context>

<pallas_src>
import functools

import jax
import jax.numpy as jnp
from jax import lax
from jax.experimental import pallas as pl
from jax.experimental.pallas import tpu as pltpu

_EPS = 1e-5
_LANE = 128


def _round_up(x, m):
    return (x + m - 1) // m * m


def _vmem_limit_bytes():
    # v5e / v6e have 128 MiB physical VMEM -> allow large resident blocks.
    # v7x (64 MiB per TC) and unknown chips get a conservative 48 MiB.
    try:
        kind = jax.devices()[0].device_kind.lower()
    except Exception:
        kind = ""
    if "v5" in kind or "v6" in kind:
        return 100 * 1024 * 1024
    return 48 * 1024 * 1024


def _compiler_params():
    return pltpu.CompilerParams(
        dimension_semantics=("parallel",),        # batch samples are independent
        vmem_limit_bytes=_vmem_limit_bytes(),
    )


# --------------------------------------------------------------------------
# Fused conv kernel
# --------------------------------------------------------------------------

def _conv4x4_kernel(*refs, stride2, in_affine, add_bias, stats, slope,
                    in_slope, oh, ow, c2, cs, h_in, w_in):
    """One whole-sample 4x4 conv step.

    Optional prologue: apply the previous layer's deferred BN affine +
    LeakyReLU to the loaded slab (and re-zero the spatial padding exactly).
    Body: 8 (stride 2) / 16 (stride 1) unit-stride shifted matmuls, f32 acc.
    Optional epilogue: per-channel partial stats, bias add, LeakyReLU.
    """
    i = 0
    x_ref = refs[i]; i += 1
    w_ref = refs[i]; i += 1
    b_ref = None
    if add_bias:
        b_ref = refs[i]; i += 1
    sc_ref = sh_ref = None
    if in_affine:
        sc_ref = refs[i]; i += 1
        sh_ref = refs[i]; i += 1
    o_ref = refs[i]; i += 1
    if stats:
        sum_ref, sq_ref = refs[i], refs[i + 1]

    x = x_ref[0]                     # (H2e, 2, W2e, 2Cs) or (Hp, Wp, Cs), bf16

    if in_affine:
        # Deferred BatchNorm affine + LeakyReLU of the previous layer.  The
        # zero spatial padding must stay exactly zero, so re-mask the border
        # after the activation.
        a = x.astype(jnp.float32)
        shp = (1,) * (a.ndim - 1) + (c2,)
        a = a * sc_ref[...].reshape(shp) + sh_ref[...].reshape(shp)
        a = jnp.where(a >= 0, a, in_slope * a)
        if stride2:
            row = (2 * lax.broadcasted_iota(jnp.int32, a.shape, 0)
                   + lax.broadcasted_iota(jnp.int32, a.shape, 1))
            col = (2 * lax.broadcasted_iota(jnp.int32, a.shape, 2)
                   + (lax.broadcasted_iota(jnp.int32, a.shape, 3) >= cs)
                   .astype(jnp.int32))
        else:
            row = lax.broadcasted_iota(jnp.int32, a.shape, 0)
            col = lax.broadcasted_iota(jnp.int32, a.shape, 1)
        interior = (row >= 1) & (row <= h_in) & (col >= 1) & (col <= w_in)
        a = jnp.where(interior, a, 0.0)
        x = a.astype(jnp.bfloat16)

    # 4x4 conv as shifted unit-stride matmuls (MXU, f32 accumulation).
    acc = None
    if stride2:
        for kh in range(4):
            da, hr = kh // 2, kh % 2
            for db in range(2):
                lhs = x[da:da + oh, hr, db:db + ow, :].reshape(oh * ow, c2)
                t = jnp.dot(lhs, w_ref[kh, db],
                            preferred_element_type=jnp.float32)
                acc = t if acc is None else acc + t
    else:
        for kh in range(4):
            for kw in range(4):
                lhs = x[kh:kh + oh, kw:kw + ow, :].reshape(oh * ow, c2)
                t = jnp.dot(lhs, w_ref[kh, kw],
                            preferred_element_type=jnp.float32)
                acc = t if acc is None else acc + t

    if stats:
        # Per-channel partial batch statistics of the *pre-bias* conv output
        # (variance is bias-invariant; the bias cancels inside BatchNorm).
        sum_ref[0] = jnp.sum(acc, axis=0, keepdims=True)
        sq_ref[0] = jnp.sum(acc * acc, axis=0, keepdims=True)
    if add_bias:
        acc = acc + b_ref[...]
    if slope is not None:
        acc = jnp.where(acc >= 0, acc, slope * acc)
    o_ref[0] = acc.astype(o_ref.dtype)


# --------------------------------------------------------------------------
# Per-layer driver (JAX glue: free reshapes, weight repack, pallas_call)
# --------------------------------------------------------------------------

def _conv4x4_layer(h, w, b, *, stride, use_bn, slope,
                   in_scale, in_shift, in_slope, out_dtype):
    """Conv2d(k=4, pad=1, stride) with deferred-BN input affine.

    h: (N, H, W, Cs) bf16 NHWC as stored (Cs may include zero channel pad).
    Returns (out_nhwc, partial_sum, partial_sumsq).
    """
    n, hh, ww, cs = h.shape
    oc, ic = w.shape[0], w.shape[1]
    assert cs >= ic
    ocp = _round_up(oc, _LANE)
    oh = (hh + 2 - 4) // stride + 1
    ow = (ww + 2 - 4) // stride + 1
    m_out = oh * ow
    in_affine = in_scale is not None

    # ---- weights: (OC, IC, 4, 4) -> bf16, zero-pad IC -> Cs, OC -> OCp.
    wt = jnp.transpose(w, (2, 3, 1, 0))                    # (4, 4, IC, OC)
    wt = jnp.pad(wt, ((0, 0), (0, 0), (0, cs - ic), (0, ocp - oc)))
    if stride == 2:
        # kw = 2*db + dwp; merge (dwp, c) -> 2Cs to match the parity reshape.
        wk = wt.reshape(4, 2, 2, cs, ocp).reshape(4, 2, 2 * cs, ocp)
    else:
        wk = wt                                            # (4, 4, Cs, OCp)
    wk = wk.astype(jnp.bfloat16)

    # ---- input: zero spatial pad; for stride 2 fold (H, W) parity into the
    # channel dim with free NHWC reshapes so in-kernel slices are unit-stride.
    if stride == 2:
        h2e, w2e = oh + 1, ow + 1
        hp, wp = 2 * h2e, 2 * w2e
    else:
        hp, wp = hh + 2, ww + 2
    xp = jnp.pad(h, ((0, 0), (1, hp - hh - 1), (1, wp - ww - 1), (0, 0)))
    if stride == 2:
        xp = xp.reshape(n, h2e, 2, w2e, 2 * cs)
        x_block = (1, h2e, 2, w2e, 2 * cs)
        x_map = lambda i: (i, 0, 0, 0, 0)
        c2 = 2 * cs
    else:
        x_block = (1, hp, wp, cs)
        x_map = lambda i: (i, 0, 0, 0)
        c2 = cs

    inputs = [xp, wk]
    in_specs = [pl.BlockSpec(x_block, x_map),
                pl.BlockSpec(wk.shape, lambda i: (0,) * wk.ndim)]

    add_bias = not use_bn                 # bias cancels exactly under BatchNorm
    if add_bias:
        bp = jnp.pad(b, (0, ocp - oc)).reshape(1, ocp).astype(jnp.float32)
        inputs.append(bp)
        in_specs.append(pl.BlockSpec((1, ocp), lambda i: (0, 0)))
    if in_affine:
        if stride == 2:
            sc = jnp.concatenate([in_scale, in_scale]).reshape(1, c2)
            sh = jnp.concatenate([in_shift, in_shift]).reshape(1, c2)
        else:
            sc = in_scale.reshape(1, c2)
            sh = in_shift.reshape(1, c2)
        inputs += [sc.astype(jnp.float32), sh.astype(jnp.float32)]
        in_specs += [pl.BlockSpec((1, c2), lambda i: (0, 0)),
                     pl.BlockSpec((1, c2), lambda i: (0, 0))]

    out_shapes = [jax.ShapeDtypeStruct((n, m_out, ocp), out_dtype)]
    out_specs = [pl.BlockSpec((1, m_out, ocp), lambda i: (i, 0, 0))]
    if use_bn:
        out_shapes += [jax.ShapeDtypeStruct((n, 1, ocp), jnp.float32)] * 2
        out_specs += [pl.BlockSpec((1, 1, ocp), lambda i: (i, 0, 0)),
                      pl.BlockSpec((1, 1, ocp), lambda i: (i, 0, 0))]

    kernel = functools.partial(
        _conv4x4_kernel, stride2=(stride == 2), in_affine=in_affine,
        add_bias=add_bias, stats=use_bn, slope=slope, in_slope=in_slope,
        oh=oh, ow=ow, c2=c2, cs=cs, h_in=hh, w_in=ww)

    res = pl.pallas_call(
        kernel,
        out_shape=tuple(out_shapes),
        grid_spec=pl.GridSpec(grid=(n,), in_specs=in_specs,
                              out_specs=tuple(out_specs)),
        compiler_params=_compiler_params(),
    )(*inputs)

    out = res[0].reshape(n, oh, ow, ocp)
    if use_bn:
        return out, res[1], res[2]
    return out, None, None


# --------------------------------------------------------------------------
# Params + forward
# --------------------------------------------------------------------------

def init_patch_d_params(key, in_ch=2):
    """Deterministic init. PyTorch conv weight layout (OC, IC, KH, KW)."""
    layer_defs = [
        (in_ch, 64, 2, False, 0.2),
        (64, 128, 2, True, 0.2),
        (128, 256, 2, True, 0.2),
        (256, 1, 1, False, None),
    ]
    params = []
    for ic, oc, stride, use_bn, slope in layer_defs:
        key, kw_, kb_ = jax.random.split(key, 3)
        fan_in = ic * 16
        w = jax.random.normal(kw_, (oc, ic, 4, 4), jnp.float32) * (fan_in ** -0.5)
        b = jax.random.normal(kb_, (oc,), jnp.float32) * 0.01
        gamma = jnp.ones((oc,), jnp.float32)    # BatchNorm2d default affine init
        beta = jnp.zeros((oc,), jnp.float32)
        params.append(dict(w=w, b=b, gamma=gamma, beta=beta,
                           stride=stride, use_bn=use_bn, slope=slope))
    return params


def patch_d_forward(params, x, y):
    # x, y: NCHW f32; torch.cat([x, y], dim=1); NHWC bf16 internally.
    h = jnp.concatenate([x, y], axis=1)
    h = jnp.transpose(h, (0, 2, 3, 1)).astype(jnp.bfloat16)
    c0 = h.shape[-1]
    if c0 % 8:                        # lane-friendly channel pad for layer 1
        h = jnp.pad(h, ((0, 0), (0, 0), (0, 0), (0, 8 - c0 % 8)))

    pend_scale = pend_shift = pend_slope = None
    n_layers = len(params)
    for li, p in enumerate(params):
        is_last = li == n_layers - 1
        out_dtype = jnp.float32 if is_last else jnp.bfloat16
        out, psum, psq = _conv4x4_layer(
            h, p["w"], p["b"], stride=p["stride"], use_bn=p["use_bn"],
            slope=p["slope"], in_scale=pend_scale, in_shift=pend_shift,
            in_slope=pend_slope, out_dtype=out_dtype)

        if p["use_bn"]:
            # Combine per-sample partial sums into batch statistics and fold
            # (gamma, beta, mean, var) into a per-channel affine that the next
            # layer applies in-kernel.  The conv bias cancels exactly.
            oc = p["w"].shape[0]
            ocp = out.shape[-1]
            m_total = out.shape[0] * out.shape[1] * out.shape[2]
            s = jnp.sum(psum[:, 0, :], axis=0)
            sq = jnp.sum(psq[:, 0, :], axis=0)
            mean = s / m_total
            # NOTE: one-pass E[x^2] - mean^2 on the *pre-bias* conv (bias would
            # otherwise inflate the mean and worsen cancellation); clamped >= 0.
            var = jnp.maximum(sq / m_total - mean * mean, 0.0)
            g = jnp.pad(p["gamma"], (0, ocp - oc))     # padded channels -> 0
            be = jnp.pad(p["beta"], (0, ocp - oc))
            scale = g * lax.rsqrt(var + _EPS)
            shift = be - mean * scale
            pend_scale, pend_shift, pend_slope = scale, shift, p["slope"]
        else:
            pend_scale = pend_shift = pend_slope = None
        h = out

    out = h[..., :1]                                  # strip OC padding (OC=1)
    return jnp.transpose(out, (0, 3, 1, 2)).astype(jnp.float32)


if __name__ == "__main__":
    key = jax.random.PRNGKey(0)
    kx, ky, kp = jax.random.split(key, 3)

    # in_ch=2 total after concat -> x and y each have 1 channel.
    x = jax.random.normal(kx, (2, 1, 16, 16), jnp.float32)
    y = jax.random.normal(ky, (2, 1, 16, 16), jnp.float32)

    params = init_patch_d_params(kp, in_ch=2)

    fwd = jax.jit(lambda xx, yy: patch_d_forward(params, xx, yy))
    out = jax.block_until_ready(fwd(x, y))

    assert out.shape == (2, 1, 1, 1), out.shape
    assert out.dtype == jnp.float32
    assert bool(jnp.all(jnp.isfinite(out)))
    print("KERNEL_OK")
</pallas_src>

<mosaic_0001>
module attributes {stable_mosaic.version = 11 : i64} {
  func.func @_conv4x4_kernel(%arg0: i32, %arg1: memref<1x9x2x9x16xbf16, #tpu.memory_space<vmem>>, %arg2: memref<4x2x16x128xbf16, #tpu.memory_space<vmem>>, %arg3: memref<1x128xf32, #tpu.memory_space<vmem>>, %arg4: memref<1x64x128xbf16, #tpu.memory_space<vmem>>) attributes {dimension_semantics = [#tpu.dimension_semantics<parallel>], iteration_bounds = array<i64: 2>, scalar_prefetch = 0 : i64, scratch_operands = 0 : i64, tpu.core_type = #tpu.core_type<tc>, window_params = [{transform_indices = @transform_0, window_bounds = array<i64: 1, 9, 2, 9, 16>}, {pipeline_mode = #tpu.pipeline_mode<synchronous>, transform_indices = @transform_1, window_bounds = array<i64: 4, 2, 16, 128>}, {pipeline_mode = #tpu.pipeline_mode<synchronous>, transform_indices = @transform_2, window_bounds = array<i64: 1, 128>}, {transform_indices = @transform_3, window_bounds = array<i64: 1, 64, 128>}]} {
    %c0 = arith.constant 0 : index
    %c0_0 = arith.constant 0 : index
    %c0_1 = arith.constant 0 : index
    %c0_2 = arith.constant 0 : index
    %c0_3 = arith.constant 0 : index
    %0 = vector.load %arg1[%c0, %c0_0, %c0_1, %c0_2, %c0_3] : memref<1x9x2x9x16xbf16, #tpu.memory_space<vmem>>, vector<1x9x2x9x16xbf16>
    %1 = vector.shape_cast %0 : vector<1x9x2x9x16xbf16> to vector<9x2x9x16xbf16>
    %2 = vector.extract_strided_slice %1 {offsets = [0, 0, 0, 0], sizes = [8, 1, 8, 16], strides = [1, 1, 1, 1]} : vector<9x2x9x16xbf16> to vector<8x1x8x16xbf16>
    %3 = vector.shape_cast %2 : vector<8x1x8x16xbf16> to vector<8x8x16xbf16>
    %4 = vector.shape_cast %3 : vector<8x8x16xbf16> to vector<64x16xbf16>
    %c0_4 = arith.constant 0 : index
    %c0_5 = arith.constant 0 : index
    %c0_6 = arith.constant 0 : index
    %c0_7 = arith.constant 0 : index
    %5 = vector.load %arg2[%c0_4, %c0_5, %c0_6, %c0_7] : memref<4x2x16x128xbf16, #tpu.memory_space<vmem>>, vector<1x1x16x128xbf16>
    %6 = vector.shape_cast %5 : vector<1x1x16x128xbf16> to vector<16x128xbf16>
    %cst = arith.constant dense<0.000000e+00> : vector<64x128xf32>
    %7 = tpu.matmul %4, %6, %cst {dimension_numbers = #tpu.dot_dimension_numbers<[1], [0], [0], [1], [0, 0, 1, 1], [], []>} : vector<64x16xbf16>, vector<16x128xbf16>, vector<64x128xf32> -> vector<64x128xf32>
    %8 = vector.extract_strided_slice %1 {offsets = [0, 0, 1, 0], sizes = [8, 1, 8, 16], strides = [1, 1, 1, 1]} : vector<9x2x9x16xbf16> to vector<8x1x8x16xbf16>
    %9 = vector.shape_cast %8 : vector<8x1x8x16xbf16> to vector<8x8x16xbf16>
    %10 = vector.shape_cast %9 : vector<8x8x16xbf16> to vector<64x16xbf16>
    %c0_8 = arith.constant 0 : index
    %c1 = arith.constant 1 : index
    %c0_9 = arith.constant 0 : index
    %c0_10 = arith.constant 0 : index
    %11 = vector.load %arg2[%c0_8, %c1, %c0_9, %c0_10] : memref<4x2x16x128xbf16, #tpu.memory_space<vmem>>, vector<1x1x16x128xbf16>
    %12 = vector.shape_cast %11 : vector<1x1x16x128xbf16> to vector<16x128xbf16>
    %cst_11 = arith.constant dense<0.000000e+00> : vector<64x128xf32>
    %13 = tpu.matmul %10, %12, %cst_11 {dimension_numbers = #tpu.dot_dimension_numbers<[1], [0], [0], [1], [0, 0, 1, 1], [], []>} : vector<64x16xbf16>, vector<16x128xbf16>, vector<64x128xf32> -> vector<64x128xf32>
    %14 = arith.addf %7, %13 : vector<64x128xf32>
    %15 = vector.extract_strided_slice %1 {offsets = [0, 1, 0, 0], sizes = [8, 1, 8, 16], strides = [1, 1, 1, 1]} : vector<9x2x9x16xbf16> to vector<8x1x8x16xbf16>
    %16 = vector.shape_cast %15 : vector<8x1x8x16xbf16> to vector<8x8x16xbf16>
    %17 = vector.shape_cast %16 : vector<8x8x16xbf16> to vector<64x16xbf16>
    %c1_12 = arith.constant 1 : index
    %c0_13 = arith.constant 0 : index
    %c0_14 = arith.constant 0 : index
    %c0_15 = arith.constant 0 : index
    %18 = vector.load %arg2[%c1_12, %c0_13, %c0_14, %c0_15] : memref<4x2x16x128xbf16, #tpu.memory_space<vmem>>, vector<1x1x16x128xbf16>
    %19 = vector.shape_cast %18 : vector<1x1x16x128xbf16> to vector<16x128xbf16>
    %cst_16 = arith.constant dense<0.000000e+00> : vector<64x128xf32>
    %20 = tpu.matmul %17, %19, %cst_16 {dimension_numbers = #tpu.dot_dimension_numbers<[1], [0], [0], [1], [0, 0, 1, 1], [], []>} : vector<64x16xbf16>, vector<16x128xbf16>, vector<64x128xf32> -> vector<64x128xf32>
    %21 = arith.addf %14, %20 : vector<64x128xf32>
    %22 = vector.extract_strided_slice %1 {offsets = [0, 1, 1, 0], sizes = [8, 1, 8, 16], strides = [1, 1, 1, 1]} : vector<9x2x9x16xbf16> to vector<8x1x8x16xbf16>
    %23 = vector.shape_cast %22 : vector<8x1x8x16xbf16> to vector<8x8x16xbf16>
    %24 = vector.shape_cast %23 : vector<8x8x16xbf16> to vector<64x16xbf16>
    %c1_17 = arith.constant 1 : index
    %c1_18 = arith.constant 1 : index
    %c0_19 = arith.constant 0 : index
    %c0_20 = arith.constant 0 : index
    %25 = vector.load %arg2[%c1_17, %c1_18, %c0_19, %c0_20] : memref<4x2x16x128xbf16, #tpu.memory_space<vmem>>, vector<1x1x16x128xbf16>
    %26 = vector.shape_cast %25 : vector<1x1x16x128xbf16> to vector<16x128xbf16>
    %cst_21 = arith.constant dense<0.000000e+00> : vector<64x128xf32>
    %27 = tpu.matmul %24, %26, %cst_21 {dimension_numbers = #tpu.dot_dimension_numbers<[1], [0], [0], [1], [0, 0, 1, 1], [], []>} : vector<64x16xbf16>, vector<16x128xbf16>, vector<64x128xf32> -> vector<64x128xf32>
    %28 = arith.addf %21, %27 : vector<64x128xf32>
    %29 = vector.extract_strided_slice %1 {offsets = [1, 0, 0, 0], sizes = [8, 1, 8, 16], strides = [1, 1, 1, 1]} : vector<9x2x9x16xbf16> to vector<8x1x8x16xbf16>
    %30 = vector.shape_cast %29 : vector<8x1x8x16xbf16> to vector<8x8x16xbf16>
    %31 = vector.shape_cast %30 : vector<8x8x16xbf16> to vector<64x16xbf16>
    %c2 = arith.constant 2 : index
    %c0_22 = arith.constant 0 : index
    %c0_23 = arith.constant 0 : index
    %c0_24 = arith.constant 0 : index
    %32 = vector.load %arg2[%c2, %c0_22, %c0_23, %c0_24] : memref<4x2x16x128xbf16, #tpu.memory_space<vmem>>, vector<1x1x16x128xbf16>
    %33 = vector.shape_cast %32 : vector<1x1x16x128xbf16> to vector<16x128xbf16>
    %cst_25 = arith.constant dense<0.000000e+00> : vector<64x128xf32>
    %34 = tpu.matmul %31, %33, %cst_25 {dimension_numbers = #tpu.dot_dimension_numbers<[1], [0], [0], [1], [0, 0, 1, 1], [], []>} : vector<64x16xbf16>, vector<16x128xbf16>, vector<64x128xf32> -> vector<64x128xf32>
    %35 = arith.addf %28, %34 : vector<64x128xf32>
    %36 = vector.extract_strided_slice %1 {offsets = [1, 0, 1, 0], sizes = [8, 1, 8, 16], strides = [1, 1, 1, 1]} : vector<9x2x9x16xbf16> to vector<8x1x8x16xbf16>
    %37 = vector.shape_cast %36 : vector<8x1x8x16xbf16> to vector<8x8x16xbf16>
    %38 = vector.shape_cast %37 : vector<8x8x16xbf16> to vector<64x16xbf16>
    %c2_26 = arith.constant 2 : index
    %c1_27 = arith.constant 1 : index
    %c0_28 = arith.constant 0 : index
    %c0_29 = arith.constant 0 : index
    %39 = vector.load %arg2[%c2_26, %c1_27, %c0_28, %c0_29] : memref<4x2x16x128xbf16, #tpu.memory_space<vmem>>, vector<1x1x16x128xbf16>
    %40 = vector.shape_cast %39 : vector<1x1x16x128xbf16> to vector<16x128xbf16>
    %cst_30 = arith.constant dense<0.000000e+00> : vector<64x128xf32>
    %41 = tpu.matmul %38, %40, %cst_30 {dimension_numbers = #tpu.dot_dimension_numbers<[1], [0], [0], [1], [0, 0, 1, 1], [], []>} : vector<64x16xbf16>, vector<16x128xbf16>, vector<64x128xf32> -> vector<64x128xf32>
    %42 = arith.addf %35, %41 : vector<64x128xf32>
    %43 = vector.extract_strided_slice %1 {offsets = [1, 1, 0, 0], sizes = [8, 1, 8, 16], strides = [1, 1, 1, 1]} : vector<9x2x9x16xbf16> to vector<8x1x8x16xbf16>
    %44 = vector.shape_cast %43 : vector<8x1x8x16xbf16> to vector<8x8x16xbf16>
    %45 = vector.shape_cast %44 : vector<8x8x16xbf16> to vector<64x16xbf16>
    %c3 = arith.constant 3 : index
    %c0_31 = arith.constant 0 : index
    %c0_32 = arith.constant 0 : index
    %c0_33 = arith.constant 0 : index
    %46 = vector.load %arg2[%c3, %c0_31, %c0_32, %c0_33] : memref<4x2x16x128xbf16, #tpu.memory_space<vmem>>, vector<1x1x16x128xbf16>
    %47 = vector.shape_cast %46 : vector<1x1x16x128xbf16> to vector<16x128xbf16>
    %cst_34 = arith.constant dense<0.000000e+00> : vector<64x128xf32>
    %48 = tpu.matmul %45, %47, %cst_34 {dimension_numbers = #tpu.dot_dimension_numbers<[1], [0], [0], [1], [0, 0, 1, 1], [], []>} : vector<64x16xbf16>, vector<16x128xbf16>, vector<64x128xf32> -> vector<64x128xf32>
    %49 = arith.addf %42, %48 : vector<64x128xf32>
    %50 = vector.extract_strided_slice %1 {offsets = [1, 1, 1, 0], sizes = [8, 1, 8, 16], strides = [1, 1, 1, 1]} : vector<9x2x9x16xbf16> to vector<8x1x8x16xbf16>
    %51 = vector.shape_cast %50 : vector<8x1x8x16xbf16> to vector<8x8x16xbf16>
    %52 = vector.shape_cast %51 : vector<8x8x16xbf16> to vector<64x16xbf16>
    %c3_35 = arith.constant 3 : index
    %c1_36 = arith.constant 1 : index
    %c0_37 = arith.constant 0 : index
    %c0_38 = arith.constant 0 : index
    %53 = vector.load %arg2[%c3_35, %c1_36, %c0_37, %c0_38] : memref<4x2x16x128xbf16, #tpu.memory_space<vmem>>, vector<1x1x16x128xbf16>
    %54 = vector.shape_cast %53 : vector<1x1x16x128xbf16> to vector<16x128xbf16>
    %cst_39 = arith.constant dense<0.000000e+00> : vector<64x128xf32>
    %55 = tpu.matmul %52, %54, %cst_39 {dimension_numbers = #tpu.dot_dimension_numbers<[1], [0], [0], [1], [0, 0, 1, 1], [], []>} : vector<64x16xbf16>, vector<16x128xbf16>, vector<64x128xf32> -> vector<64x128xf32>
    %56 = arith.addf %49, %55 : vector<64x128xf32>
    %c0_40 = arith.constant 0 : index
    %c0_41 = arith.constant 0 : index
    %57 = vector.load %arg3[%c0_40, %c0_41] : memref<1x128xf32, #tpu.memory_space<vmem>>, vector<1x128xf32>
    %58 = vector.broadcast %57 : vector<1x128xf32> to vector<64x128xf32>
    %59 = arith.addf %56, %58 : vector<64x128xf32>
    %cst_42 = arith.constant 0.000000e+00 : f32
    %60 = vector.broadcast %cst_42 : f32 to vector<64x128xf32>
    %61 = arith.cmpf oge, %59, %60 : vector<64x128xf32>
    %cst_43 = arith.constant 2.000000e-01 : f32
    %62 = vector.broadcast %cst_43 : f32 to vector<64x128xf32>
    %63 = arith.mulf %62, %59 : vector<64x128xf32>
    %64 = arith.select %61, %59, %63 : vector<64x128xi1>, vector<64x128xf32>
    %65 = arith.truncf %64 : vector<64x128xf32> to vector<64x128xbf16>
    %c0_44 = arith.constant 0 : index
    %c0_45 = arith.constant 0 : index
    %c0_46 = arith.constant 0 : index
    %66 = vector.load %arg4[%c0_44, %c0_45, %c0_46] : memref<1x64x128xbf16, #tpu.memory_space<vmem>>, vector<1x64x128xbf16>
    %67 = vector.shape_cast %66 : vector<1x64x128xbf16> to vector<64x128xbf16>
    %68 = vector.shape_cast %65 : vector<64x128xbf16> to vector<1x64x128xbf16>
    tpu.vector_store %arg4[%c0_44, %c0_45, %c0_46], %68 {strides = array<i32>} : memref<1x64x128xbf16, #tpu.memory_space<vmem>>, vector<1x64x128xbf16>,
    return
  }
  func.func @transform_0(%arg0: i32) -> (i32, i32, i32, i32, i32) {
    %c0_i32 = arith.constant 0 : i32
    %c0_i32_0 = arith.constant 0 : i32
    %c0_i32_1 = arith.constant 0 : i32
    %c0_i32_2 = arith.constant 0 : i32
    %c0_i32_3 = arith.constant 0 : i32
    return %arg0, %c0_i32, %c0_i32_0, %c0_i32_1, %c0_i32_2 : i32, i32, i32, i32, i32
  }
  func.func @transform_1(%arg0: i32) -> (i32, i32, i32, i32) {
    %c0_i32 = arith.constant 0 : i32
    %c0_i32_0 = arith.constant 0 : i32
    %c0_i32_1 = arith.constant 0 : i32
    %c0_i32_2 = arith.constant 0 : i32
    %c0_i32_3 = arith.constant 0 : i32
    return %c0_i32, %c0_i32_0, %c0_i32_1, %c0_i32_2 : i32, i32, i32, i32
  }
  func.func @transform_2(%arg0: i32) -> (i32, i32) {
    %c0_i32 = arith.constant 0 : i32
    %c0_i32_0 = arith.constant 0 : i32
    %c0_i32_1 = arith.constant 0 : i32
    return %c0_i32, %c0_i32_0 : i32, i32
  }
  func.func @transform_3(%arg0: i32) -> (i32, i32, i32) {
    %c0_i32 = arith.constant 0 : i32
    %c0_i32_0 = arith.constant 0 : i32
    %c0_i32_1 = arith.constant 0 : i32
    return %arg0, %c0_i32, %c0_i32_0 : i32, i32, i32
  }
}

module attributes {stable_mosaic.version = 11 : i64} {
  func.func @_conv4x4_kernel(%arg0: i32, %arg1: memref<1x5x2x5x256xbf16, #tpu.memory_space<vmem>>, %arg2: memref<4x2x256x128xbf16, #tpu.memory_space<vmem>>, %arg3: memref<1x16x128xbf16, #tpu.memory_space<vmem>>, %arg4: memref<1x1x128xf32, #tpu.memory_space<vmem>>, %arg5: memref<1x1x128xf32, #tpu.memory_space<vmem>>) attributes {dimension_semantics = [#tpu.dimension_semantics<parallel>], iteration_bounds = array<i64: 2>, scalar_prefetch = 0 : i64, scratch_operands = 0 : i64, tpu.core_type = #tpu.core_type<tc>, window_params = [{transform_indices = @transform_0, window_bounds = array<i64: 1, 5, 2, 5, 256>}, {pipeline_mode = #tpu.pipeline_mode<synchronous>, transform_indices = @transform_1, window_bounds = array<i64: 4, 2, 256, 128>}, {transform_indices = @transform_2, window_bounds = array<i64: 1, 16, 128>}, {transform_indices = @transform_3, window_bounds = array<i64: 1, 1, 128>}, {transform_indices = @transform_4, window_bounds = array<i64: 1, 1, 128>}]} {
    %c0 = arith.constant 0 : index
    %c0_0 = arith.constant 0 : index
    %c0_1 = arith.constant 0 : index
    %c0_2 = arith.constant 0 : index
    %c0_3 = arith.constant 0 : index
    %0 = vector.load %arg1[%c0, %c0_0, %c0_1, %c0_2, %c0_3] : memref<1x5x2x5x256xbf16, #tpu.memory_space<vmem>>, vector<1x5x2x5x256xbf16>
    %1 = vector.shape_cast %0 : vector<1x5x2x5x256xbf16> to vector<5x2x5x256xbf16>
    %2 = vector.extract_strided_slice %1 {offsets = [0, 0, 0, 0], sizes = [4, 1, 4, 256], strides = [1, 1, 1, 1]} : vector<5x2x5x256xbf16> to vector<4x1x4x256xbf16>
    %3 = vector.shape_cast %2 : vector<4x1x4x256xbf16> to vector<4x4x256xbf16>
    %4 = vector.shape_cast %3 : vector<4x4x256xbf16> to vector<16x256xbf16>
    %c0_4 = arith.constant 0 : index
    %c0_5 = arith.constant 0 : index
    %c0_6 = arith.constant 0 : index
    %c0_7 = arith.constant 0 : index
    %5 = vector.load %arg2[%c0_4, %c0_5, %c0_6, %c0_7] : memref<4x2x256x128xbf16, #tpu.memory_space<vmem>>, vector<1x1x256x128xbf16>
    %6 = vector.shape_cast %5 : vector<1x1x256x128xbf16> to vector<256x128xbf16>
    %cst = arith.constant dense<0.000000e+00> : vector<16x128xf32>
    %7 = tpu.matmul %4, %6, %cst {dimension_numbers = #tpu.dot_dimension_numbers<[1], [0], [0], [1], [0, 0, 1, 1], [], []>} : vector<16x256xbf16>, vector<256x128xbf16>, vector<16x128xf32> -> vector<16x128xf32>
    %8 = vector.extract_strided_slice %1 {offsets = [0, 0, 1, 0], sizes = [4, 1, 4, 256], strides = [1, 1, 1, 1]} : vector<5x2x5x256xbf16> to vector<4x1x4x256xbf16>
    %9 = vector.shape_cast %8 : vector<4x1x4x256xbf16> to vector<4x4x256xbf16>
    %10 = vector.shape_cast %9 : vector<4x4x256xbf16> to vector<16x256xbf16>
    %c0_8 = arith.constant 0 : index
    %c1 = arith.constant 1 : index
    %c0_9 = arith.constant 0 : index
    %c0_10 = arith.constant 0 : index
    %11 = vector.load %arg2[%c0_8, %c1, %c0_9, %c0_10] : memref<4x2x256x128xbf16, #tpu.memory_space<vmem>>, vector<1x1x256x128xbf16>
    %12 = vector.shape_cast %11 : vector<1x1x256x128xbf16> to vector<256x128xbf16>
    %cst_11 = arith.constant dense<0.000000e+00> : vector<16x128xf32>
    %13 = tpu.matmul %10, %12, %cst_11 {dimension_numbers = #tpu.dot_dimension_numbers<[1], [0], [0], [1], [0, 0, 1, 1], [], []>} : vector<16x256xbf16>, vector<256x128xbf16>, vector<16x128xf32> -> vector<16x128xf32>
    %14 = arith.addf %7, %13 : vector<16x128xf32>
    %15 = vector.extract_strided_slice %1 {offsets = [0, 1, 0, 0], sizes = [4, 1, 4, 256], strides = [1, 1, 1, 1]} : vector<5x2x5x256xbf16> to vector<4x1x4x256xbf16>
    %16 = vector.shape_cast %15 : vector<4x1x4x256xbf16> to vector<4x4x256xbf16>
    %17 = vector.shape_cast %16 : vector<4x4x256xbf16> to vector<16x256xbf16>
    %c1_12 = arith.constant 1 : index
    %c0_13 = arith.constant 0 : index
    %c0_14 = arith.constant 0 : index
    %c0_15 = arith.constant 0 : index
    %18 = vector.load %arg2[%c1_12, %c0_13, %c0_14, %c0_15] : memref<4x2x256x128xbf16, #tpu.memory_space<vmem>>, vector<1x1x256x128xbf16>
    %19 = vector.shape_cast %18 : vector<1x1x256x128xbf16> to vector<256x128xbf16>
    %cst_16 = arith.constant dense<0.000000e+00> : vector<16x128xf32>
    %20 = tpu.matmul %17, %19, %cst_16 {dimension_numbers = #tpu.dot_dimension_numbers<[1], [0], [0], [1], [0, 0, 1, 1], [], []>} : vector<16x256xbf16>, vector<256x128xbf16>, vector<16x128xf32> -> vector<16x128xf32>
    %21 = arith.addf %14, %20 : vector<16x128xf32>
    %22 = vector.extract_strided_slice %1 {offsets = [0, 1, 1, 0], sizes = [4, 1, 4, 256], strides = [1, 1, 1, 1]} : vector<5x2x5x256xbf16> to vector<4x1x4x256xbf16>
    %23 = vector.shape_cast %22 : vector<4x1x4x256xbf16> to vector<4x4x256xbf16>
    %24 = vector.shape_cast %23 : vector<4x4x256xbf16> to vector<16x256xbf16>
    %c1_17 = arith.constant 1 : index
    %c1_18 = arith.constant 1 : index
    %c0_19 = arith.constant 0 : index
    %c0_20 = arith.constant 0 : index
    %25 = vector.load %arg2[%c1_17, %c1_18, %c0_19, %c0_20] : memref<4x2x256x128xbf16, #tpu.memory_space<vmem>>, vector<1x1x256x128xbf16>
    %26 = vector.shape_cast %25 : vector<1x1x256x128xbf16> to vector<256x128xbf16>
    %cst_21 = arith.constant dense<0.000000e+00> : vector<16x128xf32>
    %27 = tpu.matmul %24, %26, %cst_21 {dimension_numbers = #tpu.dot_dimension_numbers<[1], [0], [0], [1], [0, 0, 1, 1], [], []>} : vector<16x256xbf16>, vector<256x128xbf16>, vector<16x128xf32> -> vector<16x128xf32>
    %28 = arith.addf %21, %27 : vector<16x128xf32>
    %29 = vector.extract_strided_slice %1 {offsets = [1, 0, 0, 0], sizes = [4, 1, 4, 256], strides = [1, 1, 1, 1]} : vector<5x2x5x256xbf16> to vector<4x1x4x256xbf16>
    %30 = vector.shape_cast %29 : vector<4x1x4x256xbf16> to vector<4x4x256xbf16>
    %31 = vector.shape_cast %30 : vector<4x4x256xbf16> to vector<16x256xbf16>
    %c2 = arith.constant 2 : index
    %c0_22 = arith.constant 0 : index
    %c0_23 = arith.constant 0 : index
    %c0_24 = arith.constant 0 : index
    %32 = vector.load %arg2[%c2, %c0_22, %c0_23, %c0_24] : memref<4x2x256x128xbf16, #tpu.memory_space<vmem>>, vector<1x1x256x128xbf16>
    %33 = vector.shape_cast %32 : vector<1x1x256x128xbf16> to vector<256x128xbf16>
    %cst_25 = arith.constant dense<0.000000e+00> : vector<16x128xf32>
    %34 = tpu.matmul %31, %33, %cst_25 {dimension_numbers = #tpu.dot_dimension_numbers<[1], [0], [0], [1], [0, 0, 1, 1], [], []>} : vector<16x256xbf16>, vector<256x128xbf16>, vector<16x128xf32> -> vector<16x128xf32>
    %35 = arith.addf %28, %34 : vector<16x128xf32>
    %36 = vector.extract_strided_slice %1 {offsets = [1, 0, 1, 0], sizes = [4, 1, 4, 256], strides = [1, 1, 1, 1]} : vector<5x2x5x256xbf16> to vector<4x1x4x256xbf16>
    %37 = vector.shape_cast %36 : vector<4x1x4x256xbf16> to vector<4x4x256xbf16>
    %38 = vector.shape_cast %37 : vector<4x4x256xbf16> to vector<16x256xbf16>
    %c2_26 = arith.constant 2 : index
    %c1_27 = arith.constant 1 : index
    %c0_28 = arith.constant 0 : index
    %c0_29 = arith.constant 0 : index
    %39 = vector.load %arg2[%c2_26, %c1_27, %c0_28, %c0_29] : memref<4x2x256x128xbf16, #tpu.memory_space<vmem>>, vector<1x1x256x128xbf16>
    %40 = vector.shape_cast %39 : vector<1x1x256x128xbf16> to vector<256x128xbf16>
    %cst_30 = arith.constant dense<0.000000e+00> : vector<16x128xf32>
    %41 = tpu.matmul %38, %40, %cst_30 {dimension_numbers = #tpu.dot_dimension_numbers<[1], [0], [0], [1], [0, 0, 1, 1], [], []>} : vector<16x256xbf16>, vector<256x128xbf16>, vector<16x128xf32> -> vector<16x128xf32>
    %42 = arith.addf %35, %41 : vector<16x128xf32>
    %43 = vector.extract_strided_slice %1 {offsets = [1, 1, 0, 0], sizes = [4, 1, 4, 256], strides = [1, 1, 1, 1]} : vector<5x2x5x256xbf16> to vector<4x1x4x256xbf16>
    %44 = vector.shape_cast %43 : vector<4x1x4x256xbf16> to vector<4x4x256xbf16>
    %45 = vector.shape_cast %44 : vector<4x4x256xbf16> to vector<16x256xbf16>
    %c3 = arith.constant 3 : index
    %c0_31 = arith.constant 0 : index
    %c0_32 = arith.constant 0 : index
    %c0_33 = arith.constant 0 : index
    %46 = vector.load %arg2[%c3, %c0_31, %c0_32, %c0_33] : memref<4x2x256x128xbf16, #tpu.memory_space<vmem>>, vector<1x1x256x128xbf16>
    %47 = vector.shape_cast %46 : vector<1x1x256x128xbf16> to vector<256x128xbf16>
    %cst_34 = arith.constant dense<0.000000e+00> : vector<16x128xf32>
    %48 = tpu.matmul %45, %47, %cst_34 {dimension_numbers = #tpu.dot_dimension_numbers<[1], [0], [0], [1], [0, 0, 1, 1], [], []>} : vector<16x256xbf16>, vector<256x128xbf16>, vector<16x128xf32> -> vector<16x128xf32>
    %49 = arith.addf %42, %48 : vector<16x128xf32>
    %50 = vector.extract_strided_slice %1 {offsets = [1, 1, 1, 0], sizes = [4, 1, 4, 256], strides = [1, 1, 1, 1]} : vector<5x2x5x256xbf16> to vector<4x1x4x256xbf16>
    %51 = vector.shape_cast %50 : vector<4x1x4x256xbf16> to vector<4x4x256xbf16>
    %52 = vector.shape_cast %51 : vector<4x4x256xbf16> to vector<16x256xbf16>
    %c3_35 = arith.constant 3 : index
    %c1_36 = arith.constant 1 : index
    %c0_37 = arith.constant 0 : index
    %c0_38 = arith.constant 0 : index
    %53 = vector.load %arg2[%c3_35, %c1_36, %c0_37, %c0_38] : memref<4x2x256x128xbf16, #tpu.memory_space<vmem>>, vector<1x1x256x128xbf16>
    %54 = vector.shape_cast %53 : vector<1x1x256x128xbf16> to vector<256x128xbf16>
    %cst_39 = arith.constant dense<0.000000e+00> : vector<16x128xf32>
    %55 = tpu.matmul %52, %54, %cst_39 {dimension_numbers = #tpu.dot_dimension_numbers<[1], [0], [0], [1], [0, 0, 1, 1], [], []>} : vector<16x256xbf16>, vector<256x128xbf16>, vector<16x128xf32> -> vector<16x128xf32>
    %56 = arith.addf %49, %55 : vector<16x128xf32>
    %cst_40 = arith.constant dense<0.000000e+00> : vector<128xf32>
    %57 = vector.multi_reduction <add>, %56, %cst_40 [0] : vector<16x128xf32> to vector<128xf32>
    %58 = vector.shape_cast %57 : vector<128xf32> to vector<1x128xf32>
    %c0_41 = arith.constant 0 : index
    %c0_42 = arith.constant 0 : index
    %c0_43 = arith.constant 0 : index
    %59 = vector.load %arg4[%c0_41, %c0_42, %c0_43] : memref<1x1x128xf32, #tpu.memory_space<vmem>>, vector<1x1x128xf32>
    %60 = vector.shape_cast %59 : vector<1x1x128xf32> to vector<1x128xf32>
    %61 = vector.shape_cast %58 : vector<1x128xf32> to vector<1x1x128xf32>
    tpu.vector_store %arg4[%c0_41, %c0_42, %c0_43], %61 {strides = array<i32>} : memref<1x1x128xf32, #tpu.memory_space<vmem>>, vector<1x1x128xf32>,
    %62 = arith.mulf %56, %56 : vector<16x128xf32>
    %cst_44 = arith.constant dense<0.000000e+00> : vector<128xf32>
    %63 = vector.multi_reduction <add>, %62, %cst_44 [0] : vector<16x128xf32> to vector<128xf32>
    %64 = vector.shape_cast %63 : vector<128xf32> to vector<1x128xf32>
    %c0_45 = arith.constant 0 : index
    %c0_46 = arith.constant 0 : index
    %c0_47 = arith.constant 0 : index
    %65 = vector.load %arg5[%c0_45, %c0_46, %c0_47] : memref<1x1x128xf32, #tpu.memory_space<vmem>>, vector<1x1x128xf32>
    %66 = vector.shape_cast %65 : vector<1x1x128xf32> to vector<1x128xf32>
    %67 = vector.shape_cast %64 : vector<1x128xf32> to vector<1x1x128xf32>
    tpu.vector_store %arg5[%c0_45, %c0_46, %c0_47], %67 {strides = array<i32>} : memref<1x1x128xf32, #tpu.memory_space<vmem>>, vector<1x1x128xf32>,
    %cst_48 = arith.constant 0.000000e+00 : f32
    %68 = vector.broadcast %cst_48 : f32 to vector<16x128xf32>
    %69 = arith.cmpf oge, %56, %68 : vector<16x128xf32>
    %cst_49 = arith.constant 2.000000e-01 : f32
    %70 = vector.broadcast %cst_49 : f32 to vector<16x128xf32>
    %71 = arith.mulf %70, %56 : vector<16x128xf32>
    %72 = arith.select %69, %56, %71 : vector<16x128xi1>, vector<16x128xf32>
    %73 = arith.truncf %72 : vector<16x128xf32> to vector<16x128xbf16>
    %c0_50 = arith.constant 0 : index
    %c0_51 = arith.constant 0 : index
    %c0_52 = arith.constant 0 : index
    %74 = vector.load %arg3[%c0_50, %c0_51, %c0_52] : memref<1x16x128xbf16, #tpu.memory_space<vmem>>, vector<1x16x128xbf16>
    %75 = vector.shape_cast %74 : vector<1x16x128xbf16> to vector<16x128xbf16>
    %76 = vector.shape_cast %73 : vector<16x128xbf16> to vector<1x16x128xbf16>
    tpu.vector_store %arg3[%c0_50, %c0_51, %c0_52], %76 {strides = array<i32>} : memref<1x16x128xbf16, #tpu.memory_space<vmem>>, vector<1x16x128xbf16>,
    return
  }
  func.func @transform_0(%arg0: i32) -> (i32, i32, i32, i32, i32) {
    %c0_i32 = arith.constant 0 : i32
    %c0_i32_0 = arith.constant 0 : i32
    %c0_i32_1 = arith.constant 0 : i32
    %c0_i32_2 = arith.constant 0 : i32
    %c0_i32_3 = arith.constant 0 : i32
    return %arg0, %c0_i32, %c0_i32_0, %c0_i32_1, %c0_i32_2 : i32, i32, i32, i32, i32
  }
  func.func @transform_1(%arg0: i32) -> (i32, i32, i32, i32) {
    %c0_i32 = arith.constant 0 : i32
    %c0_i32_0 = arith.constant 0 : i32
    %c0_i32_1 = arith.constant 0 : i32
    %c0_i32_2 = arith.constant 0 : i32
    %c0_i32_3 = arith.constant 0 : i32
    return %c0_i32, %c0_i32_0, %c0_i32_1, %c0_i32_2 : i32, i32, i32, i32
  }
  func.func @transform_2(%arg0: i32) -> (i32, i32, i32) {
    %c0_i32 = arith.constant 0 : i32
    %c0_i32_0 = arith.constant 0 : i32
    %c0_i32_1 = arith.constant 0 : i32
    return %arg0, %c0_i32, %c0_i32_0 : i32, i32, i32
  }
  func.func @transform_3(%arg0: i32) -> (i32, i32, i32) {
    %c0_i32 = arith.constant 0 : i32
    %c0_i32_0 = arith.constant 0 : i32
    %c0_i32_1 = arith.constant 0 : i32
    return %arg0, %c0_i32, %c0_i32_0 : i32, i32, i32
  }
  func.func @transform_4(%arg0: i32) -> (i32, i32, i32) {
    %c0_i32 = arith.constant 0 : i32
    %c0_i32_0 = arith.constant 0 : i32
    %c0_i32_1 = arith.constant 0 : i32
    return %arg0, %c0_i32, %c0_i32_0 : i32, i32, i32
  }
}

module attributes {stable_mosaic.version = 11 : i64} {
  func.func @_conv4x4_kernel(%arg0: i32, %arg1: memref<1x3x2x3x256xbf16, #tpu.memory_space<vmem>>, %arg2: memref<4x2x256x256xbf16, #tpu.memory_space<vmem>>, %arg3: memref<1x256xf32, #tpu.memory_space<vmem>>, %arg4: memref<1x256xf32, #tpu.memory_space<vmem>>, %arg5: memref<1x4x256xbf16, #tpu.memory_space<vmem>>, %arg6: memref<1x1x256xf32, #tpu.memory_space<vmem>>, %arg7: memref<1x1x256xf32, #tpu.memory_space<vmem>>) attributes {dimension_semantics = [#tpu.dimension_semantics<parallel>], iteration_bounds = array<i64: 2>, scalar_prefetch = 0 : i64, scratch_operands = 0 : i64, tpu.core_type = #tpu.core_type<tc>, window_params = [{transform_indices = @transform_0, window_bounds = array<i64: 1, 3, 2, 3, 256>}, {pipeline_mode = #tpu.pipeline_mode<synchronous>, transform_indices = @transform_1, window_bounds = array<i64: 4, 2, 256, 256>}, {pipeline_mode = #tpu.pipeline_mode<synchronous>, transform_indices = @transform_2, window_bounds = array<i64: 1, 256>}, {pipeline_mode = #tpu.pipeline_mode<synchronous>, transform_indices = @transform_3, window_bounds = array<i64: 1, 256>}, {transform_indices = @transform_4, window_bounds = array<i64: 1, 4, 256>}, {transform_indices = @transform_5, window_bounds = array<i64: 1, 1, 256>}, {transform_indices = @transform_6, window_bounds = array<i64: 1, 1, 256>}]} {
    %c0 = arith.constant 0 : index
    %c0_0 = arith.constant 0 : index
    %c0_1 = arith.constant 0 : index
    %c0_2 = arith.constant 0 : index
    %c0_3 = arith.constant 0 : index
    %0 = vector.load %arg1[%c0, %c0_0, %c0_1, %c0_2, %c0_3] : memref<1x3x2x3x256xbf16, #tpu.memory_space<vmem>>, vector<1x3x2x3x256xbf16>
    %1 = vector.shape_cast %0 : vector<1x3x2x3x256xbf16> to vector<3x2x3x256xbf16>
    %2 = arith.extf %1 : vector<3x2x3x256xbf16> to vector<3x2x3x256xf32>
    %c0_4 = arith.constant 0 : index
    %c0_5 = arith.constant 0 : index
    %3 = vector.load %arg3[%c0_4, %c0_5] : memref<1x256xf32, #tpu.memory_space<vmem>>, vector<1x256xf32>
    %4 = vector.shape_cast %3 : vector<1x256xf32> to vector<1x1x1x256xf32>
    %5 = vector.broadcast %4 : vector<1x1x1x256xf32> to vector<3x2x3x256xf32>
    %6 = arith.mulf %2, %5 : vector<3x2x3x256xf32>
    %c0_6 = arith.constant 0 : index
    %c0_7 = arith.constant 0 : index
    %7 = vector.load %arg4[%c0_6, %c0_7] : memref<1x256xf32, #tpu.memory_space<vmem>>, vector<1x256xf32>
    %8 = vector.shape_cast %7 : vector<1x256xf32> to vector<1x1x1x256xf32>
    %9 = vector.broadcast %8 : vector<1x1x1x256xf32> to vector<3x2x3x256xf32>
    %10 = arith.addf %6, %9 : vector<3x2x3x256xf32>
    %cst = arith.constant 0.000000e+00 : f32
    %11 = vector.broadcast %cst : f32 to vector<3x2x3x256xf32>
    %12 = arith.cmpf oge, %10, %11 : vector<3x2x3x256xf32>
    %cst_8 = arith.constant 2.000000e-01 : f32
    %13 = vector.broadcast %cst_8 : f32 to vector<3x2x3x256xf32>
    %14 = arith.mulf %13, %10 : vector<3x2x3x256xf32>
    %15 = arith.select %12, %10, %14 : vector<3x2x3x256xi1>, vector<3x2x3x256xf32>
    %16 = tpu.iota {dimensions = array<i32: 0>} : vector<3x2x3x256xi32>
    %c2_i32 = arith.constant 2 : i32
    %17 = vector.broadcast %c2_i32 : i32 to vector<3x2x3x256xi32>
    %18 = arith.muli %17, %16 : vector<3x2x3x256xi32>
    %19 = tpu.iota {dimensions = array<i32: 1>} : vector<3x2x3x256xi32>
    %20 = arith.addi %18, %19 : vector<3x2x3x256xi32>
    %21 = tpu.iota {dimensions = array<i32: 2>} : vector<3x2x3x256xi32>
    %c2_i32_9 = arith.constant 2 : i32
    %22 = vector.broadcast %c2_i32_9 : i32 to vector<3x2x3x256xi32>
    %23 = arith.muli %22, %21 : vector<3x2x3x256xi32>
    %24 = tpu.iota {dimensions = array<i32: 3>} : vector<3x2x3x256xi32>
    %c128_i32 = arith.constant 128 : i32
    %25 = vector.broadcast %c128_i32 : i32 to vector<3x2x3x256xi32>
    %26 = arith.cmpi sge, %24, %25 : vector<3x2x3x256xi32>
    %27 = arith.extui %26 : vector<3x2x3x256xi1> to vector<3x2x3x256xi32>
    %28 = arith.addi %23, %27 : vector<3x2x3x256xi32>
    %c1_i32 = arith.constant 1 : i32
    %29 = vector.broadcast %c1_i32 : i32 to vector<3x2x3x256xi32>
    %30 = arith.cmpi sge, %20, %29 : vector<3x2x3x256xi32>
    %c4_i32 = arith.constant 4 : i32
    %31 = vector.broadcast %c4_i32 : i32 to vector<3x2x3x256xi32>
    %32 = arith.cmpi sle, %20, %31 : vector<3x2x3x256xi32>
    %33 = arith.andi %30, %32 : vector<3x2x3x256xi1>
    %c1_i32_10 = arith.constant 1 : i32
    %34 = vector.broadcast %c1_i32_10 : i32 to vector<3x2x3x256xi32>
    %35 = arith.cmpi sge, %28, %34 : vector<3x2x3x256xi32>
    %36 = arith.andi %33, %35 : vector<3x2x3x256xi1>
    %c4_i32_11 = arith.constant 4 : i32
    %37 = vector.broadcast %c4_i32_11 : i32 to vector<3x2x3x256xi32>
    %38 = arith.cmpi sle, %28, %37 : vector<3x2x3x256xi32>
    %39 = arith.andi %36, %38 : vector<3x2x3x256xi1>
    %cst_12 = arith.constant 0.000000e+00 : f32
    %40 = vector.broadcast %cst_12 : f32 to vector<3x2x3x256xf32>
    %41 = arith.select %39, %15, %40 : vector<3x2x3x256xi1>, vector<3x2x3x256xf32>
    %42 = arith.truncf %41 : vector<3x2x3x256xf32> to vector<3x2x3x256xbf16>
    %43 = vector.extract_strided_slice %42 {offsets = [0, 0, 0, 0], sizes = [2, 1, 2, 256], strides = [1, 1, 1, 1]} : vector<3x2x3x256xbf16> to vector<2x1x2x256xbf16>
    %44 = vector.shape_cast %43 : vector<2x1x2x256xbf16> to vector<2x2x256xbf16>
    %45 = vector.shape_cast %44 : vector<2x2x256xbf16> to vector<4x256xbf16>
    %c0_13 = arith.constant 0 : index
    %c0_14 = arith.constant 0 : index
    %c0_15 = arith.constant 0 : index
    %c0_16 = arith.constant 0 : index
    %46 = vector.load %arg2[%c0_13, %c0_14, %c0_15, %c0_16] : memref<4x2x256x256xbf16, #tpu.memory_space<vmem>>, vector<1x1x256x256xbf16>
    %47 = vector.shape_cast %46 : vector<1x1x256x256xbf16> to vector<256x256xbf16>
    %cst_17 = arith.constant dense<0.000000e+00> : vector<4x256xf32>
    %48 = tpu.matmul %45, %47, %cst_17 {dimension_numbers = #tpu.dot_dimension_numbers<[1], [0], [0], [1], [0, 0, 1, 1], [], []>} : vector<4x256xbf16>, vector<256x256xbf16>, vector<4x256xf32> -> vector<4x256xf32>
    %49 = vector.extract_strided_slice %42 {offsets = [0, 0, 1, 0], sizes = [2, 1, 2, 256], strides = [1, 1, 1, 1]} : vector<3x2x3x256xbf16> to vector<2x1x2x256xbf16>
    %50 = vector.shape_cast %49 : vector<2x1x2x256xbf16> to vector<2x2x256xbf16>
    %51 = vector.shape_cast %50 : vector<2x2x256xbf16> to vector<4x256xbf16>
    %c0_18 = arith.constant 0 : index
    %c1 = arith.constant 1 : index
    %c0_19 = arith.constant 0 : index
    %c0_20 = arith.constant 0 : index
    %52 = vector.load %arg2[%c0_18, %c1, %c0_19, %c0_20] : memref<4x2x256x256xbf16, #tpu.memory_space<vmem>>, vector<1x1x256x256xbf16>
    %53 = vector.shape_cast %52 : vector<1x1x256x256xbf16> to vector<256x256xbf16>
    %cst_21 = arith.constant dense<0.000000e+00> : vector<4x256xf32>
    %54 = tpu.matmul %51, %53, %cst_21 {dimension_numbers = #tpu.dot_dimension_numbers<[1], [0], [0], [1], [0, 0, 1, 1], [], []>} : vector<4x256xbf16>, vector<256x256xbf16>, vector<4x256xf32> -> vector<4x256xf32>
    %55 = arith.addf %48, %54 : vector<4x256xf32>
    %56 = vector.extract_strided_slice %42 {offsets = [0, 1, 0, 0], sizes = [2, 1, 2, 256], strides = [1, 1, 1, 1]} : vector<3x2x3x256xbf16> to vector<2x1x2x256xbf16>
    %57 = vector.shape_cast %56 : vector<2x1x2x256xbf16> to vector<2x2x256xbf16>
    %58 = vector.shape_cast %57 : vector<2x2x256xbf16> to vector<4x256xbf16>
    %c1_22 = arith.constant 1 : index
    %c0_23 = arith.constant 0 : index
    %c0_24 = arith.constant 0 : index
    %c0_25 = arith.constant 0 : index
    %59 = vector.load %arg2[%c1_22, %c0_23, %c0_24, %c0_25] : memref<4x2x256x256xbf16, #tpu.memory_space<vmem>>, vector<1x1x256x256xbf16>
    %60 = vector.shape_cast %59 : vector<1x1x256x256xbf16> to vector<256x256xbf16>
    %cst_26 = arith.constant dense<0.000000e+00> : vector<4x256xf32>
    %61 = tpu.matmul %58, %60, %cst_26 {dimension_numbers = #tpu.dot_dimension_numbers<[1], [0], [0], [1], [0, 0, 1, 1], [], []>} : vector<4x256xbf16>, vector<256x256xbf16>, vector<4x256xf32> -> vector<4x256xf32>
    %62 = arith.addf %55, %61 : vector<4x256xf32>
    %63 = vector.extract_strided_slice %42 {offsets = [0, 1, 1, 0], sizes = [2, 1, 2, 256], strides = [1, 1, 1, 1]} : vector<3x2x3x256xbf16> to vector<2x1x2x256xbf16>
    %64 = vector.shape_cast %63 : vector<2x1x2x256xbf16> to vector<2x2x256xbf16>
    %65 = vector.shape_cast %64 : vector<2x2x256xbf16> to vector<4x256xbf16>
    %c1_27 = arith.constant 1 : index
    %c1_28 = arith.constant 1 : index
    %c0_29 = arith.constant 0 : index
    %c0_30 = arith.constant 0 : index
    %66 = vector.load %arg2[%c1_27, %c1_28, %c0_29, %c0_30] : memref<4x2x256x256xbf16, #tpu.memory_space<vmem>>, vector<1x1x256x256xbf16>
    %67 = vector.shape_cast %66 : vector<1x1x256x256xbf16> to vector<256x256xbf16>
    %cst_31 = arith.constant dense<0.000000e+00> : vector<4x256xf32>
    %68 = tpu.matmul %65, %67, %cst_31 {dimension_numbers = #tpu.dot_dimension_numbers<[1], [0], [0], [1], [0, 0, 1, 1], [], []>} : vector<4x256xbf16>, vector<256x256xbf16>, vector<4x256xf32> -> vector<4x256xf32>
    %69 = arith.addf %62, %68 : vector<4x256xf32>
    %70 = vector.extract_strided_slice %42 {offsets = [1, 0, 0, 0], sizes = [2, 1, 2, 256], strides = [1, 1, 1, 1]} : vector<3x2x3x256xbf16> to vector<2x1x2x256xbf16>
    %71 = vector.shape_cast %70 : vector<2x1x2x256xbf16> to vector<2x2x256xbf16>
    %72 = vector.shape_cast %71 : vector<2x2x256xbf16> to vector<4x256xbf16>
    %c2 = arith.constant 2 : index
    %c0_32 = arith.constant 0 : index
    %c0_33 = arith.constant 0 : index
    %c0_34 = arith.constant 0 : index
    %73 = vector.load %arg2[%c2, %c0_32, %c0_33, %c0_34] : memref<4x2x256x256xbf16, #tpu.memory_space<vmem>>, vector<1x1x256x256xbf16>
    %74 = vector.shape_cast %73 : vector<1x1x256x256xbf16> to vector<256x256xbf16>
    %cst_35 = arith.constant dense<0.000000e+00> : vector<4x256xf32>
    %75 = tpu.matmul %72, %74, %cst_35 {dimension_numbers = #tpu.dot_dimension_numbers<[1], [0], [0], [1], [0, 0, 1, 1], [], []>} : vector<4x256xbf16>, vector<256x256xbf16>, vector<4x256xf32> -> vector<4x256xf32>
    %76 = arith.addf %69, %75 : vector<4x256xf32>
    %77 = vector.extract_strided_slice %42 {offsets = [1, 0, 1, 0], sizes = [2, 1, 2, 256], strides = [1, 1, 1, 1]} : vector<3x2x3x256xbf16> to vector<2x1x2x256xbf16>
    %78 = vector.shape_cast %77 : vector<2x1x2x256xbf16> to vector<2x2x256xbf16>
    %79 = vector.shape_cast %78 : vector<2x2x256xbf16> to vector<4x256xbf16>
    %c2_36 = arith.constant 2 : index
    %c1_37 = arith.constant 1 : index
    %c0_38 = arith.constant 0 : index
    %c0_39 = arith.constant 0 : index
    %80 = vector.load %arg2[%c2_36, %c1_37, %c0_38, %c0_39] : memref<4x2x256x256xbf16, #tpu.memory_space<vmem>>, vector<1x1x256x256xbf16>
    %81 = vector.shape_cast %80 : vector<1x1x256x256xbf16> to vector<256x256xbf16>
    %cst_40 = arith.constant dense<0.000000e+00> : vector<4x256xf32>
    %82 = tpu.matmul %79, %81, %cst_40 {dimension_numbers = #tpu.dot_dimension_numbers<[1], [0], [0], [1], [0, 0, 1, 1], [], []>} : vector<4x256xbf16>, vector<256x256xbf16>, vector<4x256xf32> -> vector<4x256xf32>
    %83 = arith.addf %76, %82 : vector<4x256xf32>
    %84 = vector.extract_strided_slice %42 {offsets = [1, 1, 0, 0], sizes = [2, 1, 2, 256], strides = [1, 1, 1, 1]} : vector<3x2x3x256xbf16> to vector<2x1x2x256xbf16>
    %85 = vector.shape_cast %84 : vector<2x1x2x256xbf16> to vector<2x2x256xbf16>
    %86 = vector.shape_cast %85 : vector<2x2x256xbf16> to vector<4x256xbf16>
    %c3 = arith.constant 3 : index
    %c0_41 = arith.constant 0 : index
    %c0_42 = arith.constant 0 : index
    %c0_43 = arith.constant 0 : index
    %87 = vector.load %arg2[%c3, %c0_41, %c0_42, %c0_43] : memref<4x2x256x256xbf16, #tpu.memory_space<vmem>>, vector<1x1x256x256xbf16>
    %88 = vector.shape_cast %87 : vector<1x1x256x256xbf16> to vector<256x256xbf16>
    %cst_44 = arith.constant dense<0.000000e+00> : vector<4x256xf32>
    %89 = tpu.matmul %86, %88, %cst_44 {dimension_numbers = #tpu.dot_dimension_numbers<[1], [0], [0], [1], [0, 0, 1, 1], [], []>} : vector<4x256xbf16>, vector<256x256xbf16>, vector<4x256xf32> -> vector<4x256xf32>
    %90 = arith.addf %83, %89 : vector<4x256xf32>
    %91 = vector.extract_strided_slice %42 {offsets = [1, 1, 1, 0], sizes = [2, 1, 2, 256], strides = [1, 1, 1, 1]} : vector<3x2x3x256xbf16> to vector<2x1x2x256xbf16>
    %92 = vector.shape_cast %91 : vector<2x1x2x256xbf16> to vector<2x2x256xbf16>
    %93 = vector.shape_cast %92 : vector<2x2x256xbf16> to vector<4x256xbf16>
    %c3_45 = arith.constant 3 : index
    %c1_46 = arith.constant 1 : index
    %c0_47 = arith.constant 0 : index
    %c0_48 = arith.constant 0 : index
    %94 = vector.load %arg2[%c3_45, %c1_46, %c0_47, %c0_48] : memref<4x2x256x256xbf16, #tpu.memory_space<vmem>>, vector<1x1x256x256xbf16>
    %95 = vector.shape_cast %94 : vector<1x1x256x256xbf16> to vector<256x256xbf16>
    %cst_49 = arith.constant dense<0.000000e+00> : vector<4x256xf32>
    %96 = tpu.matmul %93, %95, %cst_49 {dimension_numbers = #tpu.dot_dimension_numbers<[1], [0], [0], [1], [0, 0, 1, 1], [], []>} : vector<4x256xbf16>, vector<256x256xbf16>, vector<4x256xf32> -> vector<4x256xf32>
    %97 = arith.addf %90, %96 : vector<4x256xf32>
    %cst_50 = arith.constant dense<0.000000e+00> : vector<256xf32>
    %98 = vector.multi_reduction <add>, %97, %cst_50 [0] : vector<4x256xf32> to vector<256xf32>
    %99 = vector.shape_cast %98 : vector<256xf32> to vector<1x256xf32>
    %c0_51 = arith.constant 0 : index
    %c0_52 = arith.constant 0 : index
    %c0_53 = arith.constant 0 : index
    %100 = vector.load %arg6[%c0_51, %c0_52, %c0_53] : memref<1x1x256xf32, #tpu.memory_space<vmem>>, vector<1x1x256xf32>
    %101 = vector.shape_cast %100 : vector<1x1x256xf32> to vector<1x256xf32>
    %102 = vector.shape_cast %99 : vector<1x256xf32> to vector<1x1x256xf32>
    tpu.vector_store %arg6[%c0_51, %c0_52, %c0_53], %102 {strides = array<i32>} : memref<1x1x256xf32, #tpu.memory_space<vmem>>, vector<1x1x256xf32>,
    %103 = arith.mulf %97, %97 : vector<4x256xf32>
    %cst_54 = arith.constant dense<0.000000e+00> : vector<256xf32>
    %104 = vector.multi_reduction <add>, %103, %cst_54 [0] : vector<4x256xf32> to vector<256xf32>
    %105 = vector.shape_cast %104 : vector<256xf32> to vector<1x256xf32>
    %c0_55 = arith.constant 0 : index
    %c0_56 = arith.constant 0 : index
    %c0_57 = arith.constant 0 : index
    %106 = vector.load %arg7[%c0_55, %c0_56, %c0_57] : memref<1x1x256xf32, #tpu.memory_space<vmem>>, vector<1x1x256xf32>
    %107 = vector.shape_cast %106 : vector<1x1x256xf32> to vector<1x256xf32>
    %108 = vector.shape_cast %105 : vector<1x256xf32> to vector<1x1x256xf32>
    tpu.vector_store %arg7[%c0_55, %c0_56, %c0_57], %108 {strides = array<i32>} : memref<1x1x256xf32, #tpu.memory_space<vmem>>, vector<1x1x256xf32>,
    %cst_58 = arith.constant 0.000000e+00 : f32
    %109 = vector.broadcast %cst_58 : f32 to vector<4x256xf32>
    %110 = arith.cmpf oge, %97, %109 : vector<4x256xf32>
    %cst_59 = arith.constant 2.000000e-01 : f32
    %111 = vector.broadcast %cst_59 : f32 to vector<4x256xf32>
    %112 = arith.mulf %111, %97 : vector<4x256xf32>
    %113 = arith.select %110, %97, %112 : vector<4x256xi1>, vector<4x256xf32>
    %114 = arith.truncf %113 : vector<4x256xf32> to vector<4x256xbf16>
    %c0_60 = arith.constant 0 : index
    %c0_61 = arith.constant 0 : index
    %c0_62 = arith.constant 0 : index
    %115 = vector.load %arg5[%c0_60, %c0_61, %c0_62] : memref<1x4x256xbf16, #tpu.memory_space<vmem>>, vector<1x4x256xbf16>
    %116 = vector.shape_cast %115 : vector<1x4x256xbf16> to vector<4x256xbf16>
    %117 = vector.shape_cast %114 : vector<4x256xbf16> to vector<1x4x256xbf16>
    tpu.vector_store %arg5[%c0_60, %c0_61, %c0_62], %117 {strides = array<i32>} : memref<1x4x256xbf16, #tpu.memory_space<vmem>>, vector<1x4x256xbf16>,
    return
  }
  func.func @transform_0(%arg0: i32) -> (i32, i32, i32, i32, i32) {
    %c0_i32 = arith.constant 0 : i32
    %c0_i32_0 = arith.constant 0 : i32
    %c0_i32_1 = arith.constant 0 : i32
    %c0_i32_2 = arith.constant 0 : i32
    %c0_i32_3 = arith.constant 0 : i32
    return %arg0, %c0_i32, %c0_i32_0, %c0_i32_1, %c0_i32_2 : i32, i32, i32, i32, i32
  }
  func.func @transform_1(%arg0: i32) -> (i32, i32, i32, i32) {
    %c0_i32 = arith.constant 0 : i32
    %c0_i32_0 = arith.constant 0 : i32
    %c0_i32_1 = arith.constant 0 : i32
    %c0_i32_2 = arith.constant 0 : i32
    %c0_i32_3 = arith.constant 0 : i32
    return %c0_i32, %c0_i32_0, %c0_i32_1, %c0_i32_2 : i32, i32, i32, i32
  }
  func.func @transform_2(%arg0: i32) -> (i32, i32) {
    %c0_i32 = arith.constant 0 : i32
    %c0_i32_0 = arith.constant 0 : i32
    %c0_i32_1 = arith.constant 0 : i32
    return %c0_i32, %c0_i32_0 : i32, i32
  }
  func.func @transform_3(%arg0: i32) -> (i32, i32) {
    %c0_i32 = arith.constant 0 : i32
    %c0_i32_0 = arith.constant 0 : i32
    %c0_i32_1 = arith.constant 0 : i32
    return %c0_i32, %c0_i32_0 : i32, i32
  }
  func.func @transform_4(%arg0: i32) -> (i32, i32, i32) {
    %c0_i32 = arith.constant 0 : i32
    %c0_i32_0 = arith.constant 0 : i32
    %c0_i32_1 = arith.constant 0 : i32
    return %arg0, %c0_i32, %c0_i32_0 : i32, i32, i32
  }
  func.func @transform_5(%arg0: i32) -> (i32, i32, i32) {
    %c0_i32 = arith.constant 0 : i32
    %c0_i32_0 = arith.constant 0 : i32
    %c0_i32_1 = arith.constant 0 : i32
    return %arg0, %c0_i32, %c0_i32_0 : i32, i32, i32
  }
  func.func @transform_6(%arg0: i32) -> (i32, i32, i32) {
    %c0_i32 = arith.constant 0 : i32
    %c0_i32_0 = arith.constant 0 : i32
    %c0_i32_1 = arith.constant 0 : i32
    return %arg0, %c0_i32, %c0_i32_0 : i32, i32, i32
  }
}

module attributes {stable_mosaic.version = 11 : i64} {
  func.func @_conv4x4_kernel(%arg0: i32, %arg1: memref<1x4x4x256xbf16, #tpu.memory_space<vmem>>, %arg2: memref<4x4x256x128xbf16, #tpu.memory_space<vmem>>, %arg3: memref<1x128xf32, #tpu.memory_space<vmem>>, %arg4: memref<1x256xf32, #tpu.memory_space<vmem>>, %arg5: memref<1x256xf32, #tpu.memory_space<vmem>>, %arg6: memref<1x1x128xf32, #tpu.memory_space<vmem>>) attributes {dimension_semantics = [#tpu.dimension_semantics<parallel>], iteration_bounds = array<i64: 2>, scalar_prefetch = 0 : i64, scratch_operands = 0 : i64, tpu.core_type = #tpu.core_type<tc>, window_params = [{transform_indices = @transform_0, window_bounds = array<i64: 1, 4, 4, 256>}, {pipeline_mode = #tpu.pipeline_mode<synchronous>, transform_indices = @transform_1, window_bounds = array<i64: 4, 4, 256, 128>}, {pipeline_mode = #tpu.pipeline_mode<synchronous>, transform_indices = @transform_2, window_bounds = array<i64: 1, 128>}, {pipeline_mode = #tpu.pipeline_mode<synchronous>, transform_indices = @transform_3, window_bounds = array<i64: 1, 256>}, {pipeline_mode = #tpu.pipeline_mode<synchronous>, transform_indices = @transform_4, window_bounds = array<i64: 1, 256>}, {transform_indices = @transform_5, window_bounds = array<i64: 1, 1, 128>}]} {
    %c0 = arith.constant 0 : index
    %c0_0 = arith.constant 0 : index
    %c0_1 = arith.constant 0 : index
    %c0_2 = arith.constant 0 : index
    %0 = vector.load %arg1[%c0, %c0_0, %c0_1, %c0_2] : memref<1x4x4x256xbf16, #tpu.memory_space<vmem>>, vector<1x4x4x256xbf16>
    %1 = vector.shape_cast %0 : vector<1x4x4x256xbf16> to vector<4x4x256xbf16>
    %2 = arith.extf %1 : vector<4x4x256xbf16> to vector<4x4x256xf32>
    %c0_3 = arith.constant 0 : index
    %c0_4 = arith.constant 0 : index
    %3 = vector.load %arg4[%c0_3, %c0_4] : memref<1x256xf32, #tpu.memory_space<vmem>>, vector<1x256xf32>
    %4 = vector.shape_cast %3 : vector<1x256xf32> to vector<1x1x256xf32>
    %5 = vector.broadcast %4 : vector<1x1x256xf32> to vector<4x4x256xf32>
    %6 = arith.mulf %2, %5 : vector<4x4x256xf32>
    %c0_5 = arith.constant 0 : index
    %c0_6 = arith.constant 0 : index
    %7 = vector.load %arg5[%c0_5, %c0_6] : memref<1x256xf32, #tpu.memory_space<vmem>>, vector<1x256xf32>
    %8 = vector.shape_cast %7 : vector<1x256xf32> to vector<1x1x256xf32>
    %9 = vector.broadcast %8 : vector<1x1x256xf32> to vector<4x4x256xf32>
    %10 = arith.addf %6, %9 : vector<4x4x256xf32>
    %cst = arith.constant 0.000000e+00 : f32
    %11 = vector.broadcast %cst : f32 to vector<4x4x256xf32>
    %12 = arith.cmpf oge, %10, %11 : vector<4x4x256xf32>
    %cst_7 = arith.constant 2.000000e-01 : f32
    %13 = vector.broadcast %cst_7 : f32 to vector<4x4x256xf32>
    %14 = arith.mulf %13, %10 : vector<4x4x256xf32>
    %15 = arith.select %12, %10, %14 : vector<4x4x256xi1>, vector<4x4x256xf32>
    %16 = tpu.iota {dimensions = array<i32: 0>} : vector<4x4x256xi32>
    %17 = tpu.iota {dimensions = array<i32: 1>} : vector<4x4x256xi32>
    %c1_i32 = arith.constant 1 : i32
    %18 = vector.broadcast %c1_i32 : i32 to vector<4x4x256xi32>
    %19 = arith.cmpi sge, %16, %18 : vector<4x4x256xi32>
    %c2_i32 = arith.constant 2 : i32
    %20 = vector.broadcast %c2_i32 : i32 to vector<4x4x256xi32>
    %21 = arith.cmpi sle, %16, %20 : vector<4x4x256xi32>
    %22 = arith.andi %19, %21 : vector<4x4x256xi1>
    %c1_i32_8 = arith.constant 1 : i32
    %23 = vector.broadcast %c1_i32_8 : i32 to vector<4x4x256xi32>
    %24 = arith.cmpi sge, %17, %23 : vector<4x4x256xi32>
    %25 = arith.andi %22, %24 : vector<4x4x256xi1>
    %c2_i32_9 = arith.constant 2 : i32
    %26 = vector.broadcast %c2_i32_9 : i32 to vector<4x4x256xi32>
    %27 = arith.cmpi sle, %17, %26 : vector<4x4x256xi32>
    %28 = arith.andi %25, %27 : vector<4x4x256xi1>
    %cst_10 = arith.constant 0.000000e+00 : f32
    %29 = vector.broadcast %cst_10 : f32 to vector<4x4x256xf32>
    %30 = arith.select %28, %15, %29 : vector<4x4x256xi1>, vector<4x4x256xf32>
    %31 = arith.truncf %30 : vector<4x4x256xf32> to vector<4x4x256xbf16>
    %32 = vector.extract_strided_slice %31 {offsets = [0, 0, 0], sizes = [1, 1, 256], strides = [1, 1, 1]} : vector<4x4x256xbf16> to vector<1x1x256xbf16>
    %33 = vector.shape_cast %32 : vector<1x1x256xbf16> to vector<1x256xbf16>
    %c0_11 = arith.constant 0 : index
    %c0_12 = arith.constant 0 : index
    %c0_13 = arith.constant 0 : index
    %c0_14 = arith.constant 0 : index
    %34 = vector.load %arg2[%c0_11, %c0_12, %c0_13, %c0_14] : memref<4x4x256x128xbf16, #tpu.memory_space<vmem>>, vector<1x1x256x128xbf16>
    %35 = vector.shape_cast %34 : vector<1x1x256x128xbf16> to vector<256x128xbf16>
    %cst_15 = arith.constant dense<0.000000e+00> : vector<1x128xf32>
    %36 = tpu.matmul %33, %35, %cst_15 {dimension_numbers = #tpu.dot_dimension_numbers<[1], [0], [0], [1], [0, 0, 1, 1], [], []>} : vector<1x256xbf16>, vector<256x128xbf16>, vector<1x128xf32> -> vector<1x128xf32>
    %37 = vector.extract_strided_slice %31 {offsets = [0, 1, 0], sizes = [1, 1, 256], strides = [1, 1, 1]} : vector<4x4x256xbf16> to vector<1x1x256xbf16>
    %38 = vector.shape_cast %37 : vector<1x1x256xbf16> to vector<1x256xbf16>
    %c0_16 = arith.constant 0 : index
    %c1 = arith.constant 1 : index
    %c0_17 = arith.constant 0 : index
    %c0_18 = arith.constant 0 : index
    %39 = vector.load %arg2[%c0_16, %c1, %c0_17, %c0_18] : memref<4x4x256x128xbf16, #tpu.memory_space<vmem>>, vector<1x1x256x128xbf16>
    %40 = vector.shape_cast %39 : vector<1x1x256x128xbf16> to vector<256x128xbf16>
    %cst_19 = arith.constant dense<0.000000e+00> : vector<1x128xf32>
    %41 = tpu.matmul %38, %40, %cst_19 {dimension_numbers = #tpu.dot_dimension_numbers<[1], [0], [0], [1], [0, 0, 1, 1], [], []>} : vector<1x256xbf16>, vector<256x128xbf16>, vector<1x128xf32> -> vector<1x128xf32>
    %42 = arith.addf %36, %41 : vector<1x128xf32>
    %43 = vector.extract_strided_slice %31 {offsets = [0, 2, 0], sizes = [1, 1, 256], strides = [1, 1, 1]} : vector<4x4x256xbf16> to vector<1x1x256xbf16>
    %44 = vector.shape_cast %43 : vector<1x1x256xbf16> to vector<1x256xbf16>
    %c0_20 = arith.constant 0 : index
    %c2 = arith.constant 2 : index
    %c0_21 = arith.constant 0 : index
    %c0_22 = arith.constant 0 : index
    %45 = vector.load %arg2[%c0_20, %c2, %c0_21, %c0_22] : memref<4x4x256x128xbf16, #tpu.memory_space<vmem>>, vector<1x1x256x128xbf16>
    %46 = vector.shape_cast %45 : vector<1x1x256x128xbf16> to vector<256x128xbf16>
    %cst_23 = arith.constant dense<0.000000e+00> : vector<1x128xf32>
    %47 = tpu.matmul %44, %46, %cst_23 {dimension_numbers = #tpu.dot_dimension_numbers<[1], [0], [0], [1], [0, 0, 1, 1], [], []>} : vector<1x256xbf16>, vector<256x128xbf16>, vector<1x128xf32> -> vector<1x128xf32>
    %48 = arith.addf %42, %47 : vector<1x128xf32>
    %49 = vector.extract_strided_slice %31 {offsets = [0, 3, 0], sizes = [1, 1, 256], strides = [1, 1, 1]} : vector<4x4x256xbf16> to vector<1x1x256xbf16>
    %50 = vector.shape_cast %49 : vector<1x1x256xbf16> to vector<1x256xbf16>
    %c0_24 = arith.constant 0 : index
    %c3 = arith.constant 3 : index
    %c0_25 = arith.constant 0 : index
    %c0_26 = arith.constant 0 : index
    %51 = vector.load %arg2[%c0_24, %c3, %c0_25, %c0_26] : memref<4x4x256x128xbf16, #tpu.memory_space<vmem>>, vector<1x1x256x128xbf16>
    %52 = vector.shape_cast %51 : vector<1x1x256x128xbf16> to vector<256x128xbf16>
    %cst_27 = arith.constant dense<0.000000e+00> : vector<1x128xf32>
    %53 = tpu.matmul %50, %52, %cst_27 {dimension_numbers = #tpu.dot_dimension_numbers<[1], [0], [0], [1], [0, 0, 1, 1], [], []>} : vector<1x256xbf16>, vector<256x128xbf16>, vector<1x128xf32> -> vector<1x128xf32>
    %54 = arith.addf %48, %53 : vector<1x128xf32>
    %55 = vector.extract_strided_slice %31 {offsets = [1, 0, 0], sizes = [1, 1, 256], strides = [1, 1, 1]} : vector<4x4x256xbf16> to vector<1x1x256xbf16>
    %56 = vector.shape_cast %55 : vector<1x1x256xbf16> to vector<1x256xbf16>
    %c1_28 = arith.constant 1 : index
    %c0_29 = arith.constant 0 : index
    %c0_30 = arith.constant 0 : index
    %c0_31 = arith.constant 0 : index
    %57 = vector.load %arg2[%c1_28, %c0_29, %c0_30, %c0_31] : memref<4x4x256x128xbf16, #tpu.memory_space<vmem>>, vector<1x1x256x128xbf16>
    %58 = vector.shape_cast %57 : vector<1x1x256x128xbf16> to vector<256x128xbf16>
    %cst_32 = arith.constant dense<0.000000e+00> : vector<1x128xf32>
    %59 = tpu.matmul %56, %58, %cst_32 {dimension_numbers = #tpu.dot_dimension_numbers<[1], [0], [0], [1], [0, 0, 1, 1], [], []>} : vector<1x256xbf16>, vector<256x128xbf16>, vector<1x128xf32> -> vector<1x128xf32>
    %60 = arith.addf %54, %59 : vector<1x128xf32>
    %61 = vector.extract_strided_slice %31 {offsets = [1, 1, 0], sizes = [1, 1, 256], strides = [1, 1, 1]} : vector<4x4x256xbf16> to vector<1x1x256xbf16>
    %62 = vector.shape_cast %61 : vector<1x1x256xbf16> to vector<1x256xbf16>
    %c1_33 = arith.constant 1 : index
    %c1_34 = arith.constant 1 : index
    %c0_35 = arith.constant 0 : index
    %c0_36 = arith.constant 0 : index
    %63 = vector.load %arg2[%c1_33, %c1_34, %c0_35, %c0_36] : memref<4x4x256x128xbf16, #tpu.memory_space<vmem>>, vector<1x1x256x128xbf16>
    %64 = vector.shape_cast %63 : vector<1x1x256x128xbf16> to vector<256x128xbf16>
    %cst_37 = arith.constant dense<0.000000e+00> : vector<1x128xf32>
    %65 = tpu.matmul %62, %64, %cst_37 {dimension_numbers = #tpu.dot_dimension_numbers<[1], [0], [0], [1], [0, 0, 1, 1], [], []>} : vector<1x256xbf16>, vector<256x128xbf16>, vector<1x128xf32> -> vector<1x128xf32>
    %66 = arith.addf %60, %65 : vector<1x128xf32>
    %67 = vector.extract_strided_slice %31 {offsets = [1, 2, 0], sizes = [1, 1, 256], strides = [1, 1, 1]} : vector<4x4x256xbf16> to vector<1x1x256xbf16>
    %68 = vector.shape_cast %67 : vector<1x1x256xbf16> to vector<1x256xbf16>
    %c1_38 = arith.constant 1 : index
    %c2_39 = arith.constant 2 : index
    %c0_40 = arith.constant 0 : index
    %c0_41 = arith.constant 0 : index
    %69 = vector.load %arg2[%c1_38, %c2_39, %c0_40, %c0_41] : memref<4x4x256x128xbf16, #tpu.memory_space<vmem>>, vector<1x1x256x128xbf16>
    %70 = vector.shape_cast %69 : vector<1x1x256x128xbf16> to vector<256x128xbf16>
    %cst_42 = arith.constant dense<0.000000e+00> : vector<1x128xf32>
    %71 = tpu.matmul %68, %70, %cst_42 {dimension_numbers = #tpu.dot_dimension_numbers<[1], [0], [0], [1], [0, 0, 1, 1], [], []>} : vector<1x256xbf16>, vector<256x128xbf16>, vector<1x128xf32> -> vector<1x128xf32>
    %72 = arith.addf %66, %71 : vector<1x128xf32>
    %73 = vector.extract_strided_slice %31 {offsets = [1, 3, 0], sizes = [1, 1, 256], strides = [1, 1, 1]} : vector<4x4x256xbf16> to vector<1x1x256xbf16>
    %74 = vector.shape_cast %73 : vector<1x1x256xbf16> to vector<1x256xbf16>
    %c1_43 = arith.constant 1 : index
    %c3_44 = arith.constant 3 : index
    %c0_45 = arith.constant 0 : index
    %c0_46 = arith.constant 0 : index
    %75 = vector.load %arg2[%c1_43, %c3_44, %c0_45, %c0_46] : memref<4x4x256x128xbf16, #tpu.memory_space<vmem>>, vector<1x1x256x128xbf16>
    %76 = vector.shape_cast %75 : vector<1x1x256x128xbf16> to vector<256x128xbf16>
    %cst_47 = arith.constant dense<0.000000e+00> : vector<1x128xf32>
    %77 = tpu.matmul %74, %76, %cst_47 {dimension_numbers = #tpu.dot_dimension_numbers<[1], [0], [0], [1], [0, 0, 1, 1], [], []>} : vector<1x256xbf16>, vector<256x128xbf16>, vector<1x128xf32> -> vector<1x128xf32>
    %78 = arith.addf %72, %77 : vector<1x128xf32>
    %79 = vector.extract_strided_slice %31 {offsets = [2, 0, 0], sizes = [1, 1, 256], strides = [1, 1, 1]} : vector<4x4x256xbf16> to vector<1x1x256xbf16>
    %80 = vector.shape_cast %79 : vector<1x1x256xbf16> to vector<1x256xbf16>
    %c2_48 = arith.constant 2 : index
    %c0_49 = arith.constant 0 : index
    %c0_50 = arith.constant 0 : index
    %c0_51 = arith.constant 0 : index
    %81 = vector.load %arg2[%c2_48, %c0_49, %c0_50, %c0_51] : memref<4x4x256x128xbf16, #tpu.memory_space<vmem>>, vector<1x1x256x128xbf16>
    %82 = vector.shape_cast %81 : vector<1x1x256x128xbf16> to vector<256x128xbf16>
    %cst_52 = arith.constant dense<0.000000e+00> : vector<1x128xf32>
    %83 = tpu.matmul %80, %82, %cst_52 {dimension_numbers = #tpu.dot_dimension_numbers<[1], [0], [0], [1], [0, 0, 1, 1], [], []>} : vector<1x256xbf16>, vector<256x128xbf16>, vector<1x128xf32> -> vector<1x128xf32>
    %84 = arith.addf %78, %83 : vector<1x128xf32>
    %85 = vector.extract_strided_slice %31 {offsets = [2, 1, 0], sizes = [1, 1, 256], strides = [1, 1, 1]} : vector<4x4x256xbf16> to vector<1x1x256xbf16>
    %86 = vector.shape_cast %85 : vector<1x1x256xbf16> to vector<1x256xbf16>
    %c2_53 = arith.constant 2 : index
    %c1_54 = arith.constant 1 : index
    %c0_55 = arith.constant 0 : index
    %c0_56 = arith.constant 0 : index
    %87 = vector.load %arg2[%c2_53, %c1_54, %c0_55, %c0_56] : memref<4x4x256x128xbf16, #tpu.memory_space<vmem>>, vector<1x1x256x128xbf16>
    %88 = vector.shape_cast %87 : vector<1x1x256x128xbf16> to vector<256x128xbf16>
    %cst_57 = arith.constant dense<0.000000e+00> : vector<1x128xf32>
    %89 = tpu.matmul %86, %88, %cst_57 {dimension_numbers = #tpu.dot_dimension_numbers<[1], [0], [0], [1], [0, 0, 1, 1], [], []>} : vector<1x256xbf16>, vector<256x128xbf16>, vector<1x128xf32> -> vector<1x128xf32>
    %90 = arith.addf %84, %89 : vector<1x128xf32>
    %91 = vector.extract_strided_slice %31 {offsets = [2, 2, 0], sizes = [1, 1, 256], strides = [1, 1, 1]} : vector<4x4x256xbf16> to vector<1x1x256xbf16>
    %92 = vector.shape_cast %91 : vector<1x1x256xbf16> to vector<1x256xbf16>
    %c2_58 = arith.constant 2 : index
    %c2_59 = arith.constant 2 : index
    %c0_60 = arith.constant 0 : index
    %c0_61 = arith.constant 0 : index
    %93 = vector.load %arg2[%c2_58, %c2_59, %c0_60, %c0_61] : memref<4x4x256x128xbf16, #tpu.memory_space<vmem>>, vector<1x1x256x128xbf16>
    %94 = vector.shape_cast %93 : vector<1x1x256x128xbf16> to vector<256x128xbf16>
    %cst_62 = arith.constant dense<0.000000e+00> : vector<1x128xf32>
    %95 = tpu.matmul %92, %94, %cst_62 {dimension_numbers = #tpu.dot_dimension_numbers<[1], [0], [0], [1], [0, 0, 1, 1], [], []>} : vector<1x256xbf16>, vector<256x128xbf16>, vector<1x128xf32> -> vector<1x128xf32>
    %96 = arith.addf %90, %95 : vector<1x128xf32>
    %97 = vector.extract_strided_slice %31 {offsets = [2, 3, 0], sizes = [1, 1, 256], strides = [1, 1, 1]} : vector<4x4x256xbf16> to vector<1x1x256xbf16>
    %98 = vector.shape_cast %97 : vector<1x1x256xbf16> to vector<1x256xbf16>
    %c2_63 = arith.constant 2 : index
    %c3_64 = arith.constant 3 : index
    %c0_65 = arith.constant 0 : index
    %c0_66 = arith.constant 0 : index
    %99 = vector.load %arg2[%c2_63, %c3_64, %c0_65, %c0_66] : memref<4x4x256x128xbf16, #tpu.memory_space<vmem>>, vector<1x1x256x128xbf16>
    %100 = vector.shape_cast %99 : vector<1x1x256x128xbf16> to vector<256x128xbf16>
    %cst_67 = arith.constant dense<0.000000e+00> : vector<1x128xf32>
    %101 = tpu.matmul %98, %100, %cst_67 {dimension_numbers = #tpu.dot_dimension_numbers<[1], [0], [0], [1], [0, 0, 1, 1], [], []>} : vector<1x256xbf16>, vector<256x128xbf16>, vector<1x128xf32> -> vector<1x128xf32>
    %102 = arith.addf %96, %101 : vector<1x128xf32>
    %103 = vector.extract_strided_slice %31 {offsets = [3, 0, 0], sizes = [1, 1, 256], strides = [1, 1, 1]} : vector<4x4x256xbf16> to vector<1x1x256xbf16>
    %104 = vector.shape_cast %103 : vector<1x1x256xbf16> to vector<1x256xbf16>
    %c3_68 = arith.constant 3 : index
    %c0_69 = arith.constant 0 : index
    %c0_70 = arith.constant 0 : index
    %c0_71 = arith.constant 0 : index
    %105 = vector.load %arg2[%c3_68, %c0_69, %c0_70, %c0_71] : memref<4x4x256x128xbf16, #tpu.memory_space<vmem>>, vector<1x1x256x128xbf16>
    %106 = vector.shape_cast %105 : vector<1x1x256x128xbf16> to vector<256x128xbf16>
    %cst_72 = arith.constant dense<0.000000e+00> : vector<1x128xf32>
    %107 = tpu.matmul %104, %106, %cst_72 {dimension_numbers = #tpu.dot_dimension_numbers<[1], [0], [0], [1], [0, 0, 1, 1], [], []>} : vector<1x256xbf16>, vector<256x128xbf16>, vector<1x128xf32> -> vector<1x128xf32>
    %108 = arith.addf %102, %107 : vector<1x128xf32>
    %109 = vector.extract_strided_slice %31 {offsets = [3, 1, 0], sizes = [1, 1, 256], strides = [1, 1, 1]} : vector<4x4x256xbf16> to vector<1x1x256xbf16>
    %110 = vector.shape_cast %109 : vector<1x1x256xbf16> to vector<1x256xbf16>
    %c3_73 = arith.constant 3 : index
    %c1_74 = arith.constant 1 : index
    %c0_75 = arith.constant 0 : index
    %c0_76 = arith.constant 0 : index
    %111 = vector.load %arg2[%c3_73, %c1_74, %c0_75, %c0_76] : memref<4x4x256x128xbf16, #tpu.memory_space<vmem>>, vector<1x1x256x128xbf16>
    %112 = vector.shape_cast %111 : vector<1x1x256x128xbf16> to vector<256x128xbf16>
    %cst_77 = arith.constant dense<0.000000e+00> : vector<1x128xf32>
    %113 = tpu.matmul %110, %112, %cst_77 {dimension_numbers = #tpu.dot_dimension_numbers<[1], [0], [0], [1], [0, 0, 1, 1], [], []>} : vector<1x256xbf16>, vector<256x128xbf16>, vector<1x128xf32> -> vector<1x128xf32>
    %114 = arith.addf %108, %113 : vector<1x128xf32>
    %115 = vector.extract_strided_slice %31 {offsets = [3, 2, 0], sizes = [1, 1, 256], strides = [1, 1, 1]} : vector<4x4x256xbf16> to vector<1x1x256xbf16>
    %116 = vector.shape_cast %115 : vector<1x1x256xbf16> to vector<1x256xbf16>
    %c3_78 = arith.constant 3 : index
    %c2_79 = arith.constant 2 : index
    %c0_80 = arith.constant 0 : index
    %c0_81 = arith.constant 0 : index
    %117 = vector.load %arg2[%c3_78, %c2_79, %c0_80, %c0_81] : memref<4x4x256x128xbf16, #tpu.memory_space<vmem>>, vector<1x1x256x128xbf16>
    %118 = vector.shape_cast %117 : vector<1x1x256x128xbf16> to vector<256x128xbf16>
    %cst_82 = arith.constant dense<0.000000e+00> : vector<1x128xf32>
    %119 = tpu.matmul %116, %118, %cst_82 {dimension_numbers = #tpu.dot_dimension_numbers<[1], [0], [0], [1], [0, 0, 1, 1], [], []>} : vector<1x256xbf16>, vector<256x128xbf16>, vector<1x128xf32> -> vector<1x128xf32>
    %120 = arith.addf %114, %119 : vector<1x128xf32>
    %121 = vector.extract_strided_slice %31 {offsets = [3, 3, 0], sizes = [1, 1, 256], strides = [1, 1, 1]} : vector<4x4x256xbf16> to vector<1x1x256xbf16>
    %122 = vector.shape_cast %121 : vector<1x1x256xbf16> to vector<1x256xbf16>
    %c3_83 = arith.constant 3 : index
    %c3_84 = arith.constant 3 : index
    %c0_85 = arith.constant 0 : index
    %c0_86 = arith.constant 0 : index
    %123 = vector.load %arg2[%c3_83, %c3_84, %c0_85, %c0_86] : memref<4x4x256x128xbf16, #tpu.memory_space<vmem>>, vector<1x1x256x128xbf16>
    %124 = vector.shape_cast %123 : vector<1x1x256x128xbf16> to vector<256x128xbf16>
    %cst_87 = arith.constant dense<0.000000e+00> : vector<1x128xf32>
    %125 = tpu.matmul %122, %124, %cst_87 {dimension_numbers = #tpu.dot_dimension_numbers<[1], [0], [0], [1], [0, 0, 1, 1], [], []>} : vector<1x256xbf16>, vector<256x128xbf16>, vector<1x128xf32> -> vector<1x128xf32>
    %126 = arith.addf %120, %125 : vector<1x128xf32>
    %c0_88 = arith.constant 0 : index
    %c0_89 = arith.constant 0 : index
    %127 = vector.load %arg3[%c0_88, %c0_89] : memref<1x128xf32, #tpu.memory_space<vmem>>, vector<1x128xf32>
    %128 = arith.addf %126, %127 : vector<1x128xf32>
    %c0_90 = arith.constant 0 : index
    %c0_91 = arith.constant 0 : index
    %c0_92 = arith.constant 0 : index
    %129 = vector.load %arg6[%c0_90, %c0_91, %c0_92] : memref<1x1x128xf32, #tpu.memory_space<vmem>>, vector<1x1x128xf32>
    %130 = vector.shape_cast %129 : vector<1x1x128xf32> to vector<1x128xf32>
    %131 = vector.shape_cast %128 : vector<1x128xf32> to vector<1x1x128xf32>
    tpu.vector_store %arg6[%c0_90, %c0_91, %c0_92], %131 {strides = array<i32>} : memref<1x1x128xf32, #tpu.memory_space<vmem>>, vector<1x1x128xf32>,
    return
  }
  func.func @transform_0(%arg0: i32) -> (i32, i32, i32, i32) {
    %c0_i32 = arith.constant 0 : i32
    %c0_i32_0 = arith.constant 0 : i32
    %c0_i32_1 = arith.constant 0 : i32
    %c0_i32_2 = arith.constant 0 : i32
    return %arg0, %c0_i32, %c0_i32_0, %c0_i32_1 : i32, i32, i32, i32
  }
  func.func @transform_1(%arg0: i32) -> (i32, i32, i32, i32) {
    %c0_i32 = arith.constant 0 : i32
    %c0_i32_0 = arith.constant 0 : i32
    %c0_i32_1 = arith.constant 0 : i32
    %c0_i32_2 = arith.constant 0 : i32
    %c0_i32_3 = arith.constant 0 : i32
    return %c0_i32, %c0_i32_0, %c0_i32_1, %c0_i32_2 : i32, i32, i32, i32
  }
  func.func @transform_2(%arg0: i32) -> (i32, i32) {
    %c0_i32 = arith.constant 0 : i32
    %c0_i32_0 = arith.constant 0 : i32
    %c0_i32_1 = arith.constant 0 : i32
    return %c0_i32, %c0_i32_0 : i32, i32
  }
  func.func @transform_3(%arg0: i32) -> (i32, i32) {
    %c0_i32 = arith.constant 0 : i32
    %c0_i32_0 = arith.constant 0 : i32
    %c0_i32_1 = arith.constant 0 : i32
    return %c0_i32, %c0_i32_0 : i32, i32
  }
  func.func @transform_4(%arg0: i32) -> (i32, i32) {
    %c0_i32 = arith.constant 0 : i32
    %c0_i32_0 = arith.constant 0 : i32
    %c0_i32_1 = arith.constant 0 : i32
    return %c0_i32, %c0_i32_0 : i32, i32
  }
  func.func @transform_5(%arg0: i32) -> (i32, i32, i32) {
    %c0_i32 = arith.constant 0 : i32
    %c0_i32_0 = arith.constant 0 : i32
    %c0_i32_1 = arith.constant 0 : i32
    return %arg0, %c0_i32, %c0_i32_0 : i32, i32, i32
  }
}

</mosaic_0001>

<llo_original>
// kernel: _lambda_.4
$region0: #{_lambda_.4}
  #allocation0 [shape = 'u32[]', space=smem, size = 0x4, offset = 0x4, fixed_abs, tag = 'smem constant byte address 0x4 - core index']
  #allocation1 [shape = 'u32[144,128]{1,0:T(1,128)}', space=vmem, size = 0x12000, scoped, tag = 'internal scratch']
  %s0 = inlined_call_operand.vmem [shape: bf16[2,9,2,9,16], index: 0, kind: input, shape index: {}]
  %s1 = inlined_call_operand.vmem [shape: bf16[4,2,16,128], index: 1, kind: input, shape index: {}]
  %s2 = inlined_call_operand.vmem [shape: f32[1,128], index: 2, kind: input, shape index: {}]
  %s3 = inlined_call_operand.vmem [shape: bf16[2,64,128], index: 3, kind: output, shape index: {}]
  %s4 = sld [smem:[#allocation0]]
  $region45: #{_lambda_.4} parent=0
    _
  %s6 = ssub.s32 1, %s4
  %s7 = scalar_select 0, %s6, %s4
  loop: start=0, step=1, limit=4
  $region2: #{_lambda_.4} parent=0 // loop_pre_header
    _
  $region3: #{_lambda_.4} parent=0 // loop_header
    %s9 = sphi 0, %s13
    %p10 = scmp.ge.s32.totalorder %s9, 4
    %s19 = sphi 0, %s21
    %s22 = sphi 0, %s19
    %s23 = sphi 0, %s22
    %s39 = sphi 0, %s23
    %s43 = sphi 0, %s43
    %s45 = sphi 0, %s43
    %s46 = sphi 0, %s45
    %s60 = sphi 0, %s46
    %s64 = sphi 0, %s64
    %s66 = sphi 0, %s64
    %s67 = sphi 0, %s66
    %s81 = sphi 0, %s67
    %s87 = sphi 0, %s89
    %s90 = sphi 0, %s87
    %s91 = sphi 0, %s90
    %s107 = sphi 0, %s91
  $region4: #{_lambda_.4} parent=0 // loop_header_branch
    %12 = sbr.rel (%p10) target = $region8
  $region5: #{_lambda_.4} parent=0 // loop_body
    %s14 = ssub.s32 %s9, 1
    %s15 = ssub.s32 %s9, 2
    %s16 = sadd.s32 %s9, 1
    %s17 = ssub.s32 %s9, %s16
    %p18 = scmp.eq.s32.totalorder %s17, 0
    %s20 = sadd.s32 %s19, 1
    %s21 = scalar_select %p18, %s19, %s20
    %p24 = pneg %p18
    %p25 = scmp.eq.s32.totalorder %s9, 1
    %p26 = por %p24, %p25
    %p27 = scmp.ne.s32.totalorder %s19, %s22
    %p28 = scmp.eq.s32.totalorder %s9, 0
    %p29 = por %p27, %p28
    %p30 = scmp.ne.s32.totalorder %s19, %s22
    %p31 = scmp.eq.s32.totalorder %s14, 1
    %p32 = por %p30, %p31
    %p33 = scmp.ne.s32.totalorder %s22, %s23
    %p34 = scmp.eq.s32.totalorder %s14, 0
    %p35 = por %p33, %p34
    %p36 = scmp.ne.s32.totalorder %s22, %s23
    %p37 = scmp.eq.s32.totalorder %s15, 1
    %p38 = por %p36, %p37
    %p40 = scmp.ne.s32.totalorder %s23, %s39
    %p41 = scmp.eq.s32.totalorder %s15, 0
    %p42 = por %p40, %p41
    %s44 = sadd.s32 %s43, 1
    %p47 = scmp.eq.s32.totalorder %s9, 1
    %p48 = scmp.ne.s32.totalorder %s43, %s45
    %p49 = scmp.eq.s32.totalorder %s9, 0
    %p50 = por %p48, %p49
    %p51 = scmp.ne.s32.totalorder %s43, %s45
    %p52 = scmp.eq.s32.totalorder %s14, 1
    %p53 = por %p51, %p52
    %p54 = scmp.ne.s32.totalorder %s45, %s46
    %p55 = scmp.eq.s32.totalorder %s14, 0
    %p56 = por %p54, %p55
    %p57 = scmp.ne.s32.totalorder %s45, %s46
    %p58 = scmp.eq.s32.totalorder %s15, 1
    %p59 = por %p57, %p58
    %p61 = scmp.ne.s32.totalorder %s46, %s60
    %p62 = scmp.eq.s32.totalorder %s15, 0
    %p63 = por %p61, %p62
    %s65 = sadd.s32 %s64, 1
    %p68 = scmp.eq.s32.totalorder %s9, 1
    %p69 = scmp.ne.s32.totalorder %s64, %s66
    %p70 = scmp.eq.s32.totalorder %s9, 0
    %p71 = por %p69, %p70
    %p72 = scmp.ne.s32.totalorder %s64, %s66
    %p73 = scmp.eq.s32.totalorder %s14, 1
    %p74 = por %p72, %p73
    %p75 = scmp.ne.s32.totalorder %s66, %s67
    %p76 = scmp.eq.s32.totalorder %s14, 0
    %p77 = por %p75, %p76
    %p78 = scmp.ne.s32.totalorder %s66, %s67
    %p79 = scmp.eq.s32.totalorder %s15, 1
    %p80 = por %p78, %p79
    %p82 = scmp.ne.s32.totalorder %s67, %s81
    %p83 = scmp.eq.s32.totalorder %s15, 0
    %p84 = por %p82, %p83
    %s85 = ssub.s32 %s9, %s16
    %p86 = scmp.eq.s32.totalorder %s85, 0
    %s88 = sadd.s32 %s87, 1
    %s89 = scalar_select %p86, %s87, %s88
    %p92 = pneg %p86
    %p93 = scmp.eq.s32.totalorder %s9, 1
    %p94 = por %p92, %p93
    %p95 = scmp.ne.s32.totalorder %s87, %s90
    %p96 = scmp.eq.s32.totalorder %s9, 0
    %p97 = por %p95, %p96
    %p98 = scmp.ne.s32.totalorder %s87, %s90
    %p99 = scmp.eq.s32.totalorder %s14, 1
    %p100 = por %p98, %p99
    %p101 = scmp.ne.s32.totalorder %s90, %s91
    %p102 = scmp.eq.s32.totalorder %s14, 0
    %p103 = por %p101, %p102
    %p104 = scmp.ne.s32.totalorder %s90, %s91
    %p105 = scmp.eq.s32.totalorder %s15, 1
    %p106 = por %p104, %p105
    %p108 = scmp.ne.s32.totalorder %s91, %s107
    %p109 = scmp.eq.s32.totalorder %s15, 0
    %p110 = por %p108, %p109
    %p111 = scmp.le.s32.totalorder 1, %s9
    %p112 = scmp.lt.s32.totalorder %s9, 3
    %p113 = pnand %p111, %p112
    %p114 = pneg %p113
    // Predicated region
    $region9: #{_lambda_.4} parent=5 // pred_check
      _
    $region10: #{_lambda_.4} parent=5 // pred_check_branch
      %116 = sbr.rel (%p113) target = $region12
    $region11: #{_lambda_.4} parent=5 // pred_region
      %s117 = ssub.s32 %s9, 1
      // Predicated region
      $region13: #{_lambda_.4} parent=11 // pred_check
        %p118 = pneg %p56
      $region14: #{_lambda_.4} parent=11 // pred_check_branch
        %120 = sbr.rel (%p118) target = $region16
      $region15: #{_lambda_.4} parent=11 // pred_region
        _
      $region16: #{_lambda_.4} parent=11 // pred_fallthru
        _
      // Predicated region
      $region17: #{_lambda_.4} parent=11 // pred_check
        %p121 = pneg %p77
      $region18: #{_lambda_.4} parent=11 // pred_check_branch
        %123 = sbr.rel (%p121) target = $region20
      $region19: #{_lambda_.4} parent=11 // pred_region
        _
      $region20: #{_lambda_.4} parent=11 // pred_fallthru
        _
    $region12: #{_lambda_.4} parent=5 // pred_fallthru
      _
    %p124 = scmp.lt.s32.totalorder %s9, 2
    // Predicated region
    $region21: #{_lambda_.4} parent=5 // pred_check
      %p125 = pneg %p124
    $region22: #{_lambda_.4} parent=5 // pred_check_branch
      %127 = sbr.rel (%p125) target = $region24
    $region23: #{_lambda_.4} parent=5 // pred_region
      // Predicated region
      $region25: #{_lambda_.4} parent=23 // pred_check
        %p128 = pneg %p29
      $region26: #{_lambda_.4} parent=23 // pred_check_branch
        %130 = sbr.rel (%p128) target = $region28
      $region27: #{_lambda_.4} parent=23 // pred_region
        %p131 = scmp.lt.s32.totalorder %s9, 1
        %s132 = scalar_select %p131, %s9, 1
        %s133 = smul.addr %s132, 36
        %s134 = smul.addr %s133, 4
        %s135 = scalar_lea.vmem %s0, %s134
      $region28: #{_lambda_.4} parent=23 // pred_fallthru
        _
    $region24: #{_lambda_.4} parent=5 // pred_fallthru
      _
    %p136 = scmp.le.s32.totalorder 1, %s9
    %p137 = scmp.lt.s32.totalorder %s9, 3
    %p138 = pnand %p136, %p137
    %p139 = pneg %p138
    // Predicated region
    $region29: #{_lambda_.4} parent=5 // pred_check
      _
    $region30: #{_lambda_.4} parent=5 // pred_check_branch
      %141 = sbr.rel (%p138) target = $region32
    $region31: #{_lambda_.4} parent=5 // pred_region
      %s142 = ssub.s32 %s9, 1
      %p143 = scmp.lt.s32.totalorder %s14, 1
      %s144 = scalar_select %p143, %s14, 1
      %s145 = smul.addr %s144, 36
      %s146 = smul.addr %s145, 4
      %s147 = scalar_lea.vmem %s0, %s146
      %p148 = pneg %p35
      %p149 = pneg %p32
      %p150 = pneg %p56
      %p151 = pneg %p53
      %p152 = pneg %p77
      %p153 = pneg %p74
      %p154 = pneg %p103
      %p155 = pneg %p100
      %p156 = scmp.lt.s32.totalorder %s14, 1
      %s157 = scalar_select %p156, %s14, 1
      %s158 = smul.addr %s157, 8
      %s159 = smul.addr %s158, 4
      %s160 = scalar_lea.vmem %s3, %s159
      %p161 = scmp.lt.s32.totalorder %s14, 1
      %s162 = scalar_select %p161, %s14, 1
      %s163 = smul.addr %s162, 36
      %s164 = smul.addr %s163, 4
      %s165 = scalar_lea.vmem %s0, %s164
      %p166 = scmp.lt.s32.totalorder %s14, 1
      %s167 = scalar_select %p166, %s14, 1
      %s168 = smul.addr %s167, 8
      %s169 = smul.addr %s168, 4
      %s170 = scalar_lea.vmem %s3, %s169
      %v172 = vld [vmem:[%s165] sm:$0xf]
      %v173 = vld [vmem:[%s165 + $0x4] sm:$0x1]
      %v174 = vld [vmem:[%s165 + $0x8] sm:$0xf]
      %v175 = vld [vmem:[%s165 + $0xc] sm:$0x1]
      %v176 = vld [vmem:[%s165 + $0x10] sm:$0xf]
      %v177 = vld [vmem:[%s165 + $0x14] sm:$0x1]
      %v178 = vld [vmem:[%s165 + $0x18] sm:$0xf]
      %v179 = vld [vmem:[%s165 + $0x1c] sm:$0x1]
      %v180 = vld [vmem:[%s165 + $0x20] sm:$0xf]
      %v181 = vld [vmem:[%s165 + $0x24] sm:$0x1]
      %v182 = vld [vmem:[%s165 + $0x28] sm:$0xf]
      %v183 = vld [vmem:[%s165 + $0x2c] sm:$0x1]
      %v184 = vld [vmem:[%s165 + $0x30] sm:$0xf]
      %v185 = vld [vmem:[%s165 + $0x34] sm:$0x1]
      %v186 = vld [vmem:[%s165 + $0x38] sm:$0xf]
      %v187 = vld [vmem:[%s165 + $0x3c] sm:$0x1]
      %v188 = vld [vmem:[%s165 + $0x40] sm:$0xf]
      %v189 = vld [vmem:[%s165 + $0x44] sm:$0x1]
      %v190 = vld [vmem:[%s165 + $0x48] sm:$0xf]
      %v191 = vld [vmem:[%s165 + $0x4c] sm:$0x1]
      %v192 = vld [vmem:[%s165 + $0x50] sm:$0xf]
      %v193 = vld [vmem:[%s165 + $0x54] sm:$0x1]
      %v194 = vld [vmem:[%s165 + $0x58] sm:$0xf]
      %v195 = vld [vmem:[%s165 + $0x5c] sm:$0x1]
      %v196 = vld [vmem:[%s165 + $0x60] sm:$0xf]
      %v197 = vld [vmem:[%s165 + $0x64] sm:$0x1]
      %v198 = vld [vmem:[%s165 + $0x68] sm:$0xf]
      %v199 = vld [vmem:[%s165 + $0x6c] sm:$0x1]
      %v200 = vld [vmem:[%s165 + $0x70] sm:$0xf]
      %v201 = vld [vmem:[%s165 + $0x74] sm:$0x1]
      %v202 = vld [vmem:[%s165 + $0x78] sm:$0xf]
      %v203 = vld [vmem:[%s165 + $0x7c] sm:$0x1]
      %v204 = vld [vmem:[%s165 + $0x80] sm:$0xf]
      %v205 = vld [vmem:[%s165 + $0x84] sm:$0x1]
      %v206 = vld [vmem:[%s165 + $0x88] sm:$0xf]
      %v207 = vld [vmem:[%s165 + $0x8c] sm:$0x1]
      %v208 = vld [vmem:[%s1] sm:$0xf]
      %v209 = vld [vmem:[%s1 + $0x4] sm:$0xf]
      %vm210 = vsmask.f32 3328
      %vm211 = vsmask.f32 7440
      %vm212 = vmor %vm210, %vm211
      %v214 = vshrl.u32 %v172, 16
      %v216 = vrot.slane %v214, 4
      %v217 = vshll.u32 %v172, 16
      %v219 = vrot.slane %v217, 5
      %v220 = vor.u32 %v216, %v219
      %v221 = vrot.slane %v220, 4
      %v223 = vshll.u32 %v173, 16
      %v225 = vrot.slane %v223, 5
      %v226 = vsel %vm212, %v221, %v225
      %v228 = vshrl.u32 %v176, 16
      %v230 = vrot.slane %v228, 4
      %v231 = vshll.u32 %v176, 16
      %v233 = vrot.slane %v231, 5
      %v234 = vor.u32 %v230, %v233
      %v235 = vrot.slane %v234, 4
      %v237 = vshll.u32 %v177, 16
      %v239 = vrot.slane %v237, 5
      %v240 = vsel %vm212, %v235, %v239
      %v242 = vshrl.u32 %v180, 16
      %v244 = vrot.slane %v242, 4
      %v245 = vshll.u32 %v180, 16
      %v247 = vrot.slane %v245, 5
      %v248 = vor.u32 %v244, %v247
      %v249 = vrot.slane %v248, 4
      %v251 = vshll.u32 %v181, 16
      %v253 = vrot.slane %v251, 5
      %v254 = vsel %vm212, %v249, %v253
      %v256 = vshrl.u32 %v184, 16
      %v258 = vrot.slane %v256, 4
      %v259 = vshll.u32 %v184, 16
      %v261 = vrot.slane %v259, 5
      %v262 = vor.u32 %v258, %v261
      %v263 = vrot.slane %v262, 4
      %v265 = vshll.u32 %v185, 16
      %v267 = vrot.slane %v265, 5
      %v268 = vsel %vm212, %v263, %v267
      %v270 = vshrl.u32 %v188, 16
      %v272 = vrot.slane %v270, 4
      %v273 = vshll.u32 %v188, 16
      %v275 = vrot.slane %v273, 5
      %v276 = vor.u32 %v272, %v275
      %v277 = vrot.slane %v276, 4
      %v279 = vshll.u32 %v189, 16
      %v281 = vrot.slane %v279, 5
      %v282 = vsel %vm212, %v277, %v281
      %v284 = vshrl.u32 %v192, 16
      %v286 = vrot.slane %v284, 4
      %v287 = vshll.u32 %v192, 16
      %v289 = vrot.slane %v287, 5
      %v290 = vor.u32 %v286, %v289
      %v291 = vrot.slane %v290, 4
      %v293 = vshll.u32 %v193, 16
      %v295 = vrot.slane %v293, 5
      %v296 = vsel %vm212, %v291, %v295
      %v298 = vshrl.u32 %v196, 16
      %v300 = vrot.slane %v298, 4
      %v301 = vshll.u32 %v196, 16
      %v303 = vrot.slane %v301, 5
      %v304 = vor.u32 %v300, %v303
      %v305 = vrot.slane %v304, 4
      %v307 = vshll.u32 %v197, 16
      %v309 = vrot.slane %v307, 5
      %v310 = vsel %vm212, %v305, %v309
      %v312 = vshrl.u32 %v200, 16
      %v314 = vrot.slane %v312, 4
      %v315 = vshll.u32 %v200, 16
      %v317 = vrot.slane %v315, 5
      %v318 = vor.u32 %v314, %v317
      %v319 = vrot.slane %v318, 4
      %v321 = vshll.u32 %v201, 16
      %v323 = vrot.slane %v321, 5
      %v324 = vsel %vm212, %v319, %v323
      %s325 = scalar_lea.vmem %s1, 8
      %v326 = vld [vmem:[%s325] sm:$0xf]
      %v327 = vld [vmem:[%s325 + $0x4] sm:$0xf]
      %v328 = vunpack.c.l.b16 %v226
      %v329 = vunpack.c.l.b16 %v240
      %v330 = vunpack.c.l.b16 %v254
      %v331 = vunpack.c.l.b16 %v268
      %v332 = vunpack.c.l.b16 %v282
      %v333 = vunpack.c.l.b16 %v296
      %v334 = vunpack.c.l.b16 %v310
      %v335 = vunpack.c.l.b16 %v324
      %v336 = vpack.c.b16 %v329, %v328
      %v337 = vpack.c.b16 %v331, %v330
      %v338 = vpack.c.b16 %v333, %v332
      %v339 = vpack.c.b16 %v335, %v334
      %v342 = vunpack.c.l.b16 %v326
      %v343 = vunpack.c.l.b16 %v327
      %v344 = vpack.c.b16 %v343, %v342
      %vm346 = vcmask 130048
      %v348 = vsel %vm346, %v336, 0
      %v351 = vsel %vm346, %v337, 0
      %v354 = vsel %vm346, %v338, 0
      %v357 = vsel %vm346, %v339, 0
      %359 = vmatprep.subr.bf16.mxu0 0
      %360 = vmatpush1.bf16.msra.mxu0 0
      %361 = vmatprep.subr.bf16.mxu0 0
      %362 = vmatpush1.bf16.msra.mxu0 0
      %363 = vmatprep.subr.bf16.mxu0 0
      %364 = vmatpush1.bf16.msra.mxu0 0
      %365 = vmatprep.subr.bf16.mxu0 0
      %366 = vmatpush1.bf16.msra.mxu0 0
      %367 = vmatprep.subr.bf16.mxu0 0
      %368 = vmatpush1.bf16.msra.mxu0 0
      %369 = vmatprep.subr.bf16.mxu0 0
      %370 = vmatpush1.bf16.msra.mxu0 0
      %371 = vmatprep.subr.bf16.mxu0 0
      %372 = vmatpush1.bf16.msra.mxu0 0
      %373 = vmatprep.subr.bf16.mxu0 0
      %374 = vmatpush1.bf16.msra.mxu0 %v344
      %375 = vmatprep.subr.bf16.mxu0 0
      %376 = vmatpush2.bf16.msra.mxu0 0
      %377 = vmatprep.subr.bf16.mxu0 0
      %378 = vmatpush2.bf16.msra.mxu0 0
      %379 = vmatprep.subr.bf16.mxu0 0
      %380 = vmatpush2.bf16.msra.mxu0 0
      %381 = vmatprep.subr.bf16.mxu0 0
      %382 = vmatpush2.bf16.msra.mxu0 0
      %383 = vmatprep.subr.bf16.mxu0 0
      %384 = vmatpush2.bf16.msra.mxu0 0
      %385 = vmatprep.subr.bf16.mxu0 0
      %386 = vmatpush2.bf16.msra.mxu0 0
      %387 = vmatprep.subr.bf16.mxu0 0
      %388 = vmatpush2.bf16.msra.mxu0 0
      %389 = vmatprep.subr.bf16.mxu0 0
      %390 = vmatpush2.bf16.msra.mxu0 0
      %391 = vmatprep.mubr.bf16.mxu0 0
      %392 = vmatmul.mubr.bf16.gmra.mxu0 %v348
      %v393 = vpop.f32.mrf.mxu0
      %v394 = vadd.f32 0.0, %v393
      %v395 = vpop.f32.mrf.mxu0
      %v396 = vpop.f32.mrf.mxu0
      %v397 = vadd.f32 0.0, %v396
      %v398 = vpop.f32.mrf.mxu0
      %399 = vmatprep.mubr.bf16.mxu0 0
      %400 = vmatmul.mubr.bf16.gmra.mxu0 %v351
      %v401 = vpop.f32.mrf.mxu0
      %v402 = vadd.f32 0.0, %v401
      %v403 = vpop.f32.mrf.mxu0
      %v404 = vpop.f32.mrf.mxu0
      %v405 = vadd.f32 0.0, %v404
      %v406 = vpop.f32.mrf.mxu0
      %407 = vmatprep.mubr.bf16.mxu0 0
      %408 = vmatmul.mubr.bf16.gmra.mxu0 %v354
      %v409 = vpop.f32.mrf.mxu0
      %v410 = vadd.f32 0.0, %v409
      %v411 = vpop.f32.mrf.mxu0
      %v412 = vpop.f32.mrf.mxu0
      %v413 = vadd.f32 0.0, %v412
      %v414 = vpop.f32.mrf.mxu0
      %415 = vmatprep.mubr.bf16.mxu0 0
      %416 = vmatmul.mubr.bf16.gmra.mxu0 %v357
      %v417 = vpop.f32.mrf.mxu0
      %v418 = vadd.f32 0.0, %v417
      %v419 = vpop.f32.mrf.mxu0
      %v420 = vpop.f32.mrf.mxu0
      %v421 = vadd.f32 0.0, %v420
      %v422 = vpop.f32.mrf.mxu0
      %423 = vdwg.mxu0
      %v432 = vunpack.c.l.b16 %v172
      %v433 = vunpack.c.l.b16 %v176
      %v434 = vunpack.c.l.b16 %v180
      %v435 = vunpack.c.l.b16 %v184
      %v436 = vunpack.c.l.b16 %v188
      %v437 = vunpack.c.l.b16 %v192
      %v438 = vunpack.c.l.b16 %v196
      %v439 = vunpack.c.l.b16 %v200
      %v440 = vpack.c.b16 %v433, %v432
      %v441 = vpack.c.b16 %v435, %v434
      %v442 = vpack.c.b16 %v437, %v436
      %v443 = vpack.c.b16 %v439, %v438
      %v446 = vunpack.c.l.b16 %v208
      %v447 = vunpack.c.l.b16 %v209
      %v448 = vpack.c.b16 %v447, %v446
      %v451 = vsel %vm346, %v440, 0
      %v454 = vsel %vm346, %v441, 0
      %v457 = vsel %vm346, %v442, 0
      %v460 = vsel %vm346, %v443, 0
      %462 = vmatprep.subr.bf16.mxu0 0
      %463 = vmatpush1.bf16.msra.mxu0 0
      %464 = vmatprep.subr.bf16.mxu0 0
      %465 = vmatpush1.bf16.msra.mxu0 0
      %466 = vmatprep.subr.bf16.mxu0 0
      %467 = vmatpush1.bf16.msra.mxu0 0
      %468 = vmatprep.subr.bf16.mxu0 0
      %469 = vmatpush1.bf16.msra.mxu0 0
      %470 = vmatprep.subr.bf16.mxu0 0
      %471 = vmatpush1.bf16.msra.mxu0 0
      %472 = vmatprep.subr.bf16.mxu0 0
      %473 = vmatpush1.bf16.msra.mxu0 0
      %474 = vmatprep.subr.bf16.mxu0 0
      %475 = vmatpush1.bf16.msra.mxu0 0
      %476 = vmatprep.subr.bf16.mxu0 0
      %477 = vmatpush1.bf16.msra.mxu0 %v448
      %478 = vmatprep.subr.bf16.mxu0 0
      %479 = vmatpush2.bf16.msra.mxu0 0
      %480 = vmatprep.subr.bf16.mxu0 0
      %481 = vmatpush2.bf16.msra.mxu0 0
      %482 = vmatprep.subr.bf16.mxu0 0
      %483 = vmatpush2.bf16.msra.mxu0 0
      %484 = vmatprep.subr.bf16.mxu0 0
      %485 = vmatpush2.bf16.msra.mxu0 0
      %486 = vmatprep.subr.bf16.mxu0 0
      %487 = vmatpush2.bf16.msra.mxu0 0
      %488 = vmatprep.subr.bf16.mxu0 0
      %489 = vmatpush2.bf16.msra.mxu0 0
      %490 = vmatprep.subr.bf16.mxu0 0
      %491 = vmatpush2.bf16.msra.mxu0 0
      %492 = vmatprep.subr.bf16.mxu0 0
      %493 = vmatpush2.bf16.msra.mxu0 0
      %494 = vmatprep.mubr.bf16.mxu0 0
      %495 = vmatmul.mubr.bf16.gmra.mxu0 %v451
      %v496 = vpop.f32.mrf.mxu0
      %v497 = vadd.f32 %v394, %v496
      %v498 = vpop.f32.mrf.mxu0
      %v499 = vpop.f32.mrf.mxu0
      %v500 = vadd.f32 %v397, %v499
      %v501 = vpop.f32.mrf.mxu0
      %502 = vmatprep.mubr.bf16.mxu0 0
      %503 = vmatmul.mubr.bf16.gmra.mxu0 %v454
      %v504 = vpop.f32.mrf.mxu0
      %v505 = vadd.f32 %v402, %v504
      %v506 = vpop.f32.mrf.mxu0
      %v507 = vpop.f32.mrf.mxu0
      %v508 = vadd.f32 %v405, %v507
      %v509 = vpop.f32.mrf.mxu0
      %510 = vmatprep.mubr.bf16.mxu0 0
      %511 = vmatmul.mubr.bf16.gmra.mxu0 %v457
      %v512 = vpop.f32.mrf.mxu0
      %v513 = vadd.f32 %v410, %v512
      %v514 = vpop.f32.mrf.mxu0
      %v515 = vpop.f32.mrf.mxu0
      %v516 = vadd.f32 %v413, %v515
      %v517 = vpop.f32.mrf.mxu0
      %518 = vmatprep.mubr.bf16.mxu0 0
      %519 = vmatmul.mubr.bf16.gmra.mxu0 %v460
      %v520 = vpop.f32.mrf.mxu0
      %v521 = vadd.f32 %v418, %v520
      %v522 = vpop.f32.mrf.mxu0
      %v523 = vpop.f32.mrf.mxu0
      %v524 = vadd.f32 %v421, %v523
      %v525 = vpop.f32.mrf.mxu0
      %526 = vdwg.mxu0
      %s527 = scalar_lea.vmem %s1, 16
      %v528 = vld [vmem:[%s527] sm:$0xf]
      %v529 = vld [vmem:[%s527 + $0x4] sm:$0xf]
      %v538 = vunpack.c.l.b16 %v174
      %v539 = vunpack.c.l.b16 %v178
      %v540 = vunpack.c.l.b16 %v182
      %v541 = vunpack.c.l.b16 %v186
      %v542 = vunpack.c.l.b16 %v190
      %v543 = vunpack.c.l.b16 %v194
      %v544 = vunpack.c.l.b16 %v198
      %v545 = vunpack.c.l.b16 %v202
      %v546 = vpack.c.b16 %v539, %v538
      %v547 = vpack.c.b16 %v541, %v540
      %v548 = vpack.c.b16 %v543, %v542
      %v549 = vpack.c.b16 %v545, %v544
      %v552 = vunpack.c.l.b16 %v528
      %v553 = vunpack.c.l.b16 %v529
      %v554 = vpack.c.b16 %v553, %v552
      %v557 = vsel %vm346, %v546, 0
      %v560 = vsel %vm346, %v547, 0
      %v563 = vsel %vm346, %v548, 0
      %v566 = vsel %vm346, %v549, 0
      %568 = vmatprep.subr.bf16.mxu0 0
      %569 = vmatpush1.bf16.msra.mxu0 0
      %570 = vmatprep.subr.bf16.mxu0 0
      %571 = vmatpush1.bf16.msra.mxu0 0
      %572 = vmatprep.subr.bf16.mxu0 0
      %573 = vmatpush1.bf16.msra.mxu0 0
      %574 = vmatprep.subr.bf16.mxu0 0
      %575 = vmatpush1.bf16.msra.mxu0 0
      %576 = vmatprep.subr.bf16.mxu0 0
      %577 = vmatpush1.bf16.msra.mxu0 0
      %578 = vmatprep.subr.bf16.mxu0 0
      %579 = vmatpush1.bf16.msra.mxu0 0
      %580 = vmatprep.subr.bf16.mxu0 0
      %581 = vmatpush1.bf16.msra.mxu0 0
      %582 = vmatprep.subr.bf16.mxu0 0
      %583 = vmatpush1.bf16.msra.mxu0 %v554
      %584 = vmatprep.subr.bf16.mxu0 0
      %585 = vmatpush2.bf16.msra.mxu0 0
      %586 = vmatprep.subr.bf16.mxu0 0
      %587 = vmatpush2.bf16.msra.mxu0 0
      %588 = vmatprep.subr.bf16.mxu0 0
      %589 = vmatpush2.bf16.msra.mxu0 0
      %590 = vmatprep.subr.bf16.mxu0 0
      %591 = vmatpush2.bf16.msra.mxu0 0
      %592 = vmatprep.subr.bf16.mxu0 0
      %593 = vmatpush2.bf16.msra.mxu0 0
      %594 = vmatprep.subr.bf16.mxu0 0
      %595 = vmatpush2.bf16.msra.mxu0 0
      %596 = vmatprep.subr.bf16.mxu0 0
      %597 = vmatpush2.bf16.msra.mxu0 0
      %598 = vmatprep.subr.bf16.mxu0 0
      %599 = vmatpush2.bf16.msra.mxu0 0
      %600 = vmatprep.mubr.bf16.mxu0 0
      %601 = vmatmul.mubr.bf16.gmra.mxu0 %v557
      %v602 = vpop.f32.mrf.mxu0
      %v603 = vadd.f32 0.0, %v602
      %v604 = vpop.f32.mrf.mxu0
      %v605 = vpop.f32.mrf.mxu0
      %v606 = vadd.f32 0.0, %v605
      %v607 = vpop.f32.mrf.mxu0
      %608 = vmatprep.mubr.bf16.mxu0 0
      %609 = vmatmul.mubr.bf16.gmra.mxu0 %v560
      %v610 = vpop.f32.mrf.mxu0
      %v611 = vadd.f32 0.0, %v610
      %v612 = vpop.f32.mrf.mxu0
      %v613 = vpop.f32.mrf.mxu0
      %v614 = vadd.f32 0.0, %v613
      %v615 = vpop.f32.mrf.mxu0
      %616 = vmatprep.mubr.bf16.mxu0 0
      %617 = vmatmul.mubr.bf16.gmra.mxu0 %v563
      %v618 = vpop.f32.mrf.mxu0
      %v619 = vadd.f32 0.0, %v618
      %v620 = vpop.f32.mrf.mxu0
      %v621 = vpop.f32.mrf.mxu0
      %v622 = vadd.f32 0.0, %v621
      %v623 = vpop.f32.mrf.mxu0
      %624 = vmatprep.mubr.bf16.mxu0 0
      %625 = vmatmul.mubr.bf16.gmra.mxu0 %v566
      %v626 = vpop.f32.mrf.mxu0
      %v627 = vadd.f32 0.0, %v626
      %v628 = vpop.f32.mrf.mxu0
      %v629 = vpop.f32.mrf.mxu0
      %v630 = vadd.f32 0.0, %v629
      %v631 = vpop.f32.mrf.mxu0
      %632 = vdwg.mxu0
      %v633 = vadd.f32 %v497, %v603
      %v634 = vadd.f32 %v500, %v606
      %v635 = vadd.f32 %v505, %v611
      %v636 = vadd.f32 %v508, %v614
      %v637 = vadd.f32 %v513, %v619
      %v638 = vadd.f32 %v516, %v622
      %v639 = vadd.f32 %v521, %v627
      %v640 = vadd.f32 %v524, %v630
      %v642 = vshrl.u32 %v174, 16
      %v644 = vrot.slane %v642, 4
      %v645 = vshll.u32 %v174, 16
      %v647 = vrot.slane %v645, 5
      %v648 = vor.u32 %v644, %v647
      %v649 = vrot.slane %v648, 4
      %v651 = vshll.u32 %v175, 16
      %v653 = vrot.slane %v651, 5
      %v654 = vsel %vm212, %v649, %v653
      %v656 = vshrl.u32 %v178, 16
      %v658 = vrot.slane %v656, 4
      %v659 = vshll.u32 %v178, 16
      %v661 = vrot.slane %v659, 5
      %v662 = vor.u32 %v658, %v661
      %v663 = vrot.slane %v662, 4
      %v665 = vshll.u32 %v179, 16
      %v667 = vrot.slane %v665, 5
      %v668 = vsel %vm212, %v663, %v667
      %v670 = vshrl.u32 %v182, 16
      %v672 = vrot.slane %v670, 4
      %v673 = vshll.u32 %v182, 16
      %v675 = vrot.slane %v673, 5
      %v676 = vor.u32 %v672, %v675
      %v677 = vrot.slane %v676, 4
      %v679 = vshll.u32 %v183, 16
      %v681 = vrot.slane %v679, 5
      %v682 = vsel %vm212, %v677, %v681
      %v684 = vshrl.u32 %v186, 16
      %v686 = vrot.slane %v684, 4
      %v687 = vshll.u32 %v186, 16
      %v689 = vrot.slane %v687, 5
      %v690 = vor.u32 %v686, %v689
      %v691 = vrot.slane %v690, 4
      %v693 = vshll.u32 %v187, 16
      %v695 = vrot.slane %v693, 5
      %v696 = vsel %vm212, %v691, %v695
      %v698 = vshrl.u32 %v190, 16
      %v700 = vrot.slane %v698, 4
      %v701 = vshll.u32 %v190, 16
      %v703 = vrot.slane %v701, 5
      %v704 = vor.u32 %v700, %v703
      %v705 = vrot.slane %v704, 4
      %v707 = vshll.u32 %v191, 16
      %v709 = vrot.slane %v707, 5
      %v710 = vsel %vm212, %v705, %v709
      %v712 = vshrl.u32 %v194, 16
      %v714 = vrot.slane %v712, 4
      %v715 = vshll.u32 %v194, 16
      %v717 = vrot.slane %v715, 5
      %v718 = vor.u32 %v714, %v717
      %v719 = vrot.slane %v718, 4
      %v721 = vshll.u32 %v195, 16
      %v723 = vrot.slane %v721, 5
      %v724 = vsel %vm212, %v719, %v723
      %v726 = vshrl.u32 %v198, 16
      %v728 = vrot.slane %v726, 4
      %v729 = vshll.u32 %v198, 16
      %v731 = vrot.slane %v729, 5
      %v732 = vor.u32 %v728, %v731
      %v733 = vrot.slane %v732, 4
      %v735 = vshll.u32 %v199, 16
      %v737 = vrot.slane %v735, 5
      %v738 = vsel %vm212, %v733, %v737
      %v740 = vshrl.u32 %v202, 16
      %v742 = vrot.slane %v740, 4
      %v743 = vshll.u32 %v202, 16
      %v745 = vrot.slane %v743, 5
      %v746 = vor.u32 %v742, %v745
      %v747 = vrot.slane %v746, 4
      %v749 = vshll.u32 %v203, 16
      %v751 = vrot.slane %v749, 5
      %v752 = vsel %vm212, %v747, %v751
      %s753 = scalar_lea.vmem %s1, 24
      %v754 = vld [vmem:[%s753] sm:$0xf]
      %v755 = vld [vmem:[%s753 + $0x4] sm:$0xf]
      %v756 = vunpack.c.l.b16 %v654
      %v757 = vunpack.c.l.b16 %v668
      %v758 = vunpack.c.l.b16 %v682
      %v759 = vunpack.c.l.b16 %v696
      %v760 = vunpack.c.l.b16 %v710
      %v761 = vunpack.c.l.b16 %v724
      %v762 = vunpack.c.l.b16 %v738
      %v763 = vunpack.c.l.b16 %v752
      %v764 = vpack.c.b16 %v757, %v756
      %v765 = vpack.c.b16 %v759, %v758
      %v766 = vpack.c.b16 %v761, %v760
      %v767 = vpack.c.b16 %v763, %v762
      %v770 = vunpack.c.l.b16 %v754
      %v771 = vunpack.c.l.b16 %v755
      %v772 = vpack.c.b16 %v771, %v770
      %v775 = vsel %vm346, %v764, 0
      %v778 = vsel %vm346, %v765, 0
      %v781 = vsel %vm346, %v766, 0
      %v784 = vsel %vm346, %v767, 0
      %786 = vmatprep.subr.bf16.mxu0 0
      %787 = vmatpush1.bf16.msra.mxu0 0
      %788 = vmatprep.subr.bf16.mxu0 0
      %789 = vmatpush1.bf16.msra.mxu0 0
      %790 = vmatprep.subr.bf16.mxu0 0
      %791 = vmatpush1.bf16.msra.mxu0 0
      %792 = vmatprep.subr.bf16.mxu0 0
      %793 = vmatpush1.bf16.msra.mxu0 0
      %794 = vmatprep.subr.bf16.mxu0 0
      %795 = vmatpush1.bf16.msra.mxu0 0
      %796 = vmatprep.subr.bf16.mxu0 0
      %797 = vmatpush1.bf16.msra.mxu0 0
      %798 = vmatprep.subr.bf16.mxu0 0
      %799 = vmatpush1.bf16.msra.mxu0 0
      %800 = vmatprep.subr.bf16.mxu0 0
      %801 = vmatpush1.bf16.msra.mxu0 %v772
      %802 = vmatprep.subr.bf16.mxu0 0
      %803 = vmatpush2.bf16.msra.mxu0 0
      %804 = vmatprep.subr.bf16.mxu0 0
      %805 = vmatpush2.bf16.msra.mxu0 0
      %806 = vmatprep.subr.bf16.mxu0 0
      %807 = vmatpush2.bf16.msra.mxu0 0
      %808 = vmatprep.subr.bf16.mxu0 0
      %809 = vmatpush2.bf16.msra.mxu0 0
      %810 = vmatprep.subr.bf16.mxu0 0
      %811 = vmatpush2.bf16.msra.mxu0 0
      %812 = vmatprep.subr.bf16.mxu0 0
      %813 = vmatpush2.bf16.msra.mxu0 0
      %814 = vmatprep.subr.bf16.mxu0 0
      %815 = vmatpush2.bf16.msra.mxu0 0
      %816 = vmatprep.subr.bf16.mxu0 0
      %817 = vmatpush2.bf16.msra.mxu0 0
      %818 = vmatprep.mubr.bf16.mxu0 0
      %819 = vmatmul.mubr.bf16.gmra.mxu0 %v775
      %v820 = vpop.f32.mrf.mxu0
      %v821 = vadd.f32 0.0, %v820
      %v822 = vpop.f32.mrf.mxu0
      %v823 = vpop.f32.mrf.mxu0
      %v824 = vadd.f32 0.0, %v823
      %v825 = vpop.f32.mrf.mxu0
      %826 = vmatprep.mubr.bf16.mxu0 0
      %827 = vmatmul.mubr.bf16.gmra.mxu0 %v778
      %v828 = vpop.f32.mrf.mxu0
      %v829 = vadd.f32 0.0, %v828
      %v830 = vpop.f32.mrf.mxu0
      %v831 = vpop.f32.mrf.mxu0
      %v832 = vadd.f32 0.0, %v831
      %v833 = vpop.f32.mrf.mxu0
      %834 = vmatprep.mubr.bf16.mxu0 0
      %835 = vmatmul.mubr.bf16.gmra.mxu0 %v781
      %v836 = vpop.f32.mrf.mxu0
      %v837 = vadd.f32 0.0, %v836
      %v838 = vpop.f32.mrf.mxu0
      %v839 = vpop.f32.mrf.mxu0
      %v840 = vadd.f32 0.0, %v839
      %v841 = vpop.f32.mrf.mxu0
      %842 = vmatprep.mubr.bf16.mxu0 0
      %843 = vmatmul.mubr.bf16.gmra.mxu0 %v784
      %v844 = vpop.f32.mrf.mxu0
      %v845 = vadd.f32 0.0, %v844
      %v846 = vpop.f32.mrf.mxu0
      %v847 = vpop.f32.mrf.mxu0
      %v848 = vadd.f32 0.0, %v847
      %v849 = vpop.f32.mrf.mxu0
      %850 = vdwg.mxu0
      %v851 = vadd.f32 %v633, %v821
      %v852 = vadd.f32 %v634, %v824
      %v853 = vadd.f32 %v635, %v829
      %v854 = vadd.f32 %v636, %v832
      %v855 = vadd.f32 %v637, %v837
      %v856 = vadd.f32 %v638, %v840
      %v857 = vadd.f32 %v639, %v845
      %v858 = vadd.f32 %v640, %v848
      %s859 = scalar_lea.vmem %s1, 32
      %v860 = vld [vmem:[%s859] sm:$0xf]
      %v861 = vld [vmem:[%s859 + $0x4] sm:$0xf]
      %v863 = vunpack.c.l.b16 %v204
      %v864 = vpack.c.b16 %v434, %v433
      %v865 = vpack.c.b16 %v436, %v435
      %v866 = vpack.c.b16 %v438, %v437
      %v867 = vpack.c.b16 %v863, %v439
      %v870 = vunpack.c.l.b16 %v860
      %v871 = vunpack.c.l.b16 %v861
      %v872 = vpack.c.b16 %v871, %v870
      %v875 = vsel %vm346, %v864, 0
      %v878 = vsel %vm346, %v865, 0
      %v881 = vsel %vm346, %v866, 0
      %v884 = vsel %vm346, %v867, 0
      %886 = vmatprep.subr.bf16.mxu0 0
      %887 = vmatpush1.bf16.msra.mxu0 0
      %888 = vmatprep.subr.bf16.mxu0 0
      %889 = vmatpush1.bf16.msra.mxu0 0
      %890 = vmatprep.subr.bf16.mxu0 0
      %891 = vmatpush1.bf16.msra.mxu0 0
      %892 = vmatprep.subr.bf16.mxu0 0
      %893 = vmatpush1.bf16.msra.mxu0 0
      %894 = vmatprep.subr.bf16.mxu0 0
      %895 = vmatpush1.bf16.msra.mxu0 0
      %896 = vmatprep.subr.bf16.mxu0 0
      %897 = vmatpush1.bf16.msra.mxu0 0
      %898 = vmatprep.subr.bf16.mxu0 0
      %899 = vmatpush1.bf16.msra.mxu0 0
      %900 = vmatprep.subr.bf16.mxu0 0
      %901 = vmatpush1.bf16.msra.mxu0 %v872
      %902 = vmatprep.subr.bf16.mxu0 0
      %903 = vmatpush2.bf16.msra.mxu0 0
      %904 = vmatprep.subr.bf16.mxu0 0
      %905 = vmatpush2.bf16.msra.mxu0 0
      %906 = vmatprep.subr.bf16.mxu0 0
      %907 = vmatpush2.bf16.msra.mxu0 0
      %908 = vmatprep.subr.bf16.mxu0 0
      %909 = vmatpush2.bf16.msra.mxu0 0
      %910 = vmatprep.subr.bf16.mxu0 0
      %911 = vmatpush2.bf16.msra.mxu0 0
      %912 = vmatprep.subr.bf16.mxu0 0
      %913 = vmatpush2.bf16.msra.mxu0 0
      %914 = vmatprep.subr.bf16.mxu0 0
      %915 = vmatpush2.bf16.msra.mxu0 0
      %916 = vmatprep.subr.bf16.mxu0 0
      %917 = vmatpush2.bf16.msra.mxu0 0
      %918 = vmatprep.mubr.bf16.mxu0 0
      %919 = vmatmul.mubr.bf16.gmra.mxu0 %v875
      %v920 = vpop.f32.mrf.mxu0
      %v921 = vadd.f32 0.0, %v920
      %v922 = vpop.f32.mrf.mxu0
      %v923 = vpop.f32.mrf.mxu0
      %v924 = vadd.f32 0.0, %v923
      %v925 = vpop.f32.mrf.mxu0
      %926 = vmatprep.mubr.bf16.mxu0 0
      %927 = vmatmul.mubr.bf16.gmra.mxu0 %v878
      %v928 = vpop.f32.mrf.mxu0
      %v929 = vadd.f32 0.0, %v928
      %v930 = vpop.f32.mrf.mxu0
      %v931 = vpop.f32.mrf.mxu0
      %v932 = vadd.f32 0.0, %v931
      %v933 = vpop.f32.mrf.mxu0
      %934 = vmatprep.mubr.bf16.mxu0 0
      %935 = vmatmul.mubr.bf16.gmra.mxu0 %v881
      %v936 = vpop.f32.mrf.mxu0
      %v937 = vadd.f32 0.0, %v936
      %v938 = vpop.f32.mrf.mxu0
      %v939 = vpop.f32.mrf.mxu0
      %v940 = vadd.f32 0.0, %v939
      %v941 = vpop.f32.mrf.mxu0
      %942 = vmatprep.mubr.bf16.mxu0 0
      %943 = vmatmul.mubr.bf16.gmra.mxu0 %v884
      %v944 = vpop.f32.mrf.mxu0
      %v945 = vadd.f32 0.0, %v944
      %v946 = vpop.f32.mrf.mxu0
      %v947 = vpop.f32.mrf.mxu0
      %v948 = vadd.f32 0.0, %v947
      %v949 = vpop.f32.mrf.mxu0
      %950 = vdwg.mxu0
      %v951 = vadd.f32 %v851, %v921
      %v952 = vadd.f32 %v852, %v924
      %v953 = vadd.f32 %v853, %v929
      %v954 = vadd.f32 %v854, %v932
      %v955 = vadd.f32 %v855, %v937
      %v956 = vadd.f32 %v856, %v940
      %v957 = vadd.f32 %v857, %v945
      %v958 = vadd.f32 %v858, %v948
      %v960 = vshrl.u32 %v204, 16
      %v962 = vrot.slane %v960, 4
      %v963 = vshll.u32 %v204, 16
      %v965 = vrot.slane %v963, 5
      %v966 = vor.u32 %v962, %v965
      %v967 = vrot.slane %v966, 4
      %v969 = vshll.u32 %v205, 16
      %v971 = vrot.slane %v969, 5
      %v972 = vsel %vm212, %v967, %v971
      %s973 = scalar_lea.vmem %s1, 40
      %v974 = vld [vmem:[%s973] sm:$0xf]
      %v975 = vld [vmem:[%s973 + $0x4] sm:$0xf]
      %v976 = vunpack.c.l.b16 %v972
      %v977 = vpack.c.b16 %v330, %v329
      %v978 = vpack.c.b16 %v332, %v331
      %v979 = vpack.c.b16 %v334, %v333
      %v980 = vpack.c.b16 %v976, %v335
      %v983 = vunpack.c.l.b16 %v974
      %v984 = vunpack.c.l.b16 %v975
      %v985 = vpack.c.b16 %v984, %v983
      %v988 = vsel %vm346, %v977, 0
      %v991 = vsel %vm346, %v978, 0
      %v994 = vsel %vm346, %v979, 0
      %v997 = vsel %vm346, %v980, 0
      %999 = vmatprep.subr.bf16.mxu0 0
      %1000 = vmatpush1.bf16.msra.mxu0 0
      %1001 = vmatprep.subr.bf16.mxu0 0
      %1002 = vmatpush1.bf16.msra.mxu0 0
      %1003 = vmatprep.subr.bf16.mxu0 0
      %1004 = vmatpush1.bf16.msra.mxu0 0
      %1005 = vmatprep.subr.bf16.mxu0 0
      %1006 = vmatpush1.bf16.msra.mxu0 0
      %1007 = vmatprep.subr.bf16.mxu0 0
      %1008 = vmatpush1.bf16.msra.mxu0 0
      %1009 = vmatprep.subr.bf16.mxu0 0
      %1010 = vmatpush1.bf16.msra.mxu0 0
      %1011 = vmatprep.subr.bf16.mxu0 0
      %1012 = vmatpush1.bf16.msra.mxu0 0
      %1013 = vmatprep.subr.bf16.mxu0 0
      %1014 = vmatpush1.bf16.msra.mxu0 %v985
      %1015 = vmatprep.subr.bf16.mxu0 0
      %1016 = vmatpush2.bf16.msra.mxu0 0
      %1017 = vmatprep.subr.bf16.mxu0 0
      %1018 = vmatpush2.bf16.msra.mxu0 0
      %1019 = vmatprep.subr.bf16.mxu0 0
      %1020 = vmatpush2.bf16.msra.mxu0 0
      %1021 = vmatprep.subr.bf16.mxu0 0
      %1022 = vmatpush2.bf16.msra.mxu0 0
      %1023 = vmatprep.subr.bf16.mxu0 0
      %1024 = vmatpush2.bf16.msra.mxu0 0
      %1025 = vmatprep.subr.bf16.mxu0 0
      %1026 = vmatpush2.bf16.msra.mxu0 0
      %1027 = vmatprep.subr.bf16.mxu0 0
      %1028 = vmatpush2.bf16.msra.mxu0 0
      %1029 = vmatprep.subr.bf16.mxu0 0
      %1030 = vmatpush2.bf16.msra.mxu0 0
      %1031 = vmatprep.mubr.bf16.mxu0 0
      %1032 = vmatmul.mubr.bf16.gmra.mxu0 %v988
      %v1033 = vpop.f32.mrf.mxu0
      %v1034 = vadd.f32 0.0, %v1033
      %v1035 = vpop.f32.mrf.mxu0
      %v1036 = vpop.f32.mrf.mxu0
      %v1037 = vadd.f32 0.0, %v1036
      %v1038 = vpop.f32.mrf.mxu0
      %1039 = vmatprep.mubr.bf16.mxu0 0
      %1040 = vmatmul.mubr.bf16.gmra.mxu0 %v991
      %v1041 = vpop.f32.mrf.mxu0
      %v1042 = vadd.f32 0.0, %v1041
      %v1043 = vpop.f32.mrf.mxu0
      %v1044 = vpop.f32.mrf.mxu0
      %v1045 = vadd.f32 0.0, %v1044
      %v1046 = vpop.f32.mrf.mxu0
      %1047 = vmatprep.mubr.bf16.mxu0 0
      %1048 = vmatmul.mubr.bf16.gmra.mxu0 %v994
      %v1049 = vpop.f32.mrf.mxu0
      %v1050 = vadd.f32 0.0, %v1049
      %v1051 = vpop.f32.mrf.mxu0
      %v1052 = vpop.f32.mrf.mxu0
      %v1053 = vadd.f32 0.0, %v1052
      %v1054 = vpop.f32.mrf.mxu0
      %1055 = vmatprep.mubr.bf16.mxu0 0
      %1056 = vmatmul.mubr.bf16.gmra.mxu0 %v997
      %v1057 = vpop.f32.mrf.mxu0
      %v1058 = vadd.f32 0.0, %v1057
      %v1059 = vpop.f32.mrf.mxu0
      %v1060 = vpop.f32.mrf.mxu0
      %v1061 = vadd.f32 0.0, %v1060
      %v1062 = vpop.f32.mrf.mxu0
      %1063 = vdwg.mxu0
      %v1064 = vadd.f32 %v951, %v1034
      %v1065 = vadd.f32 %v952, %v1037
      %v1066 = vadd.f32 %v953, %v1042
      %v1067 = vadd.f32 %v954, %v1045
      %v1068 = vadd.f32 %v955, %v1050
      %v1069 = vadd.f32 %v956, %v1053
      %v1070 = vadd.f32 %v957, %v1058
      %v1071 = vadd.f32 %v958, %v1061
      %s1072 = scalar_lea.vmem %s1, 48
      %v1073 = vld [vmem:[%s1072] sm:$0xf]
      %v1074 = vld [vmem:[%s1072 + $0x4] sm:$0xf]
      %v1076 = vunpack.c.l.b16 %v206
      %v1077 = vpack.c.b16 %v540, %v539
      %v1078 = vpack.c.b16 %v542, %v541
      %v1079 = vpack.c.b16 %v544, %v543
      %v1080 = vpack.c.b16 %v1076, %v545
      %v1083 = vunpack.c.l.b16 %v1073
      %v1084 = vunpack.c.l.b16 %v1074
      %v1085 = vpack.c.b16 %v1084, %v1083
      %v1088 = vsel %vm346, %v1077, 0
      %v1091 = vsel %vm346, %v1078, 0
      %v1094 = vsel %vm346, %v1079, 0
      %v1097 = vsel %vm346, %v1080, 0
      %1099 = vmatprep.subr.bf16.mxu0 0
      %1100 = vmatpush1.bf16.msra.mxu0 0
      %1101 = vmatprep.subr.bf16.mxu0 0
      %1102 = vmatpush1.bf16.msra.mxu0 0
      %1103 = vmatprep.subr.bf16.mxu0 0
      %1104 = vmatpush1.bf16.msra.mxu0 0
      %1105 = vmatprep.subr.bf16.mxu0 0
      %1106 = vmatpush1.bf16.msra.mxu0 0
      %1107 = vmatprep.subr.bf16.mxu0 0
      %1108 = vmatpush1.bf16.msra.mxu0 0
      %1109 = vmatprep.subr.bf16.mxu0 0
      %1110 = vmatpush1.bf16.msra.mxu0 0
      %1111 = vmatprep.subr.bf16.mxu0 0
      %1112 = vmatpush1.bf16.msra.mxu0 0
      %1113 = vmatprep.subr.bf16.mxu0 0
      %1114 = vmatpush1.bf16.msra.mxu0 %v1085
      %1115 = vmatprep.subr.bf16.mxu0 0
      %1116 = vmatpush2.bf16.msra.mxu0 0
      %1117 = vmatprep.subr.bf16.mxu0 0
      %1118 = vmatpush2.bf16.msra.mxu0 0
      %1119 = vmatprep.subr.bf16.mxu0 0
      %1120 = vmatpush2.bf16.msra.mxu0 0
      %1121 = vmatprep.subr.bf16.mxu0 0
      %1122 = vmatpush2.bf16.msra.mxu0 0
      %1123 = vmatprep.subr.bf16.mxu0 0
      %1124 = vmatpush2.bf16.msra.mxu0 0
      %1125 = vmatprep.subr.bf16.mxu0 0
      %1126 = vmatpush2.bf16.msra.mxu0 0
      %1127 = vmatprep.subr.bf16.mxu0 0
      %1128 = vmatpush2.bf16.msra.mxu0 0
      %1129 = vmatprep.subr.bf16.mxu0 0
      %1130 = vmatpush2.bf16.msra.mxu0 0
      %1131 = vmatprep.mubr.bf16.mxu0 0
      %1132 = vmatmul.mubr.bf16.gmra.mxu0 %v1088
      %v1133 = vpop.f32.mrf.mxu0
      %v1134 = vadd.f32 0.0, %v1133
      %v1135 = vpop.f32.mrf.mxu0
      %v1136 = vpop.f32.mrf.mxu0
      %v1137 = vadd.f32 0.0, %v1136
      %v1138 = vpop.f32.mrf.mxu0
      %1139 = vmatprep.mubr.bf16.mxu0 0
      %1140 = vmatmul.mubr.bf16.gmra.mxu0 %v1091
      %v1141 = vpop.f32.mrf.mxu0
      %v1142 = vadd.f32 0.0, %v1141
      %v1143 = vpop.f32.mrf.mxu0
      %v1144 = vpop.f32.mrf.mxu0
      %v1145 = vadd.f32 0.0, %v1144
      %v1146 = vpop.f32.mrf.mxu0
      %1147 = vmatprep.mubr.bf16.mxu0 0
      %1148 = vmatmul.mubr.bf16.gmra.mxu0 %v1094
      %v1149 = vpop.f32.mrf.mxu0
      %v1150 = vadd.f32 0.0, %v1149
      %v1151 = vpop.f32.mrf.mxu0
      %v1152 = vpop.f32.mrf.mxu0
      %v1153 = vadd.f32 0.0, %v1152
      %v1154 = vpop.f32.mrf.mxu0
      %1155 = vmatprep.mubr.bf16.mxu0 0
      %1156 = vmatmul.mubr.bf16.gmra.mxu0 %v1097
      %v1157 = vpop.f32.mrf.mxu0
      %v1158 = vadd.f32 0.0, %v1157
      %v1159 = vpop.f32.mrf.mxu0
      %v1160 = vpop.f32.mrf.mxu0
      %v1161 = vadd.f32 0.0, %v1160
      %v1162 = vpop.f32.mrf.mxu0
      %1163 = vdwg.mxu0
      %v1164 = vadd.f32 %v1064, %v1134
      %v1165 = vadd.f32 %v1065, %v1137
      %v1166 = vadd.f32 %v1066, %v1142
      %v1167 = vadd.f32 %v1067, %v1145
      %v1168 = vadd.f32 %v1068, %v1150
      %v1169 = vadd.f32 %v1069, %v1153
      %v1170 = vadd.f32 %v1070, %v1158
      %v1171 = vadd.f32 %v1071, %v1161
      %v1173 = vshrl.u32 %v206, 16
      %v1175 = vrot.slane %v1173, 4
      %v1176 = vshll.u32 %v206, 16
      %v1178 = vrot.slane %v1176, 5
      %v1179 = vor.u32 %v1175, %v1178
      %v1180 = vrot.slane %v1179, 4
      %v1182 = vshll.u32 %v207, 16
      %v1184 = vrot.slane %v1182, 5
      %v1185 = vsel %vm212, %v1180, %v1184
      %s1186 = scalar_lea.vmem %s1, 56
      %v1187 = vld [vmem:[%s1186] sm:$0xf]
      %v1188 = vld [vmem:[%s1186 + $0x4] sm:$0xf]
      %v1189 = vunpack.c.l.b16 %v1185
      %v1190 = vpack.c.b16 %v758, %v757
      %v1191 = vpack.c.b16 %v760, %v759
      %v1192 = vpack.c.b16 %v762, %v761
      %v1193 = vpack.c.b16 %v1189, %v763
      %v1196 = vunpack.c.l.b16 %v1187
      %v1197 = vunpack.c.l.b16 %v1188
      %v1198 = vpack.c.b16 %v1197, %v1196
      %v1201 = vsel %vm346, %v1190, 0
      %v1204 = vsel %vm346, %v1191, 0
      %v1207 = vsel %vm346, %v1192, 0
      %v1210 = vsel %vm346, %v1193, 0
      %1212 = vmatprep.subr.bf16.mxu0 0
      %1213 = vmatpush1.bf16.msra.mxu0 0
      %1214 = vmatprep.subr.bf16.mxu0 0
      %1215 = vmatpush1.bf16.msra.mxu0 0
      %1216 = vmatprep.subr.bf16.mxu0 0
      %1217 = vmatpush1.bf16.msra.mxu0 0
      %1218 = vmatprep.subr.bf16.mxu0 0
      %1219 = vmatpush1.bf16.msra.mxu0 0
      %1220 = vmatprep.subr.bf16.mxu0 0
      %1221 = vmatpush1.bf16.msra.mxu0 0
      %1222 = vmatprep.subr.bf16.mxu0 0
      %1223 = vmatpush1.bf16.msra.mxu0 0
      %1224 = vmatprep.subr.bf16.mxu0 0
      %1225 = vmatpush1.bf16.msra.mxu0 0
      %1226 = vmatprep.subr.bf16.mxu0 0
      %1227 = vmatpush1.bf16.msra.mxu0 %v1198
      %1228 = vmatprep.subr.bf16.mxu0 0
      %1229 = vmatpush2.bf16.msra.mxu0 0
      %1230 = vmatprep.subr.bf16.mxu0 0
      %1231 = vmatpush2.bf16.msra.mxu0 0
      %1232 = vmatprep.subr.bf16.mxu0 0
      %1233 = vmatpush2.bf16.msra.mxu0 0
      %1234 = vmatprep.subr.bf16.mxu0 0
      %1235 = vmatpush2.bf16.msra.mxu0 0
      %1236 = vmatprep.subr.bf16.mxu0 0
      %1237 = vmatpush2.bf16.msra.mxu0 0
      %1238 = vmatprep.subr.bf16.mxu0 0
      %1239 = vmatpush2.bf16.msra.mxu0 0
      %1240 = vmatprep.subr.bf16.mxu0 0
      %1241 = vmatpush2.bf16.msra.mxu0 0
      %1242 = vmatprep.subr.bf16.mxu0 0
      %1243 = vmatpush2.bf16.msra.mxu0 0
      %1244 = vmatprep.mubr.bf16.mxu0 0
      %1245 = vmatmul.mubr.bf16.gmra.mxu0 %v1201
      %v1246 = vpop.f32.mrf.mxu0
      %v1247 = vadd.f32 0.0, %v1246
      %v1248 = vpop.f32.mrf.mxu0
      %v1249 = vpop.f32.mrf.mxu0
      %v1250 = vadd.f32 0.0, %v1249
      %v1251 = vpop.f32.mrf.mxu0
      %1252 = vmatprep.mubr.bf16.mxu0 0
      %1253 = vmatmul.mubr.bf16.gmra.mxu0 %v1204
      %v1254 = vpop.f32.mrf.mxu0
      %v1255 = vadd.f32 0.0, %v1254
      %v1256 = vpop.f32.mrf.mxu0
      %v1257 = vpop.f32.mrf.mxu0
      %v1258 = vadd.f32 0.0, %v1257
      %v1259 = vpop.f32.mrf.mxu0
      %1260 = vmatprep.mubr.bf16.mxu0 0
      %1261 = vmatmul.mubr.bf16.gmra.mxu0 %v1207
      %v1262 = vpop.f32.mrf.mxu0
      %v1263 = vadd.f32 0.0, %v1262
      %v1264 = vpop.f32.mrf.mxu0
      %v1265 = vpop.f32.mrf.mxu0
      %v1266 = vadd.f32 0.0, %v1265
      %v1267 = vpop.f32.mrf.mxu0
      %1268 = vmatprep.mubr.bf16.mxu0 0
      %1269 = vmatmul.mubr.bf16.gmra.mxu0 %v1210
      %v1270 = vpop.f32.mrf.mxu0
      %v1271 = vadd.f32 0.0, %v1270
      %v1272 = vpop.f32.mrf.mxu0
      %v1273 = vpop.f32.mrf.mxu0
      %v1274 = vadd.f32 0.0, %v1273
      %v1275 = vpop.f32.mrf.mxu0
      %1276 = vdwg.mxu0
      %v1277 = vadd.f32 %v1164, %v1247
      %v1278 = vadd.f32 %v1165, %v1250
      %v1279 = vadd.f32 %v1166, %v1255
      %v1280 = vadd.f32 %v1167, %v1258
      %v1281 = vadd.f32 %v1168, %v1263
      %v1282 = vadd.f32 %v1169, %v1266
      %v1283 = vadd.f32 %v1170, %v1271
      %v1284 = vadd.f32 %v1171, %v1274
      %v1285 = vld [vmem:[%s2] sm:$0x1]
      %v1287 = vlaneseq
      %v1288 = vshrl.u32 %v1287, 7
      %v1289 = vsub.s32 0, %v1288
      %v1290 = vrot.slane %v1285, %v1289
      %v1292 = vadd.f32 %v1277, %v1290
      %v1293 = vadd.f32 %v1278, %v1290
      %v1294 = vadd.f32 %v1279, %v1290
      %v1295 = vadd.f32 %v1280, %v1290
      %v1296 = vadd.f32 %v1281, %v1290
      %v1297 = vadd.f32 %v1282, %v1290
      %v1298 = vadd.f32 %v1283, %v1290
      %v1299 = vadd.f32 %v1284, %v1290
      %vm1300 = vcmp.ge.f32.partialorder %v1292, 0.0
      %vm1301 = vcmp.ge.f32.partialorder %v1293, 0.0
      %vm1302 = vcmp.ge.f32.partialorder %v1294, 0.0
      %vm1303 = vcmp.ge.f32.partialorder %v1295, 0.0
      %vm1304 = vcmp.ge.f32.partialorder %v1296, 0.0
      %vm1305 = vcmp.ge.f32.partialorder %v1297, 0.0
      %vm1306 = vcmp.ge.f32.partialorder %v1298, 0.0
      %vm1307 = vcmp.ge.f32.partialorder %v1299, 0.0
      %v1308 = vmul.f32 %v1292, 0.2
      %v1309 = vmul.f32 %v1293, 0.2
      %v1310 = vmul.f32 %v1294, 0.2
      %v1311 = vmul.f32 %v1295, 0.2
      %v1312 = vmul.f32 %v1296, 0.2
      %v1313 = vmul.f32 %v1297, 0.2
      %v1314 = vmul.f32 %v1298, 0.2
      %v1315 = vmul.f32 %v1299, 0.2
      %v1316 = vsel %vm1300, %v1292, %v1308
      %v1317 = vsel %vm1301, %v1293, %v1309
      %v1318 = vsel %vm1302, %v1294, %v1310
      %v1319 = vsel %vm1303, %v1295, %v1311
      %v1320 = vsel %vm1304, %v1296, %v1312
      %v1321 = vsel %vm1305, %v1297, %v1313
      %v1322 = vsel %vm1306, %v1298, %v1314
      %v1323 = vsel %vm1307, %v1299, %v1315
      %v1324 = vpack.c.bf16 %v1317, %v1316
      %v1325 = vpack.c.bf16 %v1319, %v1318
      %v1326 = vpack.c.bf16 %v1321, %v1320
      %v1327 = vpack.c.bf16 %v1323, %v1322
      %v1332 = vunpack.c.l.b16 %v1324
      %v1333 = vunpack.c.h.b16 %v1324
      %v1334 = vunpack.c.l.b16 %v1325
      %v1335 = vunpack.c.h.b16 %v1325
      %v1336 = vunpack.c.l.b16 %v1326
      %v1337 = vunpack.c.h.b16 %v1326
      %v1338 = vunpack.c.l.b16 %v1327
      %v1339 = vunpack.c.h.b16 %v1327
      %v1340 = vpack.c.b16 %v1332, %v1332
      %v1341 = vpack.c.b16 %v1333, %v1333
      %v1342 = vpack.c.b16 %v1334, %v1334
      %v1343 = vpack.c.b16 %v1335, %v1335
      %v1344 = vpack.c.b16 %v1336, %v1336
      %v1345 = vpack.c.b16 %v1337, %v1337
      %v1346 = vpack.c.b16 %v1338, %v1338
      %v1347 = vpack.c.b16 %v1339, %v1339
      %1356 = vst [vmem:[%s170] sm:$0xf] %v1340
      %1357 = vst [vmem:[%s170 + $0x4] sm:$0xf] %v1341
      %1358 = vst [vmem:[%s170 + $0x8] sm:$0xf] %v1342
      %1359 = vst [vmem:[%s170 + $0xc] sm:$0xf] %v1343
      %1360 = vst [vmem:[%s170 + $0x10] sm:$0xf] %v1344
      %1361 = vst [vmem:[%s170 + $0x14] sm:$0xf] %v1345
      %1362 = vst [vmem:[%s170 + $0x18] sm:$0xf] %v1346
      %1363 = vst [vmem:[%s170 + $0x1c] sm:$0xf] %v1347
      %p1364 = scmp.lt.s32.totalorder %s14, 1
      %s1365 = scalar_select %p1364, %s14, 1
      %s1366 = smul.addr %s1365, 8
      %s1367 = smul.addr %s1366, 4
      %s1368 = scalar_lea.vmem %s3, %s1367
      // Predicated region
      $region33: #{_lambda_.4} parent=31 // pred_check
        %p1369 = pneg %p100
      $region34: #{_lambda_.4} parent=31 // pred_check_branch
        %1371 = sbr.rel (%p1369) target = $region36
      $region35: #{_lambda_.4} parent=31 // pred_region
        _
      $region36: #{_lambda_.4} parent=31 // pred_fallthru
        _
    $region32: #{_lambda_.4} parent=5 // pred_fallthru
      _
    %p1372 = scmp.le.s32.totalorder 2, %s9
    // Predicated region
    $region37: #{_lambda_.4} parent=5 // pred_check
      %p1373 = pneg %p1372
    $region38: #{_lambda_.4} parent=5 // pred_check_branch
      %1375 = sbr.rel (%p1373) target = $region40
    $region39: #{_lambda_.4} parent=5 // pred_region
      %s1376 = ssub.s32 %s9, 2
      // Predicated region
      $region41: #{_lambda_.4} parent=39 // pred_check
        %p1377 = pneg %p106
      $region42: #{_lambda_.4} parent=39 // pred_check_branch
        %1379 = sbr.rel (%p1377) target = $region44
      $region43: #{_lambda_.4} parent=39 // pred_region
        %p1380 = scmp.lt.s32.totalorder %s15, 1
        %s1381 = scalar_select %p1380, %s15, 1
        %s1382 = smul.addr %s1381, 8
        %s1383 = smul.addr %s1382, 4
        %s1384 = scalar_lea.vmem %s3, %s1383
      $region44: #{_lambda_.4} parent=39 // pred_fallthru
        _
    $region40: #{_lambda_.4} parent=5 // pred_fallthru
      _
  $region6: #{_lambda_.4} parent=0 // loop_footer
    %s13 = sadd.s32 1, %s9
  $region7: #{_lambda_.4} parent=0 // loop_footer_branch
    %8 = sbr.rel target = $region3
  $region8: #{_lambda_.4} parent=0 // loop_exit
    _

// kernel: _lambda_.5
$region0: #{_lambda_.5}
  #allocation0 [shape = 'u32[]', space=smem, size = 0x4, offset = 0x4, fixed_abs, tag = 'smem constant byte address 0x4 - core index']
  #allocation1 [shape = 'u32[144,128]{1,0:T(1,128)}', space=vmem, size = 0x12000, scoped, tag = 'internal scratch']
  %s0 = inlined_call_operand.vmem [shape: bf16[2,5,2,5,256], index: 0, kind: input, shape index: {}]
  %s1 = inlined_call_operand.vmem [shape: bf16[4,2,256,128], index: 1, kind: input, shape index: {}]
  %s2 = inlined_call_operand.vmem [shape: bf16[2,16,128], index: 2, kind: output, shape index: {0}]
  %s3 = inlined_call_operand.vmem [shape: f32[2,1,128], index: 3, kind: output, shape index: {1}]
  %s4 = inlined_call_operand.vmem [shape: f32[2,1,128], index: 4, kind: output, shape index: {2}]
  %5 = xla_tuple %s2, %s3, %s4
  %s6 = sld [smem:[#allocation0]]
  $region57: #{_lambda_.5} parent=0
    _
  %s8 = ssub.s32 1, %s6
  %s9 = scalar_select 0, %s8, %s6
  loop: start=0, step=1, limit=4
  $region2: #{_lambda_.5} parent=0 // loop_pre_header
    _
  $region3: #{_lambda_.5} parent=0 // loop_header
    %s11 = sphi 0, %s15
    %p12 = scmp.ge.s32.totalorder %s11, 4
    %s21 = sphi 0, %s23
    %s24 = sphi 0, %s21
    %s25 = sphi 0, %s24
    %s41 = sphi 0, %s25
    %s45 = sphi 0, %s45
    %s47 = sphi 0, %s45
    %s48 = sphi 0, %s47
    %s62 = sphi 0, %s48
    %s68 = sphi 0, %s70
    %s71 = sphi 0, %s68
    %s72 = sphi 0, %s71
    %s88 = sphi 0, %s72
    %s94 = sphi 0, %s96
    %s97 = sphi 0, %s94
    %s98 = sphi 0, %s97
    %s114 = sphi 0, %s98
    %s120 = sphi 0, %s122
    %s123 = sphi 0, %s120
    %s124 = sphi 0, %s123
    %s140 = sphi 0, %s124
  $region4: #{_lambda_.5} parent=0 // loop_header_branch
    %14 = sbr.rel (%p12) target = $region8
  $region5: #{_lambda_.5} parent=0 // loop_body
    %s16 = ssub.s32 %s11, 1
    %s17 = ssub.s32 %s11, 2
    %s18 = sadd.s32 %s11, 1
    %s19 = ssub.s32 %s11, %s18
    %p20 = scmp.eq.s32.totalorder %s19, 0
    %s22 = sadd.s32 %s21, 1
    %s23 = scalar_select %p20, %s21, %s22
    %p26 = pneg %p20
    %p27 = scmp.eq.s32.totalorder %s11, 1
    %p28 = por %p26, %p27
    %p29 = scmp.ne.s32.totalorder %s21, %s24
    %p30 = scmp.eq.s32.totalorder %s11, 0
    %p31 = por %p29, %p30
    %p32 = scmp.ne.s32.totalorder %s21, %s24
    %p33 = scmp.eq.s32.totalorder %s16, 1
    %p34 = por %p32, %p33
    %p35 = scmp.ne.s32.totalorder %s24, %s25
    %p36 = scmp.eq.s32.totalorder %s16, 0
    %p37 = por %p35, %p36
    %p38 = scmp.ne.s32.totalorder %s24, %s25
    %p39 = scmp.eq.s32.totalorder %s17, 1
    %p40 = por %p38, %p39
    %p42 = scmp.ne.s32.totalorder %s25, %s41
    %p43 = scmp.eq.s32.totalorder %s17, 0
    %p44 = por %p42, %p43
    %s46 = sadd.s32 %s45, 1
    %p49 = scmp.eq.s32.totalorder %s11, 1
    %p50 = scmp.ne.s32.totalorder %s45, %s47
    %p51 = scmp.eq.s32.totalorder %s11, 0
    %p52 = por %p50, %p51
    %p53 = scmp.ne.s32.totalorder %s45, %s47
    %p54 = scmp.eq.s32.totalorder %s16, 1
    %p55 = por %p53, %p54
    %p56 = scmp.ne.s32.totalorder %s47, %s48
    %p57 = scmp.eq.s32.totalorder %s16, 0
    %p58 = por %p56, %p57
    %p59 = scmp.ne.s32.totalorder %s47, %s48
    %p60 = scmp.eq.s32.totalorder %s17, 1
    %p61 = por %p59, %p60
    %p63 = scmp.ne.s32.totalorder %s48, %s62
    %p64 = scmp.eq.s32.totalorder %s17, 0
    %p65 = por %p63, %p64
    %s66 = ssub.s32 %s11, %s18
    %p67 = scmp.eq.s32.totalorder %s66, 0
    %s69 = sadd.s32 %s68, 1
    %s70 = scalar_select %p67, %s68, %s69
    %p73 = pneg %p67
    %p74 = scmp.eq.s32.totalorder %s11, 1
    %p75 = por %p73, %p74
    %p76 = scmp.ne.s32.totalorder %s68, %s71
    %p77 = scmp.eq.s32.totalorder %s11, 0
    %p78 = por %p76, %p77
    %p79 = scmp.ne.s32.totalorder %s68, %s71
    %p80 = scmp.eq.s32.totalorder %s16, 1
    %p81 = por %p79, %p80
    %p82 = scmp.ne.s32.totalorder %s71, %s72
    %p83 = scmp.eq.s32.totalorder %s16, 0
    %p84 = por %p82, %p83
    %p85 = scmp.ne.s32.totalorder %s71, %s72
    %p86 = scmp.eq.s32.totalorder %s17, 1
    %p87 = por %p85, %p86
    %p89 = scmp.ne.s32.totalorder %s72, %s88
    %p90 = scmp.eq.s32.totalorder %s17, 0
    %p91 = por %p89, %p90
    %s92 = ssub.s32 %s11, %s18
    %p93 = scmp.eq.s32.totalorder %s92, 0
    %s95 = sadd.s32 %s94, 1
    %s96 = scalar_select %p93, %s94, %s95
    %p99 = pneg %p93
    %p100 = scmp.eq.s32.totalorder %s11, 1
    %p101 = por %p99, %p100
    %p102 = scmp.ne.s32.totalorder %s94, %s97
    %p103 = scmp.eq.s32.totalorder %s11, 0
    %p104 = por %p102, %p103
    %p105 = scmp.ne.s32.totalorder %s94, %s97
    %p106 = scmp.eq.s32.totalorder %s16, 1
    %p107 = por %p105, %p106
    %p108 = scmp.ne.s32.totalorder %s97, %s98
    %p109 = scmp.eq.s32.totalorder %s16, 0
    %p110 = por %p108, %p109
    %p111 = scmp.ne.s32.totalorder %s97, %s98
    %p112 = scmp.eq.s32.totalorder %s17, 1
    %p113 = por %p111, %p112
    %p115 = scmp.ne.s32.totalorder %s98, %s114
    %p116 = scmp.eq.s32.totalorder %s17, 0
    %p117 = por %p115, %p116
    %s118 = ssub.s32 %s11, %s18
    %p119 = scmp.eq.s32.totalorder %s118, 0
    %s121 = sadd.s32 %s120, 1
    %s122 = scalar_select %p119, %s120, %s121
    %p125 = pneg %p119
    %p126 = scmp.eq.s32.totalorder %s11, 1
    %p127 = por %p125, %p126
    %p128 = scmp.ne.s32.totalorder %s120, %s123
    %p129 = scmp.eq.s32.totalorder %s11, 0
    %p130 = por %p128, %p129
    %p131 = scmp.ne.s32.totalorder %s120, %s123
    %p132 = scmp.eq.s32.totalorder %s16, 1
    %p133 = por %p131, %p132
    %p134 = scmp.ne.s32.totalorder %s123, %s124
    %p135 = scmp.eq.s32.totalorder %s16, 0
    %p136 = por %p134, %p135
    %p137 = scmp.ne.s32.totalorder %s123, %s124
    %p138 = scmp.eq.s32.totalorder %s17, 1
    %p139 = por %p137, %p138
    %p141 = scmp.ne.s32.totalorder %s124, %s140
    %p142 = scmp.eq.s32.totalorder %s17, 0
    %p143 = por %p141, %p142
    %p144 = scmp.le.s32.totalorder 1, %s11
    %p145 = scmp.lt.s32.totalorder %s11, 3
    %p146 = pnand %p144, %p145
    %p147 = pneg %p146
    // Predicated region
    $region9: #{_lambda_.5} parent=5 // pred_check
      _
    $region10: #{_lambda_.5} parent=5 // pred_check_branch
      %149 = sbr.rel (%p146) target = $region12
    $region11: #{_lambda_.5} parent=5 // pred_region
      %s150 = ssub.s32 %s11, 1
      // Predicated region
      $region13: #{_lambda_.5} parent=11 // pred_check
        %p151 = pneg %p58
      $region14: #{_lambda_.5} parent=11 // pred_check_branch
        %153 = sbr.rel (%p151) target = $region16
      $region15: #{_lambda_.5} parent=11 // pred_region
        _
      $region16: #{_lambda_.5} parent=11 // pred_fallthru
        _
    $region12: #{_lambda_.5} parent=5 // pred_fallthru
      _
    %p154 = scmp.lt.s32.totalorder %s11, 2
    // Predicated region
    $region17: #{_lambda_.5} parent=5 // pred_check
      %p155 = pneg %p154
    $region18: #{_lambda_.5} parent=5 // pred_check_branch
      %157 = sbr.rel (%p155) target = $region20
    $region19: #{_lambda_.5} parent=5 // pred_region
      // Predicated region
      $region21: #{_lambda_.5} parent=19 // pred_check
        %p158 = pneg %p31
      $region22: #{_lambda_.5} parent=19 // pred_check_branch
        %160 = sbr.rel (%p158) target = $region24
      $region23: #{_lambda_.5} parent=19 // pred_region
        %p161 = scmp.lt.s32.totalorder %s11, 1
        %s162 = scalar_select %p161, %s11, 1
        %s163 = smul.addr %s162, 20
        %s164 = smul.addr %s163, 4
        %s165 = scalar_lea.vmem %s0, %s164
      $region24: #{_lambda_.5} parent=19 // pred_fallthru
        _
    $region20: #{_lambda_.5} parent=5 // pred_fallthru
      _
    %p166 = scmp.le.s32.totalorder 1, %s11
    %p167 = scmp.lt.s32.totalorder %s11, 3
    %p168 = pnand %p166, %p167
    %p169 = pneg %p168
    // Predicated region
    $region25: #{_lambda_.5} parent=5 // pred_check
      _
    $region26: #{_lambda_.5} parent=5 // pred_check_branch
      %171 = sbr.rel (%p168) target = $region28
    $region27: #{_lambda_.5} parent=5 // pred_region
      %s172 = ssub.s32 %s11, 1
      %p173 = scmp.lt.s32.totalorder %s16, 1
      %s174 = scalar_select %p173, %s16, 1
      %s175 = smul.addr %s174, 20
      %s176 = smul.addr %s175, 4
      %s177 = scalar_lea.vmem %s0, %s176
      %p178 = pneg %p37
      %p179 = pneg %p34
      %p180 = pneg %p58
      %p181 = pneg %p55
      %p182 = pneg %p84
      %p183 = pneg %p81
      %p184 = scmp.lt.s32.totalorder %s16, 1
      %s185 = scalar_select %p184, %s16, 1
      %s186 = smul.addr %s185, 2
      %s187 = smul.addr %s186, 4
      %s188 = scalar_lea.vmem %s2, %s187
      %p189 = pneg %p110
      %p190 = pneg %p107
      %p191 = scmp.lt.s32.totalorder %s16, 1
      %s192 = scalar_select %p191, %s16, 1
      %s193 = scalar_lea.vmem %s3, %s192
      %p194 = pneg %p136
      %p195 = pneg %p133
      %p196 = scmp.lt.s32.totalorder %s16, 1
      %s197 = scalar_select %p196, %s16, 1
      %s198 = scalar_lea.vmem %s4, %s197
      %p199 = scmp.lt.s32.totalorder %s16, 1
      %s200 = scalar_select %p199, %s16, 1
      %s201 = smul.addr %s200, 20
      %s202 = smul.addr %s201, 4
      %s203 = scalar_lea.vmem %s0, %s202
      %p204 = scmp.lt.s32.totalorder %s16, 1
      %s205 = scalar_select %p204, %s16, 1
      %s206 = smul.addr %s205, 2
      %s207 = smul.addr %s206, 4
      %s208 = scalar_lea.vmem %s2, %s207
      %p209 = scmp.lt.s32.totalorder %s16, 1
      %s210 = scalar_select %p209, %s16, 1
      %s211 = scalar_lea.vmem %s3, %s210
      %p212 = scmp.lt.s32.totalorder %s16, 1
      %s213 = scalar_select %p212, %s16, 1
      %s214 = scalar_lea.vmem %s4, %s213
      %v216 = vld [vmem:[%s203] sm:$0x77]
      %v217 = vld [vmem:[%s203 + $0x8] sm:$0x77]
      %v218 = vld [vmem:[%s203 + $0x10] sm:$0x77]
      %v219 = vld [vmem:[%s203 + $0x18] sm:$0x77]
      %v220 = vld [vmem:[%s203 + $0x20] sm:$0x77]
      %v221 = vld [vmem:[%s203 + $0x28] sm:$0x77]
      %v222 = vld [vmem:[%s203 + $0x30] sm:$0x77]
      %v223 = vld [vmem:[%s203 + $0x38] sm:$0x77]
      %v224 = vld [vmem:[%s203 + $0x40] sm:$0x77]
      %v225 = vld [vmem:[%s203 + $0x48] sm:$0x77]
      %v231 = vunpack.c.l.s4 1983009808
      %v232 = vunpack.c.0.s8 %v231
      %v233 = vlaneseq
      %v234 = vshrl.u32 %v233, 7
      %v235 = vsub.s32 %v232, %v234
      %v236 = vrot.slane %v216, %v235
      %v238 = vunpack.c.l.s4 1983009808
      %v239 = vunpack.c.0.s8 %v238
      %v240 = vlaneseq
      %v241 = vshrl.u32 %v240, 7
      %v242 = vsub.s32 %v239, %v241
      %v243 = vrot.slane %v218, %v242
      %v245 = vunpack.c.l.s4 1983009808
      %v246 = vunpack.c.0.s8 %v245
      %v247 = vlaneseq
      %v248 = vshrl.u32 %v247, 7
      %v249 = vsub.s32 %v246, %v248
      %v250 = vrot.slane %v220, %v249
      %v252 = vunpack.c.l.s4 1983009808
      %v253 = vunpack.c.0.s8 %v252
      %v254 = vlaneseq
      %v255 = vshrl.u32 %v254, 7
      %v256 = vsub.s32 %v253, %v255
      %v257 = vrot.slane %v222, %v256
      %v258 = vld [vmem:[%s1] sm:$0xf]
      %v259 = vld [vmem:[%s1 + $0x4] sm:$0xf]
      %v260 = vld [vmem:[%s1 + $0x8] sm:$0xf]
      %v261 = vld [vmem:[%s1 + $0xc] sm:$0xf]
      %v262 = vld [vmem:[%s1 + $0x10] sm:$0xf]
      %v263 = vld [vmem:[%s1 + $0x14] sm:$0xf]
      %v264 = vld [vmem:[%s1 + $0x18] sm:$0xf]
      %v265 = vld [vmem:[%s1 + $0x1c] sm:$0xf]
      %v266 = vld [vmem:[%s1 + $0x20] sm:$0xf]
      %v267 = vld [vmem:[%s1 + $0x24] sm:$0xf]
      %v268 = vld [vmem:[%s1 + $0x28] sm:$0xf]
      %v269 = vld [vmem:[%s1 + $0x2c] sm:$0xf]
      %v270 = vld [vmem:[%s1 + $0x30] sm:$0xf]
      %v271 = vld [vmem:[%s1 + $0x34] sm:$0xf]
      %v272 = vld [vmem:[%s1 + $0x38] sm:$0xf]
      %v273 = vld [vmem:[%s1 + $0x3c] sm:$0xf]
      %v274 = vld [vmem:[%s1 + $0x40] sm:$0xf]
      %v275 = vld [vmem:[%s1 + $0x44] sm:$0xf]
      %v276 = vld [vmem:[%s1 + $0x48] sm:$0xf]
      %v277 = vld [vmem:[%s1 + $0x4c] sm:$0xf]
      %v278 = vld [vmem:[%s1 + $0x50] sm:$0xf]
      %v279 = vld [vmem:[%s1 + $0x54] sm:$0xf]
      %v280 = vld [vmem:[%s1 + $0x58] sm:$0xf]
      %v281 = vld [vmem:[%s1 + $0x5c] sm:$0xf]
      %v282 = vld [vmem:[%s1 + $0x60] sm:$0xf]
      %v283 = vld [vmem:[%s1 + $0x64] sm:$0xf]
      %v284 = vld [vmem:[%s1 + $0x68] sm:$0xf]
      %v285 = vld [vmem:[%s1 + $0x6c] sm:$0xf]
      %v286 = vld [vmem:[%s1 + $0x70] sm:$0xf]
      %v287 = vld [vmem:[%s1 + $0x74] sm:$0xf]
      %v288 = vld [vmem:[%s1 + $0x78] sm:$0xf]
      %v289 = vld [vmem:[%s1 + $0x7c] sm:$0xf]
      %v290 = vcombine.high %v236, %v236
      %v291 = vcombine.high %v243, %v243
      %v292 = vcombine.high %v250, %v250
      %v293 = vcombine.high %v257, %v257
      %vm294 = vsmask.f32 1280
      %vm295 = vsmask.f32 3336
      %vm296 = vmor %vm294, %vm295
      %vm297 = vsmask.f32 5392
      %vm298 = vmor %vm296, %vm297
      %vm299 = vsmask.f32 7448
      %vm300 = vmor %vm298, %vm299
      %v302 = vshrl.u32 %v236, 16
      %v304 = vrot.slane %v302, 6
      %v305 = vshll.u32 %v236, 16
      %v307 = vrot.slane %v305, 7
      %v308 = vor.u32 %v304, %v307
      %v309 = vrot.slane %v308, 2
      %v311 = vshll.u32 %v290, 16
      %v313 = vrot.slane %v311, 7
      %v314 = vsel %vm300, %v309, %v313
      %v316 = vshrl.u32 %v243, 16
      %v318 = vrot.slane %v316, 6
      %v319 = vshll.u32 %v243, 16
      %v321 = vrot.slane %v319, 7
      %v322 = vor.u32 %v318, %v321
      %v323 = vrot.slane %v322, 2
      %v325 = vshll.u32 %v291, 16
      %v327 = vrot.slane %v325, 7
      %v328 = vsel %vm300, %v323, %v327
      %v330 = vshrl.u32 %v250, 16
      %v332 = vrot.slane %v330, 6
      %v333 = vshll.u32 %v250, 16
      %v335 = vrot.slane %v333, 7
      %v336 = vor.u32 %v332, %v335
      %v337 = vrot.slane %v336, 2
      %v339 = vshll.u32 %v292, 16
      %v341 = vrot.slane %v339, 7
      %v342 = vsel %vm300, %v337, %v341
      %v344 = vshrl.u32 %v257, 16
      %v346 = vrot.slane %v344, 6
      %v347 = vshll.u32 %v257, 16
      %v349 = vrot.slane %v347, 7
      %v350 = vor.u32 %v346, %v349
      %v351 = vrot.slane %v350, 2
      %v353 = vshll.u32 %v293, 16
      %v355 = vrot.slane %v353, 7
      %v356 = vsel %vm300, %v351, %v355
      %s357 = scalar_lea.vmem %s1, 128
      %v358 = vld [vmem:[%s357] sm:$0xf]
      %v359 = vld [vmem:[%s357 + $0x4] sm:$0xf]
      %v360 = vld [vmem:[%s357 + $0x8] sm:$0xf]
      %v361 = vld [vmem:[%s357 + $0xc] sm:$0xf]
      %v362 = vld [vmem:[%s357 + $0x10] sm:$0xf]
      %v363 = vld [vmem:[%s357 + $0x14] sm:$0xf]
      %v364 = vld [vmem:[%s357 + $0x18] sm:$0xf]
      %v365 = vld [vmem:[%s357 + $0x1c] sm:$0xf]
      %v366 = vld [vmem:[%s357 + $0x20] sm:$0xf]
      %v367 = vld [vmem:[%s357 + $0x24] sm:$0xf]
      %v368 = vld [vmem:[%s357 + $0x28] sm:$0xf]
      %v369 = vld [vmem:[%s357 + $0x2c] sm:$0xf]
      %v370 = vld [vmem:[%s357 + $0x30] sm:$0xf]
      %v371 = vld [vmem:[%s357 + $0x34] sm:$0xf]
      %v372 = vld [vmem:[%s357 + $0x38] sm:$0xf]
      %v373 = vld [vmem:[%s357 + $0x3c] sm:$0xf]
      %v374 = vld [vmem:[%s357 + $0x40] sm:$0xf]
      %v375 = vld [vmem:[%s357 + $0x44] sm:$0xf]
      %v376 = vld [vmem:[%s357 + $0x48] sm:$0xf]
      %v377 = vld [vmem:[%s357 + $0x4c] sm:$0xf]
      %v378 = vld [vmem:[%s357 + $0x50] sm:$0xf]
      %v379 = vld [vmem:[%s357 + $0x54] sm:$0xf]
      %v380 = vld [vmem:[%s357 + $0x58] sm:$0xf]
      %v381 = vld [vmem:[%s357 + $0x5c] sm:$0xf]
      %v382 = vld [vmem:[%s357 + $0x60] sm:$0xf]
      %v383 = vld [vmem:[%s357 + $0x64] sm:$0xf]
      %v384 = vld [vmem:[%s357 + $0x68] sm:$0xf]
      %v385 = vld [vmem:[%s357 + $0x6c] sm:$0xf]
      %v386 = vld [vmem:[%s357 + $0x70] sm:$0xf]
      %v387 = vld [vmem:[%s357 + $0x74] sm:$0xf]
      %v388 = vld [vmem:[%s357 + $0x78] sm:$0xf]
      %v389 = vld [vmem:[%s357 + $0x7c] sm:$0xf]
      %v390 = vcombine.low %v314, %v328
      %v391 = vcombine.low %v342, %v356
      %v393 = vunpack.c.l.s4 1983009808
      %v394 = vunpack.c.0.s8 %v393
      %v395 = vlaneseq
      %v396 = vshrl.u32 %v395, 7
      %v397 = vsub.s32 %v394, %v396
      %v398 = vrot.slane %v390, %v397
      %v400 = vunpack.c.l.s4 1983009808
      %v401 = vunpack.c.0.s8 %v400
      %v402 = vlaneseq
      %v403 = vshrl.u32 %v402, 7
      %v404 = vsub.s32 %v401, %v403
      %v405 = vrot.slane %v391, %v404
      %v406 = vcombine.low %v398, %v405
      %v407 = vcombine.high %v398, %v405
      %v442 = vunpack.c.l.b16 %v358
      %v443 = vunpack.c.l.b16 %v359
      %v444 = vunpack.c.l.b16 %v360
      %v445 = vunpack.c.l.b16 %v361
      %v446 = vunpack.c.l.b16 %v362
      %v447 = vunpack.c.l.b16 %v363
      %v448 = vunpack.c.l.b16 %v364
      %v449 = vunpack.c.l.b16 %v365
      %v450 = vunpack.c.l.b16 %v366
      %v451 = vunpack.c.l.b16 %v367
      %v452 = vunpack.c.l.b16 %v368
      %v453 = vunpack.c.l.b16 %v369
      %v454 = vunpack.c.l.b16 %v370
      %v455 = vunpack.c.l.b16 %v371
      %v456 = vunpack.c.l.b16 %v372
      %v457 = vunpack.c.l.b16 %v373
      %v458 = vunpack.c.l.b16 %v374
      %v459 = vunpack.c.l.b16 %v375
      %v460 = vunpack.c.l.b16 %v376
      %v461 = vunpack.c.l.b16 %v377
      %v462 = vunpack.c.l.b16 %v378
      %v463 = vunpack.c.l.b16 %v379
      %v464 = vunpack.c.l.b16 %v380
      %v465 = vunpack.c.l.b16 %v381
      %v466 = vunpack.c.l.b16 %v382
      %v467 = vunpack.c.l.b16 %v383
      %v468 = vunpack.c.l.b16 %v384
      %v469 = vunpack.c.l.b16 %v385
      %v470 = vunpack.c.l.b16 %v386
      %v471 = vunpack.c.l.b16 %v387
      %v472 = vunpack.c.l.b16 %v388
      %v473 = vunpack.c.l.b16 %v389
      %v474 = vpack.c.b16 %v443, %v442
      %v475 = vpack.c.b16 %v445, %v444
      %v476 = vpack.c.b16 %v447, %v446
      %v477 = vpack.c.b16 %v449, %v448
      %v478 = vpack.c.b16 %v451, %v450
      %v479 = vpack.c.b16 %v453, %v452
      %v480 = vpack.c.b16 %v455, %v454
      %v481 = vpack.c.b16 %v457, %v456
      %v482 = vpack.c.b16 %v459, %v458
      %v483 = vpack.c.b16 %v461, %v460
      %v484 = vpack.c.b16 %v463, %v462
      %v485 = vpack.c.b16 %v465, %v464
      %v486 = vpack.c.b16 %v467, %v466
      %v487 = vpack.c.b16 %v469, %v468
      %v488 = vpack.c.b16 %v471, %v470
      %v489 = vpack.c.b16 %v473, %v472
      %506 = vmatprep.subr.bf16.mxu0 0
      %507 = vmatpush1.bf16.msra.mxu0 %v481
      %508 = vmatprep.subr.bf16.mxu0 0
      %509 = vmatpush1.bf16.msra.mxu0 %v480
      %510 = vmatprep.subr.bf16.mxu0 0
      %511 = vmatpush1.bf16.msra.mxu0 %v479
      %512 = vmatprep.subr.bf16.mxu0 0
      %513 = vmatpush1.bf16.msra.mxu0 %v478
      %514 = vmatprep.subr.bf16.mxu0 0
      %515 = vmatpush1.bf16.msra.mxu0 %v477
      %516 = vmatprep.subr.bf16.mxu0 0
      %517 = vmatpush1.bf16.msra.mxu0 %v476
      %518 = vmatprep.subr.bf16.mxu0 0
      %519 = vmatpush1.bf16.msra.mxu0 %v475
      %520 = vmatprep.subr.bf16.mxu0 0
      %521 = vmatpush1.bf16.msra.mxu0 %v474
      %522 = vmatprep.subr.bf16.mxu0 0
      %523 = vmatpush2.bf16.msra.mxu0 %v489
      %524 = vmatprep.subr.bf16.mxu0 0
      %525 = vmatpush2.bf16.msra.mxu0 %v488
      %526 = vmatprep.subr.bf16.mxu0 0
      %527 = vmatpush2.bf16.msra.mxu0 %v487
      %528 = vmatprep.subr.bf16.mxu0 0
      %529 = vmatpush2.bf16.msra.mxu0 %v486
      %530 = vmatprep.subr.bf16.mxu0 0
      %531 = vmatpush2.bf16.msra.mxu0 %v485
      %532 = vmatprep.subr.bf16.mxu0 0
      %533 = vmatpush2.bf16.msra.mxu0 %v484
      %534 = vmatprep.subr.bf16.mxu0 0
      %535 = vmatpush2.bf16.msra.mxu0 %v483
      %536 = vmatprep.subr.bf16.mxu0 0
      %537 = vmatpush2.bf16.msra.mxu0 %v482
      %538 = vmatprep.mubr.bf16.mxu0 %v407
      %539 = vmatmul.mubr.bf16.gmra.mxu0 %v406
      %v540 = vpop.f32.mrf.mxu0
      %v541 = vadd.f32 0.0, %v540
      %v542 = vpop.f32.mrf.mxu0
      %v543 = vpop.f32.mrf.mxu0
      %v544 = vadd.f32 0.0, %v543
      %v545 = vpop.f32.mrf.mxu0
      %546 = vdwg.mxu0
      %v547 = vcombine.low %v236, %v243
      %v548 = vcombine.low %v250, %v257
      %v550 = vunpack.c.l.s4 1983009808
      %v551 = vunpack.c.0.s8 %v550
      %v552 = vlaneseq
      %v553 = vshrl.u32 %v552, 7
      %v554 = vsub.s32 %v551, %v553
      %v555 = vrot.slane %v547, %v554
      %v557 = vunpack.c.l.s4 1983009808
      %v558 = vunpack.c.0.s8 %v557
      %v559 = vlaneseq
      %v560 = vshrl.u32 %v559, 7
      %v561 = vsub.s32 %v558, %v560
      %v562 = vrot.slane %v548, %v561
      %v563 = vcombine.low %v555, %v562
      %v564 = vcombine.high %v555, %v562
      %v599 = vunpack.c.l.b16 %v258
      %v600 = vunpack.c.l.b16 %v259
      %v601 = vunpack.c.l.b16 %v260
      %v602 = vunpack.c.l.b16 %v261
      %v603 = vunpack.c.l.b16 %v262
      %v604 = vunpack.c.l.b16 %v263
      %v605 = vunpack.c.l.b16 %v264
      %v606 = vunpack.c.l.b16 %v265
      %v607 = vunpack.c.l.b16 %v266
      %v608 = vunpack.c.l.b16 %v267
      %v609 = vunpack.c.l.b16 %v268
      %v610 = vunpack.c.l.b16 %v269
      %v611 = vunpack.c.l.b16 %v270
      %v612 = vunpack.c.l.b16 %v271
      %v613 = vunpack.c.l.b16 %v272
      %v614 = vunpack.c.l.b16 %v273
      %v615 = vunpack.c.l.b16 %v274
      %v616 = vunpack.c.l.b16 %v275
      %v617 = vunpack.c.l.b16 %v276
      %v618 = vunpack.c.l.b16 %v277
      %v619 = vunpack.c.l.b16 %v278
      %v620 = vunpack.c.l.b16 %v279
      %v621 = vunpack.c.l.b16 %v280
      %v622 = vunpack.c.l.b16 %v281
      %v623 = vunpack.c.l.b16 %v282
      %v624 = vunpack.c.l.b16 %v283
      %v625 = vunpack.c.l.b16 %v284
      %v626 = vunpack.c.l.b16 %v285
      %v627 = vunpack.c.l.b16 %v286
      %v628 = vunpack.c.l.b16 %v287
      %v629 = vunpack.c.l.b16 %v288
      %v630 = vunpack.c.l.b16 %v289
      %v631 = vpack.c.b16 %v600, %v599
      %v632 = vpack.c.b16 %v602, %v601
      %v633 = vpack.c.b16 %v604, %v603
      %v634 = vpack.c.b16 %v606, %v605
      %v635 = vpack.c.b16 %v608, %v607
      %v636 = vpack.c.b16 %v610, %v609
      %v637 = vpack.c.b16 %v612, %v611
      %v638 = vpack.c.b16 %v614, %v613
      %v639 = vpack.c.b16 %v616, %v615
      %v640 = vpack.c.b16 %v618, %v617
      %v641 = vpack.c.b16 %v620, %v619
      %v642 = vpack.c.b16 %v622, %v621
      %v643 = vpack.c.b16 %v624, %v623
      %v644 = vpack.c.b16 %v626, %v625
      %v645 = vpack.c.b16 %v628, %v627
      %v646 = vpack.c.b16 %v630, %v629
      %663 = vmatprep.subr.bf16.mxu0 0
      %664 = vmatpush1.bf16.msra.mxu0 %v638
      %665 = vmatprep.subr.bf16.mxu0 0
      %666 = vmatpush1.bf16.msra.mxu0 %v637
      %667 = vmatprep.subr.bf16.mxu0 0
      %668 = vmatpush1.bf16.msra.mxu0 %v636
      %669 = vmatprep.subr.bf16.mxu0 0
      %670 = vmatpush1.bf16.msra.mxu0 %v635
      %671 = vmatprep.subr.bf16.mxu0 0
      %672 = vmatpush1.bf16.msra.mxu0 %v634
      %673 = vmatprep.subr.bf16.mxu0 0
      %674 = vmatpush1.bf16.msra.mxu0 %v633
      %675 = vmatprep.subr.bf16.mxu0 0
      %676 = vmatpush1.bf16.msra.mxu0 %v632
      %677 = vmatprep.subr.bf16.mxu0 0
      %678 = vmatpush1.bf16.msra.mxu0 %v631
      %679 = vmatprep.subr.bf16.mxu0 0
      %680 = vmatpush2.bf16.msra.mxu0 %v646
      %681 = vmatprep.subr.bf16.mxu0 0
      %682 = vmatpush2.bf16.msra.mxu0 %v645
      %683 = vmatprep.subr.bf16.mxu0 0
      %684 = vmatpush2.bf16.msra.mxu0 %v644
      %685 = vmatprep.subr.bf16.mxu0 0
      %686 = vmatpush2.bf16.msra.mxu0 %v643
      %687 = vmatprep.subr.bf16.mxu0 0
      %688 = vmatpush2.bf16.msra.mxu0 %v642
      %689 = vmatprep.subr.bf16.mxu0 0
      %690 = vmatpush2.bf16.msra.mxu0 %v641
      %691 = vmatprep.subr.bf16.mxu0 0
      %692 = vmatpush2.bf16.msra.mxu0 %v640
      %693 = vmatprep.subr.bf16.mxu0 0
      %694 = vmatpush2.bf16.msra.mxu0 %v639
      %695 = vmatprep.mubr.bf16.mxu0 %v564
      %696 = vmatmul.mubr.bf16.gmra.mxu0 %v563
      %v697 = vpop.f32.mrf.mxu0
      %v698 = vadd.f32 %v541, %v697
      %v699 = vpop.f32.mrf.mxu0
      %v700 = vpop.f32.mrf.mxu0
      %v701 = vadd.f32 %v544, %v700
      %v702 = vpop.f32.mrf.mxu0
      %703 = vdwg.mxu0
      %v709 = vunpack.c.l.s4 1983009808
      %v710 = vunpack.c.0.s8 %v709
      %v711 = vlaneseq
      %v712 = vshrl.u32 %v711, 7
      %v713 = vsub.s32 %v710, %v712
      %v714 = vrot.slane %v217, %v713
      %v716 = vunpack.c.l.s4 1983009808
      %v717 = vunpack.c.0.s8 %v716
      %v718 = vlaneseq
      %v719 = vshrl.u32 %v718, 7
      %v720 = vsub.s32 %v717, %v719
      %v721 = vrot.slane %v219, %v720
      %v723 = vunpack.c.l.s4 1983009808
      %v724 = vunpack.c.0.s8 %v723
      %v725 = vlaneseq
      %v726 = vshrl.u32 %v725, 7
      %v727 = vsub.s32 %v724, %v726
      %v728 = vrot.slane %v221, %v727
      %v730 = vunpack.c.l.s4 1983009808
      %v731 = vunpack.c.0.s8 %v730
      %v732 = vlaneseq
      %v733 = vshrl.u32 %v732, 7
      %v734 = vsub.s32 %v731, %v733
      %v735 = vrot.slane %v223, %v734
      %s736 = scalar_lea.vmem %s1, 256
      %v737 = vld [vmem:[%s736] sm:$0xf]
      %v738 = vld [vmem:[%s736 + $0x4] sm:$0xf]
      %v739 = vld [vmem:[%s736 + $0x8] sm:$0xf]
      %v740 = vld [vmem:[%s736 + $0xc] sm:$0xf]
      %v741 = vld [vmem:[%s736 + $0x10] sm:$0xf]
      %v742 = vld [vmem:[%s736 + $0x14] sm:$0xf]
      %v743 = vld [vmem:[%s736 + $0x18] sm:$0xf]
      %v744 = vld [vmem:[%s736 + $0x1c] sm:$0xf]
      %v745 = vld [vmem:[%s736 + $0x20] sm:$0xf]
      %v746 = vld [vmem:[%s736 + $0x24] sm:$0xf]
      %v747 = vld [vmem:[%s736 + $0x28] sm:$0xf]
      %v748 = vld [vmem:[%s736 + $0x2c] sm:$0xf]
      %v749 = vld [vmem:[%s736 + $0x30] sm:$0xf]
      %v750 = vld [vmem:[%s736 + $0x34] sm:$0xf]
      %v751 = vld [vmem:[%s736 + $0x38] sm:$0xf]
      %v752 = vld [vmem:[%s736 + $0x3c] sm:$0xf]
      %v753 = vld [vmem:[%s736 + $0x40] sm:$0xf]
      %v754 = vld [vmem:[%s736 + $0x44] sm:$0xf]
      %v755 = vld [vmem:[%s736 + $0x48] sm:$0xf]
      %v756 = vld [vmem:[%s736 + $0x4c] sm:$0xf]
      %v757 = vld [vmem:[%s736 + $0x50] sm:$0xf]
      %v758 = vld [vmem:[%s736 + $0x54] sm:$0xf]
      %v759 = vld [vmem:[%s736 + $0x58] sm:$0xf]
      %v760 = vld [vmem:[%s736 + $0x5c] sm:$0xf]
      %v761 = vld [vmem:[%s736 + $0x60] sm:$0xf]
      %v762 = vld [vmem:[%s736 + $0x64] sm:$0xf]
      %v763 = vld [vmem:[%s736 + $0x68] sm:$0xf]
      %v764 = vld [vmem:[%s736 + $0x6c] sm:$0xf]
      %v765 = vld [vmem:[%s736 + $0x70] sm:$0xf]
      %v766 = vld [vmem:[%s736 + $0x74] sm:$0xf]
      %v767 = vld [vmem:[%s736 + $0x78] sm:$0xf]
      %v768 = vld [vmem:[%s736 + $0x7c] sm:$0xf]
      %v769 = vcombine.low %v714, %v721
      %v770 = vcombine.low %v728, %v735
      %v772 = vunpack.c.l.s4 1983009808
      %v773 = vunpack.c.0.s8 %v772
      %v774 = vlaneseq
      %v775 = vshrl.u32 %v774, 7
      %v776 = vsub.s32 %v773, %v775
      %v777 = vrot.slane %v769, %v776
      %v779 = vunpack.c.l.s4 1983009808
      %v780 = vunpack.c.0.s8 %v779
      %v781 = vlaneseq
      %v782 = vshrl.u32 %v781, 7
      %v783 = vsub.s32 %v780, %v782
      %v784 = vrot.slane %v770, %v783
      %v785 = vcombine.low %v777, %v784
      %v786 = vcombine.high %v777, %v784
      %v821 = vunpack.c.l.b16 %v737
      %v822 = vunpack.c.l.b16 %v738
      %v823 = vunpack.c.l.b16 %v739
      %v824 = vunpack.c.l.b16 %v740
      %v825 = vunpack.c.l.b16 %v741
      %v826 = vunpack.c.l.b16 %v742
      %v827 = vunpack.c.l.b16 %v743
      %v828 = vunpack.c.l.b16 %v744
      %v829 = vunpack.c.l.b16 %v745
      %v830 = vunpack.c.l.b16 %v746
      %v831 = vunpack.c.l.b16 %v747
      %v832 = vunpack.c.l.b16 %v748
      %v833 = vunpack.c.l.b16 %v749
      %v834 = vunpack.c.l.b16 %v750
      %v835 = vunpack.c.l.b16 %v751
      %v836 = vunpack.c.l.b16 %v752
      %v837 = vunpack.c.l.b16 %v753
      %v838 = vunpack.c.l.b16 %v754
      %v839 = vunpack.c.l.b16 %v755
      %v840 = vunpack.c.l.b16 %v756
      %v841 = vunpack.c.l.b16 %v757
      %v842 = vunpack.c.l.b16 %v758
      %v843 = vunpack.c.l.b16 %v759
      %v844 = vunpack.c.l.b16 %v760
      %v845 = vunpack.c.l.b16 %v761
      %v846 = vunpack.c.l.b16 %v762
      %v847 = vunpack.c.l.b16 %v763
      %v848 = vunpack.c.l.b16 %v764
      %v849 = vunpack.c.l.b16 %v765
      %v850 = vunpack.c.l.b16 %v766
      %v851 = vunpack.c.l.b16 %v767
      %v852 = vunpack.c.l.b16 %v768
      %v853 = vpack.c.b16 %v822, %v821
      %v854 = vpack.c.b16 %v824, %v823
      %v855 = vpack.c.b16 %v826, %v825
      %v856 = vpack.c.b16 %v828, %v827
      %v857 = vpack.c.b16 %v830, %v829
      %v858 = vpack.c.b16 %v832, %v831
      %v859 = vpack.c.b16 %v834, %v833
      %v860 = vpack.c.b16 %v836, %v835
      %v861 = vpack.c.b16 %v838, %v837
      %v862 = vpack.c.b16 %v840, %v839
      %v863 = vpack.c.b16 %v842, %v841
      %v864 = vpack.c.b16 %v844, %v843
      %v865 = vpack.c.b16 %v846, %v845
      %v866 = vpack.c.b16 %v848, %v847
      %v867 = vpack.c.b16 %v850, %v849
      %v868 = vpack.c.b16 %v852, %v851
      %885 = vmatprep.subr.bf16.mxu0 0
      %886 = vmatpush1.bf16.msra.mxu0 %v860
      %887 = vmatprep.subr.bf16.mxu0 0
      %888 = vmatpush1.bf16.msra.mxu0 %v859
      %889 = vmatprep.subr.bf16.mxu0 0
      %890 = vmatpush1.bf16.msra.mxu0 %v858
      %891 = vmatprep.subr.bf16.mxu0 0
      %892 = vmatpush1.bf16.msra.mxu0 %v857
      %893 = vmatprep.subr.bf16.mxu0 0
      %894 = vmatpush1.bf16.msra.mxu0 %v856
      %895 = vmatprep.subr.bf16.mxu0 0
      %896 = vmatpush1.bf16.msra.mxu0 %v855
      %897 = vmatprep.subr.bf16.mxu0 0
      %898 = vmatpush1.bf16.msra.mxu0 %v854
      %899 = vmatprep.subr.bf16.mxu0 0
      %900 = vmatpush1.bf16.msra.mxu0 %v853
      %901 = vmatprep.subr.bf16.mxu0 0
      %902 = vmatpush2.bf16.msra.mxu0 %v868
      %903 = vmatprep.subr.bf16.mxu0 0
      %904 = vmatpush2.bf16.msra.mxu0 %v867
      %905 = vmatprep.subr.bf16.mxu0 0
      %906 = vmatpush2.bf16.msra.mxu0 %v866
      %907 = vmatprep.subr.bf16.mxu0 0
      %908 = vmatpush2.bf16.msra.mxu0 %v865
      %909 = vmatprep.subr.bf16.mxu0 0
      %910 = vmatpush2.bf16.msra.mxu0 %v864
      %911 = vmatprep.subr.bf16.mxu0 0
      %912 = vmatpush2.bf16.msra.mxu0 %v863
      %913 = vmatprep.subr.bf16.mxu0 0
      %914 = vmatpush2.bf16.msra.mxu0 %v862
      %915 = vmatprep.subr.bf16.mxu0 0
      %916 = vmatpush2.bf16.msra.mxu0 %v861
      %917 = vmatprep.mubr.bf16.mxu0 %v786
      %918 = vmatmul.mubr.bf16.gmra.mxu0 %v785
      %v919 = vpop.f32.mrf.mxu0
      %v920 = vadd.f32 0.0, %v919
      %v921 = vpop.f32.mrf.mxu0
      %v922 = vpop.f32.mrf.mxu0
      %v923 = vadd.f32 0.0, %v922
      %v924 = vpop.f32.mrf.mxu0
      %925 = vdwg.mxu0
      %v926 = vadd.f32 %v698, %v920
      %v927 = vadd.f32 %v701, %v923
      %v928 = vcombine.high %v714, %v714
      %v929 = vcombine.high %v721, %v721
      %v930 = vcombine.high %v728, %v728
      %v931 = vcombine.high %v735, %v735
      %v933 = vshrl.u32 %v714, 16
      %v935 = vrot.slane %v933, 6
      %v936 = vshll.u32 %v714, 16
      %v938 = vrot.slane %v936, 7
      %v939 = vor.u32 %v935, %v938
      %v940 = vrot.slane %v939, 2
      %v942 = vshll.u32 %v928, 16
      %v944 = vrot.slane %v942, 7
      %v945 = vsel %vm300, %v940, %v944
      %v947 = vshrl.u32 %v721, 16
      %v949 = vrot.slane %v947, 6
      %v950 = vshll.u32 %v721, 16
      %v952 = vrot.slane %v950, 7
      %v953 = vor.u32 %v949, %v952
      %v954 = vrot.slane %v953, 2
      %v956 = vshll.u32 %v929, 16
      %v958 = vrot.slane %v956, 7
      %v959 = vsel %vm300, %v954, %v958
      %v961 = vshrl.u32 %v728, 16
      %v963 = vrot.slane %v961, 6
      %v964 = vshll.u32 %v728, 16
      %v966 = vrot.slane %v964, 7
      %v967 = vor.u32 %v963, %v966
      %v968 = vrot.slane %v967, 2
      %v970 = vshll.u32 %v930, 16
      %v972 = vrot.slane %v970, 7
      %v973 = vsel %vm300, %v968, %v972
      %v975 = vshrl.u32 %v735, 16
      %v977 = vrot.slane %v975, 6
      %v978 = vshll.u32 %v735, 16
      %v980 = vrot.slane %v978, 7
      %v981 = vor.u32 %v977, %v980
      %v982 = vrot.slane %v981, 2
      %v984 = vshll.u32 %v931, 16
      %v986 = vrot.slane %v984, 7
      %v987 = vsel %vm300, %v982, %v986
      %s988 = scalar_lea.vmem %s1, 384
      %v989 = vld [vmem:[%s988] sm:$0xf]
      %v990 = vld [vmem:[%s988 + $0x4] sm:$0xf]
      %v991 = vld [vmem:[%s988 + $0x8] sm:$0xf]
      %v992 = vld [vmem:[%s988 + $0xc] sm:$0xf]
      %v993 = vld [vmem:[%s988 + $0x10] sm:$0xf]
      %v994 = vld [vmem:[%s988 + $0x14] sm:$0xf]
      %v995 = vld [vmem:[%s988 + $0x18] sm:$0xf]
      %v996 = vld [vmem:[%s988 + $0x1c] sm:$0xf]
      %v997 = vld [vmem:[%s988 + $0x20] sm:$0xf]
      %v998 = vld [vmem:[%s988 + $0x24] sm:$0xf]
      %v999 = vld [vmem:[%s988 + $0x28] sm:$0xf]
      %v1000 = vld [vmem:[%s988 + $0x2c] sm:$0xf]
      %v1001 = vld [vmem:[%s988 + $0x30] sm:$0xf]
      %v1002 = vld [vmem:[%s988 + $0x34] sm:$0xf]
      %v1003 = vld [vmem:[%s988 + $0x38] sm:$0xf]
      %v1004 = vld [vmem:[%s988 + $0x3c] sm:$0xf]
      %v1005 = vld [vmem:[%s988 + $0x40] sm:$0xf]
      %v1006 = vld [vmem:[%s988 + $0x44] sm:$0xf]
      %v1007 = vld [vmem:[%s988 + $0x48] sm:$0xf]
      %v1008 = vld [vmem:[%s988 + $0x4c] sm:$0xf]
      %v1009 = vld [vmem:[%s988 + $0x50] sm:$0xf]
      %v1010 = vld [vmem:[%s988 + $0x54] sm:$0xf]
      %v1011 = vld [vmem:[%s988 + $0x58] sm:$0xf]
      %v1012 = vld [vmem:[%s988 + $0x5c] sm:$0xf]
      %v1013 = vld [vmem:[%s988 + $0x60] sm:$0xf]
      %v1014 = vld [vmem:[%s988 + $0x64] sm:$0xf]
      %v1015 = vld [vmem:[%s988 + $0x68] sm:$0xf]
      %v1016 = vld [vmem:[%s988 + $0x6c] sm:$0xf]
      %v1017 = vld [vmem:[%s988 + $0x70] sm:$0xf]
      %v1018 = vld [vmem:[%s988 + $0x74] sm:$0xf]
      %v1019 = vld [vmem:[%s988 + $0x78] sm:$0xf]
      %v1020 = vld [vmem:[%s988 + $0x7c] sm:$0xf]
      %v1021 = vcombine.low %v945, %v959
      %v1022 = vcombine.low %v973, %v987
      %v1024 = vunpack.c.l.s4 1983009808
      %v1025 = vunpack.c.0.s8 %v1024
      %v1026 = vlaneseq
      %v1027 = vshrl.u32 %v1026, 7
      %v1028 = vsub.s32 %v1025, %v1027
      %v1029 = vrot.slane %v1021, %v1028
      %v1031 = vunpack.c.l.s4 1983009808
      %v1032 = vunpack.c.0.s8 %v1031
      %v1033 = vlaneseq
      %v1034 = vshrl.u32 %v1033, 7
      %v1035 = vsub.s32 %v1032, %v1034
      %v1036 = vrot.slane %v1022, %v1035
      %v1037 = vcombine.low %v1029, %v1036
      %v1038 = vcombine.high %v1029, %v1036
      %v1073 = vunpack.c.l.b16 %v989
      %v1074 = vunpack.c.l.b16 %v990
      %v1075 = vunpack.c.l.b16 %v991
      %v1076 = vunpack.c.l.b16 %v992
      %v1077 = vunpack.c.l.b16 %v993
      %v1078 = vunpack.c.l.b16 %v994
      %v1079 = vunpack.c.l.b16 %v995
      %v1080 = vunpack.c.l.b16 %v996
      %v1081 = vunpack.c.l.b16 %v997
      %v1082 = vunpack.c.l.b16 %v998
      %v1083 = vunpack.c.l.b16 %v999
      %v1084 = vunpack.c.l.b16 %v1000
      %v1085 = vunpack.c.l.b16 %v1001
      %v1086 = vunpack.c.l.b16 %v1002
      %v1087 = vunpack.c.l.b16 %v1003
      %v1088 = vunpack.c.l.b16 %v1004
      %v1089 = vunpack.c.l.b16 %v1005
      %v1090 = vunpack.c.l.b16 %v1006
      %v1091 = vunpack.c.l.b16 %v1007
      %v1092 = vunpack.c.l.b16 %v1008
      %v1093 = vunpack.c.l.b16 %v1009
      %v1094 = vunpack.c.l.b16 %v1010
      %v1095 = vunpack.c.l.b16 %v1011
      %v1096 = vunpack.c.l.b16 %v1012
      %v1097 = vunpack.c.l.b16 %v1013
      %v1098 = vunpack.c.l.b16 %v1014
      %v1099 = vunpack.c.l.b16 %v1015
      %v1100 = vunpack.c.l.b16 %v1016
      %v1101 = vunpack.c.l.b16 %v1017
      %v1102 = vunpack.c.l.b16 %v1018
      %v1103 = vunpack.c.l.b16 %v1019
      %v1104 = vunpack.c.l.b16 %v1020
      %v1105 = vpack.c.b16 %v1074, %v1073
      %v1106 = vpack.c.b16 %v1076, %v1075
      %v1107 = vpack.c.b16 %v1078, %v1077
      %v1108 = vpack.c.b16 %v1080, %v1079
      %v1109 = vpack.c.b16 %v1082, %v1081
      %v1110 = vpack.c.b16 %v1084, %v1083
      %v1111 = vpack.c.b16 %v1086, %v1085
      %v1112 = vpack.c.b16 %v1088, %v1087
      %v1113 = vpack.c.b16 %v1090, %v1089
      %v1114 = vpack.c.b16 %v1092, %v1091
      %v1115 = vpack.c.b16 %v1094, %v1093
      %v1116 = vpack.c.b16 %v1096, %v1095
      %v1117 = vpack.c.b16 %v1098, %v1097
      %v1118 = vpack.c.b16 %v1100, %v1099
      %v1119 = vpack.c.b16 %v1102, %v1101
      %v1120 = vpack.c.b16 %v1104, %v1103
      %1137 = vmatprep.subr.bf16.mxu0 0
      %1138 = vmatpush1.bf16.msra.mxu0 %v1112
      %1139 = vmatprep.subr.bf16.mxu0 0
      %1140 = vmatpush1.bf16.msra.mxu0 %v1111
      %1141 = vmatprep.subr.bf16.mxu0 0
      %1142 = vmatpush1.bf16.msra.mxu0 %v1110
      %1143 = vmatprep.subr.bf16.mxu0 0
      %1144 = vmatpush1.bf16.msra.mxu0 %v1109
      %1145 = vmatprep.subr.bf16.mxu0 0
      %1146 = vmatpush1.bf16.msra.mxu0 %v1108
      %1147 = vmatprep.subr.bf16.mxu0 0
      %1148 = vmatpush1.bf16.msra.mxu0 %v1107
      %1149 = vmatprep.subr.bf16.mxu0 0
      %1150 = vmatpush1.bf16.msra.mxu0 %v1106
      %1151 = vmatprep.subr.bf16.mxu0 0
      %1152 = vmatpush1.bf16.msra.mxu0 %v1105
      %1153 = vmatprep.subr.bf16.mxu0 0
      %1154 = vmatpush2.bf16.msra.mxu0 %v1120
      %1155 = vmatprep.subr.bf16.mxu0 0
      %1156 = vmatpush2.bf16.msra.mxu0 %v1119
      %1157 = vmatprep.subr.bf16.mxu0 0
      %1158 = vmatpush2.bf16.msra.mxu0 %v1118
      %1159 = vmatprep.subr.bf16.mxu0 0
      %1160 = vmatpush2.bf16.msra.mxu0 %v1117
      %1161 = vmatprep.subr.bf16.mxu0 0
      %1162 = vmatpush2.bf16.msra.mxu0 %v1116
      %1163 = vmatprep.subr.bf16.mxu0 0
      %1164 = vmatpush2.bf16.msra.mxu0 %v1115
      %1165 = vmatprep.subr.bf16.mxu0 0
      %1166 = vmatpush2.bf16.msra.mxu0 %v1114
      %1167 = vmatprep.subr.bf16.mxu0 0
      %1168 = vmatpush2.bf16.msra.mxu0 %v1113
      %1169 = vmatprep.mubr.bf16.mxu0 %v1038
      %1170 = vmatmul.mubr.bf16.gmra.mxu0 %v1037
      %v1171 = vpop.f32.mrf.mxu0
      %v1172 = vadd.f32 0.0, %v1171
      %v1173 = vpop.f32.mrf.mxu0
      %v1174 = vpop.f32.mrf.mxu0
      %v1175 = vadd.f32 0.0, %v1174
      %v1176 = vpop.f32.mrf.mxu0
      %1177 = vdwg.mxu0
      %v1178 = vadd.f32 %v926, %v1172
      %v1179 = vadd.f32 %v927, %v1175
      %v1182 = vunpack.c.l.s4 1983009808
      %v1183 = vunpack.c.0.s8 %v1182
      %v1184 = vlaneseq
      %v1185 = vshrl.u32 %v1184, 7
      %v1186 = vsub.s32 %v1183, %v1185
      %v1187 = vrot.slane %v224, %v1186
      %s1188 = scalar_lea.vmem %s1, 512
      %v1189 = vld [vmem:[%s1188] sm:$0xf]
      %v1190 = vld [vmem:[%s1188 + $0x4] sm:$0xf]
      %v1191 = vld [vmem:[%s1188 + $0x8] sm:$0xf]
      %v1192 = vld [vmem:[%s1188 + $0xc] sm:$0xf]
      %v1193 = vld [vmem:[%s1188 + $0x10] sm:$0xf]
      %v1194 = vld [vmem:[%s1188 + $0x14] sm:$0xf]
      %v1195 = vld [vmem:[%s1188 + $0x18] sm:$0xf]
      %v1196 = vld [vmem:[%s1188 + $0x1c] sm:$0xf]
      %v1197 = vld [vmem:[%s1188 + $0x20] sm:$0xf]
      %v1198 = vld [vmem:[%s1188 + $0x24] sm:$0xf]
      %v1199 = vld [vmem:[%s1188 + $0x28] sm:$0xf]
      %v1200 = vld [vmem:[%s1188 + $0x2c] sm:$0xf]
      %v1201 = vld [vmem:[%s1188 + $0x30] sm:$0xf]
      %v1202 = vld [vmem:[%s1188 + $0x34] sm:$0xf]
      %v1203 = vld [vmem:[%s1188 + $0x38] sm:$0xf]
      %v1204 = vld [vmem:[%s1188 + $0x3c] sm:$0xf]
      %v1205 = vld [vmem:[%s1188 + $0x40] sm:$0xf]
      %v1206 = vld [vmem:[%s1188 + $0x44] sm:$0xf]
      %v1207 = vld [vmem:[%s1188 + $0x48] sm:$0xf]
      %v1208 = vld [vmem:[%s1188 + $0x4c] sm:$0xf]
      %v1209 = vld [vmem:[%s1188 + $0x50] sm:$0xf]
      %v1210 = vld [vmem:[%s1188 + $0x54] sm:$0xf]
      %v1211 = vld [vmem:[%s1188 + $0x58] sm:$0xf]
      %v1212 = vld [vmem:[%s1188 + $0x5c] sm:$0xf]
      %v1213 = vld [vmem:[%s1188 + $0x60] sm:$0xf]
      %v1214 = vld [vmem:[%s1188 + $0x64] sm:$0xf]
      %v1215 = vld [vmem:[%s1188 + $0x68] sm:$0xf]
      %v1216 = vld [vmem:[%s1188 + $0x6c] sm:$0xf]
      %v1217 = vld [vmem:[%s1188 + $0x70] sm:$0xf]
      %v1218 = vld [vmem:[%s1188 + $0x74] sm:$0xf]
      %v1219 = vld [vmem:[%s1188 + $0x78] sm:$0xf]
      %v1220 = vld [vmem:[%s1188 + $0x7c] sm:$0xf]
      %v1221 = vcombine.low %v243, %v250
      %v1222 = vcombine.low %v257, %v1187
      %v1224 = vunpack.c.l.s4 1983009808
      %v1225 = vunpack.c.0.s8 %v1224
      %v1226 = vlaneseq
      %v1227 = vshrl.u32 %v1226, 7
      %v1228 = vsub.s32 %v1225, %v1227
      %v1229 = vrot.slane %v1221, %v1228
      %v1231 = vunpack.c.l.s4 1983009808
      %v1232 = vunpack.c.0.s8 %v1231
      %v1233 = vlaneseq
      %v1234 = vshrl.u32 %v1233, 7
      %v1235 = vsub.s32 %v1232, %v1234
      %v1236 = vrot.slane %v1222, %v1235
      %v1237 = vcombine.low %v1229, %v1236
      %v1238 = vcombine.high %v1229, %v1236
      %v1273 = vunpack.c.l.b16 %v1189
      %v1274 = vunpack.c.l.b16 %v1190
      %v1275 = vunpack.c.l.b16 %v1191
      %v1276 = vunpack.c.l.b16 %v1192
      %v1277 = vunpack.c.l.b16 %v1193
      %v1278 = vunpack.c.l.b16 %v1194
      %v1279 = vunpack.c.l.b16 %v1195
      %v1280 = vunpack.c.l.b16 %v1196
      %v1281 = vunpack.c.l.b16 %v1197
      %v1282 = vunpack.c.l.b16 %v1198
      %v1283 = vunpack.c.l.b16 %v1199
      %v1284 = vunpack.c.l.b16 %v1200
      %v1285 = vunpack.c.l.b16 %v1201
      %v1286 = vunpack.c.l.b16 %v1202
      %v1287 = vunpack.c.l.b16 %v1203
      %v1288 = vunpack.c.l.b16 %v1204
      %v1289 = vunpack.c.l.b16 %v1205
      %v1290 = vunpack.c.l.b16 %v1206
      %v1291 = vunpack.c.l.b16 %v1207
      %v1292 = vunpack.c.l.b16 %v1208
      %v1293 = vunpack.c.l.b16 %v1209
      %v1294 = vunpack.c.l.b16 %v1210
      %v1295 = vunpack.c.l.b16 %v1211
      %v1296 = vunpack.c.l.b16 %v1212
      %v1297 = vunpack.c.l.b16 %v1213
      %v1298 = vunpack.c.l.b16 %v1214
      %v1299 = vunpack.c.l.b16 %v1215
      %v1300 = vunpack.c.l.b16 %v1216
      %v1301 = vunpack.c.l.b16 %v1217
      %v1302 = vunpack.c.l.b16 %v1218
      %v1303 = vunpack.c.l.b16 %v1219
      %v1304 = vunpack.c.l.b16 %v1220
      %v1305 = vpack.c.b16 %v1274, %v1273
      %v1306 = vpack.c.b16 %v1276, %v1275
      %v1307 = vpack.c.b16 %v1278, %v1277
      %v1308 = vpack.c.b16 %v1280, %v1279
      %v1309 = vpack.c.b16 %v1282, %v1281
      %v1310 = vpack.c.b16 %v1284, %v1283
      %v1311 = vpack.c.b16 %v1286, %v1285
      %v1312 = vpack.c.b16 %v1288, %v1287
      %v1313 = vpack.c.b16 %v1290, %v1289
      %v1314 = vpack.c.b16 %v1292, %v1291
      %v1315 = vpack.c.b16 %v1294, %v1293
      %v1316 = vpack.c.b16 %v1296, %v1295
      %v1317 = vpack.c.b16 %v1298, %v1297
      %v1318 = vpack.c.b16 %v1300, %v1299
      %v1319 = vpack.c.b16 %v1302, %v1301
      %v1320 = vpack.c.b16 %v1304, %v1303
      %1337 = vmatprep.subr.bf16.mxu0 0
      %1338 = vmatpush1.bf16.msra.mxu0 %v1312
      %1339 = vmatprep.subr.bf16.mxu0 0
      %1340 = vmatpush1.bf16.msra.mxu0 %v1311
      %1341 = vmatprep.subr.bf16.mxu0 0
      %1342 = vmatpush1.bf16.msra.mxu0 %v1310
      %1343 = vmatprep.subr.bf16.mxu0 0
      %1344 = vmatpush1.bf16.msra.mxu0 %v1309
      %1345 = vmatprep.subr.bf16.mxu0 0
      %1346 = vmatpush1.bf16.msra.mxu0 %v1308
      %1347 = vmatprep.subr.bf16.mxu0 0
      %1348 = vmatpush1.bf16.msra.mxu0 %v1307
      %1349 = vmatprep.subr.bf16.mxu0 0
      %1350 = vmatpush1.bf16.msra.mxu0 %v1306
      %1351 = vmatprep.subr.bf16.mxu0 0
      %1352 = vmatpush1.bf16.msra.mxu0 %v1305
      %1353 = vmatprep.subr.bf16.mxu0 0
      %1354 = vmatpush2.bf16.msra.mxu0 %v1320
      %1355 = vmatprep.subr.bf16.mxu0 0
      %1356 = vmatpush2.bf16.msra.mxu0 %v1319
      %1357 = vmatprep.subr.bf16.mxu0 0
      %1358 = vmatpush2.bf16.msra.mxu0 %v1318
      %1359 = vmatprep.subr.bf16.mxu0 0
      %1360 = vmatpush2.bf16.msra.mxu0 %v1317
      %1361 = vmatprep.subr.bf16.mxu0 0
      %1362 = vmatpush2.bf16.msra.mxu0 %v1316
      %1363 = vmatprep.subr.bf16.mxu0 0
      %1364 = vmatpush2.bf16.msra.mxu0 %v1315
      %1365 = vmatprep.subr.bf16.mxu0 0
      %1366 = vmatpush2.bf16.msra.mxu0 %v1314
      %1367 = vmatprep.subr.bf16.mxu0 0
      %1368 = vmatpush2.bf16.msra.mxu0 %v1313
      %1369 = vmatprep.mubr.bf16.mxu0 %v1238
      %1370 = vmatmul.mubr.bf16.gmra.mxu0 %v1237
      %v1371 = vpop.f32.mrf.mxu0
      %v1372 = vadd.f32 0.0, %v1371
      %v1373 = vpop.f32.mrf.mxu0
      %v1374 = vpop.f32.mrf.mxu0
      %v1375 = vadd.f32 0.0, %v1374
      %v1376 = vpop.f32.mrf.mxu0
      %1377 = vdwg.mxu0
      %v1378 = vadd.f32 %v1178, %v1372
      %v1379 = vadd.f32 %v1179, %v1375
      %v1380 = vcombine.high %v1187, %v1187
      %v1382 = vshrl.u32 %v1187, 16
      %v1384 = vrot.slane %v1382, 6
      %v1385 = vshll.u32 %v1187, 16
      %v1387 = vrot.slane %v1385, 7
      %v1388 = vor.u32 %v1384, %v1387
      %v1389 = vrot.slane %v1388, 2
      %v1391 = vshll.u32 %v1380, 16
      %v1393 = vrot.slane %v1391, 7
      %v1394 = vsel %vm300, %v1389, %v1393
      %s1395 = scalar_lea.vmem %s1, 640
      %v1396 = vld [vmem:[%s1395] sm:$0xf]
      %v1397 = vld [vmem:[%s1395 + $0x4] sm:$0xf]
      %v1398 = vld [vmem:[%s1395 + $0x8] sm:$0xf]
      %v1399 = vld [vmem:[%s1395 + $0xc] sm:$0xf]
      %v1400 = vld [vmem:[%s1395 + $0x10] sm:$0xf]
      %v1401 = vld [vmem:[%s1395 + $0x14] sm:$0xf]
      %v1402 = vld [vmem:[%s1395 + $0x18] sm:$0xf]
      %v1403 = vld [vmem:[%s1395 + $0x1c] sm:$0xf]
      %v1404 = vld [vmem:[%s1395 + $0x20] sm:$0xf]
      %v1405 = vld [vmem:[%s1395 + $0x24] sm:$0xf]
      %v1406 = vld [vmem:[%s1395 + $0x28] sm:$0xf]
      %v1407 = vld [vmem:[%s1395 + $0x2c] sm:$0xf]
      %v1408 = vld [vmem:[%s1395 + $0x30] sm:$0xf]
      %v1409 = vld [vmem:[%s1395 + $0x34] sm:$0xf]
      %v1410 = vld [vmem:[%s1395 + $0x38] sm:$0xf]
      %v1411 = vld [vmem:[%s1395 + $0x3c] sm:$0xf]
      %v1412 = vld [vmem:[%s1395 + $0x40] sm:$0xf]
      %v1413 = vld [vmem:[%s1395 + $0x44] sm:$0xf]
      %v1414 = vld [vmem:[%s1395 + $0x48] sm:$0xf]
      %v1415 = vld [vmem:[%s1395 + $0x4c] sm:$0xf]
      %v1416 = vld [vmem:[%s1395 + $0x50] sm:$0xf]
      %v1417 = vld [vmem:[%s1395 + $0x54] sm:$0xf]
      %v1418 = vld [vmem:[%s1395 + $0x58] sm:$0xf]
      %v1419 = vld [vmem:[%s1395 + $0x5c] sm:$0xf]
      %v1420 = vld [vmem:[%s1395 + $0x60] sm:$0xf]
      %v1421 = vld [vmem:[%s1395 + $0x64] sm:$0xf]
      %v1422 = vld [vmem:[%s1395 + $0x68] sm:$0xf]
      %v1423 = vld [vmem:[%s1395 + $0x6c] sm:$0xf]
      %v1424 = vld [vmem:[%s1395 + $0x70] sm:$0xf]
      %v1425 = vld [vmem:[%s1395 + $0x74] sm:$0xf]
      %v1426 = vld [vmem:[%s1395 + $0x78] sm:$0xf]
      %v1427 = vld [vmem:[%s1395 + $0x7c] sm:$0xf]
      %v1428 = vcombine.low %v328, %v342
      %v1429 = vcombine.low %v356, %v1394
      %v1431 = vunpack.c.l.s4 1983009808
      %v1432 = vunpack.c.0.s8 %v1431
      %v1433 = vlaneseq
      %v1434 = vshrl.u32 %v1433, 7
      %v1435 = vsub.s32 %v1432, %v1434
      %v1436 = vrot.slane %v1428, %v1435
      %v1438 = vunpack.c.l.s4 1983009808
      %v1439 = vunpack.c.0.s8 %v1438
      %v1440 = vlaneseq
      %v1441 = vshrl.u32 %v1440, 7
      %v1442 = vsub.s32 %v1439, %v1441
      %v1443 = vrot.slane %v1429, %v1442
      %v1444 = vcombine.low %v1436, %v1443
      %v1445 = vcombine.high %v1436, %v1443
      %v1480 = vunpack.c.l.b16 %v1396
      %v1481 = vunpack.c.l.b16 %v1397
      %v1482 = vunpack.c.l.b16 %v1398
      %v1483 = vunpack.c.l.b16 %v1399
      %v1484 = vunpack.c.l.b16 %v1400
      %v1485 = vunpack.c.l.b16 %v1401
      %v1486 = vunpack.c.l.b16 %v1402
      %v1487 = vunpack.c.l.b16 %v1403
      %v1488 = vunpack.c.l.b16 %v1404
      %v1489 = vunpack.c.l.b16 %v1405
      %v1490 = vunpack.c.l.b16 %v1406
      %v1491 = vunpack.c.l.b16 %v1407
      %v1492 = vunpack.c.l.b16 %v1408
      %v1493 = vunpack.c.l.b16 %v1409
      %v1494 = vunpack.c.l.b16 %v1410
      %v1495 = vunpack.c.l.b16 %v1411
      %v1496 = vunpack.c.l.b16 %v1412
      %v1497 = vunpack.c.l.b16 %v1413
      %v1498 = vunpack.c.l.b16 %v1414
      %v1499 = vunpack.c.l.b16 %v1415
      %v1500 = vunpack.c.l.b16 %v1416
      %v1501 = vunpack.c.l.b16 %v1417
      %v1502 = vunpack.c.l.b16 %v1418
      %v1503 = vunpack.c.l.b16 %v1419
      %v1504 = vunpack.c.l.b16 %v1420
      %v1505 = vunpack.c.l.b16 %v1421
      %v1506 = vunpack.c.l.b16 %v1422
      %v1507 = vunpack.c.l.b16 %v1423
      %v1508 = vunpack.c.l.b16 %v1424
      %v1509 = vunpack.c.l.b16 %v1425
      %v1510 = vunpack.c.l.b16 %v1426
      %v1511 = vunpack.c.l.b16 %v1427
      %v1512 = vpack.c.b16 %v1481, %v1480
      %v1513 = vpack.c.b16 %v1483, %v1482
      %v1514 = vpack.c.b16 %v1485, %v1484
      %v1515 = vpack.c.b16 %v1487, %v1486
      %v1516 = vpack.c.b16 %v1489, %v1488
      %v1517 = vpack.c.b16 %v1491, %v1490
      %v1518 = vpack.c.b16 %v1493, %v1492
      %v1519 = vpack.c.b16 %v1495, %v1494
      %v1520 = vpack.c.b16 %v1497, %v1496
      %v1521 = vpack.c.b16 %v1499, %v1498
      %v1522 = vpack.c.b16 %v1501, %v1500
      %v1523 = vpack.c.b16 %v1503, %v1502
      %v1524 = vpack.c.b16 %v1505, %v1504
      %v1525 = vpack.c.b16 %v1507, %v1506
      %v1526 = vpack.c.b16 %v1509, %v1508
      %v1527 = vpack.c.b16 %v1511, %v1510
      %1544 = vmatprep.subr.bf16.mxu0 0
      %1545 = vmatpush1.bf16.msra.mxu0 %v1519
      %1546 = vmatprep.subr.bf16.mxu0 0
      %1547 = vmatpush1.bf16.msra.mxu0 %v1518
      %1548 = vmatprep.subr.bf16.mxu0 0
      %1549 = vmatpush1.bf16.msra.mxu0 %v1517
      %1550 = vmatprep.subr.bf16.mxu0 0
      %1551 = vmatpush1.bf16.msra.mxu0 %v1516
      %1552 = vmatprep.subr.bf16.mxu0 0
      %1553 = vmatpush1.bf16.msra.mxu0 %v1515
      %1554 = vmatprep.subr.bf16.mxu0 0
      %1555 = vmatpush1.bf16.msra.mxu0 %v1514
      %1556 = vmatprep.subr.bf16.mxu0 0
      %1557 = vmatpush1.bf16.msra.mxu0 %v1513
      %1558 = vmatprep.subr.bf16.mxu0 0
      %1559 = vmatpush1.bf16.msra.mxu0 %v1512
      %1560 = vmatprep.subr.bf16.mxu0 0
      %1561 = vmatpush2.bf16.msra.mxu0 %v1527
      %1562 = vmatprep.subr.bf16.mxu0 0
      %1563 = vmatpush2.bf16.msra.mxu0 %v1526
      %1564 = vmatprep.subr.bf16.mxu0 0
      %1565 = vmatpush2.bf16.msra.mxu0 %v1525
      %1566 = vmatprep.subr.bf16.mxu0 0
      %1567 = vmatpush2.bf16.msra.mxu0 %v1524
      %1568 = vmatprep.subr.bf16.mxu0 0
      %1569 = vmatpush2.bf16.msra.mxu0 %v1523
      %1570 = vmatprep.subr.bf16.mxu0 0
      %1571 = vmatpush2.bf16.msra.mxu0 %v1522
      %1572 = vmatprep.subr.bf16.mxu0 0
      %1573 = vmatpush2.bf16.msra.mxu0 %v1521
      %1574 = vmatprep.subr.bf16.mxu0 0
      %1575 = vmatpush2.bf16.msra.mxu0 %v1520
      %1576 = vmatprep.mubr.bf16.mxu0 %v1445
      %1577 = vmatmul.mubr.bf16.gmra.mxu0 %v1444
      %v1578 = vpop.f32.mrf.mxu0
      %v1579 = vadd.f32 0.0, %v1578
      %v1580 = vpop.f32.mrf.mxu0
      %v1581 = vpop.f32.mrf.mxu0
      %v1582 = vadd.f32 0.0, %v1581
      %v1583 = vpop.f32.mrf.mxu0
      %1584 = vdwg.mxu0
      %v1585 = vadd.f32 %v1378, %v1579
      %v1586 = vadd.f32 %v1379, %v1582
      %v1589 = vunpack.c.l.s4 1983009808
      %v1590 = vunpack.c.0.s8 %v1589
      %v1591 = vlaneseq
      %v1592 = vshrl.u32 %v1591, 7
      %v1593 = vsub.s32 %v1590, %v1592
      %v1594 = vrot.slane %v225, %v1593
      %s1595 = scalar_lea.vmem %s1, 768
      %v1596 = vld [vmem:[%s1595] sm:$0xf]
      %v1597 = vld [vmem:[%s1595 + $0x4] sm:$0xf]
      %v1598 = vld [vmem:[%s1595 + $0x8] sm:$0xf]
      %v1599 = vld [vmem:[%s1595 + $0xc] sm:$0xf]
      %v1600 = vld [vmem:[%s1595 + $0x10] sm:$0xf]
      %v1601 = vld [vmem:[%s1595 + $0x14] sm:$0xf]
      %v1602 = vld [vmem:[%s1595 + $0x18] sm:$0xf]
      %v1603 = vld [vmem:[%s1595 + $0x1c] sm:$0xf]
      %v1604 = vld [vmem:[%s1595 + $0x20] sm:$0xf]
      %v1605 = vld [vmem:[%s1595 + $0x24] sm:$0xf]
      %v1606 = vld [vmem:[%s1595 + $0x28] sm:$0xf]
      %v1607 = vld [vmem:[%s1595 + $0x2c] sm:$0xf]
      %v1608 = vld [vmem:[%s1595 + $0x30] sm:$0xf]
      %v1609 = vld [vmem:[%s1595 + $0x34] sm:$0xf]
      %v1610 = vld [vmem:[%s1595 + $0x38] sm:$0xf]
      %v1611 = vld [vmem:[%s1595 + $0x3c] sm:$0xf]
      %v1612 = vld [vmem:[%s1595 + $0x40] sm:$0xf]
      %v1613 = vld [vmem:[%s1595 + $0x44] sm:$0xf]
      %v1614 = vld [vmem:[%s1595 + $0x48] sm:$0xf]
      %v1615 = vld [vmem:[%s1595 + $0x4c] sm:$0xf]
      %v1616 = vld [vmem:[%s1595 + $0x50] sm:$0xf]
      %v1617 = vld [vmem:[%s1595 + $0x54] sm:$0xf]
      %v1618 = vld [vmem:[%s1595 + $0x58] sm:$0xf]
      %v1619 = vld [vmem:[%s1595 + $0x5c] sm:$0xf]
      %v1620 = vld [vmem:[%s1595 + $0x60] sm:$0xf]
      %v1621 = vld [vmem:[%s1595 + $0x64] sm:$0xf]
      %v1622 = vld [vmem:[%s1595 + $0x68] sm:$0xf]
      %v1623 = vld [vmem:[%s1595 + $0x6c] sm:$0xf]
      %v1624 = vld [vmem:[%s1595 + $0x70] sm:$0xf]
      %v1625 = vld [vmem:[%s1595 + $0x74] sm:$0xf]
      %v1626 = vld [vmem:[%s1595 + $0x78] sm:$0xf]
      %v1627 = vld [vmem:[%s1595 + $0x7c] sm:$0xf]
      %v1628 = vcombine.low %v721, %v728
      %v1629 = vcombine.low %v735, %v1594
      %v1631 = vunpack.c.l.s4 1983009808
      %v1632 = vunpack.c.0.s8 %v1631
      %v1633 = vlaneseq
      %v1634 = vshrl.u32 %v1633, 7
      %v1635 = vsub.s32 %v1632, %v1634
      %v1636 = vrot.slane %v1628, %v1635
      %v1638 = vunpack.c.l.s4 1983009808
      %v1639 = vunpack.c.0.s8 %v1638
      %v1640 = vlaneseq
      %v1641 = vshrl.u32 %v1640, 7
      %v1642 = vsub.s32 %v1639, %v1641
      %v1643 = vrot.slane %v1629, %v1642
      %v1644 = vcombine.low %v1636, %v1643
      %v1645 = vcombine.high %v1636, %v1643
      %v1680 = vunpack.c.l.b16 %v1596
      %v1681 = vunpack.c.l.b16 %v1597
      %v1682 = vunpack.c.l.b16 %v1598
      %v1683 = vunpack.c.l.b16 %v1599
      %v1684 = vunpack.c.l.b16 %v1600
      %v1685 = vunpack.c.l.b16 %v1601
      %v1686 = vunpack.c.l.b16 %v1602
      %v1687 = vunpack.c.l.b16 %v1603
      %v1688 = vunpack.c.l.b16 %v1604
      %v1689 = vunpack.c.l.b16 %v1605
      %v1690 = vunpack.c.l.b16 %v1606
      %v1691 = vunpack.c.l.b16 %v1607
      %v1692 = vunpack.c.l.b16 %v1608
      %v1693 = vunpack.c.l.b16 %v1609
      %v1694 = vunpack.c.l.b16 %v1610
      %v1695 = vunpack.c.l.b16 %v1611
      %v1696 = vunpack.c.l.b16 %v1612
      %v1697 = vunpack.c.l.b16 %v1613
      %v1698 = vunpack.c.l.b16 %v1614
      %v1699 = vunpack.c.l.b16 %v1615
      %v1700 = vunpack.c.l.b16 %v1616
      %v1701 = vunpack.c.l.b16 %v1617
      %v1702 = vunpack.c.l.b16 %v1618
      %v1703 = vunpack.c.l.b16 %v1619
      %v1704 = vunpack.c.l.b16 %v1620
      %v1705 = vunpack.c.l.b16 %v1621
      %v1706 = vunpack.c.l.b16 %v1622
      %v1707 = vunpack.c.l.b16 %v1623
      %v1708 = vunpack.c.l.b16 %v1624
      %v1709 = vunpack.c.l.b16 %v1625
      %v1710 = vunpack.c.l.b16 %v1626
      %v1711 = vunpack.c.l.b16 %v1627
      %v1712 = vpack.c.b16 %v1681, %v1680
      %v1713 = vpack.c.b16 %v1683, %v1682
      %v1714 = vpack.c.b16 %v1685, %v1684
      %v1715 = vpack.c.b16 %v1687, %v1686
      %v1716 = vpack.c.b16 %v1689, %v1688
      %v1717 = vpack.c.b16 %v1691, %v1690
      %v1718 = vpack.c.b16 %v1693, %v1692
      %v1719 = vpack.c.b16 %v1695, %v1694
      %v1720 = vpack.c.b16 %v1697, %v1696
      %v1721 = vpack.c.b16 %v1699, %v1698
      %v1722 = vpack.c.b16 %v1701, %v1700
      %v1723 = vpack.c.b16 %v1703, %v1702
      %v1724 = vpack.c.b16 %v1705, %v1704
      %v1725 = vpack.c.b16 %v1707, %v1706
      %v1726 = vpack.c.b16 %v1709, %v1708
      %v1727 = vpack.c.b16 %v1711, %v1710
      %1744 = vmatprep.subr.bf16.mxu0 0
      %1745 = vmatpush1.bf16.msra.mxu0 %v1719
      %1746 = vmatprep.subr.bf16.mxu0 0
      %1747 = vmatpush1.bf16.msra.mxu0 %v1718
      %1748 = vmatprep.subr.bf16.mxu0 0
      %1749 = vmatpush1.bf16.msra.mxu0 %v1717
      %1750 = vmatprep.subr.bf16.mxu0 0
      %1751 = vmatpush1.bf16.msra.mxu0 %v1716
      %1752 = vmatprep.subr.bf16.mxu0 0
      %1753 = vmatpush1.bf16.msra.mxu0 %v1715
      %1754 = vmatprep.subr.bf16.mxu0 0
      %1755 = vmatpush1.bf16.msra.mxu0 %v1714
      %1756 = vmatprep.subr.bf16.mxu0 0
      %1757 = vmatpush1.bf16.msra.mxu0 %v1713
      %1758 = vmatprep.subr.bf16.mxu0 0
      %1759 = vmatpush1.bf16.msra.mxu0 %v1712
      %1760 = vmatprep.subr.bf16.mxu0 0
      %1761 = vmatpush2.bf16.msra.mxu0 %v1727
      %1762 = vmatprep.subr.bf16.mxu0 0
      %1763 = vmatpush2.bf16.msra.mxu0 %v1726
      %1764 = vmatprep.subr.bf16.mxu0 0
      %1765 = vmatpush2.bf16.msra.mxu0 %v1725
      %1766 = vmatprep.subr.bf16.mxu0 0
      %1767 = vmatpush2.bf16.msra.mxu0 %v1724
      %1768 = vmatprep.subr.bf16.mxu0 0
      %1769 = vmatpush2.bf16.msra.mxu0 %v1723
      %1770 = vmatprep.subr.bf16.mxu0 0
      %1771 = vmatpush2.bf16.msra.mxu0 %v1722
      %1772 = vmatprep.subr.bf16.mxu0 0
      %1773 = vmatpush2.bf16.msra.mxu0 %v1721
      %1774 = vmatprep.subr.bf16.mxu0 0
      %1775 = vmatpush2.bf16.msra.mxu0 %v1720
      %1776 = vmatprep.mubr.bf16.mxu0 %v1645
      %1777 = vmatmul.mubr.bf16.gmra.mxu0 %v1644
      %v1778 = vpop.f32.mrf.mxu0
      %v1779 = vadd.f32 0.0, %v1778
      %v1780 = vpop.f32.mrf.mxu0
      %v1781 = vpop.f32.mrf.mxu0
      %v1782 = vadd.f32 0.0, %v1781
      %v1783 = vpop.f32.mrf.mxu0
      %1784 = vdwg.mxu0
      %v1785 = vadd.f32 %v1585, %v1779
      %v1786 = vadd.f32 %v1586, %v1782
      %v1787 = vcombine.high %v1594, %v1594
      %v1789 = vshrl.u32 %v1594, 16
      %v1791 = vrot.slane %v1789, 6
      %v1792 = vshll.u32 %v1594, 16
      %v1794 = vrot.slane %v1792, 7
      %v1795 = vor.u32 %v1791, %v1794
      %v1796 = vrot.slane %v1795, 2
      %v1798 = vshll.u32 %v1787, 16
      %v1800 = vrot.slane %v1798, 7
      %v1801 = vsel %vm300, %v1796, %v1800
      %s1802 = scalar_lea.vmem %s1, 896
      %v1803 = vld [vmem:[%s1802] sm:$0xf]
      %v1804 = vld [vmem:[%s1802 + $0x4] sm:$0xf]
      %v1805 = vld [vmem:[%s1802 + $0x8] sm:$0xf]
      %v1806 = vld [vmem:[%s1802 + $0xc] sm:$0xf]
      %v1807 = vld [vmem:[%s1802 + $0x10] sm:$0xf]
      %v1808 = vld [vmem:[%s1802 + $0x14] sm:$0xf]
      %v1809 = vld [vmem:[%s1802 + $0x18] sm:$0xf]
      %v1810 = vld [vmem:[%s1802 + $0x1c] sm:$0xf]
      %v1811 = vld [vmem:[%s1802 + $0x20] sm:$0xf]
      %v1812 = vld [vmem:[%s1802 + $0x24] sm:$0xf]
      %v1813 = vld [vmem:[%s1802 + $0x28] sm:$0xf]
      %v1814 = vld [vmem:[%s1802 + $0x2c] sm:$0xf]
      %v1815 = vld [vmem:[%s1802 + $0x30] sm:$0xf]
      %v1816 = vld [vmem:[%s1802 + $0x34] sm:$0xf]
      %v1817 = vld [vmem:[%s1802 + $0x38] sm:$0xf]
      %v1818 = vld [vmem:[%s1802 + $0x3c] sm:$0xf]
      %v1819 = vld [vmem:[%s1802 + $0x40] sm:$0xf]
      %v1820 = vld [vmem:[%s1802 + $0x44] sm:$0xf]
      %v1821 = vld [vmem:[%s1802 + $0x48] sm:$0xf]
      %v1822 = vld [vmem:[%s1802 + $0x4c] sm:$0xf]
      %v1823 = vld [vmem:[%s1802 + $0x50] sm:$0xf]
      %v1824 = vld [vmem:[%s1802 + $0x54] sm:$0xf]
      %v1825 = vld [vmem:[%s1802 + $0x58] sm:$0xf]
      %v1826 = vld [vmem:[%s1802 + $0x5c] sm:$0xf]
      %v1827 = vld [vmem:[%s1802 + $0x60] sm:$0xf]
      %v1828 = vld [vmem:[%s1802 + $0x64] sm:$0xf]
      %v1829 = vld [vmem:[%s1802 + $0x68] sm:$0xf]
      %v1830 = vld [vmem:[%s1802 + $0x6c] sm:$0xf]
      %v1831 = vld [vmem:[%s1802 + $0x70] sm:$0xf]
      %v1832 = vld [vmem:[%s1802 + $0x74] sm:$0xf]
      %v1833 = vld [vmem:[%s1802 + $0x78] sm:$0xf]
      %v1834 = vld [vmem:[%s1802 + $0x7c] sm:$0xf]
      %v1835 = vcombine.low %v959, %v973
      %v1836 = vcombine.low %v987, %v1801
      %v1838 = vunpack.c.l.s4 1983009808
      %v1839 = vunpack.c.0.s8 %v1838
      %v1840 = vlaneseq
      %v1841 = vshrl.u32 %v1840, 7
      %v1842 = vsub.s32 %v1839, %v1841
      %v1843 = vrot.slane %v1835, %v1842
      %v1845 = vunpack.c.l.s4 1983009808
      %v1846 = vunpack.c.0.s8 %v1845
      %v1847 = vlaneseq
      %v1848 = vshrl.u32 %v1847, 7
      %v1849 = vsub.s32 %v1846, %v1848
      %v1850 = vrot.slane %v1836, %v1849
      %v1851 = vcombine.low %v1843, %v1850
      %v1852 = vcombine.high %v1843, %v1850
      %v1887 = vunpack.c.l.b16 %v1803
      %v1888 = vunpack.c.l.b16 %v1804
      %v1889 = vunpack.c.l.b16 %v1805
      %v1890 = vunpack.c.l.b16 %v1806
      %v1891 = vunpack.c.l.b16 %v1807
      %v1892 = vunpack.c.l.b16 %v1808
      %v1893 = vunpack.c.l.b16 %v1809
      %v1894 = vunpack.c.l.b16 %v1810
      %v1895 = vunpack.c.l.b16 %v1811
      %v1896 = vunpack.c.l.b16 %v1812
      %v1897 = vunpack.c.l.b16 %v1813
      %v1898 = vunpack.c.l.b16 %v1814
      %v1899 = vunpack.c.l.b16 %v1815
      %v1900 = vunpack.c.l.b16 %v1816
      %v1901 = vunpack.c.l.b16 %v1817
      %v1902 = vunpack.c.l.b16 %v1818
      %v1903 = vunpack.c.l.b16 %v1819
      %v1904 = vunpack.c.l.b16 %v1820
      %v1905 = vunpack.c.l.b16 %v1821
      %v1906 = vunpack.c.l.b16 %v1822
      %v1907 = vunpack.c.l.b16 %v1823
      %v1908 = vunpack.c.l.b16 %v1824
      %v1909 = vunpack.c.l.b16 %v1825
      %v1910 = vunpack.c.l.b16 %v1826
      %v1911 = vunpack.c.l.b16 %v1827
      %v1912 = vunpack.c.l.b16 %v1828
      %v1913 = vunpack.c.l.b16 %v1829
      %v1914 = vunpack.c.l.b16 %v1830
      %v1915 = vunpack.c.l.b16 %v1831
      %v1916 = vunpack.c.l.b16 %v1832
      %v1917 = vunpack.c.l.b16 %v1833
      %v1918 = vunpack.c.l.b16 %v1834
      %v1919 = vpack.c.b16 %v1888, %v1887
      %v1920 = vpack.c.b16 %v1890, %v1889
      %v1921 = vpack.c.b16 %v1892, %v1891
      %v1922 = vpack.c.b16 %v1894, %v1893
      %v1923 = vpack.c.b16 %v1896, %v1895
      %v1924 = vpack.c.b16 %v1898, %v1897
      %v1925 = vpack.c.b16 %v1900, %v1899
      %v1926 = vpack.c.b16 %v1902, %v1901
      %v1927 = vpack.c.b16 %v1904, %v1903
      %v1928 = vpack.c.b16 %v1906, %v1905
      %v1929 = vpack.c.b16 %v1908, %v1907
      %v1930 = vpack.c.b16 %v1910, %v1909
      %v1931 = vpack.c.b16 %v1912, %v1911
      %v1932 = vpack.c.b16 %v1914, %v1913
      %v1933 = vpack.c.b16 %v1916, %v1915
      %v1934 = vpack.c.b16 %v1918, %v1917
      %1951 = vmatprep.subr.bf16.mxu0 0
      %1952 = vmatpush1.bf16.msra.mxu0 %v1926
      %1953 = vmatprep.subr.bf16.mxu0 0
      %1954 = vmatpush1.bf16.msra.mxu0 %v1925
      %1955 = vmatprep.subr.bf16.mxu0 0
      %1956 = vmatpush1.bf16.msra.mxu0 %v1924
      %1957 = vmatprep.subr.bf16.mxu0 0
      %1958 = vmatpush1.bf16.msra.mxu0 %v1923
      %1959 = vmatprep.subr.bf16.mxu0 0
      %1960 = vmatpush1.bf16.msra.mxu0 %v1922
      %1961 = vmatprep.subr.bf16.mxu0 0
      %1962 = vmatpush1.bf16.msra.mxu0 %v1921
      %1963 = vmatprep.subr.bf16.mxu0 0
      %1964 = vmatpush1.bf16.msra.mxu0 %v1920
      %1965 = vmatprep.subr.bf16.mxu0 0
      %1966 = vmatpush1.bf16.msra.mxu0 %v1919
      %1967 = vmatprep.subr.bf16.mxu0 0
      %1968 = vmatpush2.bf16.msra.mxu0 %v1934
      %1969 = vmatprep.subr.bf16.mxu0 0
      %1970 = vmatpush2.bf16.msra.mxu0 %v1933
      %1971 = vmatprep.subr.bf16.mxu0 0
      %1972 = vmatpush2.bf16.msra.mxu0 %v1932
      %1973 = vmatprep.subr.bf16.mxu0 0
      %1974 = vmatpush2.bf16.msra.mxu0 %v1931
      %1975 = vmatprep.subr.bf16.mxu0 0
      %1976 = vmatpush2.bf16.msra.mxu0 %v1930
      %1977 = vmatprep.subr.bf16.mxu0 0
      %1978 = vmatpush2.bf16.msra.mxu0 %v1929
      %1979 = vmatprep.subr.bf16.mxu0 0
      %1980 = vmatpush2.bf16.msra.mxu0 %v1928
      %1981 = vmatprep.subr.bf16.mxu0 0
      %1982 = vmatpush2.bf16.msra.mxu0 %v1927
      %1983 = vmatprep.mubr.bf16.mxu0 %v1852
      %1984 = vmatmul.mubr.bf16.gmra.mxu0 %v1851
      %v1985 = vpop.f32.mrf.mxu0
      %v1986 = vadd.f32 0.0, %v1985
      %v1987 = vpop.f32.mrf.mxu0
      %v1988 = vpop.f32.mrf.mxu0
      %v1989 = vadd.f32 0.0, %v1988
      %v1990 = vpop.f32.mrf.mxu0
      %1991 = vdwg.mxu0
      %v1992 = vadd.f32 %v1785, %v1986
      %v1993 = vadd.f32 %v1786, %v1989
      %v1994 = vadd.f32 %v1992, %v1993
      %v1995 = vrot.slane %v1994, 4
      %v1996 = vadd.f32 %v1994, %v1995
      %v1997 = vrot.slane %v1996, 2
      %v1998 = vadd.f32 %v1996, %v1997
      %v1999 = vrot.slane %v1998, 1
      %v2000 = vadd.f32 %v1998, %v1999
      %2001 = vst [vmem:[%s211] sm:$0x1] %v2000
      %v2002 = vmul.f32 %v1992, %v1992
      %v2003 = vmul.f32 %v1993, %v1993
      %v2004 = vadd.f32 %v2002, %v2003
      %v2005 = vrot.slane %v2004, 4
      %v2006 = vadd.f32 %v2004, %v2005
      %v2007 = vrot.slane %v2006, 2
      %v2008 = vadd.f32 %v2006, %v2007
      %v2009 = vrot.slane %v2008, 1
      %v2010 = vadd.f32 %v2008, %v2009
      %2011 = vst [vmem:[%s214] sm:$0x1] %v2010
      %vm2012 = vcmp.ge.f32.partialorder %v1992, 0.0
      %vm2013 = vcmp.ge.f32.partialorder %v1993, 0.0
      %v2014 = vmul.f32 %v1992, 0.2
      %v2015 = vmul.f32 %v1993, 0.2
      %v2016 = vsel %vm2012, %v1992, %v2014
      %v2017 = vsel %vm2013, %v1993, %v2015
      %v2018 = vpack.c.bf16 %v2017, %v2016
      %v2020 = vunpack.c.l.b16 %v2018
      %v2021 = vunpack.c.h.b16 %v2018
      %v2022 = vpack.c.b16 %v2020, %v2020
      %v2023 = vpack.c.b16 %v2021, %v2021
      %2026 = vst [vmem:[%s208] sm:$0xf] %v2022
      %2027 = vst [vmem:[%s208 + $0x4] sm:$0xf] %v2023
      %p2028 = scmp.lt.s32.totalorder %s16, 1
      %s2029 = scalar_select %p2028, %s16, 1
      %s2030 = smul.addr %s2029, 2
      %s2031 = smul.addr %s2030, 4
      %s2032 = scalar_lea.vmem %s2, %s2031
      %p2033 = scmp.lt.s32.totalorder %s16, 1
      %s2034 = scalar_select %p2033, %s16, 1
      %s2035 = scalar_lea.vmem %s3, %s2034
      %p2036 = scmp.lt.s32.totalorder %s16, 1
      %s2037 = scalar_select %p2036, %s16, 1
      %s2038 = scalar_lea.vmem %s4, %s2037
      // Predicated region
      $region29: #{_lambda_.5} parent=27 // pred_check
        %p2039 = pneg %p81
      $region30: #{_lambda_.5} parent=27 // pred_check_branch
        %2041 = sbr.rel (%p2039) target = $region32
      $region31: #{_lambda_.5} parent=27 // pred_region
        _
      $region32: #{_lambda_.5} parent=27 // pred_fallthru
        _
      // Predicated region
      $region33: #{_lambda_.5} parent=27 // pred_check
        %p2042 = pneg %p107
      $region34: #{_lambda_.5} parent=27 // pred_check_branch
        %2044 = sbr.rel (%p2042) target = $region36
      $region35: #{_lambda_.5} parent=27 // pred_region
        _
      $region36: #{_lambda_.5} parent=27 // pred_fallthru
        _
      // Predicated region
      $region37: #{_lambda_.5} parent=27 // pred_check
        %p2045 = pneg %p133
      $region38: #{_lambda_.5} parent=27 // pred_check_branch
        %2047 = sbr.rel (%p2045) target = $region40
      $region39: #{_lambda_.5} parent=27 // pred_region
        _
      $region40: #{_lambda_.5} parent=27 // pred_fallthru
        _
    $region28: #{_lambda_.5} parent=5 // pred_fallthru
      _
    %p2048 = scmp.le.s32.totalorder 2, %s11
    // Predicated region
    $region41: #{_lambda_.5} parent=5 // pred_check
      %p2049 = pneg %p2048
    $region42: #{_lambda_.5} parent=5 // pred_check_branch
      %2051 = sbr.rel (%p2049) target = $region44
    $region43: #{_lambda_.5} parent=5 // pred_region
      %s2052 = ssub.s32 %s11, 2
      // Predicated region
      $region45: #{_lambda_.5} parent=43 // pred_check
        %p2053 = pneg %p87
      $region46: #{_lambda_.5} parent=43 // pred_check_branch
        %2055 = sbr.rel (%p2053) target = $region48
      $region47: #{_lambda_.5} parent=43 // pred_region
        %p2056 = scmp.lt.s32.totalorder %s17, 1
        %s2057 = scalar_select %p2056, %s17, 1
        %s2058 = smul.addr %s2057, 2
        %s2059 = smul.addr %s2058, 4
        %s2060 = scalar_lea.vmem %s2, %s2059
      $region48: #{_lambda_.5} parent=43 // pred_fallthru
        _
      // Predicated region
      $region49: #{_lambda_.5} parent=43 // pred_check
        %p2061 = pneg %p113
      $region50: #{_lambda_.5} parent=43 // pred_check_branch
        %2063 = sbr.rel (%p2061) target = $region52
      $region51: #{_lambda_.5} parent=43 // pred_region
        %p2064 = scmp.lt.s32.totalorder %s17, 1
        %s2065 = scalar_select %p2064, %s17, 1
        %s2066 = scalar_lea.vmem %s3, %s2065
      $region52: #{_lambda_.5} parent=43 // pred_fallthru
        _
      // Predicated region
      $region53: #{_lambda_.5} parent=43 // pred_check
        %p2067 = pneg %p139
      $region54: #{_lambda_.5} parent=43 // pred_check_branch
        %2069 = sbr.rel (%p2067) target = $region56
      $region55: #{_lambda_.5} parent=43 // pred_region
        %p2070 = scmp.lt.s32.totalorder %s17, 1
        %s2071 = scalar_select %p2070, %s17, 1
        %s2072 = scalar_lea.vmem %s4, %s2071
      $region56: #{_lambda_.5} parent=43 // pred_fallthru
        _
    $region44: #{_lambda_.5} parent=5 // pred_fallthru
      _
  $region6: #{_lambda_.5} parent=0 // loop_footer
    %s15 = sadd.s32 1, %s11
  $region7: #{_lambda_.5} parent=0 // loop_footer_branch
    %10 = sbr.rel target = $region3
  $region8: #{_lambda_.5} parent=0 // loop_exit
    _

// kernel: _lambda_.6
$region0: #{_lambda_.6}
  #allocation0 [shape = 'u32[]', space=smem, size = 0x4, offset = 0x4, fixed_abs, tag = 'smem constant byte address 0x4 - core index']
  #allocation1 [shape = 'u32[144,128]{1,0:T(1,128)}', space=vmem, size = 0x12000, scoped, tag = 'internal scratch']
  %s0 = inlined_call_operand.vmem [shape: bf16[2,3,2,3,256], index: 0, kind: input, shape index: {}]
  %s1 = inlined_call_operand.vmem [shape: bf16[4,2,256,256], index: 1, kind: input, shape index: {}]
  %s2 = inlined_call_operand.vmem [shape: f32[1,256], index: 2, kind: input, shape index: {}]
  %s3 = inlined_call_operand.vmem [shape: f32[1,256], index: 3, kind: input, shape index: {}]
  %s4 = inlined_call_operand.vmem [shape: bf16[2,4,256], index: 4, kind: output, shape index: {0}]
  %s5 = inlined_call_operand.vmem [shape: f32[2,1,256], index: 5, kind: output, shape index: {1}]
  %s6 = inlined_call_operand.vmem [shape: f32[2,1,256], index: 6, kind: output, shape index: {2}]
  %7 = xla_tuple %s4, %s5, %s6
  %s8 = sld [smem:[#allocation0]]
  $region65: #{_lambda_.6} parent=0
    _
  %s10 = ssub.s32 1, %s8
  %s11 = scalar_select 0, %s10, %s8
  loop: start=0, step=1, limit=4
  $region2: #{_lambda_.6} parent=0 // loop_pre_header
    _
  $region3: #{_lambda_.6} parent=0 // loop_header
    %s13 = sphi 0, %s17
    %p14 = scmp.ge.s32.totalorder %s13, 4
    %s23 = sphi 0, %s25
    %s26 = sphi 0, %s23
    %s27 = sphi 0, %s26
    %s43 = sphi 0, %s27
    %s47 = sphi 0, %s47
    %s49 = sphi 0, %s47
    %s50 = sphi 0, %s49
    %s64 = sphi 0, %s50
    %s68 = sphi 0, %s68
    %s70 = sphi 0, %s68
    %s71 = sphi 0, %s70
    %s85 = sphi 0, %s71
    %s89 = sphi 0, %s89
    %s91 = sphi 0, %s89
    %s92 = sphi 0, %s91
    %s106 = sphi 0, %s92
    %s112 = sphi 0, %s114
    %s115 = sphi 0, %s112
    %s116 = sphi 0, %s115
    %s132 = sphi 0, %s116
    %s138 = sphi 0, %s140
    %s141 = sphi 0, %s138
    %s142 = sphi 0, %s141
    %s158 = sphi 0, %s142
    %s164 = sphi 0, %s166
    %s167 = sphi 0, %s164
    %s168 = sphi 0, %s167
    %s184 = sphi 0, %s168
  $region4: #{_lambda_.6} parent=0 // loop_header_branch
    %16 = sbr.rel (%p14) target = $region8
  $region5: #{_lambda_.6} parent=0 // loop_body
    %s18 = ssub.s32 %s13, 1
    %s19 = ssub.s32 %s13, 2
    %s20 = sadd.s32 %s13, 1
    %s21 = ssub.s32 %s13, %s20
    %p22 = scmp.eq.s32.totalorder %s21, 0
    %s24 = sadd.s32 %s23, 1
    %s25 = scalar_select %p22, %s23, %s24
    %p28 = pneg %p22
    %p29 = scmp.eq.s32.totalorder %s13, 1
    %p30 = por %p28, %p29
    %p31 = scmp.ne.s32.totalorder %s23, %s26
    %p32 = scmp.eq.s32.totalorder %s13, 0
    %p33 = por %p31, %p32
    %p34 = scmp.ne.s32.totalorder %s23, %s26
    %p35 = scmp.eq.s32.totalorder %s18, 1
    %p36 = por %p34, %p35
    %p37 = scmp.ne.s32.totalorder %s26, %s27
    %p38 = scmp.eq.s32.totalorder %s18, 0
    %p39 = por %p37, %p38
    %p40 = scmp.ne.s32.totalorder %s26, %s27
    %p41 = scmp.eq.s32.totalorder %s19, 1
    %p42 = por %p40, %p41
    %p44 = scmp.ne.s32.totalorder %s27, %s43
    %p45 = scmp.eq.s32.totalorder %s19, 0
    %p46 = por %p44, %p45
    %s48 = sadd.s32 %s47, 1
    %p51 = scmp.eq.s32.totalorder %s13, 1
    %p52 = scmp.ne.s32.totalorder %s47, %s49
    %p53 = scmp.eq.s32.totalorder %s13, 0
    %p54 = por %p52, %p53
    %p55 = scmp.ne.s32.totalorder %s47, %s49
    %p56 = scmp.eq.s32.totalorder %s18, 1
    %p57 = por %p55, %p56
    %p58 = scmp.ne.s32.totalorder %s49, %s50
    %p59 = scmp.eq.s32.totalorder %s18, 0
    %p60 = por %p58, %p59
    %p61 = scmp.ne.s32.totalorder %s49, %s50
    %p62 = scmp.eq.s32.totalorder %s19, 1
    %p63 = por %p61, %p62
    %p65 = scmp.ne.s32.totalorder %s50, %s64
    %p66 = scmp.eq.s32.totalorder %s19, 0
    %p67 = por %p65, %p66
    %s69 = sadd.s32 %s68, 1
    %p72 = scmp.eq.s32.totalorder %s13, 1
    %p73 = scmp.ne.s32.totalorder %s68, %s70
    %p74 = scmp.eq.s32.totalorder %s13, 0
    %p75 = por %p73, %p74
    %p76 = scmp.ne.s32.totalorder %s68, %s70
    %p77 = scmp.eq.s32.totalorder %s18, 1
    %p78 = por %p76, %p77
    %p79 = scmp.ne.s32.totalorder %s70, %s71
    %p80 = scmp.eq.s32.totalorder %s18, 0
    %p81 = por %p79, %p80
    %p82 = scmp.ne.s32.totalorder %s70, %s71
    %p83 = scmp.eq.s32.totalorder %s19, 1
    %p84 = por %p82, %p83
    %p86 = scmp.ne.s32.totalorder %s71, %s85
    %p87 = scmp.eq.s32.totalorder %s19, 0
    %p88 = por %p86, %p87
    %s90 = sadd.s32 %s89, 1
    %p93 = scmp.eq.s32.totalorder %s13, 1
    %p94 = scmp.ne.s32.totalorder %s89, %s91
    %p95 = scmp.eq.s32.totalorder %s13, 0
    %p96 = por %p94, %p95
    %p97 = scmp.ne.s32.totalorder %s89, %s91
    %p98 = scmp.eq.s32.totalorder %s18, 1
    %p99 = por %p97, %p98
    %p100 = scmp.ne.s32.totalorder %s91, %s92
    %p101 = scmp.eq.s32.totalorder %s18, 0
    %p102 = por %p100, %p101
    %p103 = scmp.ne.s32.totalorder %s91, %s92
    %p104 = scmp.eq.s32.totalorder %s19, 1
    %p105 = por %p103, %p104
    %p107 = scmp.ne.s32.totalorder %s92, %s106
    %p108 = scmp.eq.s32.totalorder %s19, 0
    %p109 = por %p107, %p108
    %s110 = ssub.s32 %s13, %s20
    %p111 = scmp.eq.s32.totalorder %s110, 0
    %s113 = sadd.s32 %s112, 1
    %s114 = scalar_select %p111, %s112, %s113
    %p117 = pneg %p111
    %p118 = scmp.eq.s32.totalorder %s13, 1
    %p119 = por %p117, %p118
    %p120 = scmp.ne.s32.totalorder %s112, %s115
    %p121 = scmp.eq.s32.totalorder %s13, 0
    %p122 = por %p120, %p121
    %p123 = scmp.ne.s32.totalorder %s112, %s115
    %p124 = scmp.eq.s32.totalorder %s18, 1
    %p125 = por %p123, %p124
    %p126 = scmp.ne.s32.totalorder %s115, %s116
    %p127 = scmp.eq.s32.totalorder %s18, 0
    %p128 = por %p126, %p127
    %p129 = scmp.ne.s32.totalorder %s115, %s116
    %p130 = scmp.eq.s32.totalorder %s19, 1
    %p131 = por %p129, %p130
    %p133 = scmp.ne.s32.totalorder %s116, %s132
    %p134 = scmp.eq.s32.totalorder %s19, 0
    %p135 = por %p133, %p134
    %s136 = ssub.s32 %s13, %s20
    %p137 = scmp.eq.s32.totalorder %s136, 0
    %s139 = sadd.s32 %s138, 1
    %s140 = scalar_select %p137, %s138, %s139
    %p143 = pneg %p137
    %p144 = scmp.eq.s32.totalorder %s13, 1
    %p145 = por %p143, %p144
    %p146 = scmp.ne.s32.totalorder %s138, %s141
    %p147 = scmp.eq.s32.totalorder %s13, 0
    %p148 = por %p146, %p147
    %p149 = scmp.ne.s32.totalorder %s138, %s141
    %p150 = scmp.eq.s32.totalorder %s18, 1
    %p151 = por %p149, %p150
    %p152 = scmp.ne.s32.totalorder %s141, %s142
    %p153 = scmp.eq.s32.totalorder %s18, 0
    %p154 = por %p152, %p153
    %p155 = scmp.ne.s32.totalorder %s141, %s142
    %p156 = scmp.eq.s32.totalorder %s19, 1
    %p157 = por %p155, %p156
    %p159 = scmp.ne.s32.totalorder %s142, %s158
    %p160 = scmp.eq.s32.totalorder %s19, 0
    %p161 = por %p159, %p160
    %s162 = ssub.s32 %s13, %s20
    %p163 = scmp.eq.s32.totalorder %s162, 0
    %s165 = sadd.s32 %s164, 1
    %s166 = scalar_select %p163, %s164, %s165
    %p169 = pneg %p163
    %p170 = scmp.eq.s32.totalorder %s13, 1
    %p171 = por %p169, %p170
    %p172 = scmp.ne.s32.totalorder %s164, %s167
    %p173 = scmp.eq.s32.totalorder %s13, 0
    %p174 = por %p172, %p173
    %p175 = scmp.ne.s32.totalorder %s164, %s167
    %p176 = scmp.eq.s32.totalorder %s18, 1
    %p177 = por %p175, %p176
    %p178 = scmp.ne.s32.totalorder %s167, %s168
    %p179 = scmp.eq.s32.totalorder %s18, 0
    %p180 = por %p178, %p179
    %p181 = scmp.ne.s32.totalorder %s167, %s168
    %p182 = scmp.eq.s32.totalorder %s19, 1
    %p183 = por %p181, %p182
    %p185 = scmp.ne.s32.totalorder %s168, %s184
    %p186 = scmp.eq.s32.totalorder %s19, 0
    %p187 = por %p185, %p186
    %p188 = scmp.le.s32.totalorder 1, %s13
    %p189 = scmp.lt.s32.totalorder %s13, 3
    %p190 = pnand %p188, %p189
    %p191 = pneg %p190
    // Predicated region
    $region9: #{_lambda_.6} parent=5 // pred_check
      _
    $region10: #{_lambda_.6} parent=5 // pred_check_branch
      %193 = sbr.rel (%p190) target = $region12
    $region11: #{_lambda_.6} parent=5 // pred_region
      %s194 = ssub.s32 %s13, 1
      // Predicated region
      $region13: #{_lambda_.6} parent=11 // pred_check
        %p195 = pneg %p60
      $region14: #{_lambda_.6} parent=11 // pred_check_branch
        %197 = sbr.rel (%p195) target = $region16
      $region15: #{_lambda_.6} parent=11 // pred_region
        _
      $region16: #{_lambda_.6} parent=11 // pred_fallthru
        _
      // Predicated region
      $region17: #{_lambda_.6} parent=11 // pred_check
        %p198 = pneg %p81
      $region18: #{_lambda_.6} parent=11 // pred_check_branch
        %200 = sbr.rel (%p198) target = $region20
      $region19: #{_lambda_.6} parent=11 // pred_region
        _
      $region20: #{_lambda_.6} parent=11 // pred_fallthru
        _
      // Predicated region
      $region21: #{_lambda_.6} parent=11 // pred_check
        %p201 = pneg %p102
      $region22: #{_lambda_.6} parent=11 // pred_check_branch
        %203 = sbr.rel (%p201) target = $region24
      $region23: #{_lambda_.6} parent=11 // pred_region
        _
      $region24: #{_lambda_.6} parent=11 // pred_fallthru
        _
    $region12: #{_lambda_.6} parent=5 // pred_fallthru
      _
    %p204 = scmp.lt.s32.totalorder %s13, 2
    // Predicated region
    $region25: #{_lambda_.6} parent=5 // pred_check
      %p205 = pneg %p204
    $region26: #{_lambda_.6} parent=5 // pred_check_branch
      %207 = sbr.rel (%p205) target = $region28
    $region27: #{_lambda_.6} parent=5 // pred_region
      // Predicated region
      $region29: #{_lambda_.6} parent=27 // pred_check
        %p208 = pneg %p33
      $region30: #{_lambda_.6} parent=27 // pred_check_branch
        %210 = sbr.rel (%p208) target = $region32
      $region31: #{_lambda_.6} parent=27 // pred_region
        %p211 = scmp.lt.s32.totalorder %s13, 1
        %s212 = scalar_select %p211, %s13, 1
        %s213 = smul.addr %s212, 12
        %s214 = smul.addr %s213, 2
        %s215 = scalar_lea.vmem %s0, %s214
      $region32: #{_lambda_.6} parent=27 // pred_fallthru
        _
    $region28: #{_lambda_.6} parent=5 // pred_fallthru
      _
    %p216 = scmp.le.s32.totalorder 1, %s13
    %p217 = scmp.lt.s32.totalorder %s13, 3
    %p218 = pnand %p216, %p217
    %p219 = pneg %p218
    // Predicated region
    $region33: #{_lambda_.6} parent=5 // pred_check
      _
    $region34: #{_lambda_.6} parent=5 // pred_check_branch
      %221 = sbr.rel (%p218) target = $region36
    $region35: #{_lambda_.6} parent=5 // pred_region
      %s222 = ssub.s32 %s13, 1
      %p223 = scmp.lt.s32.totalorder %s18, 1
      %s224 = scalar_select %p223, %s18, 1
      %s225 = smul.addr %s224, 12
      %s226 = smul.addr %s225, 2
      %s227 = scalar_lea.vmem %s0, %s226
      %p228 = pneg %p39
      %p229 = pneg %p36
      %p230 = pneg %p60
      %p231 = pneg %p57
      %p232 = pneg %p81
      %p233 = pneg %p78
      %p234 = pneg %p102
      %p235 = pneg %p99
      %p236 = pneg %p128
      %p237 = pneg %p125
      %p238 = scmp.lt.s32.totalorder %s18, 1
      %s239 = scalar_select %p238, %s18, 1
      %s240 = smul.addr %s239, 2
      %s241 = smul.addr %s240, 2
      %s242 = scalar_lea.vmem %s4, %s241
      %p243 = pneg %p154
      %p244 = pneg %p151
      %p245 = scmp.lt.s32.totalorder %s18, 1
      %s246 = scalar_select %p245, %s18, 1
      %s247 = smul.addr %s246, 2
      %s248 = scalar_lea.vmem %s5, %s247
      %p249 = pneg %p180
      %p250 = pneg %p177
      %p251 = scmp.lt.s32.totalorder %s18, 1
      %s252 = scalar_select %p251, %s18, 1
      %s253 = smul.addr %s252, 2
      %s254 = scalar_lea.vmem %s6, %s253
      %p255 = scmp.lt.s32.totalorder %s18, 1
      %s256 = scalar_select %p255, %s18, 1
      %s257 = smul.addr %s256, 12
      %s258 = smul.addr %s257, 2
      %s259 = scalar_lea.vmem %s0, %s258
      %p260 = scmp.lt.s32.totalorder %s18, 1
      %s261 = scalar_select %p260, %s18, 1
      %s262 = smul.addr %s261, 2
      %s263 = smul.addr %s262, 2
      %s264 = scalar_lea.vmem %s4, %s263
      %p265 = scmp.lt.s32.totalorder %s18, 1
      %s266 = scalar_select %p265, %s18, 1
      %s267 = smul.addr %s266, 2
      %s268 = scalar_lea.vmem %s5, %s267
      %p269 = scmp.lt.s32.totalorder %s18, 1
      %s270 = scalar_select %p269, %s18, 1
      %s271 = smul.addr %s270, 2
      %s272 = scalar_lea.vmem %s6, %s271
      %v273 = vld [vmem:[%s259] sm:$0xf]
      %v274 = vld [vmem:[%s259 + $0x4] sm:$0xf]
      %v275 = vld [vmem:[%s259 + $0x8] sm:$0xf]
      %v276 = vld [vmem:[%s259 + $0xc] sm:$0xf]
      %v277 = vld [vmem:[%s259 + $0x10] sm:$0xf]
      %v278 = vld [vmem:[%s259 + $0x14] sm:$0xf]
      %v279 = vunpack.c.l.bf16 %v273
      %v280 = vunpack.c.l.bf16 %v274
      %v281 = vunpack.c.l.bf16 %v275
      %v282 = vunpack.c.l.bf16 %v276
      %v283 = vunpack.c.l.bf16 %v277
      %v284 = vunpack.c.l.bf16 %v278
      %v285 = vld [vmem:[%s2] sm:$0x3]
      %v287 = vlaneseq
      %v288 = vshrl.u32 %v287, 7
      %v289 = vsub.s32 0, %v288
      %v290 = vrot.slane %v285, %v289
      %v291 = vlaneseq
      %v292 = vshrl.u32 %v291, 7
      %v293 = vsub.s32 1, %v292
      %v294 = vrot.slane %v285, %v293
      %v295 = vcombine.low %v290, %v294
      %v297 = vmul.f32 %v279, %v295
      %v298 = vmul.f32 %v280, %v295
      %v299 = vmul.f32 %v281, %v295
      %v300 = vmul.f32 %v282, %v295
      %v301 = vmul.f32 %v283, %v295
      %v302 = vmul.f32 %v284, %v295
      %v303 = vld [vmem:[%s3] sm:$0x3]
      %v305 = vlaneseq
      %v306 = vshrl.u32 %v305, 7
      %v307 = vsub.s32 0, %v306
      %v308 = vrot.slane %v303, %v307
      %v309 = vlaneseq
      %v310 = vshrl.u32 %v309, 7
      %v311 = vsub.s32 1, %v310
      %v312 = vrot.slane %v303, %v311
      %v313 = vcombine.low %v308, %v312
      %v315 = vadd.f32 %v297, %v313
      %v316 = vadd.f32 %v298, %v313
      %v317 = vadd.f32 %v299, %v313
      %v318 = vadd.f32 %v300, %v313
      %v319 = vadd.f32 %v301, %v313
      %v320 = vadd.f32 %v302, %v313
      %vm321 = vcmp.ge.f32.partialorder %v315, 0.0
      %vm322 = vcmp.ge.f32.partialorder %v316, 0.0
      %vm323 = vcmp.ge.f32.partialorder %v317, 0.0
      %vm324 = vcmp.ge.f32.partialorder %v318, 0.0
      %vm325 = vcmp.ge.f32.partialorder %v319, 0.0
      %vm326 = vcmp.ge.f32.partialorder %v320, 0.0
      %v327 = vmul.f32 %v315, 0.2
      %v328 = vmul.f32 %v316, 0.2
      %v329 = vmul.f32 %v317, 0.2
      %v330 = vmul.f32 %v318, 0.2
      %v331 = vmul.f32 %v319, 0.2
      %v332 = vmul.f32 %v320, 0.2
      %v333 = vsel %vm321, %v315, %v327
      %v334 = vsel %vm322, %v316, %v328
      %v335 = vsel %vm323, %v317, %v329
      %v336 = vsel %vm324, %v318, %v330
      %v337 = vsel %vm325, %v319, %v331
      %v338 = vsel %vm326, %v320, %v332
      %v339 = vlaneseq
      %v340 = vshrl.u32 %v339, 7
      %v341 = vmul.u32 %v340, 2
      %v342 = vlaneseq
      %v343 = vand.u32 %v342, 127
      %v344 = vadd.s32 %v343, 128
      %vm345 = vcmp.ge.s32.totalorder %v343, 128
      %vm346 = vcmp.ge.s32.totalorder %v344, 128
      %v347 = vsel %vm345, 1, 0
      %v348 = vsel %vm346, 1, 0
      %v349 = vadd.s32 %v341, %v347
      %v350 = vadd.s32 %v341, %v348
      %vm351 = vcmp.ge.s32.totalorder %v349, 1
      %vm352 = vcmp.ge.s32.totalorder %v350, 1
      %vm353 = vmand 0, %vm351
      %vm354 = vmand 0, %vm352
      %vm355 = vmand 1, %vm351
      %vm356 = vmand 1, %vm352
      %vm357 = vcmp.le.s32.totalorder %v349, 4
      %vm358 = vcmp.le.s32.totalorder %v350, 4
      %vm359 = vmand %vm353, %vm357
      %vm360 = vmand %vm354, %vm358
      %vm361 = vmand %vm355, %vm357
      %vm362 = vmand %vm356, %vm358
      %v369 = vcombine.high %v333, %v333
      %v370 = vcombine.high %v334, %v334
      %v371 = vcombine.high %v335, %v335
      %v372 = vcombine.high %v336, %v336
      %v373 = vcombine.high %v337, %v337
      %v374 = vcombine.high %v338, %v338
      %v381 = vsel %vm359, %v333, 0.0
      %v382 = vsel %vm360, %v369, 0.0
      %v383 = vsel %vm361, %v334, 0.0
      %v384 = vsel %vm362, %v370, 0.0
      %v385 = vsel %vm361, %v335, 0.0
      %v386 = vsel %vm362, %v371, 0.0
      %v387 = vsel %vm361, %v336, 0.0
      %v388 = vsel %vm362, %v372, 0.0
      %v389 = vsel %vm361, %v337, 0.0
      %v390 = vsel %vm362, %v373, 0.0
      %v391 = vsel %vm359, %v338, 0.0
      %v392 = vsel %vm360, %v374, 0.0
      %v393 = vpack.c.bf16 %v381, %v381
      %v394 = vpack.c.bf16 %v382, %v382
      %v395 = vpack.c.bf16 %v383, %v383
      %v396 = vpack.c.bf16 %v384, %v384
      %v397 = vpack.c.bf16 %v385, %v385
      %v398 = vpack.c.bf16 %v386, %v386
      %v399 = vpack.c.bf16 %v387, %v387
      %v400 = vpack.c.bf16 %v388, %v388
      %v401 = vpack.c.bf16 %v389, %v389
      %v402 = vpack.c.bf16 %v390, %v390
      %v403 = vpack.c.bf16 %v391, %v391
      %v404 = vpack.c.bf16 %v392, %v392
      %v409 = vcombine.low %v393, %v394
      %v411 = vunpack.c.l.s4 1966171168
      %v412 = vunpack.c.0.s8 %v411
      %v413 = vlaneseq
      %v414 = vshrl.u32 %v413, 7
      %v415 = vsub.s32 %v412, %v414
      %v416 = vrot.slane %v409, %v415
      %v418 = vunpack.c.l.s4 1966171168
      %v419 = vunpack.c.0.s8 %v418
      %v420 = vlaneseq
      %v421 = vshrl.u32 %v420, 7
      %v422 = vsub.s32 %v419, %v421
      %v423 = vrot.slane %v416, %v422
      %v424 = vcombine.low %v397, %v398
      %v426 = vunpack.c.l.s4 1966171168
      %v427 = vunpack.c.0.s8 %v426
      %v428 = vlaneseq
      %v429 = vshrl.u32 %v428, 7
      %v430 = vsub.s32 %v427, %v429
      %v431 = vrot.slane %v424, %v430
      %v433 = vunpack.c.l.s4 1966171168
      %v434 = vunpack.c.0.s8 %v433
      %v435 = vlaneseq
      %v436 = vshrl.u32 %v435, 7
      %v437 = vsub.s32 %v434, %v436
      %v438 = vrot.slane %v431, %v437
      %v439 = vld [vmem:[%s1] sm:$0xff]
      %v440 = vld [vmem:[%s1 + $0x8] sm:$0xff]
      %v441 = vld [vmem:[%s1 + $0x10] sm:$0xff]
      %v442 = vld [vmem:[%s1 + $0x18] sm:$0xff]
      %v443 = vld [vmem:[%s1 + $0x20] sm:$0xff]
      %v444 = vld [vmem:[%s1 + $0x28] sm:$0xff]
      %v445 = vld [vmem:[%s1 + $0x30] sm:$0xff]
      %v446 = vld [vmem:[%s1 + $0x38] sm:$0xff]
      %v447 = vld [vmem:[%s1 + $0x40] sm:$0xff]
      %v448 = vld [vmem:[%s1 + $0x48] sm:$0xff]
      %v449 = vld [vmem:[%s1 + $0x50] sm:$0xff]
      %v450 = vld [vmem:[%s1 + $0x58] sm:$0xff]
      %v451 = vld [vmem:[%s1 + $0x60] sm:$0xff]
      %v452 = vld [vmem:[%s1 + $0x68] sm:$0xff]
      %v453 = vld [vmem:[%s1 + $0x70] sm:$0xff]
      %v454 = vld [vmem:[%s1 + $0x78] sm:$0xff]
      %v455 = vld [vmem:[%s1 + $0x80] sm:$0xff]
      %v456 = vld [vmem:[%s1 + $0x88] sm:$0xff]
      %v457 = vld [vmem:[%s1 + $0x90] sm:$0xff]
      %v458 = vld [vmem:[%s1 + $0x98] sm:$0xff]
      %v459 = vld [vmem:[%s1 + $0xa0] sm:$0xff]
      %v460 = vld [vmem:[%s1 + $0xa8] sm:$0xff]
      %v461 = vld [vmem:[%s1 + $0xb0] sm:$0xff]
      %v462 = vld [vmem:[%s1 + $0xb8] sm:$0xff]
      %v463 = vld [vmem:[%s1 + $0xc0] sm:$0xff]
      %v464 = vld [vmem:[%s1 + $0xc8] sm:$0xff]
      %v465 = vld [vmem:[%s1 + $0xd0] sm:$0xff]
      %v466 = vld [vmem:[%s1 + $0xd8] sm:$0xff]
      %v467 = vld [vmem:[%s1 + $0xe0] sm:$0xff]
      %v468 = vld [vmem:[%s1 + $0xe8] sm:$0xff]
      %v469 = vld [vmem:[%s1 + $0xf0] sm:$0xff]
      %v470 = vld [vmem:[%s1 + $0xf8] sm:$0xff]
      %v471 = vcombine.high %v416, %v416
      %v473 = vunpack.c.l.s4 1966171168
      %v474 = vunpack.c.0.s8 %v473
      %v475 = vlaneseq
      %v476 = vshrl.u32 %v475, 7
      %v477 = vsub.s32 %v474, %v476
      %v478 = vrot.slane %v471, %v477
      %v479 = vcombine.high %v431, %v431
      %v481 = vunpack.c.l.s4 1966171168
      %v482 = vunpack.c.0.s8 %v481
      %v483 = vlaneseq
      %v484 = vshrl.u32 %v483, 7
      %v485 = vsub.s32 %v482, %v484
      %v486 = vrot.slane %v479, %v485
      %vm487 = vsmask.f32 256
      %vm488 = vsmask.f32 1284
      %vm489 = vmor %vm487, %vm488
      %vm490 = vsmask.f32 2312
      %vm491 = vmor %vm489, %vm490
      %vm492 = vsmask.f32 3340
      %vm493 = vmor %vm491, %vm492
      %vm494 = vsmask.f32 4368
      %vm495 = vmor %vm493, %vm494
      %vm496 = vsmask.f32 5396
      %vm497 = vmor %vm495, %vm496
      %vm498 = vsmask.f32 6424
      %vm499 = vmor %vm497, %vm498
      %vm500 = vsmask.f32 7452
      %vm501 = vmor %vm499, %vm500
      %v503 = vshrl.u32 %v423, 16
      %v505 = vrot.slane %v503, 7
      %v506 = vrot.slane %v505, 1
      %v508 = vshll.u32 %v478, 16
      %v510 = vsel %vm501, %v506, %v508
      %v512 = vshrl.u32 %v438, 16
      %v514 = vrot.slane %v512, 7
      %v515 = vrot.slane %v514, 1
      %v517 = vshll.u32 %v486, 16
      %v519 = vsel %vm501, %v515, %v517
      %s520 = scalar_lea.vmem %s1, 256
      %v521 = vld [vmem:[%s520] sm:$0xff]
      %v522 = vld [vmem:[%s520 + $0x8] sm:$0xff]
      %v523 = vld [vmem:[%s520 + $0x10] sm:$0xff]
      %v524 = vld [vmem:[%s520 + $0x18] sm:$0xff]
      %v525 = vld [vmem:[%s520 + $0x20] sm:$0xff]
      %v526 = vld [vmem:[%s520 + $0x28] sm:$0xff]
      %v527 = vld [vmem:[%s520 + $0x30] sm:$0xff]
      %v528 = vld [vmem:[%s520 + $0x38] sm:$0xff]
      %v529 = vld [vmem:[%s520 + $0x40] sm:$0xff]
      %v530 = vld [vmem:[%s520 + $0x48] sm:$0xff]
      %v531 = vld [vmem:[%s520 + $0x50] sm:$0xff]
      %v532 = vld [vmem:[%s520 + $0x58] sm:$0xff]
      %v533 = vld [vmem:[%s520 + $0x60] sm:$0xff]
      %v534 = vld [vmem:[%s520 + $0x68] sm:$0xff]
      %v535 = vld [vmem:[%s520 + $0x70] sm:$0xff]
      %v536 = vld [vmem:[%s520 + $0x78] sm:$0xff]
      %v537 = vld [vmem:[%s520 + $0x80] sm:$0xff]
      %v538 = vld [vmem:[%s520 + $0x88] sm:$0xff]
      %v539 = vld [vmem:[%s520 + $0x90] sm:$0xff]
      %v540 = vld [vmem:[%s520 + $0x98] sm:$0xff]
      %v541 = vld [vmem:[%s520 + $0xa0] sm:$0xff]
      %v542 = vld [vmem:[%s520 + $0xa8] sm:$0xff]
      %v543 = vld [vmem:[%s520 + $0xb0] sm:$0xff]
      %v544 = vld [vmem:[%s520 + $0xb8] sm:$0xff]
      %v545 = vld [vmem:[%s520 + $0xc0] sm:$0xff]
      %v546 = vld [vmem:[%s520 + $0xc8] sm:$0xff]
      %v547 = vld [vmem:[%s520 + $0xd0] sm:$0xff]
      %v548 = vld [vmem:[%s520 + $0xd8] sm:$0xff]
      %v549 = vld [vmem:[%s520 + $0xe0] sm:$0xff]
      %v550 = vld [vmem:[%s520 + $0xe8] sm:$0xff]
      %v551 = vld [vmem:[%s520 + $0xf0] sm:$0xff]
      %v552 = vld [vmem:[%s520 + $0xf8] sm:$0xff]
      %v553 = vcombine.low %v510, %v519
      %v555 = vunpack.c.l.s4 1966171168
      %v556 = vunpack.c.0.s8 %v555
      %v557 = vlaneseq
      %v558 = vshrl.u32 %v557, 7
      %v559 = vsub.s32 %v556, %v558
      %v560 = vrot.slane %v553, %v559
      %v561 = vcombine.high %v560, %v560
      %v563 = vunpack.c.l.s4 1966171168
      %v564 = vunpack.c.0.s8 %v563
      %v565 = vlaneseq
      %v566 = vshrl.u32 %v565, 7
      %v567 = vsub.s32 %v564, %v566
      %v568 = vrot.slane %v560, %v567
      %v570 = vunpack.c.l.s4 1966171168
      %v571 = vunpack.c.0.s8 %v570
      %v572 = vlaneseq
      %v573 = vshrl.u32 %v572, 7
      %v574 = vsub.s32 %v571, %v573
      %v575 = vrot.slane %v561, %v574
      %v610 = vunpack.c.l.b16 %v521
      %v611 = vunpack.c.h.b16 %v521
      %v612 = vunpack.c.l.b16 %v522
      %v613 = vunpack.c.h.b16 %v522
      %v614 = vunpack.c.l.b16 %v523
      %v615 = vunpack.c.h.b16 %v523
      %v616 = vunpack.c.l.b16 %v524
      %v617 = vunpack.c.h.b16 %v524
      %v618 = vunpack.c.l.b16 %v525
      %v619 = vunpack.c.h.b16 %v525
      %v620 = vunpack.c.l.b16 %v526
      %v621 = vunpack.c.h.b16 %v526
      %v622 = vunpack.c.l.b16 %v527
      %v623 = vunpack.c.h.b16 %v527
      %v624 = vunpack.c.l.b16 %v528
      %v625 = vunpack.c.h.b16 %v528
      %v626 = vunpack.c.l.b16 %v529
      %v627 = vunpack.c.h.b16 %v529
      %v628 = vunpack.c.l.b16 %v530
      %v629 = vunpack.c.h.b16 %v530
      %v630 = vunpack.c.l.b16 %v531
      %v631 = vunpack.c.h.b16 %v531
      %v632 = vunpack.c.l.b16 %v532
      %v633 = vunpack.c.h.b16 %v532
      %v634 = vunpack.c.l.b16 %v533
      %v635 = vunpack.c.h.b16 %v533
      %v636 = vunpack.c.l.b16 %v534
      %v637 = vunpack.c.h.b16 %v534
      %v638 = vunpack.c.l.b16 %v535
      %v639 = vunpack.c.h.b16 %v535
      %v640 = vunpack.c.l.b16 %v536
      %v641 = vunpack.c.h.b16 %v536
      %v642 = vunpack.c.l.b16 %v537
      %v643 = vunpack.c.h.b16 %v537
      %v644 = vunpack.c.l.b16 %v538
      %v645 = vunpack.c.h.b16 %v538
      %v646 = vunpack.c.l.b16 %v539
      %v647 = vunpack.c.h.b16 %v539
      %v648 = vunpack.c.l.b16 %v540
      %v649 = vunpack.c.h.b16 %v540
      %v650 = vunpack.c.l.b16 %v541
      %v651 = vunpack.c.h.b16 %v541
      %v652 = vunpack.c.l.b16 %v542
      %v653 = vunpack.c.h.b16 %v542
      %v654 = vunpack.c.l.b16 %v543
      %v655 = vunpack.c.h.b16 %v543
      %v656 = vunpack.c.l.b16 %v544
      %v657 = vunpack.c.h.b16 %v544
      %v658 = vunpack.c.l.b16 %v545
      %v659 = vunpack.c.h.b16 %v545
      %v660 = vunpack.c.l.b16 %v546
      %v661 = vunpack.c.h.b16 %v546
      %v662 = vunpack.c.l.b16 %v547
      %v663 = vunpack.c.h.b16 %v547
      %v664 = vunpack.c.l.b16 %v548
      %v665 = vunpack.c.h.b16 %v548
      %v666 = vunpack.c.l.b16 %v549
      %v667 = vunpack.c.h.b16 %v549
      %v668 = vunpack.c.l.b16 %v550
      %v669 = vunpack.c.h.b16 %v550
      %v670 = vunpack.c.l.b16 %v551
      %v671 = vunpack.c.h.b16 %v551
      %v672 = vunpack.c.l.b16 %v552
      %v673 = vunpack.c.h.b16 %v552
      %v674 = vpack.c.b16 %v612, %v610
      %v675 = vpack.c.b16 %v613, %v611
      %v676 = vpack.c.b16 %v616, %v614
      %v677 = vpack.c.b16 %v617, %v615
      %v678 = vpack.c.b16 %v620, %v618
      %v679 = vpack.c.b16 %v621, %v619
      %v680 = vpack.c.b16 %v624, %v622
      %v681 = vpack.c.b16 %v625, %v623
      %v682 = vpack.c.b16 %v628, %v626
      %v683 = vpack.c.b16 %v629, %v627
      %v684 = vpack.c.b16 %v632, %v630
      %v685 = vpack.c.b16 %v633, %v631
      %v686 = vpack.c.b16 %v636, %v634
      %v687 = vpack.c.b16 %v637, %v635
      %v688 = vpack.c.b16 %v640, %v638
      %v689 = vpack.c.b16 %v641, %v639
      %v690 = vpack.c.b16 %v644, %v642
      %v691 = vpack.c.b16 %v645, %v643
      %v692 = vpack.c.b16 %v648, %v646
      %v693 = vpack.c.b16 %v649, %v647
      %v694 = vpack.c.b16 %v652, %v650
      %v695 = vpack.c.b16 %v653, %v651
      %v696 = vpack.c.b16 %v656, %v654
      %v697 = vpack.c.b16 %v657, %v655
      %v698 = vpack.c.b16 %v660, %v658
      %v699 = vpack.c.b16 %v661, %v659
      %v700 = vpack.c.b16 %v664, %v662
      %v701 = vpack.c.b16 %v665, %v663
      %v702 = vpack.c.b16 %v668, %v666
      %v703 = vpack.c.b16 %v669, %v667
      %v704 = vpack.c.b16 %v672, %v670
      %v705 = vpack.c.b16 %v673, %v671
      %738 = vmatprep.subr.bf16.mxu0 %v689
      %739 = vmatpush1.bf16.msra.mxu0 %v688
      %740 = vmatprep.subr.bf16.mxu0 %v687
      %741 = vmatpush1.bf16.msra.mxu0 %v686
      %742 = vmatprep.subr.bf16.mxu0 %v685
      %743 = vmatpush1.bf16.msra.mxu0 %v684
      %744 = vmatprep.subr.bf16.mxu0 %v683
      %745 = vmatpush1.bf16.msra.mxu0 %v682
      %746 = vmatprep.subr.bf16.mxu0 %v681
      %747 = vmatpush1.bf16.msra.mxu0 %v680
      %748 = vmatprep.subr.bf16.mxu0 %v679
      %749 = vmatpush1.bf16.msra.mxu0 %v678
      %750 = vmatprep.subr.bf16.mxu0 %v677
      %751 = vmatpush1.bf16.msra.mxu0 %v676
      %752 = vmatprep.subr.bf16.mxu0 %v675
      %753 = vmatpush1.bf16.msra.mxu0 %v674
      %754 = vmatprep.subr.bf16.mxu0 %v705
      %755 = vmatpush2.bf16.msra.mxu0 %v704
      %756 = vmatprep.subr.bf16.mxu0 %v703
      %757 = vmatpush2.bf16.msra.mxu0 %v702
      %758 = vmatprep.subr.bf16.mxu0 %v701
      %759 = vmatpush2.bf16.msra.mxu0 %v700
      %760 = vmatprep.subr.bf16.mxu0 %v699
      %761 = vmatpush2.bf16.msra.mxu0 %v698
      %762 = vmatprep.subr.bf16.mxu0 %v697
      %763 = vmatpush2.bf16.msra.mxu0 %v696
      %764 = vmatprep.subr.bf16.mxu0 %v695
      %765 = vmatpush2.bf16.msra.mxu0 %v694
      %766 = vmatprep.subr.bf16.mxu0 %v693
      %767 = vmatpush2.bf16.msra.mxu0 %v692
      %768 = vmatprep.subr.bf16.mxu0 %v691
      %769 = vmatpush2.bf16.msra.mxu0 %v690
      %770 = vmatprep.mubr.bf16.mxu0 %v575
      %771 = vmatmul.mubr.bf16.gmra.mxu0 %v568
      %v772 = vpop.f32.mrf.mxu0
      %v773 = vadd.f32 0.0, %v772
      %v774 = vpop.f32.mrf.mxu0
      %v775 = vadd.f32 0.0, %v774
      %v776 = vpop.f32.mrf.mxu0
      %v777 = vpop.f32.mrf.mxu0
      %778 = vdwg.mxu0
      %v779 = vcombine.low %v423, %v438
      %v781 = vunpack.c.l.s4 1966171168
      %v782 = vunpack.c.0.s8 %v781
      %v783 = vlaneseq
      %v784 = vshrl.u32 %v783, 7
      %v785 = vsub.s32 %v782, %v784
      %v786 = vrot.slane %v779, %v785
      %v787 = vcombine.high %v786, %v786
      %v789 = vunpack.c.l.s4 1966171168
      %v790 = vunpack.c.0.s8 %v789
      %v791 = vlaneseq
      %v792 = vshrl.u32 %v791, 7
      %v793 = vsub.s32 %v790, %v792
      %v794 = vrot.slane %v786, %v793
      %v796 = vunpack.c.l.s4 1966171168
      %v797 = vunpack.c.0.s8 %v796
      %v798 = vlaneseq
      %v799 = vshrl.u32 %v798, 7
      %v800 = vsub.s32 %v797, %v799
      %v801 = vrot.slane %v787, %v800
      %v836 = vunpack.c.l.b16 %v439
      %v837 = vunpack.c.h.b16 %v439
      %v838 = vunpack.c.l.b16 %v440
      %v839 = vunpack.c.h.b16 %v440
      %v840 = vunpack.c.l.b16 %v441
      %v841 = vunpack.c.h.b16 %v441
      %v842 = vunpack.c.l.b16 %v442
      %v843 = vunpack.c.h.b16 %v442
      %v844 = vunpack.c.l.b16 %v443
      %v845 = vunpack.c.h.b16 %v443
      %v846 = vunpack.c.l.b16 %v444
      %v847 = vunpack.c.h.b16 %v444
      %v848 = vunpack.c.l.b16 %v445
      %v849 = vunpack.c.h.b16 %v445
      %v850 = vunpack.c.l.b16 %v446
      %v851 = vunpack.c.h.b16 %v446
      %v852 = vunpack.c.l.b16 %v447
      %v853 = vunpack.c.h.b16 %v447
      %v854 = vunpack.c.l.b16 %v448
      %v855 = vunpack.c.h.b16 %v448
      %v856 = vunpack.c.l.b16 %v449
      %v857 = vunpack.c.h.b16 %v449
      %v858 = vunpack.c.l.b16 %v450
      %v859 = vunpack.c.h.b16 %v450
      %v860 = vunpack.c.l.b16 %v451
      %v861 = vunpack.c.h.b16 %v451
      %v862 = vunpack.c.l.b16 %v452
      %v863 = vunpack.c.h.b16 %v452
      %v864 = vunpack.c.l.b16 %v453
      %v865 = vunpack.c.h.b16 %v453
      %v866 = vunpack.c.l.b16 %v454
      %v867 = vunpack.c.h.b16 %v454
      %v868 = vunpack.c.l.b16 %v455
      %v869 = vunpack.c.h.b16 %v455
      %v870 = vunpack.c.l.b16 %v456
      %v871 = vunpack.c.h.b16 %v456
      %v872 = vunpack.c.l.b16 %v457
      %v873 = vunpack.c.h.b16 %v457
      %v874 = vunpack.c.l.b16 %v458
      %v875 = vunpack.c.h.b16 %v458
      %v876 = vunpack.c.l.b16 %v459
      %v877 = vunpack.c.h.b16 %v459
      %v878 = vunpack.c.l.b16 %v460
      %v879 = vunpack.c.h.b16 %v460
      %v880 = vunpack.c.l.b16 %v461
      %v881 = vunpack.c.h.b16 %v461
      %v882 = vunpack.c.l.b16 %v462
      %v883 = vunpack.c.h.b16 %v462
      %v884 = vunpack.c.l.b16 %v463
      %v885 = vunpack.c.h.b16 %v463
      %v886 = vunpack.c.l.b16 %v464
      %v887 = vunpack.c.h.b16 %v464
      %v888 = vunpack.c.l.b16 %v465
      %v889 = vunpack.c.h.b16 %v465
      %v890 = vunpack.c.l.b16 %v466
      %v891 = vunpack.c.h.b16 %v466
      %v892 = vunpack.c.l.b16 %v467
      %v893 = vunpack.c.h.b16 %v467
      %v894 = vunpack.c.l.b16 %v468
      %v895 = vunpack.c.h.b16 %v468
      %v896 = vunpack.c.l.b16 %v469
      %v897 = vunpack.c.h.b16 %v469
      %v898 = vunpack.c.l.b16 %v470
      %v899 = vunpack.c.h.b16 %v470
      %v900 = vpack.c.b16 %v838, %v836
      %v901 = vpack.c.b16 %v839, %v837
      %v902 = vpack.c.b16 %v842, %v840
      %v903 = vpack.c.b16 %v843, %v841
      %v904 = vpack.c.b16 %v846, %v844
      %v905 = vpack.c.b16 %v847, %v845
      %v906 = vpack.c.b16 %v850, %v848
      %v907 = vpack.c.b16 %v851, %v849
      %v908 = vpack.c.b16 %v854, %v852
      %v909 = vpack.c.b16 %v855, %v853
      %v910 = vpack.c.b16 %v858, %v856
      %v911 = vpack.c.b16 %v859, %v857
      %v912 = vpack.c.b16 %v862, %v860
      %v913 = vpack.c.b16 %v863, %v861
      %v914 = vpack.c.b16 %v866, %v864
      %v915 = vpack.c.b16 %v867, %v865
      %v916 = vpack.c.b16 %v870, %v868
      %v917 = vpack.c.b16 %v871, %v869
      %v918 = vpack.c.b16 %v874, %v872
      %v919 = vpack.c.b16 %v875, %v873
      %v920 = vpack.c.b16 %v878, %v876
      %v921 = vpack.c.b16 %v879, %v877
      %v922 = vpack.c.b16 %v882, %v880
      %v923 = vpack.c.b16 %v883, %v881
      %v924 = vpack.c.b16 %v886, %v884
      %v925 = vpack.c.b16 %v887, %v885
      %v926 = vpack.c.b16 %v890, %v888
      %v927 = vpack.c.b16 %v891, %v889
      %v928 = vpack.c.b16 %v894, %v892
      %v929 = vpack.c.b16 %v895, %v893
      %v930 = vpack.c.b16 %v898, %v896
      %v931 = vpack.c.b16 %v899, %v897
      %964 = vmatprep.subr.bf16.mxu0 %v915
      %965 = vmatpush1.bf16.msra.mxu0 %v914
      %966 = vmatprep.subr.bf16.mxu0 %v913
      %967 = vmatpush1.bf16.msra.mxu0 %v912
      %968 = vmatprep.subr.bf16.mxu0 %v911
      %969 = vmatpush1.bf16.msra.mxu0 %v910
      %970 = vmatprep.subr.bf16.mxu0 %v909
      %971 = vmatpush1.bf16.msra.mxu0 %v908
      %972 = vmatprep.subr.bf16.mxu0 %v907
      %973 = vmatpush1.bf16.msra.mxu0 %v906
      %974 = vmatprep.subr.bf16.mxu0 %v905
      %975 = vmatpush1.bf16.msra.mxu0 %v904
      %976 = vmatprep.subr.bf16.mxu0 %v903
      %977 = vmatpush1.bf16.msra.mxu0 %v902
      %978 = vmatprep.subr.bf16.mxu0 %v901
      %979 = vmatpush1.bf16.msra.mxu0 %v900
      %980 = vmatprep.subr.bf16.mxu0 %v931
      %981 = vmatpush2.bf16.msra.mxu0 %v930
      %982 = vmatprep.subr.bf16.mxu0 %v929
      %983 = vmatpush2.bf16.msra.mxu0 %v928
      %984 = vmatprep.subr.bf16.mxu0 %v927
      %985 = vmatpush2.bf16.msra.mxu0 %v926
      %986 = vmatprep.subr.bf16.mxu0 %v925
      %987 = vmatpush2.bf16.msra.mxu0 %v924
      %988 = vmatprep.subr.bf16.mxu0 %v923
      %989 = vmatpush2.bf16.msra.mxu0 %v922
      %990 = vmatprep.subr.bf16.mxu0 %v921
      %991 = vmatpush2.bf16.msra.mxu0 %v920
      %992 = vmatprep.subr.bf16.mxu0 %v919
      %993 = vmatpush2.bf16.msra.mxu0 %v918
      %994 = vmatprep.subr.bf16.mxu0 %v917
      %995 = vmatpush2.bf16.msra.mxu0 %v916
      %996 = vmatprep.mubr.bf16.mxu0 %v801
      %997 = vmatmul.mubr.bf16.gmra.mxu0 %v794
      %v998 = vpop.f32.mrf.mxu0
      %v999 = vadd.f32 %v773, %v998
      %v1000 = vpop.f32.mrf.mxu0
      %v1001 = vadd.f32 %v775, %v1000
      %v1002 = vpop.f32.mrf.mxu0
      %v1003 = vpop.f32.mrf.mxu0
      %1004 = vdwg.mxu0
      %v1009 = vcombine.low %v395, %v396
      %v1011 = vunpack.c.l.s4 1966171168
      %v1012 = vunpack.c.0.s8 %v1011
      %v1013 = vlaneseq
      %v1014 = vshrl.u32 %v1013, 7
      %v1015 = vsub.s32 %v1012, %v1014
      %v1016 = vrot.slane %v1009, %v1015
      %v1018 = vunpack.c.l.s4 1966171168
      %v1019 = vunpack.c.0.s8 %v1018
      %v1020 = vlaneseq
      %v1021 = vshrl.u32 %v1020, 7
      %v1022 = vsub.s32 %v1019, %v1021
      %v1023 = vrot.slane %v1016, %v1022
      %v1024 = vcombine.low %v399, %v400
      %v1026 = vunpack.c.l.s4 1966171168
      %v1027 = vunpack.c.0.s8 %v1026
      %v1028 = vlaneseq
      %v1029 = vshrl.u32 %v1028, 7
      %v1030 = vsub.s32 %v1027, %v1029
      %v1031 = vrot.slane %v1024, %v1030
      %v1033 = vunpack.c.l.s4 1966171168
      %v1034 = vunpack.c.0.s8 %v1033
      %v1035 = vlaneseq
      %v1036 = vshrl.u32 %v1035, 7
      %v1037 = vsub.s32 %v1034, %v1036
      %v1038 = vrot.slane %v1031, %v1037
      %s1039 = scalar_lea.vmem %s1, 512
      %v1040 = vld [vmem:[%s1039] sm:$0xff]
      %v1041 = vld [vmem:[%s1039 + $0x8] sm:$0xff]
      %v1042 = vld [vmem:[%s1039 + $0x10] sm:$0xff]
      %v1043 = vld [vmem:[%s1039 + $0x18] sm:$0xff]
      %v1044 = vld [vmem:[%s1039 + $0x20] sm:$0xff]
      %v1045 = vld [vmem:[%s1039 + $0x28] sm:$0xff]
      %v1046 = vld [vmem:[%s1039 + $0x30] sm:$0xff]
      %v1047 = vld [vmem:[%s1039 + $0x38] sm:$0xff]
      %v1048 = vld [vmem:[%s1039 + $0x40] sm:$0xff]
      %v1049 = vld [vmem:[%s1039 + $0x48] sm:$0xff]
      %v1050 = vld [vmem:[%s1039 + $0x50] sm:$0xff]
      %v1051 = vld [vmem:[%s1039 + $0x58] sm:$0xff]
      %v1052 = vld [vmem:[%s1039 + $0x60] sm:$0xff]
      %v1053 = vld [vmem:[%s1039 + $0x68] sm:$0xff]
      %v1054 = vld [vmem:[%s1039 + $0x70] sm:$0xff]
      %v1055 = vld [vmem:[%s1039 + $0x78] sm:$0xff]
      %v1056 = vld [vmem:[%s1039 + $0x80] sm:$0xff]
      %v1057 = vld [vmem:[%s1039 + $0x88] sm:$0xff]
      %v1058 = vld [vmem:[%s1039 + $0x90] sm:$0xff]
      %v1059 = vld [vmem:[%s1039 + $0x98] sm:$0xff]
      %v1060 = vld [vmem:[%s1039 + $0xa0] sm:$0xff]
      %v1061 = vld [vmem:[%s1039 + $0xa8] sm:$0xff]
      %v1062 = vld [vmem:[%s1039 + $0xb0] sm:$0xff]
      %v1063 = vld [vmem:[%s1039 + $0xb8] sm:$0xff]
      %v1064 = vld [vmem:[%s1039 + $0xc0] sm:$0xff]
      %v1065 = vld [vmem:[%s1039 + $0xc8] sm:$0xff]
      %v1066 = vld [vmem:[%s1039 + $0xd0] sm:$0xff]
      %v1067 = vld [vmem:[%s1039 + $0xd8] sm:$0xff]
      %v1068 = vld [vmem:[%s1039 + $0xe0] sm:$0xff]
      %v1069 = vld [vmem:[%s1039 + $0xe8] sm:$0xff]
      %v1070 = vld [vmem:[%s1039 + $0xf0] sm:$0xff]
      %v1071 = vld [vmem:[%s1039 + $0xf8] sm:$0xff]
      %v1072 = vcombine.low %v1023, %v1038
      %v1074 = vunpack.c.l.s4 1966171168
      %v1075 = vunpack.c.0.s8 %v1074
      %v1076 = vlaneseq
      %v1077 = vshrl.u32 %v1076, 7
      %v1078 = vsub.s32 %v1075, %v1077
      %v1079 = vrot.slane %v1072, %v1078
      %v1080 = vcombine.high %v1079, %v1079
      %v1082 = vunpack.c.l.s4 1966171168
      %v1083 = vunpack.c.0.s8 %v1082
      %v1084 = vlaneseq
      %v1085 = vshrl.u32 %v1084, 7
      %v1086 = vsub.s32 %v1083, %v1085
      %v1087 = vrot.slane %v1079, %v1086
      %v1089 = vunpack.c.l.s4 1966171168
      %v1090 = vunpack.c.0.s8 %v1089
      %v1091 = vlaneseq
      %v1092 = vshrl.u32 %v1091, 7
      %v1093 = vsub.s32 %v1090, %v1092
      %v1094 = vrot.slane %v1080, %v1093
      %v1129 = vunpack.c.l.b16 %v1040
      %v1130 = vunpack.c.h.b16 %v1040
      %v1131 = vunpack.c.l.b16 %v1041
      %v1132 = vunpack.c.h.b16 %v1041
      %v1133 = vunpack.c.l.b16 %v1042
      %v1134 = vunpack.c.h.b16 %v1042
      %v1135 = vunpack.c.l.b16 %v1043
      %v1136 = vunpack.c.h.b16 %v1043
      %v1137 = vunpack.c.l.b16 %v1044
      %v1138 = vunpack.c.h.b16 %v1044
      %v1139 = vunpack.c.l.b16 %v1045
      %v1140 = vunpack.c.h.b16 %v1045
      %v1141 = vunpack.c.l.b16 %v1046
      %v1142 = vunpack.c.h.b16 %v1046
      %v1143 = vunpack.c.l.b16 %v1047
      %v1144 = vunpack.c.h.b16 %v1047
      %v1145 = vunpack.c.l.b16 %v1048
      %v1146 = vunpack.c.h.b16 %v1048
      %v1147 = vunpack.c.l.b16 %v1049
      %v1148 = vunpack.c.h.b16 %v1049
      %v1149 = vunpack.c.l.b16 %v1050
      %v1150 = vunpack.c.h.b16 %v1050
      %v1151 = vunpack.c.l.b16 %v1051
      %v1152 = vunpack.c.h.b16 %v1051
      %v1153 = vunpack.c.l.b16 %v1052
      %v1154 = vunpack.c.h.b16 %v1052
      %v1155 = vunpack.c.l.b16 %v1053
      %v1156 = vunpack.c.h.b16 %v1053
      %v1157 = vunpack.c.l.b16 %v1054
      %v1158 = vunpack.c.h.b16 %v1054
      %v1159 = vunpack.c.l.b16 %v1055
      %v1160 = vunpack.c.h.b16 %v1055
      %v1161 = vunpack.c.l.b16 %v1056
      %v1162 = vunpack.c.h.b16 %v1056
      %v1163 = vunpack.c.l.b16 %v1057
      %v1164 = vunpack.c.h.b16 %v1057
      %v1165 = vunpack.c.l.b16 %v1058
      %v1166 = vunpack.c.h.b16 %v1058
      %v1167 = vunpack.c.l.b16 %v1059
      %v1168 = vunpack.c.h.b16 %v1059
      %v1169 = vunpack.c.l.b16 %v1060
      %v1170 = vunpack.c.h.b16 %v1060
      %v1171 = vunpack.c.l.b16 %v1061
      %v1172 = vunpack.c.h.b16 %v1061
      %v1173 = vunpack.c.l.b16 %v1062
      %v1174 = vunpack.c.h.b16 %v1062
      %v1175 = vunpack.c.l.b16 %v1063
      %v1176 = vunpack.c.h.b16 %v1063
      %v1177 = vunpack.c.l.b16 %v1064
      %v1178 = vunpack.c.h.b16 %v1064
      %v1179 = vunpack.c.l.b16 %v1065
      %v1180 = vunpack.c.h.b16 %v1065
      %v1181 = vunpack.c.l.b16 %v1066
      %v1182 = vunpack.c.h.b16 %v1066
      %v1183 = vunpack.c.l.b16 %v1067
      %v1184 = vunpack.c.h.b16 %v1067
      %v1185 = vunpack.c.l.b16 %v1068
      %v1186 = vunpack.c.h.b16 %v1068
      %v1187 = vunpack.c.l.b16 %v1069
      %v1188 = vunpack.c.h.b16 %v1069
      %v1189 = vunpack.c.l.b16 %v1070
      %v1190 = vunpack.c.h.b16 %v1070
      %v1191 = vunpack.c.l.b16 %v1071
      %v1192 = vunpack.c.h.b16 %v1071
      %v1193 = vpack.c.b16 %v1131, %v1129
      %v1194 = vpack.c.b16 %v1132, %v1130
      %v1195 = vpack.c.b16 %v1135, %v1133
      %v1196 = vpack.c.b16 %v1136, %v1134
      %v1197 = vpack.c.b16 %v1139, %v1137
      %v1198 = vpack.c.b16 %v1140, %v1138
      %v1199 = vpack.c.b16 %v1143, %v1141
      %v1200 = vpack.c.b16 %v1144, %v1142
      %v1201 = vpack.c.b16 %v1147, %v1145
      %v1202 = vpack.c.b16 %v1148, %v1146
      %v1203 = vpack.c.b16 %v1151, %v1149
      %v1204 = vpack.c.b16 %v1152, %v1150
      %v1205 = vpack.c.b16 %v1155, %v1153
      %v1206 = vpack.c.b16 %v1156, %v1154
      %v1207 = vpack.c.b16 %v1159, %v1157
      %v1208 = vpack.c.b16 %v1160, %v1158
      %v1209 = vpack.c.b16 %v1163, %v1161
      %v1210 = vpack.c.b16 %v1164, %v1162
      %v1211 = vpack.c.b16 %v1167, %v1165
      %v1212 = vpack.c.b16 %v1168, %v1166
      %v1213 = vpack.c.b16 %v1171, %v1169
      %v1214 = vpack.c.b16 %v1172, %v1170
      %v1215 = vpack.c.b16 %v1175, %v1173
      %v1216 = vpack.c.b16 %v1176, %v1174
      %v1217 = vpack.c.b16 %v1179, %v1177
      %v1218 = vpack.c.b16 %v1180, %v1178
      %v1219 = vpack.c.b16 %v1183, %v1181
      %v1220 = vpack.c.b16 %v1184, %v1182
      %v1221 = vpack.c.b16 %v1187, %v1185
      %v1222 = vpack.c.b16 %v1188, %v1186
      %v1223 = vpack.c.b16 %v1191, %v1189
      %v1224 = vpack.c.b16 %v1192, %v1190
      %1257 = vmatprep.subr.bf16.mxu0 %v1208
      %1258 = vmatpush1.bf16.msra.mxu0 %v1207
      %1259 = vmatprep.subr.bf16.mxu0 %v1206
      %1260 = vmatpush1.bf16.msra.mxu0 %v1205
      %1261 = vmatprep.subr.bf16.mxu0 %v1204
      %1262 = vmatpush1.bf16.msra.mxu0 %v1203
      %1263 = vmatprep.subr.bf16.mxu0 %v1202
      %1264 = vmatpush1.bf16.msra.mxu0 %v1201
      %1265 = vmatprep.subr.bf16.mxu0 %v1200
      %1266 = vmatpush1.bf16.msra.mxu0 %v1199
      %1267 = vmatprep.subr.bf16.mxu0 %v1198
      %1268 = vmatpush1.bf16.msra.mxu0 %v1197
      %1269 = vmatprep.subr.bf16.mxu0 %v1196
      %1270 = vmatpush1.bf16.msra.mxu0 %v1195
      %1271 = vmatprep.subr.bf16.mxu0 %v1194
      %1272 = vmatpush1.bf16.msra.mxu0 %v1193
      %1273 = vmatprep.subr.bf16.mxu0 %v1224
      %1274 = vmatpush2.bf16.msra.mxu0 %v1223
      %1275 = vmatprep.subr.bf16.mxu0 %v1222
      %1276 = vmatpush2.bf16.msra.mxu0 %v1221
      %1277 = vmatprep.subr.bf16.mxu0 %v1220
      %1278 = vmatpush2.bf16.msra.mxu0 %v1219
      %1279 = vmatprep.subr.bf16.mxu0 %v1218
      %1280 = vmatpush2.bf16.msra.mxu0 %v1217
      %1281 = vmatprep.subr.bf16.mxu0 %v1216
      %1282 = vmatpush2.bf16.msra.mxu0 %v1215
      %1283 = vmatprep.subr.bf16.mxu0 %v1214
      %1284 = vmatpush2.bf16.msra.mxu0 %v1213
      %1285 = vmatprep.subr.bf16.mxu0 %v1212
      %1286 = vmatpush2.bf16.msra.mxu0 %v1211
      %1287 = vmatprep.subr.bf16.mxu0 %v1210
      %1288 = vmatpush2.bf16.msra.mxu0 %v1209
      %1289 = vmatprep.mubr.bf16.mxu0 %v1094
      %1290 = vmatmul.mubr.bf16.gmra.mxu0 %v1087
      %v1291 = vpop.f32.mrf.mxu0
      %v1292 = vadd.f32 0.0, %v1291
      %v1293 = vpop.f32.mrf.mxu0
      %v1294 = vadd.f32 0.0, %v1293
      %v1295 = vpop.f32.mrf.mxu0
      %v1296 = vpop.f32.mrf.mxu0
      %1297 = vdwg.mxu0
      %v1298 = vadd.f32 %v999, %v1292
      %v1299 = vadd.f32 %v1001, %v1294
      %v1300 = vcombine.high %v1016, %v1016
      %v1302 = vunpack.c.l.s4 1966171168
      %v1303 = vunpack.c.0.s8 %v1302
      %v1304 = vlaneseq
      %v1305 = vshrl.u32 %v1304, 7
      %v1306 = vsub.s32 %v1303, %v1305
      %v1307 = vrot.slane %v1300, %v1306
      %v1308 = vcombine.high %v1031, %v1031
      %v1310 = vunpack.c.l.s4 1966171168
      %v1311 = vunpack.c.0.s8 %v1310
      %v1312 = vlaneseq
      %v1313 = vshrl.u32 %v1312, 7
      %v1314 = vsub.s32 %v1311, %v1313
      %v1315 = vrot.slane %v1308, %v1314
      %v1317 = vshrl.u32 %v1023, 16
      %v1319 = vrot.slane %v1317, 7
      %v1320 = vrot.slane %v1319, 1
      %v1322 = vshll.u32 %v1307, 16
      %v1324 = vsel %vm501, %v1320, %v1322
      %v1326 = vshrl.u32 %v1038, 16
      %v1328 = vrot.slane %v1326, 7
      %v1329 = vrot.slane %v1328, 1
      %v1331 = vshll.u32 %v1315, 16
      %v1333 = vsel %vm501, %v1329, %v1331
      %s1334 = scalar_lea.vmem %s1, 768
      %v1335 = vld [vmem:[%s1334] sm:$0xff]
      %v1336 = vld [vmem:[%s1334 + $0x8] sm:$0xff]
      %v1337 = vld [vmem:[%s1334 + $0x10] sm:$0xff]
      %v1338 = vld [vmem:[%s1334 + $0x18] sm:$0xff]
      %v1339 = vld [vmem:[%s1334 + $0x20] sm:$0xff]
      %v1340 = vld [vmem:[%s1334 + $0x28] sm:$0xff]
      %v1341 = vld [vmem:[%s1334 + $0x30] sm:$0xff]
      %v1342 = vld [vmem:[%s1334 + $0x38] sm:$0xff]
      %v1343 = vld [vmem:[%s1334 + $0x40] sm:$0xff]
      %v1344 = vld [vmem:[%s1334 + $0x48] sm:$0xff]
      %v1345 = vld [vmem:[%s1334 + $0x50] sm:$0xff]
      %v1346 = vld [vmem:[%s1334 + $0x58] sm:$0xff]
      %v1347 = vld [vmem:[%s1334 + $0x60] sm:$0xff]
      %v1348 = vld [vmem:[%s1334 + $0x68] sm:$0xff]
      %v1349 = vld [vmem:[%s1334 + $0x70] sm:$0xff]
      %v1350 = vld [vmem:[%s1334 + $0x78] sm:$0xff]
      %v1351 = vld [vmem:[%s1334 + $0x80] sm:$0xff]
      %v1352 = vld [vmem:[%s1334 + $0x88] sm:$0xff]
      %v1353 = vld [vmem:[%s1334 + $0x90] sm:$0xff]
      %v1354 = vld [vmem:[%s1334 + $0x98] sm:$0xff]
      %v1355 = vld [vmem:[%s1334 + $0xa0] sm:$0xff]
      %v1356 = vld [vmem:[%s1334 + $0xa8] sm:$0xff]
      %v1357 = vld [vmem:[%s1334 + $0xb0] sm:$0xff]
      %v1358 = vld [vmem:[%s1334 + $0xb8] sm:$0xff]
      %v1359 = vld [vmem:[%s1334 + $0xc0] sm:$0xff]
      %v1360 = vld [vmem:[%s1334 + $0xc8] sm:$0xff]
      %v1361 = vld [vmem:[%s1334 + $0xd0] sm:$0xff]
      %v1362 = vld [vmem:[%s1334 + $0xd8] sm:$0xff]
      %v1363 = vld [vmem:[%s1334 + $0xe0] sm:$0xff]
      %v1364 = vld [vmem:[%s1334 + $0xe8] sm:$0xff]
      %v1365 = vld [vmem:[%s1334 + $0xf0] sm:$0xff]
      %v1366 = vld [vmem:[%s1334 + $0xf8] sm:$0xff]
      %v1367 = vcombine.low %v1324, %v1333
      %v1369 = vunpack.c.l.s4 1966171168
      %v1370 = vunpack.c.0.s8 %v1369
      %v1371 = vlaneseq
      %v1372 = vshrl.u32 %v1371, 7
      %v1373 = vsub.s32 %v1370, %v1372
      %v1374 = vrot.slane %v1367, %v1373
      %v1375 = vcombine.high %v1374, %v1374
      %v1377 = vunpack.c.l.s4 1966171168
      %v1378 = vunpack.c.0.s8 %v1377
      %v1379 = vlaneseq
      %v1380 = vshrl.u32 %v1379, 7
      %v1381 = vsub.s32 %v1378, %v1380
      %v1382 = vrot.slane %v1374, %v1381
      %v1384 = vunpack.c.l.s4 1966171168
      %v1385 = vunpack.c.0.s8 %v1384
      %v1386 = vlaneseq
      %v1387 = vshrl.u32 %v1386, 7
      %v1388 = vsub.s32 %v1385, %v1387
      %v1389 = vrot.slane %v1375, %v1388
      %v1424 = vunpack.c.l.b16 %v1335
      %v1425 = vunpack.c.h.b16 %v1335
      %v1426 = vunpack.c.l.b16 %v1336
      %v1427 = vunpack.c.h.b16 %v1336
      %v1428 = vunpack.c.l.b16 %v1337
      %v1429 = vunpack.c.h.b16 %v1337
      %v1430 = vunpack.c.l.b16 %v1338
      %v1431 = vunpack.c.h.b16 %v1338
      %v1432 = vunpack.c.l.b16 %v1339
      %v1433 = vunpack.c.h.b16 %v1339
      %v1434 = vunpack.c.l.b16 %v1340
      %v1435 = vunpack.c.h.b16 %v1340
      %v1436 = vunpack.c.l.b16 %v1341
      %v1437 = vunpack.c.h.b16 %v1341
      %v1438 = vunpack.c.l.b16 %v1342
      %v1439 = vunpack.c.h.b16 %v1342
      %v1440 = vunpack.c.l.b16 %v1343
      %v1441 = vunpack.c.h.b16 %v1343
      %v1442 = vunpack.c.l.b16 %v1344
      %v1443 = vunpack.c.h.b16 %v1344
      %v1444 = vunpack.c.l.b16 %v1345
      %v1445 = vunpack.c.h.b16 %v1345
      %v1446 = vunpack.c.l.b16 %v1346
      %v1447 = vunpack.c.h.b16 %v1346
      %v1448 = vunpack.c.l.b16 %v1347
      %v1449 = vunpack.c.h.b16 %v1347
      %v1450 = vunpack.c.l.b16 %v1348
      %v1451 = vunpack.c.h.b16 %v1348
      %v1452 = vunpack.c.l.b16 %v1349
      %v1453 = vunpack.c.h.b16 %v1349
      %v1454 = vunpack.c.l.b16 %v1350
      %v1455 = vunpack.c.h.b16 %v1350
      %v1456 = vunpack.c.l.b16 %v1351
      %v1457 = vunpack.c.h.b16 %v1351
      %v1458 = vunpack.c.l.b16 %v1352
      %v1459 = vunpack.c.h.b16 %v1352
      %v1460 = vunpack.c.l.b16 %v1353
      %v1461 = vunpack.c.h.b16 %v1353
      %v1462 = vunpack.c.l.b16 %v1354
      %v1463 = vunpack.c.h.b16 %v1354
      %v1464 = vunpack.c.l.b16 %v1355
      %v1465 = vunpack.c.h.b16 %v1355
      %v1466 = vunpack.c.l.b16 %v1356
      %v1467 = vunpack.c.h.b16 %v1356
      %v1468 = vunpack.c.l.b16 %v1357
      %v1469 = vunpack.c.h.b16 %v1357
      %v1470 = vunpack.c.l.b16 %v1358
      %v1471 = vunpack.c.h.b16 %v1358
      %v1472 = vunpack.c.l.b16 %v1359
      %v1473 = vunpack.c.h.b16 %v1359
      %v1474 = vunpack.c.l.b16 %v1360
      %v1475 = vunpack.c.h.b16 %v1360
      %v1476 = vunpack.c.l.b16 %v1361
      %v1477 = vunpack.c.h.b16 %v1361
      %v1478 = vunpack.c.l.b16 %v1362
      %v1479 = vunpack.c.h.b16 %v1362
      %v1480 = vunpack.c.l.b16 %v1363
      %v1481 = vunpack.c.h.b16 %v1363
      %v1482 = vunpack.c.l.b16 %v1364
      %v1483 = vunpack.c.h.b16 %v1364
      %v1484 = vunpack.c.l.b16 %v1365
      %v1485 = vunpack.c.h.b16 %v1365
      %v1486 = vunpack.c.l.b16 %v1366
      %v1487 = vunpack.c.h.b16 %v1366
      %v1488 = vpack.c.b16 %v1426, %v1424
      %v1489 = vpack.c.b16 %v1427, %v1425
      %v1490 = vpack.c.b16 %v1430, %v1428
      %v1491 = vpack.c.b16 %v1431, %v1429
      %v1492 = vpack.c.b16 %v1434, %v1432
      %v1493 = vpack.c.b16 %v1435, %v1433
      %v1494 = vpack.c.b16 %v1438, %v1436
      %v1495 = vpack.c.b16 %v1439, %v1437
      %v1496 = vpack.c.b16 %v1442, %v1440
      %v1497 = vpack.c.b16 %v1443, %v1441
      %v1498 = vpack.c.b16 %v1446, %v1444
      %v1499 = vpack.c.b16 %v1447, %v1445
      %v1500 = vpack.c.b16 %v1450, %v1448
      %v1501 = vpack.c.b16 %v1451, %v1449
      %v1502 = vpack.c.b16 %v1454, %v1452
      %v1503 = vpack.c.b16 %v1455, %v1453
      %v1504 = vpack.c.b16 %v1458, %v1456
      %v1505 = vpack.c.b16 %v1459, %v1457
      %v1506 = vpack.c.b16 %v1462, %v1460
      %v1507 = vpack.c.b16 %v1463, %v1461
      %v1508 = vpack.c.b16 %v1466, %v1464
      %v1509 = vpack.c.b16 %v1467, %v1465
      %v1510 = vpack.c.b16 %v1470, %v1468
      %v1511 = vpack.c.b16 %v1471, %v1469
      %v1512 = vpack.c.b16 %v1474, %v1472
      %v1513 = vpack.c.b16 %v1475, %v1473
      %v1514 = vpack.c.b16 %v1478, %v1476
      %v1515 = vpack.c.b16 %v1479, %v1477
      %v1516 = vpack.c.b16 %v1482, %v1480
      %v1517 = vpack.c.b16 %v1483, %v1481
      %v1518 = vpack.c.b16 %v1486, %v1484
      %v1519 = vpack.c.b16 %v1487, %v1485
      %1552 = vmatprep.subr.bf16.mxu0 %v1503
      %1553 = vmatpush1.bf16.msra.mxu0 %v1502
      %1554 = vmatprep.subr.bf16.mxu0 %v1501
      %1555 = vmatpush1.bf16.msra.mxu0 %v1500
      %1556 = vmatprep.subr.bf16.mxu0 %v1499
      %1557 = vmatpush1.bf16.msra.mxu0 %v1498
      %1558 = vmatprep.subr.bf16.mxu0 %v1497
      %1559 = vmatpush1.bf16.msra.mxu0 %v1496
      %1560 = vmatprep.subr.bf16.mxu0 %v1495
      %1561 = vmatpush1.bf16.msra.mxu0 %v1494
      %1562 = vmatprep.subr.bf16.mxu0 %v1493
      %1563 = vmatpush1.bf16.msra.mxu0 %v1492
      %1564 = vmatprep.subr.bf16.mxu0 %v1491
      %1565 = vmatpush1.bf16.msra.mxu0 %v1490
      %1566 = vmatprep.subr.bf16.mxu0 %v1489
      %1567 = vmatpush1.bf16.msra.mxu0 %v1488
      %1568 = vmatprep.subr.bf16.mxu0 %v1519
      %1569 = vmatpush2.bf16.msra.mxu0 %v1518
      %1570 = vmatprep.subr.bf16.mxu0 %v1517
      %1571 = vmatpush2.bf16.msra.mxu0 %v1516
      %1572 = vmatprep.subr.bf16.mxu0 %v1515
      %1573 = vmatpush2.bf16.msra.mxu0 %v1514
      %1574 = vmatprep.subr.bf16.mxu0 %v1513
      %1575 = vmatpush2.bf16.msra.mxu0 %v1512
      %1576 = vmatprep.subr.bf16.mxu0 %v1511
      %1577 = vmatpush2.bf16.msra.mxu0 %v1510
      %1578 = vmatprep.subr.bf16.mxu0 %v1509
      %1579 = vmatpush2.bf16.msra.mxu0 %v1508
      %1580 = vmatprep.subr.bf16.mxu0 %v1507
      %1581 = vmatpush2.bf16.msra.mxu0 %v1506
      %1582 = vmatprep.subr.bf16.mxu0 %v1505
      %1583 = vmatpush2.bf16.msra.mxu0 %v1504
      %1584 = vmatprep.mubr.bf16.mxu0 %v1389
      %1585 = vmatmul.mubr.bf16.gmra.mxu0 %v1382
      %v1586 = vpop.f32.mrf.mxu0
      %v1587 = vadd.f32 0.0, %v1586
      %v1588 = vpop.f32.mrf.mxu0
      %v1589 = vadd.f32 0.0, %v1588
      %v1590 = vpop.f32.mrf.mxu0
      %v1591 = vpop.f32.mrf.mxu0
      %1592 = vdwg.mxu0
      %v1593 = vadd.f32 %v1298, %v1587
      %v1594 = vadd.f32 %v1299, %v1589
      %v1597 = vcombine.low %v401, %v402
      %v1599 = vunpack.c.l.s4 1966171168
      %v1600 = vunpack.c.0.s8 %v1599
      %v1601 = vlaneseq
      %v1602 = vshrl.u32 %v1601, 7
      %v1603 = vsub.s32 %v1600, %v1602
      %v1604 = vrot.slane %v1597, %v1603
      %v1606 = vunpack.c.l.s4 1966171168
      %v1607 = vunpack.c.0.s8 %v1606
      %v1608 = vlaneseq
      %v1609 = vshrl.u32 %v1608, 7
      %v1610 = vsub.s32 %v1607, %v1609
      %v1611 = vrot.slane %v1604, %v1610
      %s1612 = scalar_lea.vmem %s1, 1024
      %v1613 = vld [vmem:[%s1612] sm:$0xff]
      %v1614 = vld [vmem:[%s1612 + $0x8] sm:$0xff]
      %v1615 = vld [vmem:[%s1612 + $0x10] sm:$0xff]
      %v1616 = vld [vmem:[%s1612 + $0x18] sm:$0xff]
      %v1617 = vld [vmem:[%s1612 + $0x20] sm:$0xff]
      %v1618 = vld [vmem:[%s1612 + $0x28] sm:$0xff]
      %v1619 = vld [vmem:[%s1612 + $0x30] sm:$0xff]
      %v1620 = vld [vmem:[%s1612 + $0x38] sm:$0xff]
      %v1621 = vld [vmem:[%s1612 + $0x40] sm:$0xff]
      %v1622 = vld [vmem:[%s1612 + $0x48] sm:$0xff]
      %v1623 = vld [vmem:[%s1612 + $0x50] sm:$0xff]
      %v1624 = vld [vmem:[%s1612 + $0x58] sm:$0xff]
      %v1625 = vld [vmem:[%s1612 + $0x60] sm:$0xff]
      %v1626 = vld [vmem:[%s1612 + $0x68] sm:$0xff]
      %v1627 = vld [vmem:[%s1612 + $0x70] sm:$0xff]
      %v1628 = vld [vmem:[%s1612 + $0x78] sm:$0xff]
      %v1629 = vld [vmem:[%s1612 + $0x80] sm:$0xff]
      %v1630 = vld [vmem:[%s1612 + $0x88] sm:$0xff]
      %v1631 = vld [vmem:[%s1612 + $0x90] sm:$0xff]
      %v1632 = vld [vmem:[%s1612 + $0x98] sm:$0xff]
      %v1633 = vld [vmem:[%s1612 + $0xa0] sm:$0xff]
      %v1634 = vld [vmem:[%s1612 + $0xa8] sm:$0xff]
      %v1635 = vld [vmem:[%s1612 + $0xb0] sm:$0xff]
      %v1636 = vld [vmem:[%s1612 + $0xb8] sm:$0xff]
      %v1637 = vld [vmem:[%s1612 + $0xc0] sm:$0xff]
      %v1638 = vld [vmem:[%s1612 + $0xc8] sm:$0xff]
      %v1639 = vld [vmem:[%s1612 + $0xd0] sm:$0xff]
      %v1640 = vld [vmem:[%s1612 + $0xd8] sm:$0xff]
      %v1641 = vld [vmem:[%s1612 + $0xe0] sm:$0xff]
      %v1642 = vld [vmem:[%s1612 + $0xe8] sm:$0xff]
      %v1643 = vld [vmem:[%s1612 + $0xf0] sm:$0xff]
      %v1644 = vld [vmem:[%s1612 + $0xf8] sm:$0xff]
      %v1645 = vcombine.low %v438, %v1611
      %v1647 = vunpack.c.l.s4 1966171168
      %v1648 = vunpack.c.0.s8 %v1647
      %v1649 = vlaneseq
      %v1650 = vshrl.u32 %v1649, 7
      %v1651 = vsub.s32 %v1648, %v1650
      %v1652 = vrot.slane %v1645, %v1651
      %v1653 = vcombine.high %v1652, %v1652
      %v1655 = vunpack.c.l.s4 1966171168
      %v1656 = vunpack.c.0.s8 %v1655
      %v1657 = vlaneseq
      %v1658 = vshrl.u32 %v1657, 7
      %v1659 = vsub.s32 %v1656, %v1658
      %v1660 = vrot.slane %v1652, %v1659
      %v1662 = vunpack.c.l.s4 1966171168
      %v1663 = vunpack.c.0.s8 %v1662
      %v1664 = vlaneseq
      %v1665 = vshrl.u32 %v1664, 7
      %v1666 = vsub.s32 %v1663, %v1665
      %v1667 = vrot.slane %v1653, %v1666
      %v1702 = vunpack.c.l.b16 %v1613
      %v1703 = vunpack.c.h.b16 %v1613
      %v1704 = vunpack.c.l.b16 %v1614
      %v1705 = vunpack.c.h.b16 %v1614
      %v1706 = vunpack.c.l.b16 %v1615
      %v1707 = vunpack.c.h.b16 %v1615
      %v1708 = vunpack.c.l.b16 %v1616
      %v1709 = vunpack.c.h.b16 %v1616
      %v1710 = vunpack.c.l.b16 %v1617
      %v1711 = vunpack.c.h.b16 %v1617
      %v1712 = vunpack.c.l.b16 %v1618
      %v1713 = vunpack.c.h.b16 %v1618
      %v1714 = vunpack.c.l.b16 %v1619
      %v1715 = vunpack.c.h.b16 %v1619
      %v1716 = vunpack.c.l.b16 %v1620
      %v1717 = vunpack.c.h.b16 %v1620
      %v1718 = vunpack.c.l.b16 %v1621
      %v1719 = vunpack.c.h.b16 %v1621
      %v1720 = vunpack.c.l.b16 %v1622
      %v1721 = vunpack.c.h.b16 %v1622
      %v1722 = vunpack.c.l.b16 %v1623
      %v1723 = vunpack.c.h.b16 %v1623
      %v1724 = vunpack.c.l.b16 %v1624
      %v1725 = vunpack.c.h.b16 %v1624
      %v1726 = vunpack.c.l.b16 %v1625
      %v1727 = vunpack.c.h.b16 %v1625
      %v1728 = vunpack.c.l.b16 %v1626
      %v1729 = vunpack.c.h.b16 %v1626
      %v1730 = vunpack.c.l.b16 %v1627
      %v1731 = vunpack.c.h.b16 %v1627
      %v1732 = vunpack.c.l.b16 %v1628
      %v1733 = vunpack.c.h.b16 %v1628
      %v1734 = vunpack.c.l.b16 %v1629
      %v1735 = vunpack.c.h.b16 %v1629
      %v1736 = vunpack.c.l.b16 %v1630
      %v1737 = vunpack.c.h.b16 %v1630
      %v1738 = vunpack.c.l.b16 %v1631
      %v1739 = vunpack.c.h.b16 %v1631
      %v1740 = vunpack.c.l.b16 %v1632
      %v1741 = vunpack.c.h.b16 %v1632
      %v1742 = vunpack.c.l.b16 %v1633
      %v1743 = vunpack.c.h.b16 %v1633
      %v1744 = vunpack.c.l.b16 %v1634
      %v1745 = vunpack.c.h.b16 %v1634
      %v1746 = vunpack.c.l.b16 %v1635
      %v1747 = vunpack.c.h.b16 %v1635
      %v1748 = vunpack.c.l.b16 %v1636
      %v1749 = vunpack.c.h.b16 %v1636
      %v1750 = vunpack.c.l.b16 %v1637
      %v1751 = vunpack.c.h.b16 %v1637
      %v1752 = vunpack.c.l.b16 %v1638
      %v1753 = vunpack.c.h.b16 %v1638
      %v1754 = vunpack.c.l.b16 %v1639
      %v1755 = vunpack.c.h.b16 %v1639
      %v1756 = vunpack.c.l.b16 %v1640
      %v1757 = vunpack.c.h.b16 %v1640
      %v1758 = vunpack.c.l.b16 %v1641
      %v1759 = vunpack.c.h.b16 %v1641
      %v1760 = vunpack.c.l.b16 %v1642
      %v1761 = vunpack.c.h.b16 %v1642
      %v1762 = vunpack.c.l.b16 %v1643
      %v1763 = vunpack.c.h.b16 %v1643
      %v1764 = vunpack.c.l.b16 %v1644
      %v1765 = vunpack.c.h.b16 %v1644
      %v1766 = vpack.c.b16 %v1704, %v1702
      %v1767 = vpack.c.b16 %v1705, %v1703
      %v1768 = vpack.c.b16 %v1708, %v1706
      %v1769 = vpack.c.b16 %v1709, %v1707
      %v1770 = vpack.c.b16 %v1712, %v1710
      %v1771 = vpack.c.b16 %v1713, %v1711
      %v1772 = vpack.c.b16 %v1716, %v1714
      %v1773 = vpack.c.b16 %v1717, %v1715
      %v1774 = vpack.c.b16 %v1720, %v1718
      %v1775 = vpack.c.b16 %v1721, %v1719
      %v1776 = vpack.c.b16 %v1724, %v1722
      %v1777 = vpack.c.b16 %v1725, %v1723
      %v1778 = vpack.c.b16 %v1728, %v1726
      %v1779 = vpack.c.b16 %v1729, %v1727
      %v1780 = vpack.c.b16 %v1732, %v1730
      %v1781 = vpack.c.b16 %v1733, %v1731
      %v1782 = vpack.c.b16 %v1736, %v1734
      %v1783 = vpack.c.b16 %v1737, %v1735
      %v1784 = vpack.c.b16 %v1740, %v1738
      %v1785 = vpack.c.b16 %v1741, %v1739
      %v1786 = vpack.c.b16 %v1744, %v1742
      %v1787 = vpack.c.b16 %v1745, %v1743
      %v1788 = vpack.c.b16 %v1748, %v1746
      %v1789 = vpack.c.b16 %v1749, %v1747
      %v1790 = vpack.c.b16 %v1752, %v1750
      %v1791 = vpack.c.b16 %v1753, %v1751
      %v1792 = vpack.c.b16 %v1756, %v1754
      %v1793 = vpack.c.b16 %v1757, %v1755
      %v1794 = vpack.c.b16 %v1760, %v1758
      %v1795 = vpack.c.b16 %v1761, %v1759
      %v1796 = vpack.c.b16 %v1764, %v1762
      %v1797 = vpack.c.b16 %v1765, %v1763
      %1830 = vmatprep.subr.bf16.mxu0 %v1781
      %1831 = vmatpush1.bf16.msra.mxu0 %v1780
      %1832 = vmatprep.subr.bf16.mxu0 %v1779
      %1833 = vmatpush1.bf16.msra.mxu0 %v1778
      %1834 = vmatprep.subr.bf16.mxu0 %v1777
      %1835 = vmatpush1.bf16.msra.mxu0 %v1776
      %1836 = vmatprep.subr.bf16.mxu0 %v1775
      %1837 = vmatpush1.bf16.msra.mxu0 %v1774
      %1838 = vmatprep.subr.bf16.mxu0 %v1773
      %1839 = vmatpush1.bf16.msra.mxu0 %v1772
      %1840 = vmatprep.subr.bf16.mxu0 %v1771
      %1841 = vmatpush1.bf16.msra.mxu0 %v1770
      %1842 = vmatprep.subr.bf16.mxu0 %v1769
      %1843 = vmatpush1.bf16.msra.mxu0 %v1768
      %1844 = vmatprep.subr.bf16.mxu0 %v1767
      %1845 = vmatpush1.bf16.msra.mxu0 %v1766
      %1846 = vmatprep.subr.bf16.mxu0 %v1797
      %1847 = vmatpush2.bf16.msra.mxu0 %v1796
      %1848 = vmatprep.subr.bf16.mxu0 %v1795
      %1849 = vmatpush2.bf16.msra.mxu0 %v1794
      %1850 = vmatprep.subr.bf16.mxu0 %v1793
      %1851 = vmatpush2.bf16.msra.mxu0 %v1792
      %1852 = vmatprep.subr.bf16.mxu0 %v1791
      %1853 = vmatpush2.bf16.msra.mxu0 %v1790
      %1854 = vmatprep.subr.bf16.mxu0 %v1789
      %1855 = vmatpush2.bf16.msra.mxu0 %v1788
      %1856 = vmatprep.subr.bf16.mxu0 %v1787
      %1857 = vmatpush2.bf16.msra.mxu0 %v1786
      %1858 = vmatprep.subr.bf16.mxu0 %v1785
      %1859 = vmatpush2.bf16.msra.mxu0 %v1784
      %1860 = vmatprep.subr.bf16.mxu0 %v1783
      %1861 = vmatpush2.bf16.msra.mxu0 %v1782
      %1862 = vmatprep.mubr.bf16.mxu0 %v1667
      %1863 = vmatmul.mubr.bf16.gmra.mxu0 %v1660
      %v1864 = vpop.f32.mrf.mxu0
      %v1865 = vadd.f32 0.0, %v1864
      %v1866 = vpop.f32.mrf.mxu0
      %v1867 = vadd.f32 0.0, %v1866
      %v1868 = vpop.f32.mrf.mxu0
      %v1869 = vpop.f32.mrf.mxu0
      %1870 = vdwg.mxu0
      %v1871 = vadd.f32 %v1593, %v1865
      %v1872 = vadd.f32 %v1594, %v1867
      %v1873 = vcombine.high %v1604, %v1604
      %v1875 = vunpack.c.l.s4 1966171168
      %v1876 = vunpack.c.0.s8 %v1875
      %v1877 = vlaneseq
      %v1878 = vshrl.u32 %v1877, 7
      %v1879 = vsub.s32 %v1876, %v1878
      %v1880 = vrot.slane %v1873, %v1879
      %v1882 = vshrl.u32 %v1611, 16
      %v1884 = vrot.slane %v1882, 7
      %v1885 = vrot.slane %v1884, 1
      %v1887 = vshll.u32 %v1880, 16
      %v1889 = vsel %vm501, %v1885, %v1887
      %s1890 = scalar_lea.vmem %s1, 1280
      %v1891 = vld [vmem:[%s1890] sm:$0xff]
      %v1892 = vld [vmem:[%s1890 + $0x8] sm:$0xff]
      %v1893 = vld [vmem:[%s1890 + $0x10] sm:$0xff]
      %v1894 = vld [vmem:[%s1890 + $0x18] sm:$0xff]
      %v1895 = vld [vmem:[%s1890 + $0x20] sm:$0xff]
      %v1896 = vld [vmem:[%s1890 + $0x28] sm:$0xff]
      %v1897 = vld [vmem:[%s1890 + $0x30] sm:$0xff]
      %v1898 = vld [vmem:[%s1890 + $0x38] sm:$0xff]
      %v1899 = vld [vmem:[%s1890 + $0x40] sm:$0xff]
      %v1900 = vld [vmem:[%s1890 + $0x48] sm:$0xff]
      %v1901 = vld [vmem:[%s1890 + $0x50] sm:$0xff]
      %v1902 = vld [vmem:[%s1890 + $0x58] sm:$0xff]
      %v1903 = vld [vmem:[%s1890 + $0x60] sm:$0xff]
      %v1904 = vld [vmem:[%s1890 + $0x68] sm:$0xff]
      %v1905 = vld [vmem:[%s1890 + $0x70] sm:$0xff]
      %v1906 = vld [vmem:[%s1890 + $0x78] sm:$0xff]
      %v1907 = vld [vmem:[%s1890 + $0x80] sm:$0xff]
      %v1908 = vld [vmem:[%s1890 + $0x88] sm:$0xff]
      %v1909 = vld [vmem:[%s1890 + $0x90] sm:$0xff]
      %v1910 = vld [vmem:[%s1890 + $0x98] sm:$0xff]
      %v1911 = vld [vmem:[%s1890 + $0xa0] sm:$0xff]
      %v1912 = vld [vmem:[%s1890 + $0xa8] sm:$0xff]
      %v1913 = vld [vmem:[%s1890 + $0xb0] sm:$0xff]
      %v1914 = vld [vmem:[%s1890 + $0xb8] sm:$0xff]
      %v1915 = vld [vmem:[%s1890 + $0xc0] sm:$0xff]
      %v1916 = vld [vmem:[%s1890 + $0xc8] sm:$0xff]
      %v1917 = vld [vmem:[%s1890 + $0xd0] sm:$0xff]
      %v1918 = vld [vmem:[%s1890 + $0xd8] sm:$0xff]
      %v1919 = vld [vmem:[%s1890 + $0xe0] sm:$0xff]
      %v1920 = vld [vmem:[%s1890 + $0xe8] sm:$0xff]
      %v1921 = vld [vmem:[%s1890 + $0xf0] sm:$0xff]
      %v1922 = vld [vmem:[%s1890 + $0xf8] sm:$0xff]
      %v1923 = vcombine.low %v519, %v1889
      %v1925 = vunpack.c.l.s4 1966171168
      %v1926 = vunpack.c.0.s8 %v1925
      %v1927 = vlaneseq
      %v1928 = vshrl.u32 %v1927, 7
      %v1929 = vsub.s32 %v1926, %v1928
      %v1930 = vrot.slane %v1923, %v1929
      %v1931 = vcombine.high %v1930, %v1930
      %v1933 = vunpack.c.l.s4 1966171168
      %v1934 = vunpack.c.0.s8 %v1933
      %v1935 = vlaneseq
      %v1936 = vshrl.u32 %v1935, 7
      %v1937 = vsub.s32 %v1934, %v1936
      %v1938 = vrot.slane %v1930, %v1937
      %v1940 = vunpack.c.l.s4 1966171168
      %v1941 = vunpack.c.0.s8 %v1940
      %v1942 = vlaneseq
      %v1943 = vshrl.u32 %v1942, 7
      %v1944 = vsub.s32 %v1941, %v1943
      %v1945 = vrot.slane %v1931, %v1944
      %v1980 = vunpack.c.l.b16 %v1891
      %v1981 = vunpack.c.h.b16 %v1891
      %v1982 = vunpack.c.l.b16 %v1892
      %v1983 = vunpack.c.h.b16 %v1892
      %v1984 = vunpack.c.l.b16 %v1893
      %v1985 = vunpack.c.h.b16 %v1893
      %v1986 = vunpack.c.l.b16 %v1894
      %v1987 = vunpack.c.h.b16 %v1894
      %v1988 = vunpack.c.l.b16 %v1895
      %v1989 = vunpack.c.h.b16 %v1895
      %v1990 = vunpack.c.l.b16 %v1896
      %v1991 = vunpack.c.h.b16 %v1896
      %v1992 = vunpack.c.l.b16 %v1897
      %v1993 = vunpack.c.h.b16 %v1897
      %v1994 = vunpack.c.l.b16 %v1898
      %v1995 = vunpack.c.h.b16 %v1898
      %v1996 = vunpack.c.l.b16 %v1899
      %v1997 = vunpack.c.h.b16 %v1899
      %v1998 = vunpack.c.l.b16 %v1900
      %v1999 = vunpack.c.h.b16 %v1900
      %v2000 = vunpack.c.l.b16 %v1901
      %v2001 = vunpack.c.h.b16 %v1901
      %v2002 = vunpack.c.l.b16 %v1902
      %v2003 = vunpack.c.h.b16 %v1902
      %v2004 = vunpack.c.l.b16 %v1903
      %v2005 = vunpack.c.h.b16 %v1903
      %v2006 = vunpack.c.l.b16 %v1904
      %v2007 = vunpack.c.h.b16 %v1904
      %v2008 = vunpack.c.l.b16 %v1905
      %v2009 = vunpack.c.h.b16 %v1905
      %v2010 = vunpack.c.l.b16 %v1906
      %v2011 = vunpack.c.h.b16 %v1906
      %v2012 = vunpack.c.l.b16 %v1907
      %v2013 = vunpack.c.h.b16 %v1907
      %v2014 = vunpack.c.l.b16 %v1908
      %v2015 = vunpack.c.h.b16 %v1908
      %v2016 = vunpack.c.l.b16 %v1909
      %v2017 = vunpack.c.h.b16 %v1909
      %v2018 = vunpack.c.l.b16 %v1910
      %v2019 = vunpack.c.h.b16 %v1910
      %v2020 = vunpack.c.l.b16 %v1911
      %v2021 = vunpack.c.h.b16 %v1911
      %v2022 = vunpack.c.l.b16 %v1912
      %v2023 = vunpack.c.h.b16 %v1912
      %v2024 = vunpack.c.l.b16 %v1913
      %v2025 = vunpack.c.h.b16 %v1913
      %v2026 = vunpack.c.l.b16 %v1914
      %v2027 = vunpack.c.h.b16 %v1914
      %v2028 = vunpack.c.l.b16 %v1915
      %v2029 = vunpack.c.h.b16 %v1915
      %v2030 = vunpack.c.l.b16 %v1916
      %v2031 = vunpack.c.h.b16 %v1916
      %v2032 = vunpack.c.l.b16 %v1917
      %v2033 = vunpack.c.h.b16 %v1917
      %v2034 = vunpack.c.l.b16 %v1918
      %v2035 = vunpack.c.h.b16 %v1918
      %v2036 = vunpack.c.l.b16 %v1919
      %v2037 = vunpack.c.h.b16 %v1919
      %v2038 = vunpack.c.l.b16 %v1920
      %v2039 = vunpack.c.h.b16 %v1920
      %v2040 = vunpack.c.l.b16 %v1921
      %v2041 = vunpack.c.h.b16 %v1921
      %v2042 = vunpack.c.l.b16 %v1922
      %v2043 = vunpack.c.h.b16 %v1922
      %v2044 = vpack.c.b16 %v1982, %v1980
      %v2045 = vpack.c.b16 %v1983, %v1981
      %v2046 = vpack.c.b16 %v1986, %v1984
      %v2047 = vpack.c.b16 %v1987, %v1985
      %v2048 = vpack.c.b16 %v1990, %v1988
      %v2049 = vpack.c.b16 %v1991, %v1989
      %v2050 = vpack.c.b16 %v1994, %v1992
      %v2051 = vpack.c.b16 %v1995, %v1993
      %v2052 = vpack.c.b16 %v1998, %v1996
      %v2053 = vpack.c.b16 %v1999, %v1997
      %v2054 = vpack.c.b16 %v2002, %v2000
      %v2055 = vpack.c.b16 %v2003, %v2001
      %v2056 = vpack.c.b16 %v2006, %v2004
      %v2057 = vpack.c.b16 %v2007, %v2005
      %v2058 = vpack.c.b16 %v2010, %v2008
      %v2059 = vpack.c.b16 %v2011, %v2009
      %v2060 = vpack.c.b16 %v2014, %v2012
      %v2061 = vpack.c.b16 %v2015, %v2013
      %v2062 = vpack.c.b16 %v2018, %v2016
      %v2063 = vpack.c.b16 %v2019, %v2017
      %v2064 = vpack.c.b16 %v2022, %v2020
      %v2065 = vpack.c.b16 %v2023, %v2021
      %v2066 = vpack.c.b16 %v2026, %v2024
      %v2067 = vpack.c.b16 %v2027, %v2025
      %v2068 = vpack.c.b16 %v2030, %v2028
      %v2069 = vpack.c.b16 %v2031, %v2029
      %v2070 = vpack.c.b16 %v2034, %v2032
      %v2071 = vpack.c.b16 %v2035, %v2033
      %v2072 = vpack.c.b16 %v2038, %v2036
      %v2073 = vpack.c.b16 %v2039, %v2037
      %v2074 = vpack.c.b16 %v2042, %v2040
      %v2075 = vpack.c.b16 %v2043, %v2041
      %2108 = vmatprep.subr.bf16.mxu0 %v2059
      %2109 = vmatpush1.bf16.msra.mxu0 %v2058
      %2110 = vmatprep.subr.bf16.mxu0 %v2057
      %2111 = vmatpush1.bf16.msra.mxu0 %v2056
      %2112 = vmatprep.subr.bf16.mxu0 %v2055
      %2113 = vmatpush1.bf16.msra.mxu0 %v2054
      %2114 = vmatprep.subr.bf16.mxu0 %v2053
      %2115 = vmatpush1.bf16.msra.mxu0 %v2052
      %2116 = vmatprep.subr.bf16.mxu0 %v2051
      %2117 = vmatpush1.bf16.msra.mxu0 %v2050
      %2118 = vmatprep.subr.bf16.mxu0 %v2049
      %2119 = vmatpush1.bf16.msra.mxu0 %v2048
      %2120 = vmatprep.subr.bf16.mxu0 %v2047
      %2121 = vmatpush1.bf16.msra.mxu0 %v2046
      %2122 = vmatprep.subr.bf16.mxu0 %v2045
      %2123 = vmatpush1.bf16.msra.mxu0 %v2044
      %2124 = vmatprep.subr.bf16.mxu0 %v2075
      %2125 = vmatpush2.bf16.msra.mxu0 %v2074
      %2126 = vmatprep.subr.bf16.mxu0 %v2073
      %2127 = vmatpush2.bf16.msra.mxu0 %v2072
      %2128 = vmatprep.subr.bf16.mxu0 %v2071
      %2129 = vmatpush2.bf16.msra.mxu0 %v2070
      %2130 = vmatprep.subr.bf16.mxu0 %v2069
      %2131 = vmatpush2.bf16.msra.mxu0 %v2068
      %2132 = vmatprep.subr.bf16.mxu0 %v2067
      %2133 = vmatpush2.bf16.msra.mxu0 %v2066
      %2134 = vmatprep.subr.bf16.mxu0 %v2065
      %2135 = vmatpush2.bf16.msra.mxu0 %v2064
      %2136 = vmatprep.subr.bf16.mxu0 %v2063
      %2137 = vmatpush2.bf16.msra.mxu0 %v2062
      %2138 = vmatprep.subr.bf16.mxu0 %v2061
      %2139 = vmatpush2.bf16.msra.mxu0 %v2060
      %2140 = vmatprep.mubr.bf16.mxu0 %v1945
      %2141 = vmatmul.mubr.bf16.gmra.mxu0 %v1938
      %v2142 = vpop.f32.mrf.mxu0
      %v2143 = vadd.f32 0.0, %v2142
      %v2144 = vpop.f32.mrf.mxu0
      %v2145 = vadd.f32 0.0, %v2144
      %v2146 = vpop.f32.mrf.mxu0
      %v2147 = vpop.f32.mrf.mxu0
      %2148 = vdwg.mxu0
      %v2149 = vadd.f32 %v1871, %v2143
      %v2150 = vadd.f32 %v1872, %v2145
      %v2153 = vcombine.low %v403, %v404
      %v2155 = vunpack.c.l.s4 1966171168
      %v2156 = vunpack.c.0.s8 %v2155
      %v2157 = vlaneseq
      %v2158 = vshrl.u32 %v2157, 7
      %v2159 = vsub.s32 %v2156, %v2158
      %v2160 = vrot.slane %v2153, %v2159
      %v2162 = vunpack.c.l.s4 1966171168
      %v2163 = vunpack.c.0.s8 %v2162
      %v2164 = vlaneseq
      %v2165 = vshrl.u32 %v2164, 7
      %v2166 = vsub.s32 %v2163, %v2165
      %v2167 = vrot.slane %v2160, %v2166
      %s2168 = scalar_lea.vmem %s1, 1536
      %v2169 = vld [vmem:[%s2168] sm:$0xff]
      %v2170 = vld [vmem:[%s2168 + $0x8] sm:$0xff]
      %v2171 = vld [vmem:[%s2168 + $0x10] sm:$0xff]
      %v2172 = vld [vmem:[%s2168 + $0x18] sm:$0xff]
      %v2173 = vld [vmem:[%s2168 + $0x20] sm:$0xff]
      %v2174 = vld [vmem:[%s2168 + $0x28] sm:$0xff]
      %v2175 = vld [vmem:[%s2168 + $0x30] sm:$0xff]
      %v2176 = vld [vmem:[%s2168 + $0x38] sm:$0xff]
      %v2177 = vld [vmem:[%s2168 + $0x40] sm:$0xff]
      %v2178 = vld [vmem:[%s2168 + $0x48] sm:$0xff]
      %v2179 = vld [vmem:[%s2168 + $0x50] sm:$0xff]
      %v2180 = vld [vmem:[%s2168 + $0x58] sm:$0xff]
      %v2181 = vld [vmem:[%s2168 + $0x60] sm:$0xff]
      %v2182 = vld [vmem:[%s2168 + $0x68] sm:$0xff]
      %v2183 = vld [vmem:[%s2168 + $0x70] sm:$0xff]
      %v2184 = vld [vmem:[%s2168 + $0x78] sm:$0xff]
      %v2185 = vld [vmem:[%s2168 + $0x80] sm:$0xff]
      %v2186 = vld [vmem:[%s2168 + $0x88] sm:$0xff]
      %v2187 = vld [vmem:[%s2168 + $0x90] sm:$0xff]
      %v2188 = vld [vmem:[%s2168 + $0x98] sm:$0xff]
      %v2189 = vld [vmem:[%s2168 + $0xa0] sm:$0xff]
      %v2190 = vld [vmem:[%s2168 + $0xa8] sm:$0xff]
      %v2191 = vld [vmem:[%s2168 + $0xb0] sm:$0xff]
      %v2192 = vld [vmem:[%s2168 + $0xb8] sm:$0xff]
      %v2193 = vld [vmem:[%s2168 + $0xc0] sm:$0xff]
      %v2194 = vld [vmem:[%s2168 + $0xc8] sm:$0xff]
      %v2195 = vld [vmem:[%s2168 + $0xd0] sm:$0xff]
      %v2196 = vld [vmem:[%s2168 + $0xd8] sm:$0xff]
      %v2197 = vld [vmem:[%s2168 + $0xe0] sm:$0xff]
      %v2198 = vld [vmem:[%s2168 + $0xe8] sm:$0xff]
      %v2199 = vld [vmem:[%s2168 + $0xf0] sm:$0xff]
      %v2200 = vld [vmem:[%s2168 + $0xf8] sm:$0xff]
      %v2201 = vcombine.low %v1038, %v2167
      %v2203 = vunpack.c.l.s4 1966171168
      %v2204 = vunpack.c.0.s8 %v2203
      %v2205 = vlaneseq
      %v2206 = vshrl.u32 %v2205, 7
      %v2207 = vsub.s32 %v2204, %v2206
      %v2208 = vrot.slane %v2201, %v2207
      %v2209 = vcombine.high %v2208, %v2208
      %v2211 = vunpack.c.l.s4 1966171168
      %v2212 = vunpack.c.0.s8 %v2211
      %v2213 = vlaneseq
      %v2214 = vshrl.u32 %v2213, 7
      %v2215 = vsub.s32 %v2212, %v2214
      %v2216 = vrot.slane %v2208, %v2215
      %v2218 = vunpack.c.l.s4 1966171168
      %v2219 = vunpack.c.0.s8 %v2218
      %v2220 = vlaneseq
      %v2221 = vshrl.u32 %v2220, 7
      %v2222 = vsub.s32 %v2219, %v2221
      %v2223 = vrot.slane %v2209, %v2222
      %v2258 = vunpack.c.l.b16 %v2169
      %v2259 = vunpack.c.h.b16 %v2169
      %v2260 = vunpack.c.l.b16 %v2170
      %v2261 = vunpack.c.h.b16 %v2170
      %v2262 = vunpack.c.l.b16 %v2171
      %v2263 = vunpack.c.h.b16 %v2171
      %v2264 = vunpack.c.l.b16 %v2172
      %v2265 = vunpack.c.h.b16 %v2172
      %v2266 = vunpack.c.l.b16 %v2173
      %v2267 = vunpack.c.h.b16 %v2173
      %v2268 = vunpack.c.l.b16 %v2174
      %v2269 = vunpack.c.h.b16 %v2174
      %v2270 = vunpack.c.l.b16 %v2175
      %v2271 = vunpack.c.h.b16 %v2175
      %v2272 = vunpack.c.l.b16 %v2176
      %v2273 = vunpack.c.h.b16 %v2176
      %v2274 = vunpack.c.l.b16 %v2177
      %v2275 = vunpack.c.h.b16 %v2177
      %v2276 = vunpack.c.l.b16 %v2178
      %v2277 = vunpack.c.h.b16 %v2178
      %v2278 = vunpack.c.l.b16 %v2179
      %v2279 = vunpack.c.h.b16 %v2179
      %v2280 = vunpack.c.l.b16 %v2180
      %v2281 = vunpack.c.h.b16 %v2180
      %v2282 = vunpack.c.l.b16 %v2181
      %v2283 = vunpack.c.h.b16 %v2181
      %v2284 = vunpack.c.l.b16 %v2182
      %v2285 = vunpack.c.h.b16 %v2182
      %v2286 = vunpack.c.l.b16 %v2183
      %v2287 = vunpack.c.h.b16 %v2183
      %v2288 = vunpack.c.l.b16 %v2184
      %v2289 = vunpack.c.h.b16 %v2184
      %v2290 = vunpack.c.l.b16 %v2185
      %v2291 = vunpack.c.h.b16 %v2185
      %v2292 = vunpack.c.l.b16 %v2186
      %v2293 = vunpack.c.h.b16 %v2186
      %v2294 = vunpack.c.l.b16 %v2187
      %v2295 = vunpack.c.h.b16 %v2187
      %v2296 = vunpack.c.l.b16 %v2188
      %v2297 = vunpack.c.h.b16 %v2188
      %v2298 = vunpack.c.l.b16 %v2189
      %v2299 = vunpack.c.h.b16 %v2189
      %v2300 = vunpack.c.l.b16 %v2190
      %v2301 = vunpack.c.h.b16 %v2190
      %v2302 = vunpack.c.l.b16 %v2191
      %v2303 = vunpack.c.h.b16 %v2191
      %v2304 = vunpack.c.l.b16 %v2192
      %v2305 = vunpack.c.h.b16 %v2192
      %v2306 = vunpack.c.l.b16 %v2193
      %v2307 = vunpack.c.h.b16 %v2193
      %v2308 = vunpack.c.l.b16 %v2194
      %v2309 = vunpack.c.h.b16 %v2194
      %v2310 = vunpack.c.l.b16 %v2195
      %v2311 = vunpack.c.h.b16 %v2195
      %v2312 = vunpack.c.l.b16 %v2196
      %v2313 = vunpack.c.h.b16 %v2196
      %v2314 = vunpack.c.l.b16 %v2197
      %v2315 = vunpack.c.h.b16 %v2197
      %v2316 = vunpack.c.l.b16 %v2198
      %v2317 = vunpack.c.h.b16 %v2198
      %v2318 = vunpack.c.l.b16 %v2199
      %v2319 = vunpack.c.h.b16 %v2199
      %v2320 = vunpack.c.l.b16 %v2200
      %v2321 = vunpack.c.h.b16 %v2200
      %v2322 = vpack.c.b16 %v2260, %v2258
      %v2323 = vpack.c.b16 %v2261, %v2259
      %v2324 = vpack.c.b16 %v2264, %v2262
      %v2325 = vpack.c.b16 %v2265, %v2263
      %v2326 = vpack.c.b16 %v2268, %v2266
      %v2327 = vpack.c.b16 %v2269, %v2267
      %v2328 = vpack.c.b16 %v2272, %v2270
      %v2329 = vpack.c.b16 %v2273, %v2271
      %v2330 = vpack.c.b16 %v2276, %v2274
      %v2331 = vpack.c.b16 %v2277, %v2275
      %v2332 = vpack.c.b16 %v2280, %v2278
      %v2333 = vpack.c.b16 %v2281, %v2279
      %v2334 = vpack.c.b16 %v2284, %v2282
      %v2335 = vpack.c.b16 %v2285, %v2283
      %v2336 = vpack.c.b16 %v2288, %v2286
      %v2337 = vpack.c.b16 %v2289, %v2287
      %v2338 = vpack.c.b16 %v2292, %v2290
      %v2339 = vpack.c.b16 %v2293, %v2291
      %v2340 = vpack.c.b16 %v2296, %v2294
      %v2341 = vpack.c.b16 %v2297, %v2295
      %v2342 = vpack.c.b16 %v2300, %v2298
      %v2343 = vpack.c.b16 %v2301, %v2299
      %v2344 = vpack.c.b16 %v2304, %v2302
      %v2345 = vpack.c.b16 %v2305, %v2303
      %v2346 = vpack.c.b16 %v2308, %v2306
      %v2347 = vpack.c.b16 %v2309, %v2307
      %v2348 = vpack.c.b16 %v2312, %v2310
      %v2349 = vpack.c.b16 %v2313, %v2311
      %v2350 = vpack.c.b16 %v2316, %v2314
      %v2351 = vpack.c.b16 %v2317, %v2315
      %v2352 = vpack.c.b16 %v2320, %v2318
      %v2353 = vpack.c.b16 %v2321, %v2319
      %2386 = vmatprep.subr.bf16.mxu0 %v2337
      %2387 = vmatpush1.bf16.msra.mxu0 %v2336
      %2388 = vmatprep.subr.bf16.mxu0 %v2335
      %2389 = vmatpush1.bf16.msra.mxu0 %v2334
      %2390 = vmatprep.subr.bf16.mxu0 %v2333
      %2391 = vmatpush1.bf16.msra.mxu0 %v2332
      %2392 = vmatprep.subr.bf16.mxu0 %v2331
      %2393 = vmatpush1.bf16.msra.mxu0 %v2330
      %2394 = vmatprep.subr.bf16.mxu0 %v2329
      %2395 = vmatpush1.bf16.msra.mxu0 %v2328
      %2396 = vmatprep.subr.bf16.mxu0 %v2327
      %2397 = vmatpush1.bf16.msra.mxu0 %v2326
      %2398 = vmatprep.subr.bf16.mxu0 %v2325
      %2399 = vmatpush1.bf16.msra.mxu0 %v2324
      %2400 = vmatprep.subr.bf16.mxu0 %v2323
      %2401 = vmatpush1.bf16.msra.mxu0 %v2322
      %2402 = vmatprep.subr.bf16.mxu0 %v2353
      %2403 = vmatpush2.bf16.msra.mxu0 %v2352
      %2404 = vmatprep.subr.bf16.mxu0 %v2351
      %2405 = vmatpush2.bf16.msra.mxu0 %v2350
      %2406 = vmatprep.subr.bf16.mxu0 %v2349
      %2407 = vmatpush2.bf16.msra.mxu0 %v2348
      %2408 = vmatprep.subr.bf16.mxu0 %v2347
      %2409 = vmatpush2.bf16.msra.mxu0 %v2346
      %2410 = vmatprep.subr.bf16.mxu0 %v2345
      %2411 = vmatpush2.bf16.msra.mxu0 %v2344
      %2412 = vmatprep.subr.bf16.mxu0 %v2343
      %2413 = vmatpush2.bf16.msra.mxu0 %v2342
      %2414 = vmatprep.subr.bf16.mxu0 %v2341
      %2415 = vmatpush2.bf16.msra.mxu0 %v2340
      %2416 = vmatprep.subr.bf16.mxu0 %v2339
      %2417 = vmatpush2.bf16.msra.mxu0 %v2338
      %2418 = vmatprep.mubr.bf16.mxu0 %v2223
      %2419 = vmatmul.mubr.bf16.gmra.mxu0 %v2216
      %v2420 = vpop.f32.mrf.mxu0
      %v2421 = vadd.f32 0.0, %v2420
      %v2422 = vpop.f32.mrf.mxu0
      %v2423 = vadd.f32 0.0, %v2422
      %v2424 = vpop.f32.mrf.mxu0
      %v2425 = vpop.f32.mrf.mxu0
      %2426 = vdwg.mxu0
      %v2427 = vadd.f32 %v2149, %v2421
      %v2428 = vadd.f32 %v2150, %v2423
      %v2429 = vcombine.high %v2160, %v2160
      %v2431 = vunpack.c.l.s4 1966171168
      %v2432 = vunpack.c.0.s8 %v2431
      %v2433 = vlaneseq
      %v2434 = vshrl.u32 %v2433, 7
      %v2435 = vsub.s32 %v2432, %v2434
      %v2436 = vrot.slane %v2429, %v2435
      %v2438 = vshrl.u32 %v2167, 16
      %v2440 = vrot.slane %v2438, 7
      %v2441 = vrot.slane %v2440, 1
      %v2443 = vshll.u32 %v2436, 16
      %v2445 = vsel %vm501, %v2441, %v2443
      %s2446 = scalar_lea.vmem %s1, 1792
      %v2447 = vld [vmem:[%s2446] sm:$0xff]
      %v2448 = vld [vmem:[%s2446 + $0x8] sm:$0xff]
      %v2449 = vld [vmem:[%s2446 + $0x10] sm:$0xff]
      %v2450 = vld [vmem:[%s2446 + $0x18] sm:$0xff]
      %v2451 = vld [vmem:[%s2446 + $0x20] sm:$0xff]
      %v2452 = vld [vmem:[%s2446 + $0x28] sm:$0xff]
      %v2453 = vld [vmem:[%s2446 + $0x30] sm:$0xff]
      %v2454 = vld [vmem:[%s2446 + $0x38] sm:$0xff]
      %v2455 = vld [vmem:[%s2446 + $0x40] sm:$0xff]
      %v2456 = vld [vmem:[%s2446 + $0x48] sm:$0xff]
      %v2457 = vld [vmem:[%s2446 + $0x50] sm:$0xff]
      %v2458 = vld [vmem:[%s2446 + $0x58] sm:$0xff]
      %v2459 = vld [vmem:[%s2446 + $0x60] sm:$0xff]
      %v2460 = vld [vmem:[%s2446 + $0x68] sm:$0xff]
      %v2461 = vld [vmem:[%s2446 + $0x70] sm:$0xff]
      %v2462 = vld [vmem:[%s2446 + $0x78] sm:$0xff]
      %v2463 = vld [vmem:[%s2446 + $0x80] sm:$0xff]
      %v2464 = vld [vmem:[%s2446 + $0x88] sm:$0xff]
      %v2465 = vld [vmem:[%s2446 + $0x90] sm:$0xff]
      %v2466 = vld [vmem:[%s2446 + $0x98] sm:$0xff]
      %v2467 = vld [vmem:[%s2446 + $0xa0] sm:$0xff]
      %v2468 = vld [vmem:[%s2446 + $0xa8] sm:$0xff]
      %v2469 = vld [vmem:[%s2446 + $0xb0] sm:$0xff]
      %v2470 = vld [vmem:[%s2446 + $0xb8] sm:$0xff]
      %v2471 = vld [vmem:[%s2446 + $0xc0] sm:$0xff]
      %v2472 = vld [vmem:[%s2446 + $0xc8] sm:$0xff]
      %v2473 = vld [vmem:[%s2446 + $0xd0] sm:$0xff]
      %v2474 = vld [vmem:[%s2446 + $0xd8] sm:$0xff]
      %v2475 = vld [vmem:[%s2446 + $0xe0] sm:$0xff]
      %v2476 = vld [vmem:[%s2446 + $0xe8] sm:$0xff]
      %v2477 = vld [vmem:[%s2446 + $0xf0] sm:$0xff]
      %v2478 = vld [vmem:[%s2446 + $0xf8] sm:$0xff]
      %v2479 = vcombine.low %v1333, %v2445
      %v2481 = vunpack.c.l.s4 1966171168
      %v2482 = vunpack.c.0.s8 %v2481
      %v2483 = vlaneseq
      %v2484 = vshrl.u32 %v2483, 7
      %v2485 = vsub.s32 %v2482, %v2484
      %v2486 = vrot.slane %v2479, %v2485
      %v2487 = vcombine.high %v2486, %v2486
      %v2489 = vunpack.c.l.s4 1966171168
      %v2490 = vunpack.c.0.s8 %v2489
      %v2491 = vlaneseq
      %v2492 = vshrl.u32 %v2491, 7
      %v2493 = vsub.s32 %v2490, %v2492
      %v2494 = vrot.slane %v2486, %v2493
      %v2496 = vunpack.c.l.s4 1966171168
      %v2497 = vunpack.c.0.s8 %v2496
      %v2498 = vlaneseq
      %v2499 = vshrl.u32 %v2498, 7
      %v2500 = vsub.s32 %v2497, %v2499
      %v2501 = vrot.slane %v2487, %v2500
      %v2536 = vunpack.c.l.b16 %v2447
      %v2537 = vunpack.c.h.b16 %v2447
      %v2538 = vunpack.c.l.b16 %v2448
      %v2539 = vunpack.c.h.b16 %v2448
      %v2540 = vunpack.c.l.b16 %v2449
      %v2541 = vunpack.c.h.b16 %v2449
      %v2542 = vunpack.c.l.b16 %v2450
      %v2543 = vunpack.c.h.b16 %v2450
      %v2544 = vunpack.c.l.b16 %v2451
      %v2545 = vunpack.c.h.b16 %v2451
      %v2546 = vunpack.c.l.b16 %v2452
      %v2547 = vunpack.c.h.b16 %v2452
      %v2548 = vunpack.c.l.b16 %v2453
      %v2549 = vunpack.c.h.b16 %v2453
      %v2550 = vunpack.c.l.b16 %v2454
      %v2551 = vunpack.c.h.b16 %v2454
      %v2552 = vunpack.c.l.b16 %v2455
      %v2553 = vunpack.c.h.b16 %v2455
      %v2554 = vunpack.c.l.b16 %v2456
      %v2555 = vunpack.c.h.b16 %v2456
      %v2556 = vunpack.c.l.b16 %v2457
      %v2557 = vunpack.c.h.b16 %v2457
      %v2558 = vunpack.c.l.b16 %v2458
      %v2559 = vunpack.c.h.b16 %v2458
      %v2560 = vunpack.c.l.b16 %v2459
      %v2561 = vunpack.c.h.b16 %v2459
      %v2562 = vunpack.c.l.b16 %v2460
      %v2563 = vunpack.c.h.b16 %v2460
      %v2564 = vunpack.c.l.b16 %v2461
      %v2565 = vunpack.c.h.b16 %v2461
      %v2566 = vunpack.c.l.b16 %v2462
      %v2567 = vunpack.c.h.b16 %v2462
      %v2568 = vunpack.c.l.b16 %v2463
      %v2569 = vunpack.c.h.b16 %v2463
      %v2570 = vunpack.c.l.b16 %v2464
      %v2571 = vunpack.c.h.b16 %v2464
      %v2572 = vunpack.c.l.b16 %v2465
      %v2573 = vunpack.c.h.b16 %v2465
      %v2574 = vunpack.c.l.b16 %v2466
      %v2575 = vunpack.c.h.b16 %v2466
      %v2576 = vunpack.c.l.b16 %v2467
      %v2577 = vunpack.c.h.b16 %v2467
      %v2578 = vunpack.c.l.b16 %v2468
      %v2579 = vunpack.c.h.b16 %v2468
      %v2580 = vunpack.c.l.b16 %v2469
      %v2581 = vunpack.c.h.b16 %v2469
      %v2582 = vunpack.c.l.b16 %v2470
      %v2583 = vunpack.c.h.b16 %v2470
      %v2584 = vunpack.c.l.b16 %v2471
      %v2585 = vunpack.c.h.b16 %v2471
      %v2586 = vunpack.c.l.b16 %v2472
      %v2587 = vunpack.c.h.b16 %v2472
      %v2588 = vunpack.c.l.b16 %v2473
      %v2589 = vunpack.c.h.b16 %v2473
      %v2590 = vunpack.c.l.b16 %v2474
      %v2591 = vunpack.c.h.b16 %v2474
      %v2592 = vunpack.c.l.b16 %v2475
      %v2593 = vunpack.c.h.b16 %v2475
      %v2594 = vunpack.c.l.b16 %v2476
      %v2595 = vunpack.c.h.b16 %v2476
      %v2596 = vunpack.c.l.b16 %v2477
      %v2597 = vunpack.c.h.b16 %v2477
      %v2598 = vunpack.c.l.b16 %v2478
      %v2599 = vunpack.c.h.b16 %v2478
      %v2600 = vpack.c.b16 %v2538, %v2536
      %v2601 = vpack.c.b16 %v2539, %v2537
      %v2602 = vpack.c.b16 %v2542, %v2540
      %v2603 = vpack.c.b16 %v2543, %v2541
      %v2604 = vpack.c.b16 %v2546, %v2544
      %v2605 = vpack.c.b16 %v2547, %v2545
      %v2606 = vpack.c.b16 %v2550, %v2548
      %v2607 = vpack.c.b16 %v2551, %v2549
      %v2608 = vpack.c.b16 %v2554, %v2552
      %v2609 = vpack.c.b16 %v2555, %v2553
      %v2610 = vpack.c.b16 %v2558, %v2556
      %v2611 = vpack.c.b16 %v2559, %v2557
      %v2612 = vpack.c.b16 %v2562, %v2560
      %v2613 = vpack.c.b16 %v2563, %v2561
      %v2614 = vpack.c.b16 %v2566, %v2564
      %v2615 = vpack.c.b16 %v2567, %v2565
      %v2616 = vpack.c.b16 %v2570, %v2568
      %v2617 = vpack.c.b16 %v2571, %v2569
      %v2618 = vpack.c.b16 %v2574, %v2572
      %v2619 = vpack.c.b16 %v2575, %v2573
      %v2620 = vpack.c.b16 %v2578, %v2576
      %v2621 = vpack.c.b16 %v2579, %v2577
      %v2622 = vpack.c.b16 %v2582, %v2580
      %v2623 = vpack.c.b16 %v2583, %v2581
      %v2624 = vpack.c.b16 %v2586, %v2584
      %v2625 = vpack.c.b16 %v2587, %v2585
      %v2626 = vpack.c.b16 %v2590, %v2588
      %v2627 = vpack.c.b16 %v2591, %v2589
      %v2628 = vpack.c.b16 %v2594, %v2592
      %v2629 = vpack.c.b16 %v2595, %v2593
      %v2630 = vpack.c.b16 %v2598, %v2596
      %v2631 = vpack.c.b16 %v2599, %v2597
      %2664 = vmatprep.subr.bf16.mxu0 %v2615
      %2665 = vmatpush1.bf16.msra.mxu0 %v2614
      %2666 = vmatprep.subr.bf16.mxu0 %v2613
      %2667 = vmatpush1.bf16.msra.mxu0 %v2612
      %2668 = vmatprep.subr.bf16.mxu0 %v2611
      %2669 = vmatpush1.bf16.msra.mxu0 %v2610
      %2670 = vmatprep.subr.bf16.mxu0 %v2609
      %2671 = vmatpush1.bf16.msra.mxu0 %v2608
      %2672 = vmatprep.subr.bf16.mxu0 %v2607
      %2673 = vmatpush1.bf16.msra.mxu0 %v2606
      %2674 = vmatprep.subr.bf16.mxu0 %v2605
      %2675 = vmatpush1.bf16.msra.mxu0 %v2604
      %2676 = vmatprep.subr.bf16.mxu0 %v2603
      %2677 = vmatpush1.bf16.msra.mxu0 %v2602
      %2678 = vmatprep.subr.bf16.mxu0 %v2601
      %2679 = vmatpush1.bf16.msra.mxu0 %v2600
      %2680 = vmatprep.subr.bf16.mxu0 %v2631
      %2681 = vmatpush2.bf16.msra.mxu0 %v2630
      %2682 = vmatprep.subr.bf16.mxu0 %v2629
      %2683 = vmatpush2.bf16.msra.mxu0 %v2628
      %2684 = vmatprep.subr.bf16.mxu0 %v2627
      %2685 = vmatpush2.bf16.msra.mxu0 %v2626
      %2686 = vmatprep.subr.bf16.mxu0 %v2625
      %2687 = vmatpush2.bf16.msra.mxu0 %v2624
      %2688 = vmatprep.subr.bf16.mxu0 %v2623
      %2689 = vmatpush2.bf16.msra.mxu0 %v2622
      %2690 = vmatprep.subr.bf16.mxu0 %v2621
      %2691 = vmatpush2.bf16.msra.mxu0 %v2620
      %2692 = vmatprep.subr.bf16.mxu0 %v2619
      %2693 = vmatpush2.bf16.msra.mxu0 %v2618
      %2694 = vmatprep.subr.bf16.mxu0 %v2617
      %2695 = vmatpush2.bf16.msra.mxu0 %v2616
      %2696 = vmatprep.mubr.bf16.mxu0 %v2501
      %2697 = vmatmul.mubr.bf16.gmra.mxu0 %v2494
      %v2698 = vpop.f32.mrf.mxu0
      %v2699 = vadd.f32 0.0, %v2698
      %v2700 = vpop.f32.mrf.mxu0
      %v2701 = vadd.f32 0.0, %v2700
      %v2702 = vpop.f32.mrf.mxu0
      %v2703 = vpop.f32.mrf.mxu0
      %2704 = vdwg.mxu0
      %v2705 = vadd.f32 %v2427, %v2699
      %v2706 = vadd.f32 %v2428, %v2701
      %vm2707 = vcmask 1043456
      %v2708 = vsel %vm2707, %v2705, 0.0
      %v2709 = vrot.slane %v2708, 4
      %v2710 = vadd.f32 %v2708, %v2709
      %v2711 = vrot.slane %v2710, 2
      %v2712 = vadd.f32 %v2710, %v2711
      %v2713 = vrot.slane %v2712, 1
      %v2714 = vadd.f32 %v2712, %v2713
      %v2715 = vsel %vm2707, %v2706, 0.0
      %v2716 = vrot.slane %v2715, 4
      %v2717 = vadd.f32 %v2715, %v2716
      %v2718 = vrot.slane %v2717, 2
      %v2719 = vadd.f32 %v2717, %v2718
      %v2720 = vrot.slane %v2719, 1
      %v2721 = vadd.f32 %v2719, %v2720
      %v2724 = vcombine.low %v2714, %v2721
      %v2726 = vunpack.c.l.s4 1966171168
      %v2727 = vunpack.c.0.s8 %v2726
      %v2728 = vlaneseq
      %v2729 = vshrl.u32 %v2728, 7
      %v2730 = vsub.s32 %v2727, %v2729
      %v2731 = vrot.slane %v2724, %v2730
      %v2733 = vunpack.c.l.s4 1966171168
      %v2734 = vunpack.c.0.s8 %v2733
      %v2735 = vlaneseq
      %v2736 = vshrl.u32 %v2735, 7
      %v2737 = vsub.s32 %v2734, %v2736
      %v2738 = vrot.slane %v2731, %v2737
      %v2740 = vlaneseq
      %vm2741 = vcmp.ge.s32.totalorder %v2740, 0
      %vm2742 = vcmp.lt.s32.totalorder %v2740, 256
      %vm2743 = vmand %vm2741, %vm2742
      %2744 = vst.msk [vmem:[%s268] sm:$0x3] %vm2743, %v2738
      %v2745 = vmul.f32 %v2705, %v2705
      %v2746 = vmul.f32 %v2706, %v2706
      %v2747 = vsel %vm2707, %v2745, 0.0
      %v2748 = vrot.slane %v2747, 4
      %v2749 = vadd.f32 %v2747, %v2748
      %v2750 = vrot.slane %v2749, 2
      %v2751 = vadd.f32 %v2749, %v2750
      %v2752 = vrot.slane %v2751, 1
      %v2753 = vadd.f32 %v2751, %v2752
      %v2754 = vsel %vm2707, %v2746, 0.0
      %v2755 = vrot.slane %v2754, 4
      %v2756 = vadd.f32 %v2754, %v2755
      %v2757 = vrot.slane %v2756, 2
      %v2758 = vadd.f32 %v2756, %v2757
      %v2759 = vrot.slane %v2758, 1
      %v2760 = vadd.f32 %v2758, %v2759
      %v2763 = vcombine.low %v2753, %v2760
      %v2765 = vunpack.c.l.s4 1966171168
      %v2766 = vunpack.c.0.s8 %v2765
      %v2767 = vlaneseq
      %v2768 = vshrl.u32 %v2767, 7
      %v2769 = vsub.s32 %v2766, %v2768
      %v2770 = vrot.slane %v2763, %v2769
      %v2772 = vunpack.c.l.s4 1966171168
      %v2773 = vunpack.c.0.s8 %v2772
      %v2774 = vlaneseq
      %v2775 = vshrl.u32 %v2774, 7
      %v2776 = vsub.s32 %v2773, %v2775
      %v2777 = vrot.slane %v2770, %v2776
      %2779 = vst.msk [vmem:[%s272] sm:$0x3] %vm2743, %v2777
      %vm2780 = vcmp.ge.f32.partialorder %v2705, 0.0
      %vm2781 = vcmp.ge.f32.partialorder %v2706, 0.0
      %v2782 = vmul.f32 %v2705, 0.2
      %v2783 = vmul.f32 %v2706, 0.2
      %v2784 = vsel %vm2780, %v2705, %v2782
      %v2785 = vsel %vm2781, %v2706, %v2783
      %v2786 = vpack.c.bf16 %v2784, %v2784
      %v2787 = vpack.c.bf16 %v2785, %v2785
      %v2790 = vcombine.low %v2786, %v2787
      %v2792 = vunpack.c.l.s4 1983009808
      %v2793 = vunpack.c.0.s8 %v2792
      %v2794 = vlaneseq
      %v2795 = vshrl.u32 %v2794, 7
      %v2796 = vsub.s32 %v2793, %v2795
      %v2797 = vrot.slane %v2790, %v2796
      %2799 = vst [vmem:[%s264] sm:$0xf] %v2797
      %p2800 = scmp.lt.s32.totalorder %s18, 1
      %s2801 = scalar_select %p2800, %s18, 1
      %s2802 = smul.addr %s2801, 2
      %s2803 = smul.addr %s2802, 2
      %s2804 = scalar_lea.vmem %s4, %s2803
      %p2805 = scmp.lt.s32.totalorder %s18, 1
      %s2806 = scalar_select %p2805, %s18, 1
      %s2807 = smul.addr %s2806, 2
      %s2808 = scalar_lea.vmem %s5, %s2807
      %p2809 = scmp.lt.s32.totalorder %s18, 1
      %s2810 = scalar_select %p2809, %s18, 1
      %s2811 = smul.addr %s2810, 2
      %s2812 = scalar_lea.vmem %s6, %s2811
      // Predicated region
      $region37: #{_lambda_.6} parent=35 // pred_check
        %p2813 = pneg %p125
      $region38: #{_lambda_.6} parent=35 // pred_check_branch
        %2815 = sbr.rel (%p2813) target = $region40
      $region39: #{_lambda_.6} parent=35 // pred_region
        _
      $region40: #{_lambda_.6} parent=35 // pred_fallthru
        _
      // Predicated region
      $region41: #{_lambda_.6} parent=35 // pred_check
        %p2816 = pneg %p151
      $region42: #{_lambda_.6} parent=35 // pred_check_branch
        %2818 = sbr.rel (%p2816) target = $region44
      $region43: #{_lambda_.6} parent=35 // pred_region
        _
      $region44: #{_lambda_.6} parent=35 // pred_fallthru
        _
      // Predicated region
      $region45: #{_lambda_.6} parent=35 // pred_check
        %p2819 = pneg %p177
      $region46: #{_lambda_.6} parent=35 // pred_check_branch
        %2821 = sbr.rel (%p2819) target = $region48
      $region47: #{_lambda_.6} parent=35 // pred_region
        _
      $region48: #{_lambda_.6} parent=35 // pred_fallthru
        _
    $region36: #{_lambda_.6} parent=5 // pred_fallthru
      _
    %p2822 = scmp.le.s32.totalorder 2, %s13
    // Predicated region
    $region49: #{_lambda_.6} parent=5 // pred_check
      %p2823 = pneg %p2822
    $region50: #{_lambda_.6} parent=5 // pred_check_branch
      %2825 = sbr.rel (%p2823) target = $region52
    $region51: #{_lambda_.6} parent=5 // pred_region
      %s2826 = ssub.s32 %s13, 2
      // Predicated region
      $region53: #{_lambda_.6} parent=51 // pred_check
        %p2827 = pneg %p131
      $region54: #{_lambda_.6} parent=51 // pred_check_branch
        %2829 = sbr.rel (%p2827) target = $region56
      $region55: #{_lambda_.6} parent=51 // pred_region
        %p2830 = scmp.lt.s32.totalorder %s19, 1
        %s2831 = scalar_select %p2830, %s19, 1
        %s2832 = smul.addr %s2831, 2
        %s2833 = smul.addr %s2832, 2
        %s2834 = scalar_lea.vmem %s4, %s2833
      $region56: #{_lambda_.6} parent=51 // pred_fallthru
        _
      // Predicated region
      $region57: #{_lambda_.6} parent=51 // pred_check
        %p2835 = pneg %p157
      $region58: #{_lambda_.6} parent=51 // pred_check_branch
        %2837 = sbr.rel (%p2835) target = $region60
      $region59: #{_lambda_.6} parent=51 // pred_region
        %p2838 = scmp.lt.s32.totalorder %s19, 1
        %s2839 = scalar_select %p2838, %s19, 1
        %s2840 = smul.addr %s2839, 2
        %s2841 = scalar_lea.vmem %s5, %s2840
      $region60: #{_lambda_.6} parent=51 // pred_fallthru
        _
      // Predicated region
      $region61: #{_lambda_.6} parent=51 // pred_check
        %p2842 = pneg %p183
      $region62: #{_lambda_.6} parent=51 // pred_check_branch
        %2844 = sbr.rel (%p2842) target = $region64
      $region63: #{_lambda_.6} parent=51 // pred_region
        %p2845 = scmp.lt.s32.totalorder %s19, 1
        %s2846 = scalar_select %p2845, %s19, 1
        %s2847 = smul.addr %s2846, 2
        %s2848 = scalar_lea.vmem %s6, %s2847
      $region64: #{_lambda_.6} parent=51 // pred_fallthru
        _
    $region52: #{_lambda_.6} parent=5 // pred_fallthru
      _
  $region6: #{_lambda_.6} parent=0 // loop_footer
    %s17 = sadd.s32 1, %s13
  $region7: #{_lambda_.6} parent=0 // loop_footer_branch
    %12 = sbr.rel target = $region3
  $region8: #{_lambda_.6} parent=0 // loop_exit
    _

// kernel: _lambda_.7
$region0: #{_lambda_.7}
  #allocation0 [shape = 'u32[]', space=smem, size = 0x4, offset = 0x4, fixed_abs, tag = 'smem constant byte address 0x4 - core index']
  #allocation1 [shape = 'u32[144,128]{1,0:T(1,128)}', space=vmem, size = 0x12000, scoped, tag = 'internal scratch']
  %s0 = inlined_call_operand.vmem [shape: bf16[2,4,4,256], index: 0, kind: input, shape index: {}]
  %s1 = inlined_call_operand.vmem [shape: bf16[4,4,256,128], index: 1, kind: input, shape index: {}]
  %s2 = inlined_call_operand.vmem [shape: f32[1,128], index: 2, kind: input, shape index: {}]
  %s3 = inlined_call_operand.vmem [shape: f32[1,256], index: 3, kind: input, shape index: {}]
  %s4 = inlined_call_operand.vmem [shape: f32[1,256], index: 4, kind: input, shape index: {}]
  %s5 = inlined_call_operand.vmem [shape: f32[2,1,128], index: 5, kind: output, shape index: {}]
  %s6 = sld [smem:[#allocation0]]
  $region53: #{_lambda_.7} parent=0
    _
  %s8 = ssub.s32 1, %s6
  %s9 = scalar_select 0, %s8, %s6
  loop: start=0, step=1, limit=4
  $region2: #{_lambda_.7} parent=0 // loop_pre_header
    _
  $region3: #{_lambda_.7} parent=0 // loop_header
    %s11 = sphi 0, %s15
    %p12 = scmp.ge.s32.totalorder %s11, 4
    %s21 = sphi 0, %s23
    %s24 = sphi 0, %s21
    %s25 = sphi 0, %s24
    %s41 = sphi 0, %s25
    %s45 = sphi 0, %s45
    %s47 = sphi 0, %s45
    %s48 = sphi 0, %s47
    %s62 = sphi 0, %s48
    %s66 = sphi 0, %s66
    %s68 = sphi 0, %s66
    %s69 = sphi 0, %s68
    %s83 = sphi 0, %s69
    %s87 = sphi 0, %s87
    %s89 = sphi 0, %s87
    %s90 = sphi 0, %s89
    %s104 = sphi 0, %s90
    %s108 = sphi 0, %s108
    %s110 = sphi 0, %s108
    %s111 = sphi 0, %s110
    %s125 = sphi 0, %s111
    %s131 = sphi 0, %s133
    %s134 = sphi 0, %s131
    %s135 = sphi 0, %s134
    %s151 = sphi 0, %s135
  $region4: #{_lambda_.7} parent=0 // loop_header_branch
    %14 = sbr.rel (%p12) target = $region8
  $region5: #{_lambda_.7} parent=0 // loop_body
    %s16 = ssub.s32 %s11, 1
    %s17 = ssub.s32 %s11, 2
    %s18 = sadd.s32 %s11, 1
    %s19 = ssub.s32 %s11, %s18
    %p20 = scmp.eq.s32.totalorder %s19, 0
    %s22 = sadd.s32 %s21, 1
    %s23 = scalar_select %p20, %s21, %s22
    %p26 = pneg %p20
    %p27 = scmp.eq.s32.totalorder %s11, 1
    %p28 = por %p26, %p27
    %p29 = scmp.ne.s32.totalorder %s21, %s24
    %p30 = scmp.eq.s32.totalorder %s11, 0
    %p31 = por %p29, %p30
    %p32 = scmp.ne.s32.totalorder %s21, %s24
    %p33 = scmp.eq.s32.totalorder %s16, 1
    %p34 = por %p32, %p33
    %p35 = scmp.ne.s32.totalorder %s24, %s25
    %p36 = scmp.eq.s32.totalorder %s16, 0
    %p37 = por %p35, %p36
    %p38 = scmp.ne.s32.totalorder %s24, %s25
    %p39 = scmp.eq.s32.totalorder %s17, 1
    %p40 = por %p38, %p39
    %p42 = scmp.ne.s32.totalorder %s25, %s41
    %p43 = scmp.eq.s32.totalorder %s17, 0
    %p44 = por %p42, %p43
    %s46 = sadd.s32 %s45, 1
    %p49 = scmp.eq.s32.totalorder %s11, 1
    %p50 = scmp.ne.s32.totalorder %s45, %s47
    %p51 = scmp.eq.s32.totalorder %s11, 0
    %p52 = por %p50, %p51
    %p53 = scmp.ne.s32.totalorder %s45, %s47
    %p54 = scmp.eq.s32.totalorder %s16, 1
    %p55 = por %p53, %p54
    %p56 = scmp.ne.s32.totalorder %s47, %s48
    %p57 = scmp.eq.s32.totalorder %s16, 0
    %p58 = por %p56, %p57
    %p59 = scmp.ne.s32.totalorder %s47, %s48
    %p60 = scmp.eq.s32.totalorder %s17, 1
    %p61 = por %p59, %p60
    %p63 = scmp.ne.s32.totalorder %s48, %s62
    %p64 = scmp.eq.s32.totalorder %s17, 0
    %p65 = por %p63, %p64
    %s67 = sadd.s32 %s66, 1
    %p70 = scmp.eq.s32.totalorder %s11, 1
    %p71 = scmp.ne.s32.totalorder %s66, %s68
    %p72 = scmp.eq.s32.totalorder %s11, 0
    %p73 = por %p71, %p72
    %p74 = scmp.ne.s32.totalorder %s66, %s68
    %p75 = scmp.eq.s32.totalorder %s16, 1
    %p76 = por %p74, %p75
    %p77 = scmp.ne.s32.totalorder %s68, %s69
    %p78 = scmp.eq.s32.totalorder %s16, 0
    %p79 = por %p77, %p78
    %p80 = scmp.ne.s32.totalorder %s68, %s69
    %p81 = scmp.eq.s32.totalorder %s17, 1
    %p82 = por %p80, %p81
    %p84 = scmp.ne.s32.totalorder %s69, %s83
    %p85 = scmp.eq.s32.totalorder %s17, 0
    %p86 = por %p84, %p85
    %s88 = sadd.s32 %s87, 1
    %p91 = scmp.eq.s32.totalorder %s11, 1
    %p92 = scmp.ne.s32.totalorder %s87, %s89
    %p93 = scmp.eq.s32.totalorder %s11, 0
    %p94 = por %p92, %p93
    %p95 = scmp.ne.s32.totalorder %s87, %s89
    %p96 = scmp.eq.s32.totalorder %s16, 1
    %p97 = por %p95, %p96
    %p98 = scmp.ne.s32.totalorder %s89, %s90
    %p99 = scmp.eq.s32.totalorder %s16, 0
    %p100 = por %p98, %p99
    %p101 = scmp.ne.s32.totalorder %s89, %s90
    %p102 = scmp.eq.s32.totalorder %s17, 1
    %p103 = por %p101, %p102
    %p105 = scmp.ne.s32.totalorder %s90, %s104
    %p106 = scmp.eq.s32.totalorder %s17, 0
    %p107 = por %p105, %p106
    %s109 = sadd.s32 %s108, 1
    %p112 = scmp.eq.s32.totalorder %s11, 1
    %p113 = scmp.ne.s32.totalorder %s108, %s110
    %p114 = scmp.eq.s32.totalorder %s11, 0
    %p115 = por %p113, %p114
    %p116 = scmp.ne.s32.totalorder %s108, %s110
    %p117 = scmp.eq.s32.totalorder %s16, 1
    %p118 = por %p116, %p117
    %p119 = scmp.ne.s32.totalorder %s110, %s111
    %p120 = scmp.eq.s32.totalorder %s16, 0
    %p121 = por %p119, %p120
    %p122 = scmp.ne.s32.totalorder %s110, %s111
    %p123 = scmp.eq.s32.totalorder %s17, 1
    %p124 = por %p122, %p123
    %p126 = scmp.ne.s32.totalorder %s111, %s125
    %p127 = scmp.eq.s32.totalorder %s17, 0
    %p128 = por %p126, %p127
    %s129 = ssub.s32 %s11, %s18
    %p130 = scmp.eq.s32.totalorder %s129, 0
    %s132 = sadd.s32 %s131, 1
    %s133 = scalar_select %p130, %s131, %s132
    %p136 = pneg %p130
    %p137 = scmp.eq.s32.totalorder %s11, 1
    %p138 = por %p136, %p137
    %p139 = scmp.ne.s32.totalorder %s131, %s134
    %p140 = scmp.eq.s32.totalorder %s11, 0
    %p141 = por %p139, %p140
    %p142 = scmp.ne.s32.totalorder %s131, %s134
    %p143 = scmp.eq.s32.totalorder %s16, 1
    %p144 = por %p142, %p143
    %p145 = scmp.ne.s32.totalorder %s134, %s135
    %p146 = scmp.eq.s32.totalorder %s16, 0
    %p147 = por %p145, %p146
    %p148 = scmp.ne.s32.totalorder %s134, %s135
    %p149 = scmp.eq.s32.totalorder %s17, 1
    %p150 = por %p148, %p149
    %p152 = scmp.ne.s32.totalorder %s135, %s151
    %p153 = scmp.eq.s32.totalorder %s17, 0
    %p154 = por %p152, %p153
    %p155 = scmp.le.s32.totalorder 1, %s11
    %p156 = scmp.lt.s32.totalorder %s11, 3
    %p157 = pnand %p155, %p156
    %p158 = pneg %p157
    // Predicated region
    $region9: #{_lambda_.7} parent=5 // pred_check
      _
    $region10: #{_lambda_.7} parent=5 // pred_check_branch
      %160 = sbr.rel (%p157) target = $region12
    $region11: #{_lambda_.7} parent=5 // pred_region
      %s161 = ssub.s32 %s11, 1
      // Predicated region
      $region13: #{_lambda_.7} parent=11 // pred_check
        %p162 = pneg %p58
      $region14: #{_lambda_.7} parent=11 // pred_check_branch
        %164 = sbr.rel (%p162) target = $region16
      $region15: #{_lambda_.7} parent=11 // pred_region
        _
      $region16: #{_lambda_.7} parent=11 // pred_fallthru
        _
      // Predicated region
      $region17: #{_lambda_.7} parent=11 // pred_check
        %p165 = pneg %p79
      $region18: #{_lambda_.7} parent=11 // pred_check_branch
        %167 = sbr.rel (%p165) target = $region20
      $region19: #{_lambda_.7} parent=11 // pred_region
        _
      $region20: #{_lambda_.7} parent=11 // pred_fallthru
        _
      // Predicated region
      $region21: #{_lambda_.7} parent=11 // pred_check
        %p168 = pneg %p100
      $region22: #{_lambda_.7} parent=11 // pred_check_branch
        %170 = sbr.rel (%p168) target = $region24
      $region23: #{_lambda_.7} parent=11 // pred_region
        _
      $region24: #{_lambda_.7} parent=11 // pred_fallthru
        _
      // Predicated region
      $region25: #{_lambda_.7} parent=11 // pred_check
        %p171 = pneg %p121
      $region26: #{_lambda_.7} parent=11 // pred_check_branch
        %173 = sbr.rel (%p171) target = $region28
      $region27: #{_lambda_.7} parent=11 // pred_region
        _
      $region28: #{_lambda_.7} parent=11 // pred_fallthru
        _
    $region12: #{_lambda_.7} parent=5 // pred_fallthru
      _
    %p174 = scmp.lt.s32.totalorder %s11, 2
    // Predicated region
    $region29: #{_lambda_.7} parent=5 // pred_check
      %p175 = pneg %p174
    $region30: #{_lambda_.7} parent=5 // pred_check_branch
      %177 = sbr.rel (%p175) target = $region32
    $region31: #{_lambda_.7} parent=5 // pred_region
      // Predicated region
      $region33: #{_lambda_.7} parent=31 // pred_check
        %p178 = pneg %p31
      $region34: #{_lambda_.7} parent=31 // pred_check_branch
        %180 = sbr.rel (%p178) target = $region36
      $region35: #{_lambda_.7} parent=31 // pred_region
        %p181 = scmp.lt.s32.totalorder %s11, 1
        %s182 = scalar_select %p181, %s11, 1
        %s183 = smul.addr %s182, 8
        %s184 = smul.addr %s183, 2
        %s185 = scalar_lea.vmem %s0, %s184
      $region36: #{_lambda_.7} parent=31 // pred_fallthru
        _
    $region32: #{_lambda_.7} parent=5 // pred_fallthru
      _
    %p186 = scmp.le.s32.totalorder 1, %s11
    %p187 = scmp.lt.s32.totalorder %s11, 3
    %p188 = pnand %p186, %p187
    %p189 = pneg %p188
    // Predicated region
    $region37: #{_lambda_.7} parent=5 // pred_check
      _
    $region38: #{_lambda_.7} parent=5 // pred_check_branch
      %191 = sbr.rel (%p188) target = $region40
    $region39: #{_lambda_.7} parent=5 // pred_region
      %s192 = ssub.s32 %s11, 1
      %p193 = scmp.lt.s32.totalorder %s16, 1
      %s194 = scalar_select %p193, %s16, 1
      %s195 = smul.addr %s194, 8
      %s196 = smul.addr %s195, 2
      %s197 = scalar_lea.vmem %s0, %s196
      %p198 = pneg %p37
      %p199 = pneg %p34
      %p200 = pneg %p58
      %p201 = pneg %p55
      %p202 = pneg %p79
      %p203 = pneg %p76
      %p204 = pneg %p100
      %p205 = pneg %p97
      %p206 = pneg %p121
      %p207 = pneg %p118
      %p208 = pneg %p147
      %p209 = pneg %p144
      %p210 = scmp.lt.s32.totalorder %s16, 1
      %s211 = scalar_select %p210, %s16, 1
      %s212 = scalar_lea.vmem %s5, %s211
      %p213 = scmp.lt.s32.totalorder %s16, 1
      %s214 = scalar_select %p213, %s16, 1
      %s215 = smul.addr %s214, 8
      %s216 = smul.addr %s215, 2
      %s217 = scalar_lea.vmem %s0, %s216
      %p218 = scmp.lt.s32.totalorder %s16, 1
      %s219 = scalar_select %p218, %s16, 1
      %s220 = scalar_lea.vmem %s5, %s219
      %v222 = vld [vmem:[%s217] sm:$0xf]
      %v223 = vld [vmem:[%s217 + $0x4] sm:$0xf]
      %v224 = vld [vmem:[%s217 + $0x8] sm:$0xf]
      %v225 = vld [vmem:[%s217 + $0xc] sm:$0xf]
      %v226 = vunpack.c.l.bf16 %v222
      %v227 = vunpack.c.l.bf16 %v223
      %v228 = vunpack.c.l.bf16 %v224
      %v229 = vunpack.c.l.bf16 %v225
      %v230 = vld [vmem:[%s3] sm:$0x3]
      %v232 = vlaneseq
      %v233 = vshrl.u32 %v232, 7
      %v234 = vsub.s32 0, %v233
      %v235 = vrot.slane %v230, %v234
      %v236 = vlaneseq
      %v237 = vshrl.u32 %v236, 7
      %v238 = vsub.s32 1, %v237
      %v239 = vrot.slane %v230, %v238
      %v240 = vcombine.low %v235, %v239
      %v242 = vmul.f32 %v226, %v240
      %v243 = vmul.f32 %v227, %v240
      %v244 = vmul.f32 %v228, %v240
      %v245 = vmul.f32 %v229, %v240
      %v246 = vld [vmem:[%s4] sm:$0x3]
      %v248 = vlaneseq
      %v249 = vshrl.u32 %v248, 7
      %v250 = vsub.s32 0, %v249
      %v251 = vrot.slane %v246, %v250
      %v252 = vlaneseq
      %v253 = vshrl.u32 %v252, 7
      %v254 = vsub.s32 1, %v253
      %v255 = vrot.slane %v246, %v254
      %v256 = vcombine.low %v251, %v255
      %v258 = vadd.f32 %v242, %v256
      %v259 = vadd.f32 %v243, %v256
      %v260 = vadd.f32 %v244, %v256
      %v261 = vadd.f32 %v245, %v256
      %vm262 = vcmp.ge.f32.partialorder %v258, 0.0
      %vm263 = vcmp.ge.f32.partialorder %v259, 0.0
      %vm264 = vcmp.ge.f32.partialorder %v260, 0.0
      %vm265 = vcmp.ge.f32.partialorder %v261, 0.0
      %v266 = vmul.f32 %v258, 0.2
      %v267 = vmul.f32 %v259, 0.2
      %v268 = vmul.f32 %v260, 0.2
      %v269 = vmul.f32 %v261, 0.2
      %v270 = vsel %vm262, %v258, %v266
      %v271 = vsel %vm263, %v259, %v267
      %v272 = vsel %vm264, %v260, %v268
      %v273 = vsel %vm265, %v261, %v269
      %v274 = vlaneseq
      %v275 = vshrl.u32 %v274, 7
      %vm276 = vcmp.ge.s32.totalorder %v275, 1
      %vm277 = vmand 0, %vm276
      %vm278 = vmand 1, %vm276
      %vm279 = vcmp.le.s32.totalorder %v275, 2
      %vm280 = vmand %vm277, %vm279
      %vm281 = vmand %vm278, %vm279
      %v286 = vcombine.high %v270, %v270
      %v287 = vcombine.high %v271, %v271
      %v288 = vcombine.high %v272, %v272
      %v289 = vcombine.high %v273, %v273
      %v294 = vsel %vm280, %v270, 0.0
      %v295 = vsel %vm280, %v286, 0.0
      %v296 = vsel %vm281, %v271, 0.0
      %v297 = vsel %vm281, %v287, 0.0
      %v298 = vsel %vm281, %v272, 0.0
      %v299 = vsel %vm281, %v288, 0.0
      %v300 = vsel %vm280, %v273, 0.0
      %v301 = vsel %vm280, %v289, 0.0
      %v302 = vpack.c.bf16 %v294, %v294
      %v303 = vpack.c.bf16 %v295, %v295
      %v304 = vpack.c.bf16 %v296, %v296
      %v305 = vpack.c.bf16 %v297, %v297
      %v306 = vpack.c.bf16 %v298, %v298
      %v307 = vpack.c.bf16 %v299, %v299
      %v308 = vpack.c.bf16 %v300, %v300
      %v309 = vpack.c.bf16 %v301, %v301
      %v310 = vld [vmem:[%s1] sm:$0xf]
      %v311 = vld [vmem:[%s1 + $0x4] sm:$0xf]
      %v312 = vld [vmem:[%s1 + $0x8] sm:$0xf]
      %v313 = vld [vmem:[%s1 + $0xc] sm:$0xf]
      %v314 = vld [vmem:[%s1 + $0x10] sm:$0xf]
      %v315 = vld [vmem:[%s1 + $0x14] sm:$0xf]
      %v316 = vld [vmem:[%s1 + $0x18] sm:$0xf]
      %v317 = vld [vmem:[%s1 + $0x1c] sm:$0xf]
      %v318 = vld [vmem:[%s1 + $0x20] sm:$0xf]
      %v319 = vld [vmem:[%s1 + $0x24] sm:$0xf]
      %v320 = vld [vmem:[%s1 + $0x28] sm:$0xf]
      %v321 = vld [vmem:[%s1 + $0x2c] sm:$0xf]
      %v322 = vld [vmem:[%s1 + $0x30] sm:$0xf]
      %v323 = vld [vmem:[%s1 + $0x34] sm:$0xf]
      %v324 = vld [vmem:[%s1 + $0x38] sm:$0xf]
      %v325 = vld [vmem:[%s1 + $0x3c] sm:$0xf]
      %v326 = vld [vmem:[%s1 + $0x40] sm:$0xf]
      %v327 = vld [vmem:[%s1 + $0x44] sm:$0xf]
      %v328 = vld [vmem:[%s1 + $0x48] sm:$0xf]
      %v329 = vld [vmem:[%s1 + $0x4c] sm:$0xf]
      %v330 = vld [vmem:[%s1 + $0x50] sm:$0xf]
      %v331 = vld [vmem:[%s1 + $0x54] sm:$0xf]
      %v332 = vld [vmem:[%s1 + $0x58] sm:$0xf]
      %v333 = vld [vmem:[%s1 + $0x5c] sm:$0xf]
      %v334 = vld [vmem:[%s1 + $0x60] sm:$0xf]
      %v335 = vld [vmem:[%s1 + $0x64] sm:$0xf]
      %v336 = vld [vmem:[%s1 + $0x68] sm:$0xf]
      %v337 = vld [vmem:[%s1 + $0x6c] sm:$0xf]
      %v338 = vld [vmem:[%s1 + $0x70] sm:$0xf]
      %v339 = vld [vmem:[%s1 + $0x74] sm:$0xf]
      %v340 = vld [vmem:[%s1 + $0x78] sm:$0xf]
      %v341 = vld [vmem:[%s1 + $0x7c] sm:$0xf]
      %s342 = scalar_lea.vmem %s1, 128
      %v343 = vld [vmem:[%s342] sm:$0xf]
      %v344 = vld [vmem:[%s342 + $0x4] sm:$0xf]
      %v345 = vld [vmem:[%s342 + $0x8] sm:$0xf]
      %v346 = vld [vmem:[%s342 + $0xc] sm:$0xf]
      %v347 = vld [vmem:[%s342 + $0x10] sm:$0xf]
      %v348 = vld [vmem:[%s342 + $0x14] sm:$0xf]
      %v349 = vld [vmem:[%s342 + $0x18] sm:$0xf]
      %v350 = vld [vmem:[%s342 + $0x1c] sm:$0xf]
      %v351 = vld [vmem:[%s342 + $0x20] sm:$0xf]
      %v352 = vld [vmem:[%s342 + $0x24] sm:$0xf]
      %v353 = vld [vmem:[%s342 + $0x28] sm:$0xf]
      %v354 = vld [vmem:[%s342 + $0x2c] sm:$0xf]
      %v355 = vld [vmem:[%s342 + $0x30] sm:$0xf]
      %v356 = vld [vmem:[%s342 + $0x34] sm:$0xf]
      %v357 = vld [vmem:[%s342 + $0x38] sm:$0xf]
      %v358 = vld [vmem:[%s342 + $0x3c] sm:$0xf]
      %v359 = vld [vmem:[%s342 + $0x40] sm:$0xf]
      %v360 = vld [vmem:[%s342 + $0x44] sm:$0xf]
      %v361 = vld [vmem:[%s342 + $0x48] sm:$0xf]
      %v362 = vld [vmem:[%s342 + $0x4c] sm:$0xf]
      %v363 = vld [vmem:[%s342 + $0x50] sm:$0xf]
      %v364 = vld [vmem:[%s342 + $0x54] sm:$0xf]
      %v365 = vld [vmem:[%s342 + $0x58] sm:$0xf]
      %v366 = vld [vmem:[%s342 + $0x5c] sm:$0xf]
      %v367 = vld [vmem:[%s342 + $0x60] sm:$0xf]
      %v368 = vld [vmem:[%s342 + $0x64] sm:$0xf]
      %v369 = vld [vmem:[%s342 + $0x68] sm:$0xf]
      %v370 = vld [vmem:[%s342 + $0x6c] sm:$0xf]
      %v371 = vld [vmem:[%s342 + $0x70] sm:$0xf]
      %v372 = vld [vmem:[%s342 + $0x74] sm:$0xf]
      %v373 = vld [vmem:[%s342 + $0x78] sm:$0xf]
      %v374 = vld [vmem:[%s342 + $0x7c] sm:$0xf]
      %v376 = vshrl.u32 %v302, 16
      %v379 = vshrl.u32 %v303, 16
      %v415 = vunpack.c.l.b16 %v343
      %v416 = vunpack.c.l.b16 %v344
      %v417 = vunpack.c.l.b16 %v345
      %v418 = vunpack.c.l.b16 %v346
      %v419 = vunpack.c.l.b16 %v347
      %v420 = vunpack.c.l.b16 %v348
      %v421 = vunpack.c.l.b16 %v349
      %v422 = vunpack.c.l.b16 %v350
      %v423 = vunpack.c.l.b16 %v351
      %v424 = vunpack.c.l.b16 %v352
      %v425 = vunpack.c.l.b16 %v353
      %v426 = vunpack.c.l.b16 %v354
      %v427 = vunpack.c.l.b16 %v355
      %v428 = vunpack.c.l.b16 %v356
      %v429 = vunpack.c.l.b16 %v357
      %v430 = vunpack.c.l.b16 %v358
      %v431 = vunpack.c.l.b16 %v359
      %v432 = vunpack.c.l.b16 %v360
      %v433 = vunpack.c.l.b16 %v361
      %v434 = vunpack.c.l.b16 %v362
      %v435 = vunpack.c.l.b16 %v363
      %v436 = vunpack.c.l.b16 %v364
      %v437 = vunpack.c.l.b16 %v365
      %v438 = vunpack.c.l.b16 %v366
      %v439 = vunpack.c.l.b16 %v367
      %v440 = vunpack.c.l.b16 %v368
      %v441 = vunpack.c.l.b16 %v369
      %v442 = vunpack.c.l.b16 %v370
      %v443 = vunpack.c.l.b16 %v371
      %v444 = vunpack.c.l.b16 %v372
      %v445 = vunpack.c.l.b16 %v373
      %v446 = vunpack.c.l.b16 %v374
      %v447 = vpack.c.b16 %v416, %v415
      %v448 = vpack.c.b16 %v418, %v417
      %v449 = vpack.c.b16 %v420, %v419
      %v450 = vpack.c.b16 %v422, %v421
      %v451 = vpack.c.b16 %v424, %v423
      %v452 = vpack.c.b16 %v426, %v425
      %v453 = vpack.c.b16 %v428, %v427
      %v454 = vpack.c.b16 %v430, %v429
      %v455 = vpack.c.b16 %v432, %v431
      %v456 = vpack.c.b16 %v434, %v433
      %v457 = vpack.c.b16 %v436, %v435
      %v458 = vpack.c.b16 %v438, %v437
      %v459 = vpack.c.b16 %v440, %v439
      %v460 = vpack.c.b16 %v442, %v441
      %v461 = vpack.c.b16 %v444, %v443
      %v462 = vpack.c.b16 %v446, %v445
      %479 = vmatprep.subr.bf16.mxu0 0
      %480 = vmatpush1.bf16.msra.mxu0 %v454
      %481 = vmatprep.subr.bf16.mxu0 0
      %482 = vmatpush1.bf16.msra.mxu0 %v453
      %483 = vmatprep.subr.bf16.mxu0 0
      %484 = vmatpush1.bf16.msra.mxu0 %v452
      %485 = vmatprep.subr.bf16.mxu0 0
      %486 = vmatpush1.bf16.msra.mxu0 %v451
      %487 = vmatprep.subr.bf16.mxu0 0
      %488 = vmatpush1.bf16.msra.mxu0 %v450
      %489 = vmatprep.subr.bf16.mxu0 0
      %490 = vmatpush1.bf16.msra.mxu0 %v449
      %491 = vmatprep.subr.bf16.mxu0 0
      %492 = vmatpush1.bf16.msra.mxu0 %v448
      %493 = vmatprep.subr.bf16.mxu0 0
      %494 = vmatpush1.bf16.msra.mxu0 %v447
      %495 = vmatprep.subr.bf16.mxu0 0
      %496 = vmatpush2.bf16.msra.mxu0 %v462
      %497 = vmatprep.subr.bf16.mxu0 0
      %498 = vmatpush2.bf16.msra.mxu0 %v461
      %499 = vmatprep.subr.bf16.mxu0 0
      %500 = vmatpush2.bf16.msra.mxu0 %v460
      %501 = vmatprep.subr.bf16.mxu0 0
      %502 = vmatpush2.bf16.msra.mxu0 %v459
      %503 = vmatprep.subr.bf16.mxu0 0
      %504 = vmatpush2.bf16.msra.mxu0 %v458
      %505 = vmatprep.subr.bf16.mxu0 0
      %506 = vmatpush2.bf16.msra.mxu0 %v457
      %507 = vmatprep.subr.bf16.mxu0 0
      %508 = vmatpush2.bf16.msra.mxu0 %v456
      %509 = vmatprep.subr.bf16.mxu0 0
      %510 = vmatpush2.bf16.msra.mxu0 %v455
      %511 = vmatprep.mubr.bf16.mxu0 %v379
      %512 = vmatmul.mubr.bf16.gmra.mxu0 %v376
      %v513 = vpop.f32.mrf.mxu0
      %v514 = vadd.f32 0.0, %v513
      %v515 = vpop.f32.mrf.mxu0
      %v516 = vpop.f32.mrf.mxu0
      %v517 = vpop.f32.mrf.mxu0
      %518 = vdwg.mxu0
      %v551 = vunpack.c.l.b16 %v310
      %v552 = vunpack.c.l.b16 %v311
      %v553 = vunpack.c.l.b16 %v312
      %v554 = vunpack.c.l.b16 %v313
      %v555 = vunpack.c.l.b16 %v314
      %v556 = vunpack.c.l.b16 %v315
      %v557 = vunpack.c.l.b16 %v316
      %v558 = vunpack.c.l.b16 %v317
      %v559 = vunpack.c.l.b16 %v318
      %v560 = vunpack.c.l.b16 %v319
      %v561 = vunpack.c.l.b16 %v320
      %v562 = vunpack.c.l.b16 %v321
      %v563 = vunpack.c.l.b16 %v322
      %v564 = vunpack.c.l.b16 %v323
      %v565 = vunpack.c.l.b16 %v324
      %v566 = vunpack.c.l.b16 %v325
      %v567 = vunpack.c.l.b16 %v326
      %v568 = vunpack.c.l.b16 %v327
      %v569 = vunpack.c.l.b16 %v328
      %v570 = vunpack.c.l.b16 %v329
      %v571 = vunpack.c.l.b16 %v330
      %v572 = vunpack.c.l.b16 %v331
      %v573 = vunpack.c.l.b16 %v332
      %v574 = vunpack.c.l.b16 %v333
      %v575 = vunpack.c.l.b16 %v334
      %v576 = vunpack.c.l.b16 %v335
      %v577 = vunpack.c.l.b16 %v336
      %v578 = vunpack.c.l.b16 %v337
      %v579 = vunpack.c.l.b16 %v338
      %v580 = vunpack.c.l.b16 %v339
      %v581 = vunpack.c.l.b16 %v340
      %v582 = vunpack.c.l.b16 %v341
      %v583 = vpack.c.b16 %v552, %v551
      %v584 = vpack.c.b16 %v554, %v553
      %v585 = vpack.c.b16 %v556, %v555
      %v586 = vpack.c.b16 %v558, %v557
      %v587 = vpack.c.b16 %v560, %v559
      %v588 = vpack.c.b16 %v562, %v561
      %v589 = vpack.c.b16 %v564, %v563
      %v590 = vpack.c.b16 %v566, %v565
      %v591 = vpack.c.b16 %v568, %v567
      %v592 = vpack.c.b16 %v570, %v569
      %v593 = vpack.c.b16 %v572, %v571
      %v594 = vpack.c.b16 %v574, %v573
      %v595 = vpack.c.b16 %v576, %v575
      %v596 = vpack.c.b16 %v578, %v577
      %v597 = vpack.c.b16 %v580, %v579
      %v598 = vpack.c.b16 %v582, %v581
      %615 = vmatprep.subr.bf16.mxu0 0
      %616 = vmatpush1.bf16.msra.mxu0 %v590
      %617 = vmatprep.subr.bf16.mxu0 0
      %618 = vmatpush1.bf16.msra.mxu0 %v589
      %619 = vmatprep.subr.bf16.mxu0 0
      %620 = vmatpush1.bf16.msra.mxu0 %v588
      %621 = vmatprep.subr.bf16.mxu0 0
      %622 = vmatpush1.bf16.msra.mxu0 %v587
      %623 = vmatprep.subr.bf16.mxu0 0
      %624 = vmatpush1.bf16.msra.mxu0 %v586
      %625 = vmatprep.subr.bf16.mxu0 0
      %626 = vmatpush1.bf16.msra.mxu0 %v585
      %627 = vmatprep.subr.bf16.mxu0 0
      %628 = vmatpush1.bf16.msra.mxu0 %v584
      %629 = vmatprep.subr.bf16.mxu0 0
      %630 = vmatpush1.bf16.msra.mxu0 %v583
      %631 = vmatprep.subr.bf16.mxu0 0
      %632 = vmatpush2.bf16.msra.mxu0 %v598
      %633 = vmatprep.subr.bf16.mxu0 0
      %634 = vmatpush2.bf16.msra.mxu0 %v597
      %635 = vmatprep.subr.bf16.mxu0 0
      %636 = vmatpush2.bf16.msra.mxu0 %v596
      %637 = vmatprep.subr.bf16.mxu0 0
      %638 = vmatpush2.bf16.msra.mxu0 %v595
      %639 = vmatprep.subr.bf16.mxu0 0
      %640 = vmatpush2.bf16.msra.mxu0 %v594
      %641 = vmatprep.subr.bf16.mxu0 0
      %642 = vmatpush2.bf16.msra.mxu0 %v593
      %643 = vmatprep.subr.bf16.mxu0 0
      %644 = vmatpush2.bf16.msra.mxu0 %v592
      %645 = vmatprep.subr.bf16.mxu0 0
      %646 = vmatpush2.bf16.msra.mxu0 %v591
      %647 = vmatprep.mubr.bf16.mxu0 %v303
      %648 = vmatmul.mubr.bf16.gmra.mxu0 %v302
      %v649 = vpop.f32.mrf.mxu0
      %v650 = vadd.f32 %v514, %v649
      %v651 = vpop.f32.mrf.mxu0
      %v652 = vpop.f32.mrf.mxu0
      %v653 = vpop.f32.mrf.mxu0
      %654 = vdwg.mxu0
      %s655 = scalar_lea.vmem %s1, 256
      %v656 = vld [vmem:[%s655] sm:$0xf]
      %v657 = vld [vmem:[%s655 + $0x4] sm:$0xf]
      %v658 = vld [vmem:[%s655 + $0x8] sm:$0xf]
      %v659 = vld [vmem:[%s655 + $0xc] sm:$0xf]
      %v660 = vld [vmem:[%s655 + $0x10] sm:$0xf]
      %v661 = vld [vmem:[%s655 + $0x14] sm:$0xf]
      %v662 = vld [vmem:[%s655 + $0x18] sm:$0xf]
      %v663 = vld [vmem:[%s655 + $0x1c] sm:$0xf]
      %v664 = vld [vmem:[%s655 + $0x20] sm:$0xf]
      %v665 = vld [vmem:[%s655 + $0x24] sm:$0xf]
      %v666 = vld [vmem:[%s655 + $0x28] sm:$0xf]
      %v667 = vld [vmem:[%s655 + $0x2c] sm:$0xf]
      %v668 = vld [vmem:[%s655 + $0x30] sm:$0xf]
      %v669 = vld [vmem:[%s655 + $0x34] sm:$0xf]
      %v670 = vld [vmem:[%s655 + $0x38] sm:$0xf]
      %v671 = vld [vmem:[%s655 + $0x3c] sm:$0xf]
      %v672 = vld [vmem:[%s655 + $0x40] sm:$0xf]
      %v673 = vld [vmem:[%s655 + $0x44] sm:$0xf]
      %v674 = vld [vmem:[%s655 + $0x48] sm:$0xf]
      %v675 = vld [vmem:[%s655 + $0x4c] sm:$0xf]
      %v676 = vld [vmem:[%s655 + $0x50] sm:$0xf]
      %v677 = vld [vmem:[%s655 + $0x54] sm:$0xf]
      %v678 = vld [vmem:[%s655 + $0x58] sm:$0xf]
      %v679 = vld [vmem:[%s655 + $0x5c] sm:$0xf]
      %v680 = vld [vmem:[%s655 + $0x60] sm:$0xf]
      %v681 = vld [vmem:[%s655 + $0x64] sm:$0xf]
      %v682 = vld [vmem:[%s655 + $0x68] sm:$0xf]
      %v683 = vld [vmem:[%s655 + $0x6c] sm:$0xf]
      %v684 = vld [vmem:[%s655 + $0x70] sm:$0xf]
      %v685 = vld [vmem:[%s655 + $0x74] sm:$0xf]
      %v686 = vld [vmem:[%s655 + $0x78] sm:$0xf]
      %v687 = vld [vmem:[%s655 + $0x7c] sm:$0xf]
      %v690 = vrot.slane %v302, 1
      %v691 = vrot.slane %v303, 1
      %v726 = vunpack.c.l.b16 %v656
      %v727 = vunpack.c.l.b16 %v657
      %v728 = vunpack.c.l.b16 %v658
      %v729 = vunpack.c.l.b16 %v659
      %v730 = vunpack.c.l.b16 %v660
      %v731 = vunpack.c.l.b16 %v661
      %v732 = vunpack.c.l.b16 %v662
      %v733 = vunpack.c.l.b16 %v663
      %v734 = vunpack.c.l.b16 %v664
      %v735 = vunpack.c.l.b16 %v665
      %v736 = vunpack.c.l.b16 %v666
      %v737 = vunpack.c.l.b16 %v667
      %v738 = vunpack.c.l.b16 %v668
      %v739 = vunpack.c.l.b16 %v669
      %v740 = vunpack.c.l.b16 %v670
      %v741 = vunpack.c.l.b16 %v671
      %v742 = vunpack.c.l.b16 %v672
      %v743 = vunpack.c.l.b16 %v673
      %v744 = vunpack.c.l.b16 %v674
      %v745 = vunpack.c.l.b16 %v675
      %v746 = vunpack.c.l.b16 %v676
      %v747 = vunpack.c.l.b16 %v677
      %v748 = vunpack.c.l.b16 %v678
      %v749 = vunpack.c.l.b16 %v679
      %v750 = vunpack.c.l.b16 %v680
      %v751 = vunpack.c.l.b16 %v681
      %v752 = vunpack.c.l.b16 %v682
      %v753 = vunpack.c.l.b16 %v683
      %v754 = vunpack.c.l.b16 %v684
      %v755 = vunpack.c.l.b16 %v685
      %v756 = vunpack.c.l.b16 %v686
      %v757 = vunpack.c.l.b16 %v687
      %v758 = vpack.c.b16 %v727, %v726
      %v759 = vpack.c.b16 %v729, %v728
      %v760 = vpack.c.b16 %v731, %v730
      %v761 = vpack.c.b16 %v733, %v732
      %v762 = vpack.c.b16 %v735, %v734
      %v763 = vpack.c.b16 %v737, %v736
      %v764 = vpack.c.b16 %v739, %v738
      %v765 = vpack.c.b16 %v741, %v740
      %v766 = vpack.c.b16 %v743, %v742
      %v767 = vpack.c.b16 %v745, %v744
      %v768 = vpack.c.b16 %v747, %v746
      %v769 = vpack.c.b16 %v749, %v748
      %v770 = vpack.c.b16 %v751, %v750
      %v771 = vpack.c.b16 %v753, %v752
      %v772 = vpack.c.b16 %v755, %v754
      %v773 = vpack.c.b16 %v757, %v756
      %790 = vmatprep.subr.bf16.mxu0 0
      %791 = vmatpush1.bf16.msra.mxu0 %v765
      %792 = vmatprep.subr.bf16.mxu0 0
      %793 = vmatpush1.bf16.msra.mxu0 %v764
      %794 = vmatprep.subr.bf16.mxu0 0
      %795 = vmatpush1.bf16.msra.mxu0 %v763
      %796 = vmatprep.subr.bf16.mxu0 0
      %797 = vmatpush1.bf16.msra.mxu0 %v762
      %798 = vmatprep.subr.bf16.mxu0 0
      %799 = vmatpush1.bf16.msra.mxu0 %v761
      %800 = vmatprep.subr.bf16.mxu0 0
      %801 = vmatpush1.bf16.msra.mxu0 %v760
      %802 = vmatprep.subr.bf16.mxu0 0
      %803 = vmatpush1.bf16.msra.mxu0 %v759
      %804 = vmatprep.subr.bf16.mxu0 0
      %805 = vmatpush1.bf16.msra.mxu0 %v758
      %806 = vmatprep.subr.bf16.mxu0 0
      %807 = vmatpush2.bf16.msra.mxu0 %v773
      %808 = vmatprep.subr.bf16.mxu0 0
      %809 = vmatpush2.bf16.msra.mxu0 %v772
      %810 = vmatprep.subr.bf16.mxu0 0
      %811 = vmatpush2.bf16.msra.mxu0 %v771
      %812 = vmatprep.subr.bf16.mxu0 0
      %813 = vmatpush2.bf16.msra.mxu0 %v770
      %814 = vmatprep.subr.bf16.mxu0 0
      %815 = vmatpush2.bf16.msra.mxu0 %v769
      %816 = vmatprep.subr.bf16.mxu0 0
      %817 = vmatpush2.bf16.msra.mxu0 %v768
      %818 = vmatprep.subr.bf16.mxu0 0
      %819 = vmatpush2.bf16.msra.mxu0 %v767
      %820 = vmatprep.subr.bf16.mxu0 0
      %821 = vmatpush2.bf16.msra.mxu0 %v766
      %822 = vmatprep.mubr.bf16.mxu0 %v691
      %823 = vmatmul.mubr.bf16.gmra.mxu0 %v690
      %v824 = vpop.f32.mrf.mxu0
      %v825 = vadd.f32 0.0, %v824
      %v826 = vpop.f32.mrf.mxu0
      %v827 = vpop.f32.mrf.mxu0
      %v828 = vpop.f32.mrf.mxu0
      %829 = vdwg.mxu0
      %v830 = vadd.f32 %v650, %v825
      %s831 = scalar_lea.vmem %s1, 384
      %v832 = vld [vmem:[%s831] sm:$0xf]
      %v833 = vld [vmem:[%s831 + $0x4] sm:$0xf]
      %v834 = vld [vmem:[%s831 + $0x8] sm:$0xf]
      %v835 = vld [vmem:[%s831 + $0xc] sm:$0xf]
      %v836 = vld [vmem:[%s831 + $0x10] sm:$0xf]
      %v837 = vld [vmem:[%s831 + $0x14] sm:$0xf]
      %v838 = vld [vmem:[%s831 + $0x18] sm:$0xf]
      %v839 = vld [vmem:[%s831 + $0x1c] sm:$0xf]
      %v840 = vld [vmem:[%s831 + $0x20] sm:$0xf]
      %v841 = vld [vmem:[%s831 + $0x24] sm:$0xf]
      %v842 = vld [vmem:[%s831 + $0x28] sm:$0xf]
      %v843 = vld [vmem:[%s831 + $0x2c] sm:$0xf]
      %v844 = vld [vmem:[%s831 + $0x30] sm:$0xf]
      %v845 = vld [vmem:[%s831 + $0x34] sm:$0xf]
      %v846 = vld [vmem:[%s831 + $0x38] sm:$0xf]
      %v847 = vld [vmem:[%s831 + $0x3c] sm:$0xf]
      %v848 = vld [vmem:[%s831 + $0x40] sm:$0xf]
      %v849 = vld [vmem:[%s831 + $0x44] sm:$0xf]
      %v850 = vld [vmem:[%s831 + $0x48] sm:$0xf]
      %v851 = vld [vmem:[%s831 + $0x4c] sm:$0xf]
      %v852 = vld [vmem:[%s831 + $0x50] sm:$0xf]
      %v853 = vld [vmem:[%s831 + $0x54] sm:$0xf]
      %v854 = vld [vmem:[%s831 + $0x58] sm:$0xf]
      %v855 = vld [vmem:[%s831 + $0x5c] sm:$0xf]
      %v856 = vld [vmem:[%s831 + $0x60] sm:$0xf]
      %v857 = vld [vmem:[%s831 + $0x64] sm:$0xf]
      %v858 = vld [vmem:[%s831 + $0x68] sm:$0xf]
      %v859 = vld [vmem:[%s831 + $0x6c] sm:$0xf]
      %v860 = vld [vmem:[%s831 + $0x70] sm:$0xf]
      %v861 = vld [vmem:[%s831 + $0x74] sm:$0xf]
      %v862 = vld [vmem:[%s831 + $0x78] sm:$0xf]
      %v863 = vld [vmem:[%s831 + $0x7c] sm:$0xf]
      %v864 = vrot.slane %v376, 1
      %v865 = vrot.slane %v379, 1
      %v900 = vunpack.c.l.b16 %v832
      %v901 = vunpack.c.l.b16 %v833
      %v902 = vunpack.c.l.b16 %v834
      %v903 = vunpack.c.l.b16 %v835
      %v904 = vunpack.c.l.b16 %v836
      %v905 = vunpack.c.l.b16 %v837
      %v906 = vunpack.c.l.b16 %v838
      %v907 = vunpack.c.l.b16 %v839
      %v908 = vunpack.c.l.b16 %v840
      %v909 = vunpack.c.l.b16 %v841
      %v910 = vunpack.c.l.b16 %v842
      %v911 = vunpack.c.l.b16 %v843
      %v912 = vunpack.c.l.b16 %v844
      %v913 = vunpack.c.l.b16 %v845
      %v914 = vunpack.c.l.b16 %v846
      %v915 = vunpack.c.l.b16 %v847
      %v916 = vunpack.c.l.b16 %v848
      %v917 = vunpack.c.l.b16 %v849
      %v918 = vunpack.c.l.b16 %v850
      %v919 = vunpack.c.l.b16 %v851
      %v920 = vunpack.c.l.b16 %v852
      %v921 = vunpack.c.l.b16 %v853
      %v922 = vunpack.c.l.b16 %v854
      %v923 = vunpack.c.l.b16 %v855
      %v924 = vunpack.c.l.b16 %v856
      %v925 = vunpack.c.l.b16 %v857
      %v926 = vunpack.c.l.b16 %v858
      %v927 = vunpack.c.l.b16 %v859
      %v928 = vunpack.c.l.b16 %v860
      %v929 = vunpack.c.l.b16 %v861
      %v930 = vunpack.c.l.b16 %v862
      %v931 = vunpack.c.l.b16 %v863
      %v932 = vpack.c.b16 %v901, %v900
      %v933 = vpack.c.b16 %v903, %v902
      %v934 = vpack.c.b16 %v905, %v904
      %v935 = vpack.c.b16 %v907, %v906
      %v936 = vpack.c.b16 %v909, %v908
      %v937 = vpack.c.b16 %v911, %v910
      %v938 = vpack.c.b16 %v913, %v912
      %v939 = vpack.c.b16 %v915, %v914
      %v940 = vpack.c.b16 %v917, %v916
      %v941 = vpack.c.b16 %v919, %v918
      %v942 = vpack.c.b16 %v921, %v920
      %v943 = vpack.c.b16 %v923, %v922
      %v944 = vpack.c.b16 %v925, %v924
      %v945 = vpack.c.b16 %v927, %v926
      %v946 = vpack.c.b16 %v929, %v928
      %v947 = vpack.c.b16 %v931, %v930
      %964 = vmatprep.subr.bf16.mxu0 0
      %965 = vmatpush1.bf16.msra.mxu0 %v939
      %966 = vmatprep.subr.bf16.mxu0 0
      %967 = vmatpush1.bf16.msra.mxu0 %v938
      %968 = vmatprep.subr.bf16.mxu0 0
      %969 = vmatpush1.bf16.msra.mxu0 %v937
      %970 = vmatprep.subr.bf16.mxu0 0
      %971 = vmatpush1.bf16.msra.mxu0 %v936
      %972 = vmatprep.subr.bf16.mxu0 0
      %973 = vmatpush1.bf16.msra.mxu0 %v935
      %974 = vmatprep.subr.bf16.mxu0 0
      %975 = vmatpush1.bf16.msra.mxu0 %v934
      %976 = vmatprep.subr.bf16.mxu0 0
      %977 = vmatpush1.bf16.msra.mxu0 %v933
      %978 = vmatprep.subr.bf16.mxu0 0
      %979 = vmatpush1.bf16.msra.mxu0 %v932
      %980 = vmatprep.subr.bf16.mxu0 0
      %981 = vmatpush2.bf16.msra.mxu0 %v947
      %982 = vmatprep.subr.bf16.mxu0 0
      %983 = vmatpush2.bf16.msra.mxu0 %v946
      %984 = vmatprep.subr.bf16.mxu0 0
      %985 = vmatpush2.bf16.msra.mxu0 %v945
      %986 = vmatprep.subr.bf16.mxu0 0
      %987 = vmatpush2.bf16.msra.mxu0 %v944
      %988 = vmatprep.subr.bf16.mxu0 0
      %989 = vmatpush2.bf16.msra.mxu0 %v943
      %990 = vmatprep.subr.bf16.mxu0 0
      %991 = vmatpush2.bf16.msra.mxu0 %v942
      %992 = vmatprep.subr.bf16.mxu0 0
      %993 = vmatpush2.bf16.msra.mxu0 %v941
      %994 = vmatprep.subr.bf16.mxu0 0
      %995 = vmatpush2.bf16.msra.mxu0 %v940
      %996 = vmatprep.mubr.bf16.mxu0 %v865
      %997 = vmatmul.mubr.bf16.gmra.mxu0 %v864
      %v998 = vpop.f32.mrf.mxu0
      %v999 = vadd.f32 0.0, %v998
      %v1000 = vpop.f32.mrf.mxu0
      %v1001 = vpop.f32.mrf.mxu0
      %v1002 = vpop.f32.mrf.mxu0
      %1003 = vdwg.mxu0
      %v1004 = vadd.f32 %v830, %v999
      %s1005 = scalar_lea.vmem %s1, 512
      %v1006 = vld [vmem:[%s1005] sm:$0xf]
      %v1007 = vld [vmem:[%s1005 + $0x4] sm:$0xf]
      %v1008 = vld [vmem:[%s1005 + $0x8] sm:$0xf]
      %v1009 = vld [vmem:[%s1005 + $0xc] sm:$0xf]
      %v1010 = vld [vmem:[%s1005 + $0x10] sm:$0xf]
      %v1011 = vld [vmem:[%s1005 + $0x14] sm:$0xf]
      %v1012 = vld [vmem:[%s1005 + $0x18] sm:$0xf]
      %v1013 = vld [vmem:[%s1005 + $0x1c] sm:$0xf]
      %v1014 = vld [vmem:[%s1005 + $0x20] sm:$0xf]
      %v1015 = vld [vmem:[%s1005 + $0x24] sm:$0xf]
      %v1016 = vld [vmem:[%s1005 + $0x28] sm:$0xf]
      %v1017 = vld [vmem:[%s1005 + $0x2c] sm:$0xf]
      %v1018 = vld [vmem:[%s1005 + $0x30] sm:$0xf]
      %v1019 = vld [vmem:[%s1005 + $0x34] sm:$0xf]
      %v1020 = vld [vmem:[%s1005 + $0x38] sm:$0xf]
      %v1021 = vld [vmem:[%s1005 + $0x3c] sm:$0xf]
      %v1022 = vld [vmem:[%s1005 + $0x40] sm:$0xf]
      %v1023 = vld [vmem:[%s1005 + $0x44] sm:$0xf]
      %v1024 = vld [vmem:[%s1005 + $0x48] sm:$0xf]
      %v1025 = vld [vmem:[%s1005 + $0x4c] sm:$0xf]
      %v1026 = vld [vmem:[%s1005 + $0x50] sm:$0xf]
      %v1027 = vld [vmem:[%s1005 + $0x54] sm:$0xf]
      %v1028 = vld [vmem:[%s1005 + $0x58] sm:$0xf]
      %v1029 = vld [vmem:[%s1005 + $0x5c] sm:$0xf]
      %v1030 = vld [vmem:[%s1005 + $0x60] sm:$0xf]
      %v1031 = vld [vmem:[%s1005 + $0x64] sm:$0xf]
      %v1032 = vld [vmem:[%s1005 + $0x68] sm:$0xf]
      %v1033 = vld [vmem:[%s1005 + $0x6c] sm:$0xf]
      %v1034 = vld [vmem:[%s1005 + $0x70] sm:$0xf]
      %v1035 = vld [vmem:[%s1005 + $0x74] sm:$0xf]
      %v1036 = vld [vmem:[%s1005 + $0x78] sm:$0xf]
      %v1037 = vld [vmem:[%s1005 + $0x7c] sm:$0xf]
      %v1070 = vunpack.c.l.b16 %v1006
      %v1071 = vunpack.c.l.b16 %v1007
      %v1072 = vunpack.c.l.b16 %v1008
      %v1073 = vunpack.c.l.b16 %v1009
      %v1074 = vunpack.c.l.b16 %v1010
      %v1075 = vunpack.c.l.b16 %v1011
      %v1076 = vunpack.c.l.b16 %v1012
      %v1077 = vunpack.c.l.b16 %v1013
      %v1078 = vunpack.c.l.b16 %v1014
      %v1079 = vunpack.c.l.b16 %v1015
      %v1080 = vunpack.c.l.b16 %v1016
      %v1081 = vunpack.c.l.b16 %v1017
      %v1082 = vunpack.c.l.b16 %v1018
      %v1083 = vunpack.c.l.b16 %v1019
      %v1084 = vunpack.c.l.b16 %v1020
      %v1085 = vunpack.c.l.b16 %v1021
      %v1086 = vunpack.c.l.b16 %v1022
      %v1087 = vunpack.c.l.b16 %v1023
      %v1088 = vunpack.c.l.b16 %v1024
      %v1089 = vunpack.c.l.b16 %v1025
      %v1090 = vunpack.c.l.b16 %v1026
      %v1091 = vunpack.c.l.b16 %v1027
      %v1092 = vunpack.c.l.b16 %v1028
      %v1093 = vunpack.c.l.b16 %v1029
      %v1094 = vunpack.c.l.b16 %v1030
      %v1095 = vunpack.c.l.b16 %v1031
      %v1096 = vunpack.c.l.b16 %v1032
      %v1097 = vunpack.c.l.b16 %v1033
      %v1098 = vunpack.c.l.b16 %v1034
      %v1099 = vunpack.c.l.b16 %v1035
      %v1100 = vunpack.c.l.b16 %v1036
      %v1101 = vunpack.c.l.b16 %v1037
      %v1102 = vpack.c.b16 %v1071, %v1070
      %v1103 = vpack.c.b16 %v1073, %v1072
      %v1104 = vpack.c.b16 %v1075, %v1074
      %v1105 = vpack.c.b16 %v1077, %v1076
      %v1106 = vpack.c.b16 %v1079, %v1078
      %v1107 = vpack.c.b16 %v1081, %v1080
      %v1108 = vpack.c.b16 %v1083, %v1082
      %v1109 = vpack.c.b16 %v1085, %v1084
      %v1110 = vpack.c.b16 %v1087, %v1086
      %v1111 = vpack.c.b16 %v1089, %v1088
      %v1112 = vpack.c.b16 %v1091, %v1090
      %v1113 = vpack.c.b16 %v1093, %v1092
      %v1114 = vpack.c.b16 %v1095, %v1094
      %v1115 = vpack.c.b16 %v1097, %v1096
      %v1116 = vpack.c.b16 %v1099, %v1098
      %v1117 = vpack.c.b16 %v1101, %v1100
      %1134 = vmatprep.subr.bf16.mxu0 0
      %1135 = vmatpush1.bf16.msra.mxu0 %v1109
      %1136 = vmatprep.subr.bf16.mxu0 0
      %1137 = vmatpush1.bf16.msra.mxu0 %v1108
      %1138 = vmatprep.subr.bf16.mxu0 0
      %1139 = vmatpush1.bf16.msra.mxu0 %v1107
      %1140 = vmatprep.subr.bf16.mxu0 0
      %1141 = vmatpush1.bf16.msra.mxu0 %v1106
      %1142 = vmatprep.subr.bf16.mxu0 0
      %1143 = vmatpush1.bf16.msra.mxu0 %v1105
      %1144 = vmatprep.subr.bf16.mxu0 0
      %1145 = vmatpush1.bf16.msra.mxu0 %v1104
      %1146 = vmatprep.subr.bf16.mxu0 0
      %1147 = vmatpush1.bf16.msra.mxu0 %v1103
      %1148 = vmatprep.subr.bf16.mxu0 0
      %1149 = vmatpush1.bf16.msra.mxu0 %v1102
      %1150 = vmatprep.subr.bf16.mxu0 0
      %1151 = vmatpush2.bf16.msra.mxu0 %v1117
      %1152 = vmatprep.subr.bf16.mxu0 0
      %1153 = vmatpush2.bf16.msra.mxu0 %v1116
      %1154 = vmatprep.subr.bf16.mxu0 0
      %1155 = vmatpush2.bf16.msra.mxu0 %v1115
      %1156 = vmatprep.subr.bf16.mxu0 0
      %1157 = vmatpush2.bf16.msra.mxu0 %v1114
      %1158 = vmatprep.subr.bf16.mxu0 0
      %1159 = vmatpush2.bf16.msra.mxu0 %v1113
      %1160 = vmatprep.subr.bf16.mxu0 0
      %1161 = vmatpush2.bf16.msra.mxu0 %v1112
      %1162 = vmatprep.subr.bf16.mxu0 0
      %1163 = vmatpush2.bf16.msra.mxu0 %v1111
      %1164 = vmatprep.subr.bf16.mxu0 0
      %1165 = vmatpush2.bf16.msra.mxu0 %v1110
      %1166 = vmatprep.mubr.bf16.mxu0 %v305
      %1167 = vmatmul.mubr.bf16.gmra.mxu0 %v304
      %v1168 = vpop.f32.mrf.mxu0
      %v1169 = vadd.f32 0.0, %v1168
      %v1170 = vpop.f32.mrf.mxu0
      %v1171 = vpop.f32.mrf.mxu0
      %v1172 = vpop.f32.mrf.mxu0
      %1173 = vdwg.mxu0
      %v1174 = vadd.f32 %v1004, %v1169
      %s1175 = scalar_lea.vmem %s1, 640
      %v1176 = vld [vmem:[%s1175] sm:$0xf]
      %v1177 = vld [vmem:[%s1175 + $0x4] sm:$0xf]
      %v1178 = vld [vmem:[%s1175 + $0x8] sm:$0xf]
      %v1179 = vld [vmem:[%s1175 + $0xc] sm:$0xf]
      %v1180 = vld [vmem:[%s1175 + $0x10] sm:$0xf]
      %v1181 = vld [vmem:[%s1175 + $0x14] sm:$0xf]
      %v1182 = vld [vmem:[%s1175 + $0x18] sm:$0xf]
      %v1183 = vld [vmem:[%s1175 + $0x1c] sm:$0xf]
      %v1184 = vld [vmem:[%s1175 + $0x20] sm:$0xf]
      %v1185 = vld [vmem:[%s1175 + $0x24] sm:$0xf]
      %v1186 = vld [vmem:[%s1175 + $0x28] sm:$0xf]
      %v1187 = vld [vmem:[%s1175 + $0x2c] sm:$0xf]
      %v1188 = vld [vmem:[%s1175 + $0x30] sm:$0xf]
      %v1189 = vld [vmem:[%s1175 + $0x34] sm:$0xf]
      %v1190 = vld [vmem:[%s1175 + $0x38] sm:$0xf]
      %v1191 = vld [vmem:[%s1175 + $0x3c] sm:$0xf]
      %v1192 = vld [vmem:[%s1175 + $0x40] sm:$0xf]
      %v1193 = vld [vmem:[%s1175 + $0x44] sm:$0xf]
      %v1194 = vld [vmem:[%s1175 + $0x48] sm:$0xf]
      %v1195 = vld [vmem:[%s1175 + $0x4c] sm:$0xf]
      %v1196 = vld [vmem:[%s1175 + $0x50] sm:$0xf]
      %v1197 = vld [vmem:[%s1175 + $0x54] sm:$0xf]
      %v1198 = vld [vmem:[%s1175 + $0x58] sm:$0xf]
      %v1199 = vld [vmem:[%s1175 + $0x5c] sm:$0xf]
      %v1200 = vld [vmem:[%s1175 + $0x60] sm:$0xf]
      %v1201 = vld [vmem:[%s1175 + $0x64] sm:$0xf]
      %v1202 = vld [vmem:[%s1175 + $0x68] sm:$0xf]
      %v1203 = vld [vmem:[%s1175 + $0x6c] sm:$0xf]
      %v1204 = vld [vmem:[%s1175 + $0x70] sm:$0xf]
      %v1205 = vld [vmem:[%s1175 + $0x74] sm:$0xf]
      %v1206 = vld [vmem:[%s1175 + $0x78] sm:$0xf]
      %v1207 = vld [vmem:[%s1175 + $0x7c] sm:$0xf]
      %v1209 = vshrl.u32 %v304, 16
      %v1212 = vshrl.u32 %v305, 16
      %v1248 = vunpack.c.l.b16 %v1176
      %v1249 = vunpack.c.l.b16 %v1177
      %v1250 = vunpack.c.l.b16 %v1178
      %v1251 = vunpack.c.l.b16 %v1179
      %v1252 = vunpack.c.l.b16 %v1180
      %v1253 = vunpack.c.l.b16 %v1181
      %v1254 = vunpack.c.l.b16 %v1182
      %v1255 = vunpack.c.l.b16 %v1183
      %v1256 = vunpack.c.l.b16 %v1184
      %v1257 = vunpack.c.l.b16 %v1185
      %v1258 = vunpack.c.l.b16 %v1186
      %v1259 = vunpack.c.l.b16 %v1187
      %v1260 = vunpack.c.l.b16 %v1188
      %v1261 = vunpack.c.l.b16 %v1189
      %v1262 = vunpack.c.l.b16 %v1190
      %v1263 = vunpack.c.l.b16 %v1191
      %v1264 = vunpack.c.l.b16 %v1192
      %v1265 = vunpack.c.l.b16 %v1193
      %v1266 = vunpack.c.l.b16 %v1194
      %v1267 = vunpack.c.l.b16 %v1195
      %v1268 = vunpack.c.l.b16 %v1196
      %v1269 = vunpack.c.l.b16 %v1197
      %v1270 = vunpack.c.l.b16 %v1198
      %v1271 = vunpack.c.l.b16 %v1199
      %v1272 = vunpack.c.l.b16 %v1200
      %v1273 = vunpack.c.l.b16 %v1201
      %v1274 = vunpack.c.l.b16 %v1202
      %v1275 = vunpack.c.l.b16 %v1203
      %v1276 = vunpack.c.l.b16 %v1204
      %v1277 = vunpack.c.l.b16 %v1205
      %v1278 = vunpack.c.l.b16 %v1206
      %v1279 = vunpack.c.l.b16 %v1207
      %v1280 = vpack.c.b16 %v1249, %v1248
      %v1281 = vpack.c.b16 %v1251, %v1250
      %v1282 = vpack.c.b16 %v1253, %v1252
      %v1283 = vpack.c.b16 %v1255, %v1254
      %v1284 = vpack.c.b16 %v1257, %v1256
      %v1285 = vpack.c.b16 %v1259, %v1258
      %v1286 = vpack.c.b16 %v1261, %v1260
      %v1287 = vpack.c.b16 %v1263, %v1262
      %v1288 = vpack.c.b16 %v1265, %v1264
      %v1289 = vpack.c.b16 %v1267, %v1266
      %v1290 = vpack.c.b16 %v1269, %v1268
      %v1291 = vpack.c.b16 %v1271, %v1270
      %v1292 = vpack.c.b16 %v1273, %v1272
      %v1293 = vpack.c.b16 %v1275, %v1274
      %v1294 = vpack.c.b16 %v1277, %v1276
      %v1295 = vpack.c.b16 %v1279, %v1278
      %1312 = vmatprep.subr.bf16.mxu0 0
      %1313 = vmatpush1.bf16.msra.mxu0 %v1287
      %1314 = vmatprep.subr.bf16.mxu0 0
      %1315 = vmatpush1.bf16.msra.mxu0 %v1286
      %1316 = vmatprep.subr.bf16.mxu0 0
      %1317 = vmatpush1.bf16.msra.mxu0 %v1285
      %1318 = vmatprep.subr.bf16.mxu0 0
      %1319 = vmatpush1.bf16.msra.mxu0 %v1284
      %1320 = vmatprep.subr.bf16.mxu0 0
      %1321 = vmatpush1.bf16.msra.mxu0 %v1283
      %1322 = vmatprep.subr.bf16.mxu0 0
      %1323 = vmatpush1.bf16.msra.mxu0 %v1282
      %1324 = vmatprep.subr.bf16.mxu0 0
      %1325 = vmatpush1.bf16.msra.mxu0 %v1281
      %1326 = vmatprep.subr.bf16.mxu0 0
      %1327 = vmatpush1.bf16.msra.mxu0 %v1280
      %1328 = vmatprep.subr.bf16.mxu0 0
      %1329 = vmatpush2.bf16.msra.mxu0 %v1295
      %1330 = vmatprep.subr.bf16.mxu0 0
      %1331 = vmatpush2.bf16.msra.mxu0 %v1294
      %1332 = vmatprep.subr.bf16.mxu0 0
      %1333 = vmatpush2.bf16.msra.mxu0 %v1293
      %1334 = vmatprep.subr.bf16.mxu0 0
      %1335 = vmatpush2.bf16.msra.mxu0 %v1292
      %1336 = vmatprep.subr.bf16.mxu0 0
      %1337 = vmatpush2.bf16.msra.mxu0 %v1291
      %1338 = vmatprep.subr.bf16.mxu0 0
      %1339 = vmatpush2.bf16.msra.mxu0 %v1290
      %1340 = vmatprep.subr.bf16.mxu0 0
      %1341 = vmatpush2.bf16.msra.mxu0 %v1289
      %1342 = vmatprep.subr.bf16.mxu0 0
      %1343 = vmatpush2.bf16.msra.mxu0 %v1288
      %1344 = vmatprep.mubr.bf16.mxu0 %v1212
      %1345 = vmatmul.mubr.bf16.gmra.mxu0 %v1209
      %v1346 = vpop.f32.mrf.mxu0
      %v1347 = vadd.f32 0.0, %v1346
      %v1348 = vpop.f32.mrf.mxu0
      %v1349 = vpop.f32.mrf.mxu0
      %v1350 = vpop.f32.mrf.mxu0
      %1351 = vdwg.mxu0
      %v1352 = vadd.f32 %v1174, %v1347
      %s1353 = scalar_lea.vmem %s1, 768
      %v1354 = vld [vmem:[%s1353] sm:$0xf]
      %v1355 = vld [vmem:[%s1353 + $0x4] sm:$0xf]
      %v1356 = vld [vmem:[%s1353 + $0x8] sm:$0xf]
      %v1357 = vld [vmem:[%s1353 + $0xc] sm:$0xf]
      %v1358 = vld [vmem:[%s1353 + $0x10] sm:$0xf]
      %v1359 = vld [vmem:[%s1353 + $0x14] sm:$0xf]
      %v1360 = vld [vmem:[%s1353 + $0x18] sm:$0xf]
      %v1361 = vld [vmem:[%s1353 + $0x1c] sm:$0xf]
      %v1362 = vld [vmem:[%s1353 + $0x20] sm:$0xf]
      %v1363 = vld [vmem:[%s1353 + $0x24] sm:$0xf]
      %v1364 = vld [vmem:[%s1353 + $0x28] sm:$0xf]
      %v1365 = vld [vmem:[%s1353 + $0x2c] sm:$0xf]
      %v1366 = vld [vmem:[%s1353 + $0x30] sm:$0xf]
      %v1367 = vld [vmem:[%s1353 + $0x34] sm:$0xf]
      %v1368 = vld [vmem:[%s1353 + $0x38] sm:$0xf]
      %v1369 = vld [vmem:[%s1353 + $0x3c] sm:$0xf]
      %v1370 = vld [vmem:[%s1353 + $0x40] sm:$0xf]
      %v1371 = vld [vmem:[%s1353 + $0x44] sm:$0xf]
      %v1372 = vld [vmem:[%s1353 + $0x48] sm:$0xf]
      %v1373 = vld [vmem:[%s1353 + $0x4c] sm:$0xf]
      %v1374 = vld [vmem:[%s1353 + $0x50] sm:$0xf]
      %v1375 = vld [vmem:[%s1353 + $0x54] sm:$0xf]
      %v1376 = vld [vmem:[%s1353 + $0x58] sm:$0xf]
      %v1377 = vld [vmem:[%s1353 + $0x5c] sm:$0xf]
      %v1378 = vld [vmem:[%s1353 + $0x60] sm:$0xf]
      %v1379 = vld [vmem:[%s1353 + $0x64] sm:$0xf]
      %v1380 = vld [vmem:[%s1353 + $0x68] sm:$0xf]
      %v1381 = vld [vmem:[%s1353 + $0x6c] sm:$0xf]
      %v1382 = vld [vmem:[%s1353 + $0x70] sm:$0xf]
      %v1383 = vld [vmem:[%s1353 + $0x74] sm:$0xf]
      %v1384 = vld [vmem:[%s1353 + $0x78] sm:$0xf]
      %v1385 = vld [vmem:[%s1353 + $0x7c] sm:$0xf]
      %v1388 = vrot.slane %v304, 1
      %v1389 = vrot.slane %v305, 1
      %v1424 = vunpack.c.l.b16 %v1354
      %v1425 = vunpack.c.l.b16 %v1355
      %v1426 = vunpack.c.l.b16 %v1356
      %v1427 = vunpack.c.l.b16 %v1357
      %v1428 = vunpack.c.l.b16 %v1358
      %v1429 = vunpack.c.l.b16 %v1359
      %v1430 = vunpack.c.l.b16 %v1360
      %v1431 = vunpack.c.l.b16 %v1361
      %v1432 = vunpack.c.l.b16 %v1362
      %v1433 = vunpack.c.l.b16 %v1363
      %v1434 = vunpack.c.l.b16 %v1364
      %v1435 = vunpack.c.l.b16 %v1365
      %v1436 = vunpack.c.l.b16 %v1366
      %v1437 = vunpack.c.l.b16 %v1367
      %v1438 = vunpack.c.l.b16 %v1368
      %v1439 = vunpack.c.l.b16 %v1369
      %v1440 = vunpack.c.l.b16 %v1370
      %v1441 = vunpack.c.l.b16 %v1371
      %v1442 = vunpack.c.l.b16 %v1372
      %v1443 = vunpack.c.l.b16 %v1373
      %v1444 = vunpack.c.l.b16 %v1374
      %v1445 = vunpack.c.l.b16 %v1375
      %v1446 = vunpack.c.l.b16 %v1376
      %v1447 = vunpack.c.l.b16 %v1377
      %v1448 = vunpack.c.l.b16 %v1378
      %v1449 = vunpack.c.l.b16 %v1379
      %v1450 = vunpack.c.l.b16 %v1380
      %v1451 = vunpack.c.l.b16 %v1381
      %v1452 = vunpack.c.l.b16 %v1382
      %v1453 = vunpack.c.l.b16 %v1383
      %v1454 = vunpack.c.l.b16 %v1384
      %v1455 = vunpack.c.l.b16 %v1385
      %v1456 = vpack.c.b16 %v1425, %v1424
      %v1457 = vpack.c.b16 %v1427, %v1426
      %v1458 = vpack.c.b16 %v1429, %v1428
      %v1459 = vpack.c.b16 %v1431, %v1430
      %v1460 = vpack.c.b16 %v1433, %v1432
      %v1461 = vpack.c.b16 %v1435, %v1434
      %v1462 = vpack.c.b16 %v1437, %v1436
      %v1463 = vpack.c.b16 %v1439, %v1438
      %v1464 = vpack.c.b16 %v1441, %v1440
      %v1465 = vpack.c.b16 %v1443, %v1442
      %v1466 = vpack.c.b16 %v1445, %v1444
      %v1467 = vpack.c.b16 %v1447, %v1446
      %v1468 = vpack.c.b16 %v1449, %v1448
      %v1469 = vpack.c.b16 %v1451, %v1450
      %v1470 = vpack.c.b16 %v1453, %v1452
      %v1471 = vpack.c.b16 %v1455, %v1454
      %1488 = vmatprep.subr.bf16.mxu0 0
      %1489 = vmatpush1.bf16.msra.mxu0 %v1463
      %1490 = vmatprep.subr.bf16.mxu0 0
      %1491 = vmatpush1.bf16.msra.mxu0 %v1462
      %1492 = vmatprep.subr.bf16.mxu0 0
      %1493 = vmatpush1.bf16.msra.mxu0 %v1461
      %1494 = vmatprep.subr.bf16.mxu0 0
      %1495 = vmatpush1.bf16.msra.mxu0 %v1460
      %1496 = vmatprep.subr.bf16.mxu0 0
      %1497 = vmatpush1.bf16.msra.mxu0 %v1459
      %1498 = vmatprep.subr.bf16.mxu0 0
      %1499 = vmatpush1.bf16.msra.mxu0 %v1458
      %1500 = vmatprep.subr.bf16.mxu0 0
      %1501 = vmatpush1.bf16.msra.mxu0 %v1457
      %1502 = vmatprep.subr.bf16.mxu0 0
      %1503 = vmatpush1.bf16.msra.mxu0 %v1456
      %1504 = vmatprep.subr.bf16.mxu0 0
      %1505 = vmatpush2.bf16.msra.mxu0 %v1471
      %1506 = vmatprep.subr.bf16.mxu0 0
      %1507 = vmatpush2.bf16.msra.mxu0 %v1470
      %1508 = vmatprep.subr.bf16.mxu0 0
      %1509 = vmatpush2.bf16.msra.mxu0 %v1469
      %1510 = vmatprep.subr.bf16.mxu0 0
      %1511 = vmatpush2.bf16.msra.mxu0 %v1468
      %1512 = vmatprep.subr.bf16.mxu0 0
      %1513 = vmatpush2.bf16.msra.mxu0 %v1467
      %1514 = vmatprep.subr.bf16.mxu0 0
      %1515 = vmatpush2.bf16.msra.mxu0 %v1466
      %1516 = vmatprep.subr.bf16.mxu0 0
      %1517 = vmatpush2.bf16.msra.mxu0 %v1465
      %1518 = vmatprep.subr.bf16.mxu0 0
      %1519 = vmatpush2.bf16.msra.mxu0 %v1464
      %1520 = vmatprep.mubr.bf16.mxu0 %v1389
      %1521 = vmatmul.mubr.bf16.gmra.mxu0 %v1388
      %v1522 = vpop.f32.mrf.mxu0
      %v1523 = vadd.f32 0.0, %v1522
      %v1524 = vpop.f32.mrf.mxu0
      %v1525 = vpop.f32.mrf.mxu0
      %v1526 = vpop.f32.mrf.mxu0
      %1527 = vdwg.mxu0
      %v1528 = vadd.f32 %v1352, %v1523
      %s1529 = scalar_lea.vmem %s1, 896
      %v1530 = vld [vmem:[%s1529] sm:$0xf]
      %v1531 = vld [vmem:[%s1529 + $0x4] sm:$0xf]
      %v1532 = vld [vmem:[%s1529 + $0x8] sm:$0xf]
      %v1533 = vld [vmem:[%s1529 + $0xc] sm:$0xf]
      %v1534 = vld [vmem:[%s1529 + $0x10] sm:$0xf]
      %v1535 = vld [vmem:[%s1529 + $0x14] sm:$0xf]
      %v1536 = vld [vmem:[%s1529 + $0x18] sm:$0xf]
      %v1537 = vld [vmem:[%s1529 + $0x1c] sm:$0xf]
      %v1538 = vld [vmem:[%s1529 + $0x20] sm:$0xf]
      %v1539 = vld [vmem:[%s1529 + $0x24] sm:$0xf]
      %v1540 = vld [vmem:[%s1529 + $0x28] sm:$0xf]
      %v1541 = vld [vmem:[%s1529 + $0x2c] sm:$0xf]
      %v1542 = vld [vmem:[%s1529 + $0x30] sm:$0xf]
      %v1543 = vld [vmem:[%s1529 + $0x34] sm:$0xf]
      %v1544 = vld [vmem:[%s1529 + $0x38] sm:$0xf]
      %v1545 = vld [vmem:[%s1529 + $0x3c] sm:$0xf]
      %v1546 = vld [vmem:[%s1529 + $0x40] sm:$0xf]
      %v1547 = vld [vmem:[%s1529 + $0x44] sm:$0xf]
      %v1548 = vld [vmem:[%s1529 + $0x48] sm:$0xf]
      %v1549 = vld [vmem:[%s1529 + $0x4c] sm:$0xf]
      %v1550 = vld [vmem:[%s1529 + $0x50] sm:$0xf]
      %v1551 = vld [vmem:[%s1529 + $0x54] sm:$0xf]
      %v1552 = vld [vmem:[%s1529 + $0x58] sm:$0xf]
      %v1553 = vld [vmem:[%s1529 + $0x5c] sm:$0xf]
      %v1554 = vld [vmem:[%s1529 + $0x60] sm:$0xf]
      %v1555 = vld [vmem:[%s1529 + $0x64] sm:$0xf]
      %v1556 = vld [vmem:[%s1529 + $0x68] sm:$0xf]
      %v1557 = vld [vmem:[%s1529 + $0x6c] sm:$0xf]
      %v1558 = vld [vmem:[%s1529 + $0x70] sm:$0xf]
      %v1559 = vld [vmem:[%s1529 + $0x74] sm:$0xf]
      %v1560 = vld [vmem:[%s1529 + $0x78] sm:$0xf]
      %v1561 = vld [vmem:[%s1529 + $0x7c] sm:$0xf]
      %v1562 = vrot.slane %v1209, 1
      %v1563 = vrot.slane %v1212, 1
      %v1598 = vunpack.c.l.b16 %v1530
      %v1599 = vunpack.c.l.b16 %v1531
      %v1600 = vunpack.c.l.b16 %v1532
      %v1601 = vunpack.c.l.b16 %v1533
      %v1602 = vunpack.c.l.b16 %v1534
      %v1603 = vunpack.c.l.b16 %v1535
      %v1604 = vunpack.c.l.b16 %v1536
      %v1605 = vunpack.c.l.b16 %v1537
      %v1606 = vunpack.c.l.b16 %v1538
      %v1607 = vunpack.c.l.b16 %v1539
      %v1608 = vunpack.c.l.b16 %v1540
      %v1609 = vunpack.c.l.b16 %v1541
      %v1610 = vunpack.c.l.b16 %v1542
      %v1611 = vunpack.c.l.b16 %v1543
      %v1612 = vunpack.c.l.b16 %v1544
      %v1613 = vunpack.c.l.b16 %v1545
      %v1614 = vunpack.c.l.b16 %v1546
      %v1615 = vunpack.c.l.b16 %v1547
      %v1616 = vunpack.c.l.b16 %v1548
      %v1617 = vunpack.c.l.b16 %v1549
      %v1618 = vunpack.c.l.b16 %v1550
      %v1619 = vunpack.c.l.b16 %v1551
      %v1620 = vunpack.c.l.b16 %v1552
      %v1621 = vunpack.c.l.b16 %v1553
      %v1622 = vunpack.c.l.b16 %v1554
      %v1623 = vunpack.c.l.b16 %v1555
      %v1624 = vunpack.c.l.b16 %v1556
      %v1625 = vunpack.c.l.b16 %v1557
      %v1626 = vunpack.c.l.b16 %v1558
      %v1627 = vunpack.c.l.b16 %v1559
      %v1628 = vunpack.c.l.b16 %v1560
      %v1629 = vunpack.c.l.b16 %v1561
      %v1630 = vpack.c.b16 %v1599, %v1598
      %v1631 = vpack.c.b16 %v1601, %v1600
      %v1632 = vpack.c.b16 %v1603, %v1602
      %v1633 = vpack.c.b16 %v1605, %v1604
      %v1634 = vpack.c.b16 %v1607, %v1606
      %v1635 = vpack.c.b16 %v1609, %v1608
      %v1636 = vpack.c.b16 %v1611, %v1610
      %v1637 = vpack.c.b16 %v1613, %v1612
      %v1638 = vpack.c.b16 %v1615, %v1614
      %v1639 = vpack.c.b16 %v1617, %v1616
      %v1640 = vpack.c.b16 %v1619, %v1618
      %v1641 = vpack.c.b16 %v1621, %v1620
      %v1642 = vpack.c.b16 %v1623, %v1622
      %v1643 = vpack.c.b16 %v1625, %v1624
      %v1644 = vpack.c.b16 %v1627, %v1626
      %v1645 = vpack.c.b16 %v1629, %v1628
      %1662 = vmatprep.subr.bf16.mxu0 0
      %1663 = vmatpush1.bf16.msra.mxu0 %v1637
      %1664 = vmatprep.subr.bf16.mxu0 0
      %1665 = vmatpush1.bf16.msra.mxu0 %v1636
      %1666 = vmatprep.subr.bf16.mxu0 0
      %1667 = vmatpush1.bf16.msra.mxu0 %v1635
      %1668 = vmatprep.subr.bf16.mxu0 0
      %1669 = vmatpush1.bf16.msra.mxu0 %v1634
      %1670 = vmatprep.subr.bf16.mxu0 0
      %1671 = vmatpush1.bf16.msra.mxu0 %v1633
      %1672 = vmatprep.subr.bf16.mxu0 0
      %1673 = vmatpush1.bf16.msra.mxu0 %v1632
      %1674 = vmatprep.subr.bf16.mxu0 0
      %1675 = vmatpush1.bf16.msra.mxu0 %v1631
      %1676 = vmatprep.subr.bf16.mxu0 0
      %1677 = vmatpush1.bf16.msra.mxu0 %v1630
      %1678 = vmatprep.subr.bf16.mxu0 0
      %1679 = vmatpush2.bf16.msra.mxu0 %v1645
      %1680 = vmatprep.subr.bf16.mxu0 0
      %1681 = vmatpush2.bf16.msra.mxu0 %v1644
      %1682 = vmatprep.subr.bf16.mxu0 0
      %1683 = vmatpush2.bf16.msra.mxu0 %v1643
      %1684 = vmatprep.subr.bf16.mxu0 0
      %1685 = vmatpush2.bf16.msra.mxu0 %v1642
      %1686 = vmatprep.subr.bf16.mxu0 0
      %1687 = vmatpush2.bf16.msra.mxu0 %v1641
      %1688 = vmatprep.subr.bf16.mxu0 0
      %1689 = vmatpush2.bf16.msra.mxu0 %v1640
      %1690 = vmatprep.subr.bf16.mxu0 0
      %1691 = vmatpush2.bf16.msra.mxu0 %v1639
      %1692 = vmatprep.subr.bf16.mxu0 0
      %1693 = vmatpush2.bf16.msra.mxu0 %v1638
      %1694 = vmatprep.mubr.bf16.mxu0 %v1563
      %1695 = vmatmul.mubr.bf16.gmra.mxu0 %v1562
      %v1696 = vpop.f32.mrf.mxu0
      %v1697 = vadd.f32 0.0, %v1696
      %v1698 = vpop.f32.mrf.mxu0
      %v1699 = vpop.f32.mrf.mxu0
      %v1700 = vpop.f32.mrf.mxu0
      %1701 = vdwg.mxu0
      %v1702 = vadd.f32 %v1528, %v1697
      %s1703 = scalar_lea.vmem %s1, 1024
      %v1704 = vld [vmem:[%s1703] sm:$0xf]
      %v1705 = vld [vmem:[%s1703 + $0x4] sm:$0xf]
      %v1706 = vld [vmem:[%s1703 + $0x8] sm:$0xf]
      %v1707 = vld [vmem:[%s1703 + $0xc] sm:$0xf]
      %v1708 = vld [vmem:[%s1703 + $0x10] sm:$0xf]
      %v1709 = vld [vmem:[%s1703 + $0x14] sm:$0xf]
      %v1710 = vld [vmem:[%s1703 + $0x18] sm:$0xf]
      %v1711 = vld [vmem:[%s1703 + $0x1c] sm:$0xf]
      %v1712 = vld [vmem:[%s1703 + $0x20] sm:$0xf]
      %v1713 = vld [vmem:[%s1703 + $0x24] sm:$0xf]
      %v1714 = vld [vmem:[%s1703 + $0x28] sm:$0xf]
      %v1715 = vld [vmem:[%s1703 + $0x2c] sm:$0xf]
      %v1716 = vld [vmem:[%s1703 + $0x30] sm:$0xf]
      %v1717 = vld [vmem:[%s1703 + $0x34] sm:$0xf]
      %v1718 = vld [vmem:[%s1703 + $0x38] sm:$0xf]
      %v1719 = vld [vmem:[%s1703 + $0x3c] sm:$0xf]
      %v1720 = vld [vmem:[%s1703 + $0x40] sm:$0xf]
      %v1721 = vld [vmem:[%s1703 + $0x44] sm:$0xf]
      %v1722 = vld [vmem:[%s1703 + $0x48] sm:$0xf]
      %v1723 = vld [vmem:[%s1703 + $0x4c] sm:$0xf]
      %v1724 = vld [vmem:[%s1703 + $0x50] sm:$0xf]
      %v1725 = vld [vmem:[%s1703 + $0x54] sm:$0xf]
      %v1726 = vld [vmem:[%s1703 + $0x58] sm:$0xf]
      %v1727 = vld [vmem:[%s1703 + $0x5c] sm:$0xf]
      %v1728 = vld [vmem:[%s1703 + $0x60] sm:$0xf]
      %v1729 = vld [vmem:[%s1703 + $0x64] sm:$0xf]
      %v1730 = vld [vmem:[%s1703 + $0x68] sm:$0xf]
      %v1731 = vld [vmem:[%s1703 + $0x6c] sm:$0xf]
      %v1732 = vld [vmem:[%s1703 + $0x70] sm:$0xf]
      %v1733 = vld [vmem:[%s1703 + $0x74] sm:$0xf]
      %v1734 = vld [vmem:[%s1703 + $0x78] sm:$0xf]
      %v1735 = vld [vmem:[%s1703 + $0x7c] sm:$0xf]
      %v1768 = vunpack.c.l.b16 %v1704
      %v1769 = vunpack.c.l.b16 %v1705
      %v1770 = vunpack.c.l.b16 %v1706
      %v1771 = vunpack.c.l.b16 %v1707
      %v1772 = vunpack.c.l.b16 %v1708
      %v1773 = vunpack.c.l.b16 %v1709
      %v1774 = vunpack.c.l.b16 %v1710
      %v1775 = vunpack.c.l.b16 %v1711
      %v1776 = vunpack.c.l.b16 %v1712
      %v1777 = vunpack.c.l.b16 %v1713
      %v1778 = vunpack.c.l.b16 %v1714
      %v1779 = vunpack.c.l.b16 %v1715
      %v1780 = vunpack.c.l.b16 %v1716
      %v1781 = vunpack.c.l.b16 %v1717
      %v1782 = vunpack.c.l.b16 %v1718
      %v1783 = vunpack.c.l.b16 %v1719
      %v1784 = vunpack.c.l.b16 %v1720
      %v1785 = vunpack.c.l.b16 %v1721
      %v1786 = vunpack.c.l.b16 %v1722
      %v1787 = vunpack.c.l.b16 %v1723
      %v1788 = vunpack.c.l.b16 %v1724
      %v1789 = vunpack.c.l.b16 %v1725
      %v1790 = vunpack.c.l.b16 %v1726
      %v1791 = vunpack.c.l.b16 %v1727
      %v1792 = vunpack.c.l.b16 %v1728
      %v1793 = vunpack.c.l.b16 %v1729
      %v1794 = vunpack.c.l.b16 %v1730
      %v1795 = vunpack.c.l.b16 %v1731
      %v1796 = vunpack.c.l.b16 %v1732
      %v1797 = vunpack.c.l.b16 %v1733
      %v1798 = vunpack.c.l.b16 %v1734
      %v1799 = vunpack.c.l.b16 %v1735
      %v1800 = vpack.c.b16 %v1769, %v1768
      %v1801 = vpack.c.b16 %v1771, %v1770
      %v1802 = vpack.c.b16 %v1773, %v1772
      %v1803 = vpack.c.b16 %v1775, %v1774
      %v1804 = vpack.c.b16 %v1777, %v1776
      %v1805 = vpack.c.b16 %v1779, %v1778
      %v1806 = vpack.c.b16 %v1781, %v1780
      %v1807 = vpack.c.b16 %v1783, %v1782
      %v1808 = vpack.c.b16 %v1785, %v1784
      %v1809 = vpack.c.b16 %v1787, %v1786
      %v1810 = vpack.c.b16 %v1789, %v1788
      %v1811 = vpack.c.b16 %v1791, %v1790
      %v1812 = vpack.c.b16 %v1793, %v1792
      %v1813 = vpack.c.b16 %v1795, %v1794
      %v1814 = vpack.c.b16 %v1797, %v1796
      %v1815 = vpack.c.b16 %v1799, %v1798
      %1832 = vmatprep.subr.bf16.mxu0 0
      %1833 = vmatpush1.bf16.msra.mxu0 %v1807
      %1834 = vmatprep.subr.bf16.mxu0 0
      %1835 = vmatpush1.bf16.msra.mxu0 %v1806
      %1836 = vmatprep.subr.bf16.mxu0 0
      %1837 = vmatpush1.bf16.msra.mxu0 %v1805
      %1838 = vmatprep.subr.bf16.mxu0 0
      %1839 = vmatpush1.bf16.msra.mxu0 %v1804
      %1840 = vmatprep.subr.bf16.mxu0 0
      %1841 = vmatpush1.bf16.msra.mxu0 %v1803
      %1842 = vmatprep.subr.bf16.mxu0 0
      %1843 = vmatpush1.bf16.msra.mxu0 %v1802
      %1844 = vmatprep.subr.bf16.mxu0 0
      %1845 = vmatpush1.bf16.msra.mxu0 %v1801
      %1846 = vmatprep.subr.bf16.mxu0 0
      %1847 = vmatpush1.bf16.msra.mxu0 %v1800
      %1848 = vmatprep.subr.bf16.mxu0 0
      %1849 = vmatpush2.bf16.msra.mxu0 %v1815
      %1850 = vmatprep.subr.bf16.mxu0 0
      %1851 = vmatpush2.bf16.msra.mxu0 %v1814
      %1852 = vmatprep.subr.bf16.mxu0 0
      %1853 = vmatpush2.bf16.msra.mxu0 %v1813
      %1854 = vmatprep.subr.bf16.mxu0 0
      %1855 = vmatpush2.bf16.msra.mxu0 %v1812
      %1856 = vmatprep.subr.bf16.mxu0 0
      %1857 = vmatpush2.bf16.msra.mxu0 %v1811
      %1858 = vmatprep.subr.bf16.mxu0 0
      %1859 = vmatpush2.bf16.msra.mxu0 %v1810
      %1860 = vmatprep.subr.bf16.mxu0 0
      %1861 = vmatpush2.bf16.msra.mxu0 %v1809
      %1862 = vmatprep.subr.bf16.mxu0 0
      %1863 = vmatpush2.bf16.msra.mxu0 %v1808
      %1864 = vmatprep.mubr.bf16.mxu0 %v307
      %1865 = vmatmul.mubr.bf16.gmra.mxu0 %v306
      %v1866 = vpop.f32.mrf.mxu0
      %v1867 = vadd.f32 0.0, %v1866
      %v1868 = vpop.f32.mrf.mxu0
      %v1869 = vpop.f32.mrf.mxu0
      %v1870 = vpop.f32.mrf.mxu0
      %1871 = vdwg.mxu0
      %v1872 = vadd.f32 %v1702, %v1867
      %s1873 = scalar_lea.vmem %s1, 1152
      %v1874 = vld [vmem:[%s1873] sm:$0xf]
      %v1875 = vld [vmem:[%s1873 + $0x4] sm:$0xf]
      %v1876 = vld [vmem:[%s1873 + $0x8] sm:$0xf]
      %v1877 = vld [vmem:[%s1873 + $0xc] sm:$0xf]
      %v1878 = vld [vmem:[%s1873 + $0x10] sm:$0xf]
      %v1879 = vld [vmem:[%s1873 + $0x14] sm:$0xf]
      %v1880 = vld [vmem:[%s1873 + $0x18] sm:$0xf]
      %v1881 = vld [vmem:[%s1873 + $0x1c] sm:$0xf]
      %v1882 = vld [vmem:[%s1873 + $0x20] sm:$0xf]
      %v1883 = vld [vmem:[%s1873 + $0x24] sm:$0xf]
      %v1884 = vld [vmem:[%s1873 + $0x28] sm:$0xf]
      %v1885 = vld [vmem:[%s1873 + $0x2c] sm:$0xf]
      %v1886 = vld [vmem:[%s1873 + $0x30] sm:$0xf]
      %v1887 = vld [vmem:[%s1873 + $0x34] sm:$0xf]
      %v1888 = vld [vmem:[%s1873 + $0x38] sm:$0xf]
      %v1889 = vld [vmem:[%s1873 + $0x3c] sm:$0xf]
      %v1890 = vld [vmem:[%s1873 + $0x40] sm:$0xf]
      %v1891 = vld [vmem:[%s1873 + $0x44] sm:$0xf]
      %v1892 = vld [vmem:[%s1873 + $0x48] sm:$0xf]
      %v1893 = vld [vmem:[%s1873 + $0x4c] sm:$0xf]
      %v1894 = vld [vmem:[%s1873 + $0x50] sm:$0xf]
      %v1895 = vld [vmem:[%s1873 + $0x54] sm:$0xf]
      %v1896 = vld [vmem:[%s1873 + $0x58] sm:$0xf]
      %v1897 = vld [vmem:[%s1873 + $0x5c] sm:$0xf]
      %v1898 = vld [vmem:[%s1873 + $0x60] sm:$0xf]
      %v1899 = vld [vmem:[%s1873 + $0x64] sm:$0xf]
      %v1900 = vld [vmem:[%s1873 + $0x68] sm:$0xf]
      %v1901 = vld [vmem:[%s1873 + $0x6c] sm:$0xf]
      %v1902 = vld [vmem:[%s1873 + $0x70] sm:$0xf]
      %v1903 = vld [vmem:[%s1873 + $0x74] sm:$0xf]
      %v1904 = vld [vmem:[%s1873 + $0x78] sm:$0xf]
      %v1905 = vld [vmem:[%s1873 + $0x7c] sm:$0xf]
      %v1907 = vshrl.u32 %v306, 16
      %v1910 = vshrl.u32 %v307, 16
      %v1946 = vunpack.c.l.b16 %v1874
      %v1947 = vunpack.c.l.b16 %v1875
      %v1948 = vunpack.c.l.b16 %v1876
      %v1949 = vunpack.c.l.b16 %v1877
      %v1950 = vunpack.c.l.b16 %v1878
      %v1951 = vunpack.c.l.b16 %v1879
      %v1952 = vunpack.c.l.b16 %v1880
      %v1953 = vunpack.c.l.b16 %v1881
      %v1954 = vunpack.c.l.b16 %v1882
      %v1955 = vunpack.c.l.b16 %v1883
      %v1956 = vunpack.c.l.b16 %v1884
      %v1957 = vunpack.c.l.b16 %v1885
      %v1958 = vunpack.c.l.b16 %v1886
      %v1959 = vunpack.c.l.b16 %v1887
      %v1960 = vunpack.c.l.b16 %v1888
      %v1961 = vunpack.c.l.b16 %v1889
      %v1962 = vunpack.c.l.b16 %v1890
      %v1963 = vunpack.c.l.b16 %v1891
      %v1964 = vunpack.c.l.b16 %v1892
      %v1965 = vunpack.c.l.b16 %v1893
      %v1966 = vunpack.c.l.b16 %v1894
      %v1967 = vunpack.c.l.b16 %v1895
      %v1968 = vunpack.c.l.b16 %v1896
      %v1969 = vunpack.c.l.b16 %v1897
      %v1970 = vunpack.c.l.b16 %v1898
      %v1971 = vunpack.c.l.b16 %v1899
      %v1972 = vunpack.c.l.b16 %v1900
      %v1973 = vunpack.c.l.b16 %v1901
      %v1974 = vunpack.c.l.b16 %v1902
      %v1975 = vunpack.c.l.b16 %v1903
      %v1976 = vunpack.c.l.b16 %v1904
      %v1977 = vunpack.c.l.b16 %v1905
      %v1978 = vpack.c.b16 %v1947, %v1946
      %v1979 = vpack.c.b16 %v1949, %v1948
      %v1980 = vpack.c.b16 %v1951, %v1950
      %v1981 = vpack.c.b16 %v1953, %v1952
      %v1982 = vpack.c.b16 %v1955, %v1954
      %v1983 = vpack.c.b16 %v1957, %v1956
      %v1984 = vpack.c.b16 %v1959, %v1958
      %v1985 = vpack.c.b16 %v1961, %v1960
      %v1986 = vpack.c.b16 %v1963, %v1962
      %v1987 = vpack.c.b16 %v1965, %v1964
      %v1988 = vpack.c.b16 %v1967, %v1966
      %v1989 = vpack.c.b16 %v1969, %v1968
      %v1990 = vpack.c.b16 %v1971, %v1970
      %v1991 = vpack.c.b16 %v1973, %v1972
      %v1992 = vpack.c.b16 %v1975, %v1974
      %v1993 = vpack.c.b16 %v1977, %v1976
      %2010 = vmatprep.subr.bf16.mxu0 0
      %2011 = vmatpush1.bf16.msra.mxu0 %v1985
      %2012 = vmatprep.subr.bf16.mxu0 0
      %2013 = vmatpush1.bf16.msra.mxu0 %v1984
      %2014 = vmatprep.subr.bf16.mxu0 0
      %2015 = vmatpush1.bf16.msra.mxu0 %v1983
      %2016 = vmatprep.subr.bf16.mxu0 0
      %2017 = vmatpush1.bf16.msra.mxu0 %v1982
      %2018 = vmatprep.subr.bf16.mxu0 0
      %2019 = vmatpush1.bf16.msra.mxu0 %v1981
      %2020 = vmatprep.subr.bf16.mxu0 0
      %2021 = vmatpush1.bf16.msra.mxu0 %v1980
      %2022 = vmatprep.subr.bf16.mxu0 0
      %2023 = vmatpush1.bf16.msra.mxu0 %v1979
      %2024 = vmatprep.subr.bf16.mxu0 0
      %2025 = vmatpush1.bf16.msra.mxu0 %v1978
      %2026 = vmatprep.subr.bf16.mxu0 0
      %2027 = vmatpush2.bf16.msra.mxu0 %v1993
      %2028 = vmatprep.subr.bf16.mxu0 0
      %2029 = vmatpush2.bf16.msra.mxu0 %v1992
      %2030 = vmatprep.subr.bf16.mxu0 0
      %2031 = vmatpush2.bf16.msra.mxu0 %v1991
      %2032 = vmatprep.subr.bf16.mxu0 0
      %2033 = vmatpush2.bf16.msra.mxu0 %v1990
      %2034 = vmatprep.subr.bf16.mxu0 0
      %2035 = vmatpush2.bf16.msra.mxu0 %v1989
      %2036 = vmatprep.subr.bf16.mxu0 0
      %2037 = vmatpush2.bf16.msra.mxu0 %v1988
      %2038 = vmatprep.subr.bf16.mxu0 0
      %2039 = vmatpush2.bf16.msra.mxu0 %v1987
      %2040 = vmatprep.subr.bf16.mxu0 0
      %2041 = vmatpush2.bf16.msra.mxu0 %v1986
      %2042 = vmatprep.mubr.bf16.mxu0 %v1910
      %2043 = vmatmul.mubr.bf16.gmra.mxu0 %v1907
      %v2044 = vpop.f32.mrf.mxu0
      %v2045 = vadd.f32 0.0, %v2044
      %v2046 = vpop.f32.mrf.mxu0
      %v2047 = vpop.f32.mrf.mxu0
      %v2048 = vpop.f32.mrf.mxu0
      %2049 = vdwg.mxu0
      %v2050 = vadd.f32 %v1872, %v2045
      %s2051 = scalar_lea.vmem %s1, 1280
      %v2052 = vld [vmem:[%s2051] sm:$0xf]
      %v2053 = vld [vmem:[%s2051 + $0x4] sm:$0xf]
      %v2054 = vld [vmem:[%s2051 + $0x8] sm:$0xf]
      %v2055 = vld [vmem:[%s2051 + $0xc] sm:$0xf]
      %v2056 = vld [vmem:[%s2051 + $0x10] sm:$0xf]
      %v2057 = vld [vmem:[%s2051 + $0x14] sm:$0xf]
      %v2058 = vld [vmem:[%s2051 + $0x18] sm:$0xf]
      %v2059 = vld [vmem:[%s2051 + $0x1c] sm:$0xf]
      %v2060 = vld [vmem:[%s2051 + $0x20] sm:$0xf]
      %v2061 = vld [vmem:[%s2051 + $0x24] sm:$0xf]
      %v2062 = vld [vmem:[%s2051 + $0x28] sm:$0xf]
      %v2063 = vld [vmem:[%s2051 + $0x2c] sm:$0xf]
      %v2064 = vld [vmem:[%s2051 + $0x30] sm:$0xf]
      %v2065 = vld [vmem:[%s2051 + $0x34] sm:$0xf]
      %v2066 = vld [vmem:[%s2051 + $0x38] sm:$0xf]
      %v2067 = vld [vmem:[%s2051 + $0x3c] sm:$0xf]
      %v2068 = vld [vmem:[%s2051 + $0x40] sm:$0xf]
      %v2069 = vld [vmem:[%s2051 + $0x44] sm:$0xf]
      %v2070 = vld [vmem:[%s2051 + $0x48] sm:$0xf]
      %v2071 = vld [vmem:[%s2051 + $0x4c] sm:$0xf]
      %v2072 = vld [vmem:[%s2051 + $0x50] sm:$0xf]
      %v2073 = vld [vmem:[%s2051 + $0x54] sm:$0xf]
      %v2074 = vld [vmem:[%s2051 + $0x58] sm:$0xf]
      %v2075 = vld [vmem:[%s2051 + $0x5c] sm:$0xf]
      %v2076 = vld [vmem:[%s2051 + $0x60] sm:$0xf]
      %v2077 = vld [vmem:[%s2051 + $0x64] sm:$0xf]
      %v2078 = vld [vmem:[%s2051 + $0x68] sm:$0xf]
      %v2079 = vld [vmem:[%s2051 + $0x6c] sm:$0xf]
      %v2080 = vld [vmem:[%s2051 + $0x70] sm:$0xf]
      %v2081 = vld [vmem:[%s2051 + $0x74] sm:$0xf]
      %v2082 = vld [vmem:[%s2051 + $0x78] sm:$0xf]
      %v2083 = vld [vmem:[%s2051 + $0x7c] sm:$0xf]
      %v2086 = vrot.slane %v306, 1
      %v2087 = vrot.slane %v307, 1
      %v2122 = vunpack.c.l.b16 %v2052
      %v2123 = vunpack.c.l.b16 %v2053
      %v2124 = vunpack.c.l.b16 %v2054
      %v2125 = vunpack.c.l.b16 %v2055
      %v2126 = vunpack.c.l.b16 %v2056
      %v2127 = vunpack.c.l.b16 %v2057
      %v2128 = vunpack.c.l.b16 %v2058
      %v2129 = vunpack.c.l.b16 %v2059
      %v2130 = vunpack.c.l.b16 %v2060
      %v2131 = vunpack.c.l.b16 %v2061
      %v2132 = vunpack.c.l.b16 %v2062
      %v2133 = vunpack.c.l.b16 %v2063
      %v2134 = vunpack.c.l.b16 %v2064
      %v2135 = vunpack.c.l.b16 %v2065
      %v2136 = vunpack.c.l.b16 %v2066
      %v2137 = vunpack.c.l.b16 %v2067
      %v2138 = vunpack.c.l.b16 %v2068
      %v2139 = vunpack.c.l.b16 %v2069
      %v2140 = vunpack.c.l.b16 %v2070
      %v2141 = vunpack.c.l.b16 %v2071
      %v2142 = vunpack.c.l.b16 %v2072
      %v2143 = vunpack.c.l.b16 %v2073
      %v2144 = vunpack.c.l.b16 %v2074
      %v2145 = vunpack.c.l.b16 %v2075
      %v2146 = vunpack.c.l.b16 %v2076
      %v2147 = vunpack.c.l.b16 %v2077
      %v2148 = vunpack.c.l.b16 %v2078
      %v2149 = vunpack.c.l.b16 %v2079
      %v2150 = vunpack.c.l.b16 %v2080
      %v2151 = vunpack.c.l.b16 %v2081
      %v2152 = vunpack.c.l.b16 %v2082
      %v2153 = vunpack.c.l.b16 %v2083
      %v2154 = vpack.c.b16 %v2123, %v2122
      %v2155 = vpack.c.b16 %v2125, %v2124
      %v2156 = vpack.c.b16 %v2127, %v2126
      %v2157 = vpack.c.b16 %v2129, %v2128
      %v2158 = vpack.c.b16 %v2131, %v2130
      %v2159 = vpack.c.b16 %v2133, %v2132
      %v2160 = vpack.c.b16 %v2135, %v2134
      %v2161 = vpack.c.b16 %v2137, %v2136
      %v2162 = vpack.c.b16 %v2139, %v2138
      %v2163 = vpack.c.b16 %v2141, %v2140
      %v2164 = vpack.c.b16 %v2143, %v2142
      %v2165 = vpack.c.b16 %v2145, %v2144
      %v2166 = vpack.c.b16 %v2147, %v2146
      %v2167 = vpack.c.b16 %v2149, %v2148
      %v2168 = vpack.c.b16 %v2151, %v2150
      %v2169 = vpack.c.b16 %v2153, %v2152
      %2186 = vmatprep.subr.bf16.mxu0 0
      %2187 = vmatpush1.bf16.msra.mxu0 %v2161
      %2188 = vmatprep.subr.bf16.mxu0 0
      %2189 = vmatpush1.bf16.msra.mxu0 %v2160
      %2190 = vmatprep.subr.bf16.mxu0 0
      %2191 = vmatpush1.bf16.msra.mxu0 %v2159
      %2192 = vmatprep.subr.bf16.mxu0 0
      %2193 = vmatpush1.bf16.msra.mxu0 %v2158
      %2194 = vmatprep.subr.bf16.mxu0 0
      %2195 = vmatpush1.bf16.msra.mxu0 %v2157
      %2196 = vmatprep.subr.bf16.mxu0 0
      %2197 = vmatpush1.bf16.msra.mxu0 %v2156
      %2198 = vmatprep.subr.bf16.mxu0 0
      %2199 = vmatpush1.bf16.msra.mxu0 %v2155
      %2200 = vmatprep.subr.bf16.mxu0 0
      %2201 = vmatpush1.bf16.msra.mxu0 %v2154
      %2202 = vmatprep.subr.bf16.mxu0 0
      %2203 = vmatpush2.bf16.msra.mxu0 %v2169
      %2204 = vmatprep.subr.bf16.mxu0 0
      %2205 = vmatpush2.bf16.msra.mxu0 %v2168
      %2206 = vmatprep.subr.bf16.mxu0 0
      %2207 = vmatpush2.bf16.msra.mxu0 %v2167
      %2208 = vmatprep.subr.bf16.mxu0 0
      %2209 = vmatpush2.bf16.msra.mxu0 %v2166
      %2210 = vmatprep.subr.bf16.mxu0 0
      %2211 = vmatpush2.bf16.msra.mxu0 %v2165
      %2212 = vmatprep.subr.bf16.mxu0 0
      %2213 = vmatpush2.bf16.msra.mxu0 %v2164
      %2214 = vmatprep.subr.bf16.mxu0 0
      %2215 = vmatpush2.bf16.msra.mxu0 %v2163
      %2216 = vmatprep.subr.bf16.mxu0 0
      %2217 = vmatpush2.bf16.msra.mxu0 %v2162
      %2218 = vmatprep.mubr.bf16.mxu0 %v2087
      %2219 = vmatmul.mubr.bf16.gmra.mxu0 %v2086
      %v2220 = vpop.f32.mrf.mxu0
      %v2221 = vadd.f32 0.0, %v2220
      %v2222 = vpop.f32.mrf.mxu0
      %v2223 = vpop.f32.mrf.mxu0
      %v2224 = vpop.f32.mrf.mxu0
      %2225 = vdwg.mxu0
      %v2226 = vadd.f32 %v2050, %v2221
      %s2227 = scalar_lea.vmem %s1, 1408
      %v2228 = vld [vmem:[%s2227] sm:$0xf]
      %v2229 = vld [vmem:[%s2227 + $0x4] sm:$0xf]
      %v2230 = vld [vmem:[%s2227 + $0x8] sm:$0xf]
      %v2231 = vld [vmem:[%s2227 + $0xc] sm:$0xf]
      %v2232 = vld [vmem:[%s2227 + $0x10] sm:$0xf]
      %v2233 = vld [vmem:[%s2227 + $0x14] sm:$0xf]
      %v2234 = vld [vmem:[%s2227 + $0x18] sm:$0xf]
      %v2235 = vld [vmem:[%s2227 + $0x1c] sm:$0xf]
      %v2236 = vld [vmem:[%s2227 + $0x20] sm:$0xf]
      %v2237 = vld [vmem:[%s2227 + $0x24] sm:$0xf]
      %v2238 = vld [vmem:[%s2227 + $0x28] sm:$0xf]
      %v2239 = vld [vmem:[%s2227 + $0x2c] sm:$0xf]
      %v2240 = vld [vmem:[%s2227 + $0x30] sm:$0xf]
      %v2241 = vld [vmem:[%s2227 + $0x34] sm:$0xf]
      %v2242 = vld [vmem:[%s2227 + $0x38] sm:$0xf]
      %v2243 = vld [vmem:[%s2227 + $0x3c] sm:$0xf]
      %v2244 = vld [vmem:[%s2227 + $0x40] sm:$0xf]
      %v2245 = vld [vmem:[%s2227 + $0x44] sm:$0xf]
      %v2246 = vld [vmem:[%s2227 + $0x48] sm:$0xf]
      %v2247 = vld [vmem:[%s2227 + $0x4c] sm:$0xf]
      %v2248 = vld [vmem:[%s2227 + $0x50] sm:$0xf]
      %v2249 = vld [vmem:[%s2227 + $0x54] sm:$0xf]
      %v2250 = vld [vmem:[%s2227 + $0x58] sm:$0xf]
      %v2251 = vld [vmem:[%s2227 + $0x5c] sm:$0xf]
      %v2252 = vld [vmem:[%s2227 + $0x60] sm:$0xf]
      %v2253 = vld [vmem:[%s2227 + $0x64] sm:$0xf]
      %v2254 = vld [vmem:[%s2227 + $0x68] sm:$0xf]
      %v2255 = vld [vmem:[%s2227 + $0x6c] sm:$0xf]
      %v2256 = vld [vmem:[%s2227 + $0x70] sm:$0xf]
      %v2257 = vld [vmem:[%s2227 + $0x74] sm:$0xf]
      %v2258 = vld [vmem:[%s2227 + $0x78] sm:$0xf]
      %v2259 = vld [vmem:[%s2227 + $0x7c] sm:$0xf]
      %v2260 = vrot.slane %v1907, 1
      %v2261 = vrot.slane %v1910, 1
      %v2296 = vunpack.c.l.b16 %v2228
      %v2297 = vunpack.c.l.b16 %v2229
      %v2298 = vunpack.c.l.b16 %v2230
      %v2299 = vunpack.c.l.b16 %v2231
      %v2300 = vunpack.c.l.b16 %v2232
      %v2301 = vunpack.c.l.b16 %v2233
      %v2302 = vunpack.c.l.b16 %v2234
      %v2303 = vunpack.c.l.b16 %v2235
      %v2304 = vunpack.c.l.b16 %v2236
      %v2305 = vunpack.c.l.b16 %v2237
      %v2306 = vunpack.c.l.b16 %v2238
      %v2307 = vunpack.c.l.b16 %v2239
      %v2308 = vunpack.c.l.b16 %v2240
      %v2309 = vunpack.c.l.b16 %v2241
      %v2310 = vunpack.c.l.b16 %v2242
      %v2311 = vunpack.c.l.b16 %v2243
      %v2312 = vunpack.c.l.b16 %v2244
      %v2313 = vunpack.c.l.b16 %v2245
      %v2314 = vunpack.c.l.b16 %v2246
      %v2315 = vunpack.c.l.b16 %v2247
      %v2316 = vunpack.c.l.b16 %v2248
      %v2317 = vunpack.c.l.b16 %v2249
      %v2318 = vunpack.c.l.b16 %v2250
      %v2319 = vunpack.c.l.b16 %v2251
      %v2320 = vunpack.c.l.b16 %v2252
      %v2321 = vunpack.c.l.b16 %v2253
      %v2322 = vunpack.c.l.b16 %v2254
      %v2323 = vunpack.c.l.b16 %v2255
      %v2324 = vunpack.c.l.b16 %v2256
      %v2325 = vunpack.c.l.b16 %v2257
      %v2326 = vunpack.c.l.b16 %v2258
      %v2327 = vunpack.c.l.b16 %v2259
      %v2328 = vpack.c.b16 %v2297, %v2296
      %v2329 = vpack.c.b16 %v2299, %v2298
      %v2330 = vpack.c.b16 %v2301, %v2300
      %v2331 = vpack.c.b16 %v2303, %v2302
      %v2332 = vpack.c.b16 %v2305, %v2304
      %v2333 = vpack.c.b16 %v2307, %v2306
      %v2334 = vpack.c.b16 %v2309, %v2308
      %v2335 = vpack.c.b16 %v2311, %v2310
      %v2336 = vpack.c.b16 %v2313, %v2312
      %v2337 = vpack.c.b16 %v2315, %v2314
      %v2338 = vpack.c.b16 %v2317, %v2316
      %v2339 = vpack.c.b16 %v2319, %v2318
      %v2340 = vpack.c.b16 %v2321, %v2320
      %v2341 = vpack.c.b16 %v2323, %v2322
      %v2342 = vpack.c.b16 %v2325, %v2324
      %v2343 = vpack.c.b16 %v2327, %v2326
      %2360 = vmatprep.subr.bf16.mxu0 0
      %2361 = vmatpush1.bf16.msra.mxu0 %v2335
      %2362 = vmatprep.subr.bf16.mxu0 0
      %2363 = vmatpush1.bf16.msra.mxu0 %v2334
      %2364 = vmatprep.subr.bf16.mxu0 0
      %2365 = vmatpush1.bf16.msra.mxu0 %v2333
      %2366 = vmatprep.subr.bf16.mxu0 0
      %2367 = vmatpush1.bf16.msra.mxu0 %v2332
      %2368 = vmatprep.subr.bf16.mxu0 0
      %2369 = vmatpush1.bf16.msra.mxu0 %v2331
      %2370 = vmatprep.subr.bf16.mxu0 0
      %2371 = vmatpush1.bf16.msra.mxu0 %v2330
      %2372 = vmatprep.subr.bf16.mxu0 0
      %2373 = vmatpush1.bf16.msra.mxu0 %v2329
      %2374 = vmatprep.subr.bf16.mxu0 0
      %2375 = vmatpush1.bf16.msra.mxu0 %v2328
      %2376 = vmatprep.subr.bf16.mxu0 0
      %2377 = vmatpush2.bf16.msra.mxu0 %v2343
      %2378 = vmatprep.subr.bf16.mxu0 0
      %2379 = vmatpush2.bf16.msra.mxu0 %v2342
      %2380 = vmatprep.subr.bf16.mxu0 0
      %2381 = vmatpush2.bf16.msra.mxu0 %v2341
      %2382 = vmatprep.subr.bf16.mxu0 0
      %2383 = vmatpush2.bf16.msra.mxu0 %v2340
      %2384 = vmatprep.subr.bf16.mxu0 0
      %2385 = vmatpush2.bf16.msra.mxu0 %v2339
      %2386 = vmatprep.subr.bf16.mxu0 0
      %2387 = vmatpush2.bf16.msra.mxu0 %v2338
      %2388 = vmatprep.subr.bf16.mxu0 0
      %2389 = vmatpush2.bf16.msra.mxu0 %v2337
      %2390 = vmatprep.subr.bf16.mxu0 0
      %2391 = vmatpush2.bf16.msra.mxu0 %v2336
      %2392 = vmatprep.mubr.bf16.mxu0 %v2261
      %2393 = vmatmul.mubr.bf16.gmra.mxu0 %v2260
      %v2394 = vpop.f32.mrf.mxu0
      %v2395 = vadd.f32 0.0, %v2394
      %v2396 = vpop.f32.mrf.mxu0
      %v2397 = vpop.f32.mrf.mxu0
      %v2398 = vpop.f32.mrf.mxu0
      %2399 = vdwg.mxu0
      %v2400 = vadd.f32 %v2226, %v2395
      %s2401 = scalar_lea.vmem %s1, 1536
      %v2402 = vld [vmem:[%s2401] sm:$0xf]
      %v2403 = vld [vmem:[%s2401 + $0x4] sm:$0xf]
      %v2404 = vld [vmem:[%s2401 + $0x8] sm:$0xf]
      %v2405 = vld [vmem:[%s2401 + $0xc] sm:$0xf]
      %v2406 = vld [vmem:[%s2401 + $0x10] sm:$0xf]
      %v2407 = vld [vmem:[%s2401 + $0x14] sm:$0xf]
      %v2408 = vld [vmem:[%s2401 + $0x18] sm:$0xf]
      %v2409 = vld [vmem:[%s2401 + $0x1c] sm:$0xf]
      %v2410 = vld [vmem:[%s2401 + $0x20] sm:$0xf]
      %v2411 = vld [vmem:[%s2401 + $0x24] sm:$0xf]
      %v2412 = vld [vmem:[%s2401 + $0x28] sm:$0xf]
      %v2413 = vld [vmem:[%s2401 + $0x2c] sm:$0xf]
      %v2414 = vld [vmem:[%s2401 + $0x30] sm:$0xf]
      %v2415 = vld [vmem:[%s2401 + $0x34] sm:$0xf]
      %v2416 = vld [vmem:[%s2401 + $0x38] sm:$0xf]
      %v2417 = vld [vmem:[%s2401 + $0x3c] sm:$0xf]
      %v2418 = vld [vmem:[%s2401 + $0x40] sm:$0xf]
      %v2419 = vld [vmem:[%s2401 + $0x44] sm:$0xf]
      %v2420 = vld [vmem:[%s2401 + $0x48] sm:$0xf]
      %v2421 = vld [vmem:[%s2401 + $0x4c] sm:$0xf]
      %v2422 = vld [vmem:[%s2401 + $0x50] sm:$0xf]
      %v2423 = vld [vmem:[%s2401 + $0x54] sm:$0xf]
      %v2424 = vld [vmem:[%s2401 + $0x58] sm:$0xf]
      %v2425 = vld [vmem:[%s2401 + $0x5c] sm:$0xf]
      %v2426 = vld [vmem:[%s2401 + $0x60] sm:$0xf]
      %v2427 = vld [vmem:[%s2401 + $0x64] sm:$0xf]
      %v2428 = vld [vmem:[%s2401 + $0x68] sm:$0xf]
      %v2429 = vld [vmem:[%s2401 + $0x6c] sm:$0xf]
      %v2430 = vld [vmem:[%s2401 + $0x70] sm:$0xf]
      %v2431 = vld [vmem:[%s2401 + $0x74] sm:$0xf]
      %v2432 = vld [vmem:[%s2401 + $0x78] sm:$0xf]
      %v2433 = vld [vmem:[%s2401 + $0x7c] sm:$0xf]
      %v2466 = vunpack.c.l.b16 %v2402
      %v2467 = vunpack.c.l.b16 %v2403
      %v2468 = vunpack.c.l.b16 %v2404
      %v2469 = vunpack.c.l.b16 %v2405
      %v2470 = vunpack.c.l.b16 %v2406
      %v2471 = vunpack.c.l.b16 %v2407
      %v2472 = vunpack.c.l.b16 %v2408
      %v2473 = vunpack.c.l.b16 %v2409
      %v2474 = vunpack.c.l.b16 %v2410
      %v2475 = vunpack.c.l.b16 %v2411
      %v2476 = vunpack.c.l.b16 %v2412
      %v2477 = vunpack.c.l.b16 %v2413
      %v2478 = vunpack.c.l.b16 %v2414
      %v2479 = vunpack.c.l.b16 %v2415
      %v2480 = vunpack.c.l.b16 %v2416
      %v2481 = vunpack.c.l.b16 %v2417
      %v2482 = vunpack.c.l.b16 %v2418
      %v2483 = vunpack.c.l.b16 %v2419
      %v2484 = vunpack.c.l.b16 %v2420
      %v2485 = vunpack.c.l.b16 %v2421
      %v2486 = vunpack.c.l.b16 %v2422
      %v2487 = vunpack.c.l.b16 %v2423
      %v2488 = vunpack.c.l.b16 %v2424
      %v2489 = vunpack.c.l.b16 %v2425
      %v2490 = vunpack.c.l.b16 %v2426
      %v2491 = vunpack.c.l.b16 %v2427
      %v2492 = vunpack.c.l.b16 %v2428
      %v2493 = vunpack.c.l.b16 %v2429
      %v2494 = vunpack.c.l.b16 %v2430
      %v2495 = vunpack.c.l.b16 %v2431
      %v2496 = vunpack.c.l.b16 %v2432
      %v2497 = vunpack.c.l.b16 %v2433
      %v2498 = vpack.c.b16 %v2467, %v2466
      %v2499 = vpack.c.b16 %v2469, %v2468
      %v2500 = vpack.c.b16 %v2471, %v2470
      %v2501 = vpack.c.b16 %v2473, %v2472
      %v2502 = vpack.c.b16 %v2475, %v2474
      %v2503 = vpack.c.b16 %v2477, %v2476
      %v2504 = vpack.c.b16 %v2479, %v2478
      %v2505 = vpack.c.b16 %v2481, %v2480
      %v2506 = vpack.c.b16 %v2483, %v2482
      %v2507 = vpack.c.b16 %v2485, %v2484
      %v2508 = vpack.c.b16 %v2487, %v2486
      %v2509 = vpack.c.b16 %v2489, %v2488
      %v2510 = vpack.c.b16 %v2491, %v2490
      %v2511 = vpack.c.b16 %v2493, %v2492
      %v2512 = vpack.c.b16 %v2495, %v2494
      %v2513 = vpack.c.b16 %v2497, %v2496
      %2530 = vmatprep.subr.bf16.mxu0 0
      %2531 = vmatpush1.bf16.msra.mxu0 %v2505
      %2532 = vmatprep.subr.bf16.mxu0 0
      %2533 = vmatpush1.bf16.msra.mxu0 %v2504
      %2534 = vmatprep.subr.bf16.mxu0 0
      %2535 = vmatpush1.bf16.msra.mxu0 %v2503
      %2536 = vmatprep.subr.bf16.mxu0 0
      %2537 = vmatpush1.bf16.msra.mxu0 %v2502
      %2538 = vmatprep.subr.bf16.mxu0 0
      %2539 = vmatpush1.bf16.msra.mxu0 %v2501
      %2540 = vmatprep.subr.bf16.mxu0 0
      %2541 = vmatpush1.bf16.msra.mxu0 %v2500
      %2542 = vmatprep.subr.bf16.mxu0 0
      %2543 = vmatpush1.bf16.msra.mxu0 %v2499
      %2544 = vmatprep.subr.bf16.mxu0 0
      %2545 = vmatpush1.bf16.msra.mxu0 %v2498
      %2546 = vmatprep.subr.bf16.mxu0 0
      %2547 = vmatpush2.bf16.msra.mxu0 %v2513
      %2548 = vmatprep.subr.bf16.mxu0 0
      %2549 = vmatpush2.bf16.msra.mxu0 %v2512
      %2550 = vmatprep.subr.bf16.mxu0 0
      %2551 = vmatpush2.bf16.msra.mxu0 %v2511
      %2552 = vmatprep.subr.bf16.mxu0 0
      %2553 = vmatpush2.bf16.msra.mxu0 %v2510
      %2554 = vmatprep.subr.bf16.mxu0 0
      %2555 = vmatpush2.bf16.msra.mxu0 %v2509
      %2556 = vmatprep.subr.bf16.mxu0 0
      %2557 = vmatpush2.bf16.msra.mxu0 %v2508
      %2558 = vmatprep.subr.bf16.mxu0 0
      %2559 = vmatpush2.bf16.msra.mxu0 %v2507
      %2560 = vmatprep.subr.bf16.mxu0 0
      %2561 = vmatpush2.bf16.msra.mxu0 %v2506
      %2562 = vmatprep.mubr.bf16.mxu0 %v309
      %2563 = vmatmul.mubr.bf16.gmra.mxu0 %v308
      %v2564 = vpop.f32.mrf.mxu0
      %v2565 = vadd.f32 0.0, %v2564
      %v2566 = vpop.f32.mrf.mxu0
      %v2567 = vpop.f32.mrf.mxu0
      %v2568 = vpop.f32.mrf.mxu0
      %2569 = vdwg.mxu0
      %v2570 = vadd.f32 %v2400, %v2565
      %s2571 = scalar_lea.vmem %s1, 1664
      %v2572 = vld [vmem:[%s2571] sm:$0xf]
      %v2573 = vld [vmem:[%s2571 + $0x4] sm:$0xf]
      %v2574 = vld [vmem:[%s2571 + $0x8] sm:$0xf]
      %v2575 = vld [vmem:[%s2571 + $0xc] sm:$0xf]
      %v2576 = vld [vmem:[%s2571 + $0x10] sm:$0xf]
      %v2577 = vld [vmem:[%s2571 + $0x14] sm:$0xf]
      %v2578 = vld [vmem:[%s2571 + $0x18] sm:$0xf]
      %v2579 = vld [vmem:[%s2571 + $0x1c] sm:$0xf]
      %v2580 = vld [vmem:[%s2571 + $0x20] sm:$0xf]
      %v2581 = vld [vmem:[%s2571 + $0x24] sm:$0xf]
      %v2582 = vld [vmem:[%s2571 + $0x28] sm:$0xf]
      %v2583 = vld [vmem:[%s2571 + $0x2c] sm:$0xf]
      %v2584 = vld [vmem:[%s2571 + $0x30] sm:$0xf]
      %v2585 = vld [vmem:[%s2571 + $0x34] sm:$0xf]
      %v2586 = vld [vmem:[%s2571 + $0x38] sm:$0xf]
      %v2587 = vld [vmem:[%s2571 + $0x3c] sm:$0xf]
      %v2588 = vld [vmem:[%s2571 + $0x40] sm:$0xf]
      %v2589 = vld [vmem:[%s2571 + $0x44] sm:$0xf]
      %v2590 = vld [vmem:[%s2571 + $0x48] sm:$0xf]
      %v2591 = vld [vmem:[%s2571 + $0x4c] sm:$0xf]
      %v2592 = vld [vmem:[%s2571 + $0x50] sm:$0xf]
      %v2593 = vld [vmem:[%s2571 + $0x54] sm:$0xf]
      %v2594 = vld [vmem:[%s2571 + $0x58] sm:$0xf]
      %v2595 = vld [vmem:[%s2571 + $0x5c] sm:$0xf]
      %v2596 = vld [vmem:[%s2571 + $0x60] sm:$0xf]
      %v2597 = vld [vmem:[%s2571 + $0x64] sm:$0xf]
      %v2598 = vld [vmem:[%s2571 + $0x68] sm:$0xf]
      %v2599 = vld [vmem:[%s2571 + $0x6c] sm:$0xf]
      %v2600 = vld [vmem:[%s2571 + $0x70] sm:$0xf]
      %v2601 = vld [vmem:[%s2571 + $0x74] sm:$0xf]
      %v2602 = vld [vmem:[%s2571 + $0x78] sm:$0xf]
      %v2603 = vld [vmem:[%s2571 + $0x7c] sm:$0xf]
      %v2605 = vshrl.u32 %v308, 16
      %v2608 = vshrl.u32 %v309, 16
      %v2644 = vunpack.c.l.b16 %v2572
      %v2645 = vunpack.c.l.b16 %v2573
      %v2646 = vunpack.c.l.b16 %v2574
      %v2647 = vunpack.c.l.b16 %v2575
      %v2648 = vunpack.c.l.b16 %v2576
      %v2649 = vunpack.c.l.b16 %v2577
      %v2650 = vunpack.c.l.b16 %v2578
      %v2651 = vunpack.c.l.b16 %v2579
      %v2652 = vunpack.c.l.b16 %v2580
      %v2653 = vunpack.c.l.b16 %v2581
      %v2654 = vunpack.c.l.b16 %v2582
      %v2655 = vunpack.c.l.b16 %v2583
      %v2656 = vunpack.c.l.b16 %v2584
      %v2657 = vunpack.c.l.b16 %v2585
      %v2658 = vunpack.c.l.b16 %v2586
      %v2659 = vunpack.c.l.b16 %v2587
      %v2660 = vunpack.c.l.b16 %v2588
      %v2661 = vunpack.c.l.b16 %v2589
      %v2662 = vunpack.c.l.b16 %v2590
      %v2663 = vunpack.c.l.b16 %v2591
      %v2664 = vunpack.c.l.b16 %v2592
      %v2665 = vunpack.c.l.b16 %v2593
      %v2666 = vunpack.c.l.b16 %v2594
      %v2667 = vunpack.c.l.b16 %v2595
      %v2668 = vunpack.c.l.b16 %v2596
      %v2669 = vunpack.c.l.b16 %v2597
      %v2670 = vunpack.c.l.b16 %v2598
      %v2671 = vunpack.c.l.b16 %v2599
      %v2672 = vunpack.c.l.b16 %v2600
      %v2673 = vunpack.c.l.b16 %v2601
      %v2674 = vunpack.c.l.b16 %v2602
      %v2675 = vunpack.c.l.b16 %v2603
      %v2676 = vpack.c.b16 %v2645, %v2644
      %v2677 = vpack.c.b16 %v2647, %v2646
      %v2678 = vpack.c.b16 %v2649, %v2648
      %v2679 = vpack.c.b16 %v2651, %v2650
      %v2680 = vpack.c.b16 %v2653, %v2652
      %v2681 = vpack.c.b16 %v2655, %v2654
      %v2682 = vpack.c.b16 %v2657, %v2656
      %v2683 = vpack.c.b16 %v2659, %v2658
      %v2684 = vpack.c.b16 %v2661, %v2660
      %v2685 = vpack.c.b16 %v2663, %v2662
      %v2686 = vpack.c.b16 %v2665, %v2664
      %v2687 = vpack.c.b16 %v2667, %v2666
      %v2688 = vpack.c.b16 %v2669, %v2668
      %v2689 = vpack.c.b16 %v2671, %v2670
      %v2690 = vpack.c.b16 %v2673, %v2672
      %v2691 = vpack.c.b16 %v2675, %v2674
      %2708 = vmatprep.subr.bf16.mxu0 0
      %2709 = vmatpush1.bf16.msra.mxu0 %v2683
      %2710 = vmatprep.subr.bf16.mxu0 0
      %2711 = vmatpush1.bf16.msra.mxu0 %v2682
      %2712 = vmatprep.subr.bf16.mxu0 0
      %2713 = vmatpush1.bf16.msra.mxu0 %v2681
      %2714 = vmatprep.subr.bf16.mxu0 0
      %2715 = vmatpush1.bf16.msra.mxu0 %v2680
      %2716 = vmatprep.subr.bf16.mxu0 0
      %2717 = vmatpush1.bf16.msra.mxu0 %v2679
      %2718 = vmatprep.subr.bf16.mxu0 0
      %2719 = vmatpush1.bf16.msra.mxu0 %v2678
      %2720 = vmatprep.subr.bf16.mxu0 0
      %2721 = vmatpush1.bf16.msra.mxu0 %v2677
      %2722 = vmatprep.subr.bf16.mxu0 0
      %2723 = vmatpush1.bf16.msra.mxu0 %v2676
      %2724 = vmatprep.subr.bf16.mxu0 0
      %2725 = vmatpush2.bf16.msra.mxu0 %v2691
      %2726 = vmatprep.subr.bf16.mxu0 0
      %2727 = vmatpush2.bf16.msra.mxu0 %v2690
      %2728 = vmatprep.subr.bf16.mxu0 0
      %2729 = vmatpush2.bf16.msra.mxu0 %v2689
      %2730 = vmatprep.subr.bf16.mxu0 0
      %2731 = vmatpush2.bf16.msra.mxu0 %v2688
      %2732 = vmatprep.subr.bf16.mxu0 0
      %2733 = vmatpush2.bf16.msra.mxu0 %v2687
      %2734 = vmatprep.subr.bf16.mxu0 0
      %2735 = vmatpush2.bf16.msra.mxu0 %v2686
      %2736 = vmatprep.subr.bf16.mxu0 0
      %2737 = vmatpush2.bf16.msra.mxu0 %v2685
      %2738 = vmatprep.subr.bf16.mxu0 0
      %2739 = vmatpush2.bf16.msra.mxu0 %v2684
      %2740 = vmatprep.mubr.bf16.mxu0 %v2608
      %2741 = vmatmul.mubr.bf16.gmra.mxu0 %v2605
      %v2742 = vpop.f32.mrf.mxu0
      %v2743 = vadd.f32 0.0, %v2742
      %v2744 = vpop.f32.mrf.mxu0
      %v2745 = vpop.f32.mrf.mxu0
      %v2746 = vpop.f32.mrf.mxu0
      %2747 = vdwg.mxu0
      %v2748 = vadd.f32 %v2570, %v2743
      %s2749 = scalar_lea.vmem %s1, 1792
      %v2750 = vld [vmem:[%s2749] sm:$0xf]
      %v2751 = vld [vmem:[%s2749 + $0x4] sm:$0xf]
      %v2752 = vld [vmem:[%s2749 + $0x8] sm:$0xf]
      %v2753 = vld [vmem:[%s2749 + $0xc] sm:$0xf]
      %v2754 = vld [vmem:[%s2749 + $0x10] sm:$0xf]
      %v2755 = vld [vmem:[%s2749 + $0x14] sm:$0xf]
      %v2756 = vld [vmem:[%s2749 + $0x18] sm:$0xf]
      %v2757 = vld [vmem:[%s2749 + $0x1c] sm:$0xf]
      %v2758 = vld [vmem:[%s2749 + $0x20] sm:$0xf]
      %v2759 = vld [vmem:[%s2749 + $0x24] sm:$0xf]
      %v2760 = vld [vmem:[%s2749 + $0x28] sm:$0xf]
      %v2761 = vld [vmem:[%s2749 + $0x2c] sm:$0xf]
      %v2762 = vld [vmem:[%s2749 + $0x30] sm:$0xf]
      %v2763 = vld [vmem:[%s2749 + $0x34] sm:$0xf]
      %v2764 = vld [vmem:[%s2749 + $0x38] sm:$0xf]
      %v2765 = vld [vmem:[%s2749 + $0x3c] sm:$0xf]
      %v2766 = vld [vmem:[%s2749 + $0x40] sm:$0xf]
      %v2767 = vld [vmem:[%s2749 + $0x44] sm:$0xf]
      %v2768 = vld [vmem:[%s2749 + $0x48] sm:$0xf]
      %v2769 = vld [vmem:[%s2749 + $0x4c] sm:$0xf]
      %v2770 = vld [vmem:[%s2749 + $0x50] sm:$0xf]
      %v2771 = vld [vmem:[%s2749 + $0x54] sm:$0xf]
      %v2772 = vld [vmem:[%s2749 + $0x58] sm:$0xf]
      %v2773 = vld [vmem:[%s2749 + $0x5c] sm:$0xf]
      %v2774 = vld [vmem:[%s2749 + $0x60] sm:$0xf]
      %v2775 = vld [vmem:[%s2749 + $0x64] sm:$0xf]
      %v2776 = vld [vmem:[%s2749 + $0x68] sm:$0xf]
      %v2777 = vld [vmem:[%s2749 + $0x6c] sm:$0xf]
      %v2778 = vld [vmem:[%s2749 + $0x70] sm:$0xf]
      %v2779 = vld [vmem:[%s2749 + $0x74] sm:$0xf]
      %v2780 = vld [vmem:[%s2749 + $0x78] sm:$0xf]
      %v2781 = vld [vmem:[%s2749 + $0x7c] sm:$0xf]
      %v2784 = vrot.slane %v308, 1
      %v2785 = vrot.slane %v309, 1
      %v2820 = vunpack.c.l.b16 %v2750
      %v2821 = vunpack.c.l.b16 %v2751
      %v2822 = vunpack.c.l.b16 %v2752
      %v2823 = vunpack.c.l.b16 %v2753
      %v2824 = vunpack.c.l.b16 %v2754
      %v2825 = vunpack.c.l.b16 %v2755
      %v2826 = vunpack.c.l.b16 %v2756
      %v2827 = vunpack.c.l.b16 %v2757
      %v2828 = vunpack.c.l.b16 %v2758
      %v2829 = vunpack.c.l.b16 %v2759
      %v2830 = vunpack.c.l.b16 %v2760
      %v2831 = vunpack.c.l.b16 %v2761
      %v2832 = vunpack.c.l.b16 %v2762
      %v2833 = vunpack.c.l.b16 %v2763
      %v2834 = vunpack.c.l.b16 %v2764
      %v2835 = vunpack.c.l.b16 %v2765
      %v2836 = vunpack.c.l.b16 %v2766
      %v2837 = vunpack.c.l.b16 %v2767
      %v2838 = vunpack.c.l.b16 %v2768
      %v2839 = vunpack.c.l.b16 %v2769
      %v2840 = vunpack.c.l.b16 %v2770
      %v2841 = vunpack.c.l.b16 %v2771
      %v2842 = vunpack.c.l.b16 %v2772
      %v2843 = vunpack.c.l.b16 %v2773
      %v2844 = vunpack.c.l.b16 %v2774
      %v2845 = vunpack.c.l.b16 %v2775
      %v2846 = vunpack.c.l.b16 %v2776
      %v2847 = vunpack.c.l.b16 %v2777
      %v2848 = vunpack.c.l.b16 %v2778
      %v2849 = vunpack.c.l.b16 %v2779
      %v2850 = vunpack.c.l.b16 %v2780
      %v2851 = vunpack.c.l.b16 %v2781
      %v2852 = vpack.c.b16 %v2821, %v2820
      %v2853 = vpack.c.b16 %v2823, %v2822
      %v2854 = vpack.c.b16 %v2825, %v2824
      %v2855 = vpack.c.b16 %v2827, %v2826
      %v2856 = vpack.c.b16 %v2829, %v2828
      %v2857 = vpack.c.b16 %v2831, %v2830
      %v2858 = vpack.c.b16 %v2833, %v2832
      %v2859 = vpack.c.b16 %v2835, %v2834
      %v2860 = vpack.c.b16 %v2837, %v2836
      %v2861 = vpack.c.b16 %v2839, %v2838
      %v2862 = vpack.c.b16 %v2841, %v2840
      %v2863 = vpack.c.b16 %v2843, %v2842
      %v2864 = vpack.c.b16 %v2845, %v2844
      %v2865 = vpack.c.b16 %v2847, %v2846
      %v2866 = vpack.c.b16 %v2849, %v2848
      %v2867 = vpack.c.b16 %v2851, %v2850
      %2884 = vmatprep.subr.bf16.mxu0 0
      %2885 = vmatpush1.bf16.msra.mxu0 %v2859
      %2886 = vmatprep.subr.bf16.mxu0 0
      %2887 = vmatpush1.bf16.msra.mxu0 %v2858
      %2888 = vmatprep.subr.bf16.mxu0 0
      %2889 = vmatpush1.bf16.msra.mxu0 %v2857
      %2890 = vmatprep.subr.bf16.mxu0 0
      %2891 = vmatpush1.bf16.msra.mxu0 %v2856
      %2892 = vmatprep.subr.bf16.mxu0 0
      %2893 = vmatpush1.bf16.msra.mxu0 %v2855
      %2894 = vmatprep.subr.bf16.mxu0 0
      %2895 = vmatpush1.bf16.msra.mxu0 %v2854
      %2896 = vmatprep.subr.bf16.mxu0 0
      %2897 = vmatpush1.bf16.msra.mxu0 %v2853
      %2898 = vmatprep.subr.bf16.mxu0 0
      %2899 = vmatpush1.bf16.msra.mxu0 %v2852
      %2900 = vmatprep.subr.bf16.mxu0 0
      %2901 = vmatpush2.bf16.msra.mxu0 %v2867
      %2902 = vmatprep.subr.bf16.mxu0 0
      %2903 = vmatpush2.bf16.msra.mxu0 %v2866
      %2904 = vmatprep.subr.bf16.mxu0 0
      %2905 = vmatpush2.bf16.msra.mxu0 %v2865
      %2906 = vmatprep.subr.bf16.mxu0 0
      %2907 = vmatpush2.bf16.msra.mxu0 %v2864
      %2908 = vmatprep.subr.bf16.mxu0 0
      %2909 = vmatpush2.bf16.msra.mxu0 %v2863
      %2910 = vmatprep.subr.bf16.mxu0 0
      %2911 = vmatpush2.bf16.msra.mxu0 %v2862
      %2912 = vmatprep.subr.bf16.mxu0 0
      %2913 = vmatpush2.bf16.msra.mxu0 %v2861
      %2914 = vmatprep.subr.bf16.mxu0 0
      %2915 = vmatpush2.bf16.msra.mxu0 %v2860
      %2916 = vmatprep.mubr.bf16.mxu0 %v2785
      %2917 = vmatmul.mubr.bf16.gmra.mxu0 %v2784
      %v2918 = vpop.f32.mrf.mxu0
      %v2919 = vadd.f32 0.0, %v2918
      %v2920 = vpop.f32.mrf.mxu0
      %v2921 = vpop.f32.mrf.mxu0
      %v2922 = vpop.f32.mrf.mxu0
      %2923 = vdwg.mxu0
      %v2924 = vadd.f32 %v2748, %v2919
      %s2925 = scalar_lea.vmem %s1, 1920
      %v2926 = vld [vmem:[%s2925] sm:$0xf]
      %v2927 = vld [vmem:[%s2925 + $0x4] sm:$0xf]
      %v2928 = vld [vmem:[%s2925 + $0x8] sm:$0xf]
      %v2929 = vld [vmem:[%s2925 + $0xc] sm:$0xf]
      %v2930 = vld [vmem:[%s2925 + $0x10] sm:$0xf]
      %v2931 = vld [vmem:[%s2925 + $0x14] sm:$0xf]
      %v2932 = vld [vmem:[%s2925 + $0x18] sm:$0xf]
      %v2933 = vld [vmem:[%s2925 + $0x1c] sm:$0xf]
      %v2934 = vld [vmem:[%s2925 + $0x20] sm:$0xf]
      %v2935 = vld [vmem:[%s2925 + $0x24] sm:$0xf]
      %v2936 = vld [vmem:[%s2925 + $0x28] sm:$0xf]
      %v2937 = vld [vmem:[%s2925 + $0x2c] sm:$0xf]
      %v2938 = vld [vmem:[%s2925 + $0x30] sm:$0xf]
      %v2939 = vld [vmem:[%s2925 + $0x34] sm:$0xf]
      %v2940 = vld [vmem:[%s2925 + $0x38] sm:$0xf]
      %v2941 = vld [vmem:[%s2925 + $0x3c] sm:$0xf]
      %v2942 = vld [vmem:[%s2925 + $0x40] sm:$0xf]
      %v2943 = vld [vmem:[%s2925 + $0x44] sm:$0xf]
      %v2944 = vld [vmem:[%s2925 + $0x48] sm:$0xf]
      %v2945 = vld [vmem:[%s2925 + $0x4c] sm:$0xf]
      %v2946 = vld [vmem:[%s2925 + $0x50] sm:$0xf]
      %v2947 = vld [vmem:[%s2925 + $0x54] sm:$0xf]
      %v2948 = vld [vmem:[%s2925 + $0x58] sm:$0xf]
      %v2949 = vld [vmem:[%s2925 + $0x5c] sm:$0xf]
      %v2950 = vld [vmem:[%s2925 + $0x60] sm:$0xf]
      %v2951 = vld [vmem:[%s2925 + $0x64] sm:$0xf]
      %v2952 = vld [vmem:[%s2925 + $0x68] sm:$0xf]
      %v2953 = vld [vmem:[%s2925 + $0x6c] sm:$0xf]
      %v2954 = vld [vmem:[%s2925 + $0x70] sm:$0xf]
      %v2955 = vld [vmem:[%s2925 + $0x74] sm:$0xf]
      %v2956 = vld [vmem:[%s2925 + $0x78] sm:$0xf]
      %v2957 = vld [vmem:[%s2925 + $0x7c] sm:$0xf]
      %v2958 = vrot.slane %v2605, 1
      %v2959 = vrot.slane %v2608, 1
      %v2994 = vunpack.c.l.b16 %v2926
      %v2995 = vunpack.c.l.b16 %v2927
      %v2996 = vunpack.c.l.b16 %v2928
      %v2997 = vunpack.c.l.b16 %v2929
      %v2998 = vunpack.c.l.b16 %v2930
      %v2999 = vunpack.c.l.b16 %v2931
      %v3000 = vunpack.c.l.b16 %v2932
      %v3001 = vunpack.c.l.b16 %v2933
      %v3002 = vunpack.c.l.b16 %v2934
      %v3003 = vunpack.c.l.b16 %v2935
      %v3004 = vunpack.c.l.b16 %v2936
      %v3005 = vunpack.c.l.b16 %v2937
      %v3006 = vunpack.c.l.b16 %v2938
      %v3007 = vunpack.c.l.b16 %v2939
      %v3008 = vunpack.c.l.b16 %v2940
      %v3009 = vunpack.c.l.b16 %v2941
      %v3010 = vunpack.c.l.b16 %v2942
      %v3011 = vunpack.c.l.b16 %v2943
      %v3012 = vunpack.c.l.b16 %v2944
      %v3013 = vunpack.c.l.b16 %v2945
      %v3014 = vunpack.c.l.b16 %v2946
      %v3015 = vunpack.c.l.b16 %v2947
      %v3016 = vunpack.c.l.b16 %v2948
      %v3017 = vunpack.c.l.b16 %v2949
      %v3018 = vunpack.c.l.b16 %v2950
      %v3019 = vunpack.c.l.b16 %v2951
      %v3020 = vunpack.c.l.b16 %v2952
      %v3021 = vunpack.c.l.b16 %v2953
      %v3022 = vunpack.c.l.b16 %v2954
      %v3023 = vunpack.c.l.b16 %v2955
      %v3024 = vunpack.c.l.b16 %v2956
      %v3025 = vunpack.c.l.b16 %v2957
      %v3026 = vpack.c.b16 %v2995, %v2994
      %v3027 = vpack.c.b16 %v2997, %v2996
      %v3028 = vpack.c.b16 %v2999, %v2998
      %v3029 = vpack.c.b16 %v3001, %v3000
      %v3030 = vpack.c.b16 %v3003, %v3002
      %v3031 = vpack.c.b16 %v3005, %v3004
      %v3032 = vpack.c.b16 %v3007, %v3006
      %v3033 = vpack.c.b16 %v3009, %v3008
      %v3034 = vpack.c.b16 %v3011, %v3010
      %v3035 = vpack.c.b16 %v3013, %v3012
      %v3036 = vpack.c.b16 %v3015, %v3014
      %v3037 = vpack.c.b16 %v3017, %v3016
      %v3038 = vpack.c.b16 %v3019, %v3018
      %v3039 = vpack.c.b16 %v3021, %v3020
      %v3040 = vpack.c.b16 %v3023, %v3022
      %v3041 = vpack.c.b16 %v3025, %v3024
      %3058 = vmatprep.subr.bf16.mxu0 0
      %3059 = vmatpush1.bf16.msra.mxu0 %v3033
      %3060 = vmatprep.subr.bf16.mxu0 0
      %3061 = vmatpush1.bf16.msra.mxu0 %v3032
      %3062 = vmatprep.subr.bf16.mxu0 0
      %3063 = vmatpush1.bf16.msra.mxu0 %v3031
      %3064 = vmatprep.subr.bf16.mxu0 0
      %3065 = vmatpush1.bf16.msra.mxu0 %v3030
      %3066 = vmatprep.subr.bf16.mxu0 0
      %3067 = vmatpush1.bf16.msra.mxu0 %v3029
      %3068 = vmatprep.subr.bf16.mxu0 0
      %3069 = vmatpush1.bf16.msra.mxu0 %v3028
      %3070 = vmatprep.subr.bf16.mxu0 0
      %3071 = vmatpush1.bf16.msra.mxu0 %v3027
      %3072 = vmatprep.subr.bf16.mxu0 0
      %3073 = vmatpush1.bf16.msra.mxu0 %v3026
      %3074 = vmatprep.subr.bf16.mxu0 0
      %3075 = vmatpush2.bf16.msra.mxu0 %v3041
      %3076 = vmatprep.subr.bf16.mxu0 0
      %3077 = vmatpush2.bf16.msra.mxu0 %v3040
      %3078 = vmatprep.subr.bf16.mxu0 0
      %3079 = vmatpush2.bf16.msra.mxu0 %v3039
      %3080 = vmatprep.subr.bf16.mxu0 0
      %3081 = vmatpush2.bf16.msra.mxu0 %v3038
      %3082 = vmatprep.subr.bf16.mxu0 0
      %3083 = vmatpush2.bf16.msra.mxu0 %v3037
      %3084 = vmatprep.subr.bf16.mxu0 0
      %3085 = vmatpush2.bf16.msra.mxu0 %v3036
      %3086 = vmatprep.subr.bf16.mxu0 0
      %3087 = vmatpush2.bf16.msra.mxu0 %v3035
      %3088 = vmatprep.subr.bf16.mxu0 0
      %3089 = vmatpush2.bf16.msra.mxu0 %v3034
      %3090 = vmatprep.mubr.bf16.mxu0 %v2959
      %3091 = vmatmul.mubr.bf16.gmra.mxu0 %v2958
      %v3092 = vpop.f32.mrf.mxu0
      %v3093 = vadd.f32 0.0, %v3092
      %v3094 = vpop.f32.mrf.mxu0
      %v3095 = vpop.f32.mrf.mxu0
      %v3096 = vpop.f32.mrf.mxu0
      %3097 = vdwg.mxu0
      %v3098 = vadd.f32 %v2924, %v3093
      %v3099 = vld [vmem:[%s2] sm:$0x1]
      %v3100 = vadd.f32 %v3098, %v3099
      %3101 = vst [vmem:[%s220] sm:$0x1] %v3100
      %p3102 = scmp.lt.s32.totalorder %s16, 1
      %s3103 = scalar_select %p3102, %s16, 1
      %s3104 = scalar_lea.vmem %s5, %s3103
      // Predicated region
      $region41: #{_lambda_.7} parent=39 // pred_check
        %p3105 = pneg %p144
      $region42: #{_lambda_.7} parent=39 // pred_check_branch
        %3107 = sbr.rel (%p3105) target = $region44
      $region43: #{_lambda_.7} parent=39 // pred_region
        _
      $region44: #{_lambda_.7} parent=39 // pred_fallthru
        _
    $region40: #{_lambda_.7} parent=5 // pred_fallthru
      _
    %p3108 = scmp.le.s32.totalorder 2, %s11
    // Predicated region
    $region45: #{_lambda_.7} parent=5 // pred_check
      %p3109 = pneg %p3108
    $region46: #{_lambda_.7} parent=5 // pred_check_branch
      %3111 = sbr.rel (%p3109) target = $region48
    $region47: #{_lambda_.7} parent=5 // pred_region
      %s3112 = ssub.s32 %s11, 2
      // Predicated region
      $region49: #{_lambda_.7} parent=47 // pred_check
        %p3113 = pneg %p150
      $region50: #{_lambda_.7} parent=47 // pred_check_branch
        %3115 = sbr.rel (%p3113) target = $region52
      $region51: #{_lambda_.7} parent=47 // pred_region
        %p3116 = scmp.lt.s32.totalorder %s17, 1
        %s3117 = scalar_select %p3116, %s17, 1
        %s3118 = scalar_lea.vmem %s5, %s3117
      $region52: #{_lambda_.7} parent=47 // pred_fallthru
        _
    $region48: #{_lambda_.7} parent=5 // pred_fallthru
      _
  $region6: #{_lambda_.7} parent=0 // loop_footer
    %s15 = sadd.s32 1, %s11
  $region7: #{_lambda_.7} parent=0 // loop_footer_branch
    %10 = sbr.rel target = $region3
  $region8: #{_lambda_.7} parent=0 // loop_exit
    _

</llo_original>
